<compile_context>
chip_gen: v7x
topology: tpu7x:2x2x1
jax: 0.10.0
libtpu: 0.0.40
codegen_flags: <defaults>
</compile_context>

<pallas_src>
import functools

import numpy as np
import jax
import jax.numpy as jnp
from jax import lax
from jax.experimental import pallas as pl
from jax.experimental.pallas import tpu as pltpu

_VMEM = pl.BlockSpec(memory_space=pltpu.MemorySpace.VMEM)
_EXT = 128        # guard columns per slab side (>= Wp+1 for every stage, lane aligned)
_NEG = -1e30      # max-pool padding value (finite: safe under bf16 and 0*x)


# --------------------------- geometry helpers (host) ------------------------
def _slab_cols(n, h, w):
    return n * (h + 2) * (w + 2)


def _real_mask(n, h, w):
    """(1, R) f32: 1 at real-pixel columns, 0 on the zero-padding ring."""
    hp, wp = h + 2, w + 2
    m = np.zeros((1, n * hp * wp), np.float32)
    nn, ii, jj = np.meshgrid(np.arange(n), np.arange(h), np.arange(w), indexing="ij")
    q = nn * hp * wp + (ii + 1) * wp + (jj + 1)
    m[0, q.reshape(-1)] = 1.0
    return m


def _pool_select(n, h, w):
    """(R_in, R_out) 0/1 matrix: stride-2 centre pick + re-pad for 3x3/s2/p1 pool."""
    hp, wp = h + 2, w + 2
    ho, wo = h // 2, w // 2
    hpo, wpo = ho + 2, wo + 2
    s = np.zeros((n * hp * wp, n * hpo * wpo), np.float32)
    for nn in range(n):
        for io in range(ho):
            for jo in range(wo):
                p_in = nn * hp * wp + (2 * io + 1) * wp + (2 * jo + 1)
                p_out = nn * hpo * wpo + (io + 1) * wpo + (jo + 1)
                s[p_in, p_out] = 1.0
    return s


# ----------------------------- in-kernel helpers ----------------------------
def _conv3x3(src_ref, w_ref, b_ref, *, wp, r):
    """3x3/s1/p1 conv on the flat padded slab resident in `src_ref`.

    src_ref: (Cin, _EXT + R + _EXT) slab (zero padding ring + zero guards).
    w_ref:   (Cout, 9*Cin) bf16, columns ordered (kh, kw, ci).
    b_ref:   (Cout, 1) f32.
    Returns (Cout, R) f32 -- valid at real-pixel columns only.
    """
    taps = []
    for kh in range(3):
        for kw in range(3):
            delta = (kh - 1) * wp + (kw - 1)
            taps.append(src_ref[:, pl.ds(_EXT + delta, r)])
    patches = jnp.concatenate(taps, axis=0).astype(jnp.bfloat16)     # (9*Cin, R)
    y = jnp.dot(w_ref[...], patches, preferred_element_type=jnp.float32)
    return y + b_ref[...]


def _pool3x3_max(t_ref, *, wp, r):
    """Elementwise max over the 9 shifted views of the slab held in `t_ref`."""
    out = None
    for kh in range(3):
        for kw in range(3):
            delta = (kh - 1) * wp + (kw - 1)
            v = t_ref[:, pl.ds(_EXT + delta, r)]
            out = v if out is None else jnp.maximum(out, v)
    return out


# ------------------------------ Pallas kernels ------------------------------
def _make_block_kernel(wp_in, r_in, wp_out, r_out):
    """Fused Impala block: conv3x3 -> maxpool -> 2 residual blocks."""

    def kernel(x_ref, wc_ref, bc_ref, m1_ref, st_ref,
               w11_ref, b11_ref, w12_ref, b12_ref,
               w21_ref, b21_ref, w22_ref, b22_ref, m2_ref,
               o_ref, t_ref):
        # --- block head: conv3x3 then maxpool(3, stride 2, pad 1) -----------
        y = _conv3x3(x_ref, wc_ref, bc_ref, wp=wp_in, r=r_in)        # (Co, R_in)
        m1 = m1_ref[...]                                             # (1, R_in)
        t_ref[...] = jnp.zeros_like(t_ref)
        t_ref[:, pl.ds(_EXT, r_in)] = m1 * y + (1.0 - m1) * _NEG     # -inf-ish ring
        z = _pool3x3_max(t_ref, wp=wp_in, r=r_in)                    # (Co, R_in)
        # stride-2 centre selection + re-inserted zero padding ring, as 1 matmul
        x = jnp.dot(z.astype(jnp.bfloat16), st_ref[...],
                    preferred_element_type=jnp.float32)              # (Co, R_out)
        # --- two residual blocks; intermediates never leave VMEM ------------
        m2 = m2_ref[...]                                             # (1, R_out)
        o_ref[...] = jnp.zeros_like(o_ref)
        for w1_ref, b1_ref, w2_ref, b2_ref in (
                (w11_ref, b11_ref, w12_ref, b12_ref),
                (w21_ref, b21_ref, w22_ref, b22_ref)):
            o_ref[:, pl.ds(_EXT, r_out)] = m2 * jnp.maximum(x, 0.0)  # relu once
            h1 = _conv3x3(o_ref, w1_ref, b1_ref, wp=wp_out, r=r_out)
            o_ref[:, pl.ds(_EXT, r_out)] = m2 * jnp.maximum(h1, 0.0)
            h2 = _conv3x3(o_ref, w2_ref, b2_ref, wp=wp_out, r=r_out)
            x = h2 + x
        o_ref[:, pl.ds(_EXT, r_out)] = m2 * x   # zero-padded slab for next stage

    return kernel


def _head_kernel(x_ref, wf_ref, bf_ref, wp_ref, bp_ref, logit_ref, hid_ref):
    # torch: ReLU -> Flatten -> fc -> ReLU -> fc_policy  (ReLUs fused here).
    x = jnp.maximum(x_ref[...], 0.0).astype(jnp.bfloat16)
    h = jnp.dot(x, wf_ref[...], preferred_element_type=jnp.float32) + bf_ref[...]
    h = jnp.maximum(h, 0.0)
    hid_ref[...] = h
    logit_ref[...] = (jnp.dot(h.astype(jnp.bfloat16), wp_ref[...],
                              preferred_element_type=jnp.float32) + bp_ref[...])


# ------------------------------ JAX wrappers --------------------------------
def _prep_conv(p, cin_rows):
    """OIHW conv weight -> (Cout, 9*cin_rows) bf16 (columns ordered kh, kw, ci)."""
    w = p["w"]
    cout, cin = w.shape[0], w.shape[1]
    if cin_rows != cin:
        w = jnp.pad(w, ((0, 0), (0, cin_rows - cin), (0, 0), (0, 0)))
    wm = jnp.transpose(w, (0, 2, 3, 1)).reshape(cout, 9 * cin_rows)
    return wm.astype(jnp.bfloat16), p["b"].reshape(cout, 1).astype(jnp.float32)


def _block_forward(slab, bp, n, h, w):
    cout = bp["conv"]["w"].shape[0]
    cin_rows = slab.shape[0]
    wp_in, r_in = w + 2, _slab_cols(n, h, w)
    ho, wo = h // 2, w // 2
    wp_out, r_out = wo + 2, _slab_cols(n, ho, wo)

    wc, bc = _prep_conv(bp["conv"], cin_rows)
    w11, b11 = _prep_conv(bp["res1"]["conv1"], cout)
    w12, b12 = _prep_conv(bp["res1"]["conv2"], cout)
    w21, b21 = _prep_conv(bp["res2"]["conv1"], cout)
    w22, b22 = _prep_conv(bp["res2"]["conv2"], cout)
    m1 = jnp.asarray(_real_mask(n, h, w))
    m2 = jnp.asarray(_real_mask(n, ho, wo))
    st = jnp.asarray(_pool_select(n, h, w), dtype=jnp.bfloat16)

    return pl.pallas_call(
        _make_block_kernel(wp_in, r_in, wp_out, r_out),
        out_shape=jax.ShapeDtypeStruct((cout, r_out + 2 * _EXT), jnp.float32),
        in_specs=[_VMEM] * 14,
        out_specs=_VMEM,
        scratch_shapes=[pltpu.VMEM((cout, r_in + 2 * _EXT), jnp.float32)],
    )(slab, wc, bc, m1, st, w11, b11, w12, b12, w21, b21, w22, b22, m2)


def impala_policy_forward(params, obs_nchw, ret_hidden=False):
    """ImpalaPolicyModel.forward.  obs_nchw: (N, C, H, W) float32."""
    # TODO(synk): torch.is_tensor()/.to(device) host-side conversion has no
    # kernel equivalent; inputs are assumed to already be jnp arrays.
    obs = obs_nchw.astype(jnp.float32)
    n, c, h, w = obs.shape
    assert h % 8 == 0 and w % 8 == 0, "three 3x3/s2/p1 pools need H, W % 8 == 0"
    hp, wp = h + 2, w + 2
    c_rows = -(-c // 8) * 8                     # sublane-align the input channels
    xp = jnp.pad(obs, ((0, 0), (0, 0), (1, 1), (1, 1)))
    slab = jnp.transpose(xp, (1, 0, 2, 3)).reshape(c, n * hp * wp)
    slab = jnp.pad(slab, ((0, c_rows - c), (_EXT, _EXT)))

    cur_h, cur_w = h, w
    for bp in params["blocks"]:
        slab = _block_forward(slab, bp, n, cur_h, cur_w)
        cur_h, cur_w = cur_h // 2, cur_w // 2

    # Extract real pixels and flatten in NHWC order.  No activation transpose:
    # the fc weight columns are permuted once (weight-side) instead.
    c_out = slab.shape[0]
    hpf, wpf = cur_h + 2, cur_w + 2
    core = slab[:, _EXT:_EXT + n * hpf * wpf].reshape(c_out, n, hpf, wpf)
    core = core[:, :, 1:1 + cur_h, 1:1 + cur_w]                    # (C, N, H, W)
    flat = jnp.transpose(core, (1, 2, 3, 0)).reshape(n, cur_h * cur_w * c_out)

    w_fc = params["fc"]["w"]                                       # (256, C*H*W) NCHW order
    dh = w_fc.shape[0]
    w_fc = (w_fc.reshape(dh, c_out, cur_h, cur_w)
            .transpose(0, 2, 3, 1).reshape(dh, -1).T).astype(jnp.bfloat16)
    b_fc = params["fc"]["b"].reshape(1, dh).astype(jnp.float32)
    w_pi = params["fc_policy"]["w"].T.astype(jnp.bfloat16)         # (256, A)
    b_pi = params["fc_policy"]["b"].reshape(1, -1).astype(jnp.float32)
    n_act = w_pi.shape[1]

    logit, hidden = pl.pallas_call(
        _head_kernel,
        out_shape=(jax.ShapeDtypeStruct((n, n_act), jnp.float32),
                   jax.ShapeDtypeStruct((n, dh), jnp.float32)),
        in_specs=[_VMEM] * 5,
        out_specs=(_VMEM, _VMEM),
    )(flat, w_fc, b_fc, w_pi, b_pi)
    if ret_hidden:
        return logit, hidden
    return logit


# ------------------------ deterministic parameter init ----------------------
def init_params(key, obs_shape, n_actions):
    c, h, w = obs_shape
    chans = (16, 32, 32)                 # ImpalaModel block widths (scale=1)
    keys = iter(jax.random.split(key, 32))

    def conv_p(cin, cout):
        return {"w": jax.random.normal(next(keys), (cout, cin, 3, 3), jnp.float32)
                      * (1.0 / jnp.sqrt(9.0 * cin)),
                "b": jnp.zeros((cout,), jnp.float32)}

    def linear_p(din, dout, gain=1.0):
        return {"w": jax.random.normal(next(keys), (dout, din), jnp.float32)
                      * (gain / jnp.sqrt(float(din))),
                "b": jnp.zeros((dout,), jnp.float32)}

    blocks = []
    cin = c
    for cout in chans:
        blocks.append({
            "conv": conv_p(cin, cout),
            "res1": {"conv1": conv_p(cout, cout), "conv2": conv_p(cout, cout)},
            "res2": {"conv1": conv_p(cout, cout), "conv2": conv_p(cout, cout)},
        })
        cin = cout
    flat_dim = chans[-1] * (h // 8) * (w // 8)   # three 3x3/s2/p1 max-pools
    hidden_dim = 256                             # ImpalaModel.output_dim
    # TODO(synk): orthogonal_init(gain) replaced by deterministic scaled-normal
    # init; this is a synthetic-weight kernel, not a checkpoint load.
    return {"blocks": blocks,
            "fc": linear_p(flat_dim, hidden_dim),
            "fc_policy": linear_p(hidden_dim, n_actions, gain=0.01)}


# ------------------------------ pure-JAX reference --------------------------
def _conv_ref(x, w_oihw, b):
    w_hwio = jnp.transpose(w_oihw, (2, 3, 1, 0))
    y = lax.conv_general_dilated(
        x, w_hwio, window_strides=(1, 1), padding=((1, 1), (1, 1)),
        dimension_numbers=("NHWC", "HWIO", "NHWC"))
    return y + b.reshape(1, 1, 1, -1)


def _pool_ref(x):
    return lax.reduce_window(
        x, -jnp.inf, lax.max, (1, 3, 3, 1), (1, 2, 2, 1),
        padding=((0, 0), (1, 1), (1, 1), (0, 0)))


def impala_policy_reference(params, obs_nchw, ret_hidden=False):
    x = jnp.transpose(obs_nchw.astype(jnp.float32), (0, 2, 3, 1))
    for bp in params["blocks"]:
        x = _conv_ref(x, bp["conv"]["w"], bp["conv"]["b"])
        x = _pool_ref(x)
        for rb in ("res1", "res2"):
            h1 = _conv_ref(jax.nn.relu(x), bp[rb]["conv1"]["w"], bp[rb]["conv1"]["b"])
            x = _conv_ref(jax.nn.relu(h1), bp[rb]["conv2"]["w"], bp[rb]["conv2"]["b"]) + x
    n = x.shape[0]
    flat = jnp.transpose(jax.nn.relu(x), (0, 3, 1, 2)).reshape(n, -1)
    hidden = jax.nn.relu(flat @ params["fc"]["w"].T + params["fc"]["b"])
    logit = hidden @ params["fc_policy"]["w"].T + params["fc_policy"]["b"]
    if ret_hidden:
        return logit, hidden
    return logit


# ----------------------------------- main ------------------------------------
if __name__ == "__main__":
    key = jax.random.PRNGKey(0)
    k_params, k_obs = jax.random.split(key)

    obs_shape = (3, 16, 16)          # env.obs_shape = (C, H, W)
    n_actions = 15                   # env.action_space.n
    batch = 2

    params = init_params(k_params, obs_shape, n_actions)
    obs = jax.random.uniform(k_obs, (batch,) + obs_shape, dtype=jnp.float32)

    fwd = jax.jit(functools.partial(impala_policy_forward, ret_hidden=True))
    logit, hidden = fwd(params, obs)
    logit = jax.block_until_ready(logit)
    hidden = jax.block_until_ready(hidden)

    assert logit.shape == (batch, n_actions) and logit.dtype == jnp.float32
    assert hidden.shape == (batch, 256) and hidden.dtype == jnp.float32

    ref_logit, ref_hidden = impala_policy_reference(params, obs, ret_hidden=True)
    # bf16 MXU inputs (f32 accumulation) through 15 convs + 2 fcs: keep a small
    # absolute margin on top of the relative tolerance.
    assert jnp.allclose(hidden, ref_hidden, rtol=3e-2, atol=2e-2), \
        float(jnp.max(jnp.abs(hidden - ref_hidden)))
    assert jnp.allclose(logit, ref_logit, rtol=3e-2, atol=2e-3), \
        float(jnp.max(jnp.abs(logit - ref_logit)))

    print("KERNEL_OK")
</pallas_src>

<mosaic_0001>
module attributes {stable_mosaic.version = 11 : i64} {
  func.func @kernel(%arg0: memref<8x904xf32, #tpu.memory_space<vmem>>, %arg1: memref<16x72xbf16, #tpu.memory_space<vmem>>, %arg2: memref<16x1xf32, #tpu.memory_space<vmem>>, %arg3: memref<1x648xf32, #tpu.memory_space<vmem>>, %arg4: memref<648x200xbf16, #tpu.memory_space<vmem>>, %arg5: memref<16x144xbf16, #tpu.memory_space<vmem>>, %arg6: memref<16x1xf32, #tpu.memory_space<vmem>>, %arg7: memref<16x144xbf16, #tpu.memory_space<vmem>>, %arg8: memref<16x1xf32, #tpu.memory_space<vmem>>, %arg9: memref<16x144xbf16, #tpu.memory_space<vmem>>, %arg10: memref<16x1xf32, #tpu.memory_space<vmem>>, %arg11: memref<16x144xbf16, #tpu.memory_space<vmem>>, %arg12: memref<16x1xf32, #tpu.memory_space<vmem>>, %arg13: memref<1x200xf32, #tpu.memory_space<vmem>>, %arg14: memref<16x456xf32, #tpu.memory_space<vmem>>, %arg15: memref<16x904xf32, #tpu.memory_space<vmem>>) attributes {dimension_semantics = [], scalar_prefetch = 0 : i64, scratch_operands = 1 : i64, tpu.core_type = #tpu.core_type<tc>} {
    %c0 = arith.constant 0 : index
    %c109 = arith.constant 109 : index
    %0 = vector.load %arg0[%c0, %c109] : memref<8x904xf32, #tpu.memory_space<vmem>>, vector<8x648xf32>
    %c0_0 = arith.constant 0 : index
    %c110 = arith.constant 110 : index
    %1 = vector.load %arg0[%c0_0, %c110] : memref<8x904xf32, #tpu.memory_space<vmem>>, vector<8x648xf32>
    %c0_1 = arith.constant 0 : index
    %c111 = arith.constant 111 : index
    %2 = vector.load %arg0[%c0_1, %c111] : memref<8x904xf32, #tpu.memory_space<vmem>>, vector<8x648xf32>
    %c0_2 = arith.constant 0 : index
    %c127 = arith.constant 127 : index
    %3 = vector.load %arg0[%c0_2, %c127] : memref<8x904xf32, #tpu.memory_space<vmem>>, vector<8x648xf32>
    %c0_3 = arith.constant 0 : index
    %c128 = arith.constant 128 : index
    %4 = vector.load %arg0[%c0_3, %c128] : memref<8x904xf32, #tpu.memory_space<vmem>>, vector<8x648xf32>
    %c0_4 = arith.constant 0 : index
    %c129 = arith.constant 129 : index
    %5 = vector.load %arg0[%c0_4, %c129] : memref<8x904xf32, #tpu.memory_space<vmem>>, vector<8x648xf32>
    %c0_5 = arith.constant 0 : index
    %c145 = arith.constant 145 : index
    %6 = vector.load %arg0[%c0_5, %c145] : memref<8x904xf32, #tpu.memory_space<vmem>>, vector<8x648xf32>
    %c0_6 = arith.constant 0 : index
    %c146 = arith.constant 146 : index
    %7 = vector.load %arg0[%c0_6, %c146] : memref<8x904xf32, #tpu.memory_space<vmem>>, vector<8x648xf32>
    %c0_7 = arith.constant 0 : index
    %c147 = arith.constant 147 : index
    %8 = vector.load %arg0[%c0_7, %c147] : memref<8x904xf32, #tpu.memory_space<vmem>>, vector<8x648xf32>
    %9 = tpu.concatenate %0, %1, %2, %3, %4, %5, %6, %7, %8 in 0 : vector<8x648xf32>, vector<8x648xf32>, vector<8x648xf32>, vector<8x648xf32>, vector<8x648xf32>, vector<8x648xf32>, vector<8x648xf32>, vector<8x648xf32>, vector<8x648xf32> -> vector<72x648xf32>
    %10 = arith.truncf %9 : vector<72x648xf32> to vector<72x648xbf16>
    %c0_8 = arith.constant 0 : index
    %c0_9 = arith.constant 0 : index
    %11 = vector.load %arg1[%c0_8, %c0_9] : memref<16x72xbf16, #tpu.memory_space<vmem>>, vector<16x72xbf16>
    %cst = arith.constant dense<0.000000e+00> : vector<16x648xf32>
    %12 = tpu.matmul %11, %10, %cst {dimension_numbers = #tpu.dot_dimension_numbers<[1], [0], [0], [1], [0, 0, 1, 1], [], []>} : vector<16x72xbf16>, vector<72x648xbf16>, vector<16x648xf32> -> vector<16x648xf32>
    %c0_10 = arith.constant 0 : index
    %c0_11 = arith.constant 0 : index
    %13 = vector.load %arg2[%c0_10, %c0_11] : memref<16x1xf32, #tpu.memory_space<vmem>>, vector<16x1xf32>
    %14 = vector.broadcast %13 : vector<16x1xf32> to vector<16x648xf32>
    %15 = arith.addf %12, %14 : vector<16x648xf32>
    %c0_12 = arith.constant 0 : index
    %c0_13 = arith.constant 0 : index
    %16 = vector.load %arg3[%c0_12, %c0_13] : memref<1x648xf32, #tpu.memory_space<vmem>>, vector<1x648xf32>
    %cst_14 = arith.constant 0.000000e+00 : f32
    %17 = vector.broadcast %cst_14 : f32 to vector<16x904xf32>
    %c0_15 = arith.constant 0 : index
    %c0_16 = arith.constant 0 : index
    %18 = vector.load %arg15[%c0_15, %c0_16] : memref<16x904xf32, #tpu.memory_space<vmem>>, vector<16x904xf32>
    tpu.vector_store %arg15[%c0_15, %c0_16], %17 {strides = array<i32>} : memref<16x904xf32, #tpu.memory_space<vmem>>, vector<16x904xf32>,
    %19 = vector.broadcast %16 : vector<1x648xf32> to vector<16x648xf32>
    %20 = arith.mulf %19, %15 : vector<16x648xf32>
    %cst_17 = arith.constant 1.000000e+00 : f32
    %21 = vector.broadcast %cst_17 : f32 to vector<1x648xf32>
    %22 = arith.subf %21, %16 : vector<1x648xf32>
    %cst_18 = arith.constant -1.000000e+30 : f32
    %23 = vector.broadcast %cst_18 : f32 to vector<1x648xf32>
    %24 = arith.mulf %22, %23 : vector<1x648xf32>
    %25 = vector.broadcast %24 : vector<1x648xf32> to vector<16x648xf32>
    %26 = arith.addf %20, %25 : vector<16x648xf32>
    %c0_19 = arith.constant 0 : index
    %c128_20 = arith.constant 128 : index
    %27 = vector.load %arg15[%c0_19, %c128_20] : memref<16x904xf32, #tpu.memory_space<vmem>>, vector<16x648xf32>
    tpu.vector_store %arg15[%c0_19, %c128_20], %26 {strides = array<i32>} : memref<16x904xf32, #tpu.memory_space<vmem>>, vector<16x648xf32>,
    %c0_21 = arith.constant 0 : index
    %c109_22 = arith.constant 109 : index
    %28 = vector.load %arg15[%c0_21, %c109_22] : memref<16x904xf32, #tpu.memory_space<vmem>>, vector<16x648xf32>
    %c0_23 = arith.constant 0 : index
    %c110_24 = arith.constant 110 : index
    %29 = vector.load %arg15[%c0_23, %c110_24] : memref<16x904xf32, #tpu.memory_space<vmem>>, vector<16x648xf32>
    %30 = arith.maximumf %28, %29 : vector<16x648xf32>
    %c0_25 = arith.constant 0 : index
    %c111_26 = arith.constant 111 : index
    %31 = vector.load %arg15[%c0_25, %c111_26] : memref<16x904xf32, #tpu.memory_space<vmem>>, vector<16x648xf32>
    %32 = arith.maximumf %30, %31 : vector<16x648xf32>
    %c0_27 = arith.constant 0 : index
    %c127_28 = arith.constant 127 : index
    %33 = vector.load %arg15[%c0_27, %c127_28] : memref<16x904xf32, #tpu.memory_space<vmem>>, vector<16x648xf32>
    %34 = arith.maximumf %32, %33 : vector<16x648xf32>
    %c0_29 = arith.constant 0 : index
    %c128_30 = arith.constant 128 : index
    %35 = vector.load %arg15[%c0_29, %c128_30] : memref<16x904xf32, #tpu.memory_space<vmem>>, vector<16x648xf32>
    %36 = arith.maximumf %34, %35 : vector<16x648xf32>
    %c0_31 = arith.constant 0 : index
    %c129_32 = arith.constant 129 : index
    %37 = vector.load %arg15[%c0_31, %c129_32] : memref<16x904xf32, #tpu.memory_space<vmem>>, vector<16x648xf32>
    %38 = arith.maximumf %36, %37 : vector<16x648xf32>
    %c0_33 = arith.constant 0 : index
    %c145_34 = arith.constant 145 : index
    %39 = vector.load %arg15[%c0_33, %c145_34] : memref<16x904xf32, #tpu.memory_space<vmem>>, vector<16x648xf32>
    %40 = arith.maximumf %38, %39 : vector<16x648xf32>
    %c0_35 = arith.constant 0 : index
    %c146_36 = arith.constant 146 : index
    %41 = vector.load %arg15[%c0_35, %c146_36] : memref<16x904xf32, #tpu.memory_space<vmem>>, vector<16x648xf32>
    %42 = arith.maximumf %40, %41 : vector<16x648xf32>
    %c0_37 = arith.constant 0 : index
    %c147_38 = arith.constant 147 : index
    %43 = vector.load %arg15[%c0_37, %c147_38] : memref<16x904xf32, #tpu.memory_space<vmem>>, vector<16x648xf32>
    %44 = arith.maximumf %42, %43 : vector<16x648xf32>
    %45 = arith.truncf %44 : vector<16x648xf32> to vector<16x648xbf16>
    %c0_39 = arith.constant 0 : index
    %c0_40 = arith.constant 0 : index
    %46 = vector.load %arg4[%c0_39, %c0_40] : memref<648x200xbf16, #tpu.memory_space<vmem>>, vector<648x200xbf16>
    %cst_41 = arith.constant dense<0.000000e+00> : vector<16x200xf32>
    %47 = tpu.matmul %45, %46, %cst_41 {dimension_numbers = #tpu.dot_dimension_numbers<[1], [0], [0], [1], [0, 0, 1, 1], [], []>} : vector<16x648xbf16>, vector<648x200xbf16>, vector<16x200xf32> -> vector<16x200xf32>
    %c0_42 = arith.constant 0 : index
    %c0_43 = arith.constant 0 : index
    %48 = vector.load %arg13[%c0_42, %c0_43] : memref<1x200xf32, #tpu.memory_space<vmem>>, vector<1x200xf32>
    %cst_44 = arith.constant 0.000000e+00 : f32
    %49 = vector.broadcast %cst_44 : f32 to vector<16x456xf32>
    %c0_45 = arith.constant 0 : index
    %c0_46 = arith.constant 0 : index
    %50 = vector.load %arg14[%c0_45, %c0_46] : memref<16x456xf32, #tpu.memory_space<vmem>>, vector<16x456xf32>
    tpu.vector_store %arg14[%c0_45, %c0_46], %49 {strides = array<i32>} : memref<16x456xf32, #tpu.memory_space<vmem>>, vector<16x456xf32>,
    %cst_47 = arith.constant 0.000000e+00 : f32
    %51 = vector.broadcast %cst_47 : f32 to vector<16x200xf32>
    %52 = arith.maximumf %47, %51 : vector<16x200xf32>
    %53 = vector.broadcast %48 : vector<1x200xf32> to vector<16x200xf32>
    %54 = arith.mulf %53, %52 : vector<16x200xf32>
    %c0_48 = arith.constant 0 : index
    %c128_49 = arith.constant 128 : index
    %55 = vector.load %arg14[%c0_48, %c128_49] : memref<16x456xf32, #tpu.memory_space<vmem>>, vector<16x200xf32>
    tpu.vector_store %arg14[%c0_48, %c128_49], %54 {strides = array<i32>} : memref<16x456xf32, #tpu.memory_space<vmem>>, vector<16x200xf32>,
    %c0_50 = arith.constant 0 : index
    %c117 = arith.constant 117 : index
    %56 = vector.load %arg14[%c0_50, %c117] : memref<16x456xf32, #tpu.memory_space<vmem>>, vector<16x200xf32>
    %c0_51 = arith.constant 0 : index
    %c118 = arith.constant 118 : index
    %57 = vector.load %arg14[%c0_51, %c118] : memref<16x456xf32, #tpu.memory_space<vmem>>, vector<16x200xf32>
    %c0_52 = arith.constant 0 : index
    %c119 = arith.constant 119 : index
    %58 = vector.load %arg14[%c0_52, %c119] : memref<16x456xf32, #tpu.memory_space<vmem>>, vector<16x200xf32>
    %c0_53 = arith.constant 0 : index
    %c127_54 = arith.constant 127 : index
    %59 = vector.load %arg14[%c0_53, %c127_54] : memref<16x456xf32, #tpu.memory_space<vmem>>, vector<16x200xf32>
    %c0_55 = arith.constant 0 : index
    %c128_56 = arith.constant 128 : index
    %60 = vector.load %arg14[%c0_55, %c128_56] : memref<16x456xf32, #tpu.memory_space<vmem>>, vector<16x200xf32>
    %c0_57 = arith.constant 0 : index
    %c129_58 = arith.constant 129 : index
    %61 = vector.load %arg14[%c0_57, %c129_58] : memref<16x456xf32, #tpu.memory_space<vmem>>, vector<16x200xf32>
    %c0_59 = arith.constant 0 : index
    %c137 = arith.constant 137 : index
    %62 = vector.load %arg14[%c0_59, %c137] : memref<16x456xf32, #tpu.memory_space<vmem>>, vector<16x200xf32>
    %c0_60 = arith.constant 0 : index
    %c138 = arith.constant 138 : index
    %63 = vector.load %arg14[%c0_60, %c138] : memref<16x456xf32, #tpu.memory_space<vmem>>, vector<16x200xf32>
    %c0_61 = arith.constant 0 : index
    %c139 = arith.constant 139 : index
    %64 = vector.load %arg14[%c0_61, %c139] : memref<16x456xf32, #tpu.memory_space<vmem>>, vector<16x200xf32>
    %65 = tpu.concatenate %56, %57, %58, %59, %60, %61, %62, %63, %64 in 0 : vector<16x200xf32>, vector<16x200xf32>, vector<16x200xf32>, vector<16x200xf32>, vector<16x200xf32>, vector<16x200xf32>, vector<16x200xf32>, vector<16x200xf32>, vector<16x200xf32> -> vector<144x200xf32>
    %66 = arith.truncf %65 : vector<144x200xf32> to vector<144x200xbf16>
    %c0_62 = arith.constant 0 : index
    %c0_63 = arith.constant 0 : index
    %67 = vector.load %arg5[%c0_62, %c0_63] : memref<16x144xbf16, #tpu.memory_space<vmem>>, vector<16x144xbf16>
    %cst_64 = arith.constant dense<0.000000e+00> : vector<16x200xf32>
    %68 = tpu.matmul %67, %66, %cst_64 {dimension_numbers = #tpu.dot_dimension_numbers<[1], [0], [0], [1], [0, 0, 1, 1], [], []>} : vector<16x144xbf16>, vector<144x200xbf16>, vector<16x200xf32> -> vector<16x200xf32>
    %c0_65 = arith.constant 0 : index
    %c0_66 = arith.constant 0 : index
    %69 = vector.load %arg6[%c0_65, %c0_66] : memref<16x1xf32, #tpu.memory_space<vmem>>, vector<16x1xf32>
    %70 = vector.broadcast %69 : vector<16x1xf32> to vector<16x200xf32>
    %71 = arith.addf %68, %70 : vector<16x200xf32>
    %cst_67 = arith.constant 0.000000e+00 : f32
    %72 = vector.broadcast %cst_67 : f32 to vector<16x200xf32>
    %73 = arith.maximumf %71, %72 : vector<16x200xf32>
    %74 = vector.broadcast %48 : vector<1x200xf32> to vector<16x200xf32>
    %75 = arith.mulf %74, %73 : vector<16x200xf32>
    %c0_68 = arith.constant 0 : index
    %c128_69 = arith.constant 128 : index
    %76 = vector.load %arg14[%c0_68, %c128_69] : memref<16x456xf32, #tpu.memory_space<vmem>>, vector<16x200xf32>
    tpu.vector_store %arg14[%c0_68, %c128_69], %75 {strides = array<i32>} : memref<16x456xf32, #tpu.memory_space<vmem>>, vector<16x200xf32>,
    %c0_70 = arith.constant 0 : index
    %c117_71 = arith.constant 117 : index
    %77 = vector.load %arg14[%c0_70, %c117_71] : memref<16x456xf32, #tpu.memory_space<vmem>>, vector<16x200xf32>
    %c0_72 = arith.constant 0 : index
    %c118_73 = arith.constant 118 : index
    %78 = vector.load %arg14[%c0_72, %c118_73] : memref<16x456xf32, #tpu.memory_space<vmem>>, vector<16x200xf32>
    %c0_74 = arith.constant 0 : index
    %c119_75 = arith.constant 119 : index
    %79 = vector.load %arg14[%c0_74, %c119_75] : memref<16x456xf32, #tpu.memory_space<vmem>>, vector<16x200xf32>
    %c0_76 = arith.constant 0 : index
    %c127_77 = arith.constant 127 : index
    %80 = vector.load %arg14[%c0_76, %c127_77] : memref<16x456xf32, #tpu.memory_space<vmem>>, vector<16x200xf32>
    %c0_78 = arith.constant 0 : index
    %c128_79 = arith.constant 128 : index
    %81 = vector.load %arg14[%c0_78, %c128_79] : memref<16x456xf32, #tpu.memory_space<vmem>>, vector<16x200xf32>
    %c0_80 = arith.constant 0 : index
    %c129_81 = arith.constant 129 : index
    %82 = vector.load %arg14[%c0_80, %c129_81] : memref<16x456xf32, #tpu.memory_space<vmem>>, vector<16x200xf32>
    %c0_82 = arith.constant 0 : index
    %c137_83 = arith.constant 137 : index
    %83 = vector.load %arg14[%c0_82, %c137_83] : memref<16x456xf32, #tpu.memory_space<vmem>>, vector<16x200xf32>
    %c0_84 = arith.constant 0 : index
    %c138_85 = arith.constant 138 : index
    %84 = vector.load %arg14[%c0_84, %c138_85] : memref<16x456xf32, #tpu.memory_space<vmem>>, vector<16x200xf32>
    %c0_86 = arith.constant 0 : index
    %c139_87 = arith.constant 139 : index
    %85 = vector.load %arg14[%c0_86, %c139_87] : memref<16x456xf32, #tpu.memory_space<vmem>>, vector<16x200xf32>
    %86 = tpu.concatenate %77, %78, %79, %80, %81, %82, %83, %84, %85 in 0 : vector<16x200xf32>, vector<16x200xf32>, vector<16x200xf32>, vector<16x200xf32>, vector<16x200xf32>, vector<16x200xf32>, vector<16x200xf32>, vector<16x200xf32>, vector<16x200xf32> -> vector<144x200xf32>
    %87 = arith.truncf %86 : vector<144x200xf32> to vector<144x200xbf16>
    %c0_88 = arith.constant 0 : index
    %c0_89 = arith.constant 0 : index
    %88 = vector.load %arg7[%c0_88, %c0_89] : memref<16x144xbf16, #tpu.memory_space<vmem>>, vector<16x144xbf16>
    %cst_90 = arith.constant dense<0.000000e+00> : vector<16x200xf32>
    %89 = tpu.matmul %88, %87, %cst_90 {dimension_numbers = #tpu.dot_dimension_numbers<[1], [0], [0], [1], [0, 0, 1, 1], [], []>} : vector<16x144xbf16>, vector<144x200xbf16>, vector<16x200xf32> -> vector<16x200xf32>
    %c0_91 = arith.constant 0 : index
    %c0_92 = arith.constant 0 : index
    %90 = vector.load %arg8[%c0_91, %c0_92] : memref<16x1xf32, #tpu.memory_space<vmem>>, vector<16x1xf32>
    %91 = vector.broadcast %90 : vector<16x1xf32> to vector<16x200xf32>
    %92 = arith.addf %89, %91 : vector<16x200xf32>
    %93 = arith.addf %92, %47 : vector<16x200xf32>
    %cst_93 = arith.constant 0.000000e+00 : f32
    %94 = vector.broadcast %cst_93 : f32 to vector<16x200xf32>
    %95 = arith.maximumf %93, %94 : vector<16x200xf32>
    %96 = vector.broadcast %48 : vector<1x200xf32> to vector<16x200xf32>
    %97 = arith.mulf %96, %95 : vector<16x200xf32>
    %c0_94 = arith.constant 0 : index
    %c128_95 = arith.constant 128 : index
    %98 = vector.load %arg14[%c0_94, %c128_95] : memref<16x456xf32, #tpu.memory_space<vmem>>, vector<16x200xf32>
    tpu.vector_store %arg14[%c0_94, %c128_95], %97 {strides = array<i32>} : memref<16x456xf32, #tpu.memory_space<vmem>>, vector<16x200xf32>,
    %c0_96 = arith.constant 0 : index
    %c117_97 = arith.constant 117 : index
    %99 = vector.load %arg14[%c0_96, %c117_97] : memref<16x456xf32, #tpu.memory_space<vmem>>, vector<16x200xf32>
    %c0_98 = arith.constant 0 : index
    %c118_99 = arith.constant 118 : index
    %100 = vector.load %arg14[%c0_98, %c118_99] : memref<16x456xf32, #tpu.memory_space<vmem>>, vector<16x200xf32>
    %c0_100 = arith.constant 0 : index
    %c119_101 = arith.constant 119 : index
    %101 = vector.load %arg14[%c0_100, %c119_101] : memref<16x456xf32, #tpu.memory_space<vmem>>, vector<16x200xf32>
    %c0_102 = arith.constant 0 : index
    %c127_103 = arith.constant 127 : index
    %102 = vector.load %arg14[%c0_102, %c127_103] : memref<16x456xf32, #tpu.memory_space<vmem>>, vector<16x200xf32>
    %c0_104 = arith.constant 0 : index
    %c128_105 = arith.constant 128 : index
    %103 = vector.load %arg14[%c0_104, %c128_105] : memref<16x456xf32, #tpu.memory_space<vmem>>, vector<16x200xf32>
    %c0_106 = arith.constant 0 : index
    %c129_107 = arith.constant 129 : index
    %104 = vector.load %arg14[%c0_106, %c129_107] : memref<16x456xf32, #tpu.memory_space<vmem>>, vector<16x200xf32>
    %c0_108 = arith.constant 0 : index
    %c137_109 = arith.constant 137 : index
    %105 = vector.load %arg14[%c0_108, %c137_109] : memref<16x456xf32, #tpu.memory_space<vmem>>, vector<16x200xf32>
    %c0_110 = arith.constant 0 : index
    %c138_111 = arith.constant 138 : index
    %106 = vector.load %arg14[%c0_110, %c138_111] : memref<16x456xf32, #tpu.memory_space<vmem>>, vector<16x200xf32>
    %c0_112 = arith.constant 0 : index
    %c139_113 = arith.constant 139 : index
    %107 = vector.load %arg14[%c0_112, %c139_113] : memref<16x456xf32, #tpu.memory_space<vmem>>, vector<16x200xf32>
    %108 = tpu.concatenate %99, %100, %101, %102, %103, %104, %105, %106, %107 in 0 : vector<16x200xf32>, vector<16x200xf32>, vector<16x200xf32>, vector<16x200xf32>, vector<16x200xf32>, vector<16x200xf32>, vector<16x200xf32>, vector<16x200xf32>, vector<16x200xf32> -> vector<144x200xf32>
    %109 = arith.truncf %108 : vector<144x200xf32> to vector<144x200xbf16>
    %c0_114 = arith.constant 0 : index
    %c0_115 = arith.constant 0 : index
    %110 = vector.load %arg9[%c0_114, %c0_115] : memref<16x144xbf16, #tpu.memory_space<vmem>>, vector<16x144xbf16>
    %cst_116 = arith.constant dense<0.000000e+00> : vector<16x200xf32>
    %111 = tpu.matmul %110, %109, %cst_116 {dimension_numbers = #tpu.dot_dimension_numbers<[1], [0], [0], [1], [0, 0, 1, 1], [], []>} : vector<16x144xbf16>, vector<144x200xbf16>, vector<16x200xf32> -> vector<16x200xf32>
    %c0_117 = arith.constant 0 : index
    %c0_118 = arith.constant 0 : index
    %112 = vector.load %arg10[%c0_117, %c0_118] : memref<16x1xf32, #tpu.memory_space<vmem>>, vector<16x1xf32>
    %113 = vector.broadcast %112 : vector<16x1xf32> to vector<16x200xf32>
    %114 = arith.addf %111, %113 : vector<16x200xf32>
    %cst_119 = arith.constant 0.000000e+00 : f32
    %115 = vector.broadcast %cst_119 : f32 to vector<16x200xf32>
    %116 = arith.maximumf %114, %115 : vector<16x200xf32>
    %117 = vector.broadcast %48 : vector<1x200xf32> to vector<16x200xf32>
    %118 = arith.mulf %117, %116 : vector<16x200xf32>
    %c0_120 = arith.constant 0 : index
    %c128_121 = arith.constant 128 : index
    %119 = vector.load %arg14[%c0_120, %c128_121] : memref<16x456xf32, #tpu.memory_space<vmem>>, vector<16x200xf32>
    tpu.vector_store %arg14[%c0_120, %c128_121], %118 {strides = array<i32>} : memref<16x456xf32, #tpu.memory_space<vmem>>, vector<16x200xf32>,
    %c0_122 = arith.constant 0 : index
    %c117_123 = arith.constant 117 : index
    %120 = vector.load %arg14[%c0_122, %c117_123] : memref<16x456xf32, #tpu.memory_space<vmem>>, vector<16x200xf32>
    %c0_124 = arith.constant 0 : index
    %c118_125 = arith.constant 118 : index
    %121 = vector.load %arg14[%c0_124, %c118_125] : memref<16x456xf32, #tpu.memory_space<vmem>>, vector<16x200xf32>
    %c0_126 = arith.constant 0 : index
    %c119_127 = arith.constant 119 : index
    %122 = vector.load %arg14[%c0_126, %c119_127] : memref<16x456xf32, #tpu.memory_space<vmem>>, vector<16x200xf32>
    %c0_128 = arith.constant 0 : index
    %c127_129 = arith.constant 127 : index
    %123 = vector.load %arg14[%c0_128, %c127_129] : memref<16x456xf32, #tpu.memory_space<vmem>>, vector<16x200xf32>
    %c0_130 = arith.constant 0 : index
    %c128_131 = arith.constant 128 : index
    %124 = vector.load %arg14[%c0_130, %c128_131] : memref<16x456xf32, #tpu.memory_space<vmem>>, vector<16x200xf32>
    %c0_132 = arith.constant 0 : index
    %c129_133 = arith.constant 129 : index
    %125 = vector.load %arg14[%c0_132, %c129_133] : memref<16x456xf32, #tpu.memory_space<vmem>>, vector<16x200xf32>
    %c0_134 = arith.constant 0 : index
    %c137_135 = arith.constant 137 : index
    %126 = vector.load %arg14[%c0_134, %c137_135] : memref<16x456xf32, #tpu.memory_space<vmem>>, vector<16x200xf32>
    %c0_136 = arith.constant 0 : index
    %c138_137 = arith.constant 138 : index
    %127 = vector.load %arg14[%c0_136, %c138_137] : memref<16x456xf32, #tpu.memory_space<vmem>>, vector<16x200xf32>
    %c0_138 = arith.constant 0 : index
    %c139_139 = arith.constant 139 : index
    %128 = vector.load %arg14[%c0_138, %c139_139] : memref<16x456xf32, #tpu.memory_space<vmem>>, vector<16x200xf32>
    %129 = tpu.concatenate %120, %121, %122, %123, %124, %125, %126, %127, %128 in 0 : vector<16x200xf32>, vector<16x200xf32>, vector<16x200xf32>, vector<16x200xf32>, vector<16x200xf32>, vector<16x200xf32>, vector<16x200xf32>, vector<16x200xf32>, vector<16x200xf32> -> vector<144x200xf32>
    %130 = arith.truncf %129 : vector<144x200xf32> to vector<144x200xbf16>
    %c0_140 = arith.constant 0 : index
    %c0_141 = arith.constant 0 : index
    %131 = vector.load %arg11[%c0_140, %c0_141] : memref<16x144xbf16, #tpu.memory_space<vmem>>, vector<16x144xbf16>
    %cst_142 = arith.constant dense<0.000000e+00> : vector<16x200xf32>
    %132 = tpu.matmul %131, %130, %cst_142 {dimension_numbers = #tpu.dot_dimension_numbers<[1], [0], [0], [1], [0, 0, 1, 1], [], []>} : vector<16x144xbf16>, vector<144x200xbf16>, vector<16x200xf32> -> vector<16x200xf32>
    %c0_143 = arith.constant 0 : index
    %c0_144 = arith.constant 0 : index
    %133 = vector.load %arg12[%c0_143, %c0_144] : memref<16x1xf32, #tpu.memory_space<vmem>>, vector<16x1xf32>
    %134 = vector.broadcast %133 : vector<16x1xf32> to vector<16x200xf32>
    %135 = arith.addf %132, %134 : vector<16x200xf32>
    %136 = arith.addf %135, %93 : vector<16x200xf32>
    %137 = vector.broadcast %48 : vector<1x200xf32> to vector<16x200xf32>
    %138 = arith.mulf %137, %136 : vector<16x200xf32>
    %c0_145 = arith.constant 0 : index
    %c128_146 = arith.constant 128 : index
    %139 = vector.load %arg14[%c0_145, %c128_146] : memref<16x456xf32, #tpu.memory_space<vmem>>, vector<16x200xf32>
    tpu.vector_store %arg14[%c0_145, %c128_146], %138 {strides = array<i32>} : memref<16x456xf32, #tpu.memory_space<vmem>>, vector<16x200xf32>,
    return
  }
}

module attributes {stable_mosaic.version = 11 : i64} {
  func.func @kernel(%arg0: memref<32x328xf32, #tpu.memory_space<vmem>>, %arg1: memref<32x288xbf16, #tpu.memory_space<vmem>>, %arg2: memref<32x1xf32, #tpu.memory_space<vmem>>, %arg3: memref<1x72xf32, #tpu.memory_space<vmem>>, %arg4: memref<72x32xbf16, #tpu.memory_space<vmem>>, %arg5: memref<32x288xbf16, #tpu.memory_space<vmem>>, %arg6: memref<32x1xf32, #tpu.memory_space<vmem>>, %arg7: memref<32x288xbf16, #tpu.memory_space<vmem>>, %arg8: memref<32x1xf32, #tpu.memory_space<vmem>>, %arg9: memref<32x288xbf16, #tpu.memory_space<vmem>>, %arg10: memref<32x1xf32, #tpu.memory_space<vmem>>, %arg11: memref<32x288xbf16, #tpu.memory_space<vmem>>, %arg12: memref<32x1xf32, #tpu.memory_space<vmem>>, %arg13: memref<1x32xf32, #tpu.memory_space<vmem>>, %arg14: memref<32x288xf32, #tpu.memory_space<vmem>>, %arg15: memref<32x328xf32, #tpu.memory_space<vmem>>) attributes {dimension_semantics = [], scalar_prefetch = 0 : i64, scratch_operands = 1 : i64, tpu.core_type = #tpu.core_type<tc>} {
    %c0 = arith.constant 0 : index
    %c121 = arith.constant 121 : index
    %0 = vector.load %arg0[%c0, %c121] : memref<32x328xf32, #tpu.memory_space<vmem>>, vector<32x72xf32>
    %c0_0 = arith.constant 0 : index
    %c122 = arith.constant 122 : index
    %1 = vector.load %arg0[%c0_0, %c122] : memref<32x328xf32, #tpu.memory_space<vmem>>, vector<32x72xf32>
    %c0_1 = arith.constant 0 : index
    %c123 = arith.constant 123 : index
    %2 = vector.load %arg0[%c0_1, %c123] : memref<32x328xf32, #tpu.memory_space<vmem>>, vector<32x72xf32>
    %c0_2 = arith.constant 0 : index
    %c127 = arith.constant 127 : index
    %3 = vector.load %arg0[%c0_2, %c127] : memref<32x328xf32, #tpu.memory_space<vmem>>, vector<32x72xf32>
    %c0_3 = arith.constant 0 : index
    %c128 = arith.constant 128 : index
    %4 = vector.load %arg0[%c0_3, %c128] : memref<32x328xf32, #tpu.memory_space<vmem>>, vector<32x72xf32>
    %c0_4 = arith.constant 0 : index
    %c129 = arith.constant 129 : index
    %5 = vector.load %arg0[%c0_4, %c129] : memref<32x328xf32, #tpu.memory_space<vmem>>, vector<32x72xf32>
    %c0_5 = arith.constant 0 : index
    %c133 = arith.constant 133 : index
    %6 = vector.load %arg0[%c0_5, %c133] : memref<32x328xf32, #tpu.memory_space<vmem>>, vector<32x72xf32>
    %c0_6 = arith.constant 0 : index
    %c134 = arith.constant 134 : index
    %7 = vector.load %arg0[%c0_6, %c134] : memref<32x328xf32, #tpu.memory_space<vmem>>, vector<32x72xf32>
    %c0_7 = arith.constant 0 : index
    %c135 = arith.constant 135 : index
    %8 = vector.load %arg0[%c0_7, %c135] : memref<32x328xf32, #tpu.memory_space<vmem>>, vector<32x72xf32>
    %9 = tpu.concatenate %0, %1, %2, %3, %4, %5, %6, %7, %8 in 0 : vector<32x72xf32>, vector<32x72xf32>, vector<32x72xf32>, vector<32x72xf32>, vector<32x72xf32>, vector<32x72xf32>, vector<32x72xf32>, vector<32x72xf32>, vector<32x72xf32> -> vector<288x72xf32>
    %10 = arith.truncf %9 : vector<288x72xf32> to vector<288x72xbf16>
    %c0_8 = arith.constant 0 : index
    %c0_9 = arith.constant 0 : index
    %11 = vector.load %arg1[%c0_8, %c0_9] : memref<32x288xbf16, #tpu.memory_space<vmem>>, vector<32x288xbf16>
    %cst = arith.constant dense<0.000000e+00> : vector<32x72xf32>
    %12 = tpu.matmul %11, %10, %cst {dimension_numbers = #tpu.dot_dimension_numbers<[1], [0], [0], [1], [0, 0, 1, 1], [], []>} : vector<32x288xbf16>, vector<288x72xbf16>, vector<32x72xf32> -> vector<32x72xf32>
    %c0_10 = arith.constant 0 : index
    %c0_11 = arith.constant 0 : index
    %13 = vector.load %arg2[%c0_10, %c0_11] : memref<32x1xf32, #tpu.memory_space<vmem>>, vector<32x1xf32>
    %14 = vector.broadcast %13 : vector<32x1xf32> to vector<32x72xf32>
    %15 = arith.addf %12, %14 : vector<32x72xf32>
    %c0_12 = arith.constant 0 : index
    %c0_13 = arith.constant 0 : index
    %16 = vector.load %arg3[%c0_12, %c0_13] : memref<1x72xf32, #tpu.memory_space<vmem>>, vector<1x72xf32>
    %cst_14 = arith.constant 0.000000e+00 : f32
    %17 = vector.broadcast %cst_14 : f32 to vector<32x328xf32>
    %c0_15 = arith.constant 0 : index
    %c0_16 = arith.constant 0 : index
    %18 = vector.load %arg15[%c0_15, %c0_16] : memref<32x328xf32, #tpu.memory_space<vmem>>, vector<32x328xf32>
    tpu.vector_store %arg15[%c0_15, %c0_16], %17 {strides = array<i32>} : memref<32x328xf32, #tpu.memory_space<vmem>>, vector<32x328xf32>,
    %19 = vector.broadcast %16 : vector<1x72xf32> to vector<32x72xf32>
    %20 = arith.mulf %19, %15 : vector<32x72xf32>
    %cst_17 = arith.constant 1.000000e+00 : f32
    %21 = vector.broadcast %cst_17 : f32 to vector<1x72xf32>
    %22 = arith.subf %21, %16 : vector<1x72xf32>
    %cst_18 = arith.constant -1.000000e+30 : f32
    %23 = vector.broadcast %cst_18 : f32 to vector<1x72xf32>
    %24 = arith.mulf %22, %23 : vector<1x72xf32>
    %25 = vector.broadcast %24 : vector<1x72xf32> to vector<32x72xf32>
    %26 = arith.addf %20, %25 : vector<32x72xf32>
    %c0_19 = arith.constant 0 : index
    %c128_20 = arith.constant 128 : index
    %27 = vector.load %arg15[%c0_19, %c128_20] : memref<32x328xf32, #tpu.memory_space<vmem>>, vector<32x72xf32>
    tpu.vector_store %arg15[%c0_19, %c128_20], %26 {strides = array<i32>} : memref<32x328xf32, #tpu.memory_space<vmem>>, vector<32x72xf32>,
    %c0_21 = arith.constant 0 : index
    %c121_22 = arith.constant 121 : index
    %28 = vector.load %arg15[%c0_21, %c121_22] : memref<32x328xf32, #tpu.memory_space<vmem>>, vector<32x72xf32>
    %c0_23 = arith.constant 0 : index
    %c122_24 = arith.constant 122 : index
    %29 = vector.load %arg15[%c0_23, %c122_24] : memref<32x328xf32, #tpu.memory_space<vmem>>, vector<32x72xf32>
    %30 = arith.maximumf %28, %29 : vector<32x72xf32>
    %c0_25 = arith.constant 0 : index
    %c123_26 = arith.constant 123 : index
    %31 = vector.load %arg15[%c0_25, %c123_26] : memref<32x328xf32, #tpu.memory_space<vmem>>, vector<32x72xf32>
    %32 = arith.maximumf %30, %31 : vector<32x72xf32>
    %c0_27 = arith.constant 0 : index
    %c127_28 = arith.constant 127 : index
    %33 = vector.load %arg15[%c0_27, %c127_28] : memref<32x328xf32, #tpu.memory_space<vmem>>, vector<32x72xf32>
    %34 = arith.maximumf %32, %33 : vector<32x72xf32>
    %c0_29 = arith.constant 0 : index
    %c128_30 = arith.constant 128 : index
    %35 = vector.load %arg15[%c0_29, %c128_30] : memref<32x328xf32, #tpu.memory_space<vmem>>, vector<32x72xf32>
    %36 = arith.maximumf %34, %35 : vector<32x72xf32>
    %c0_31 = arith.constant 0 : index
    %c129_32 = arith.constant 129 : index
    %37 = vector.load %arg15[%c0_31, %c129_32] : memref<32x328xf32, #tpu.memory_space<vmem>>, vector<32x72xf32>
    %38 = arith.maximumf %36, %37 : vector<32x72xf32>
    %c0_33 = arith.constant 0 : index
    %c133_34 = arith.constant 133 : index
    %39 = vector.load %arg15[%c0_33, %c133_34] : memref<32x328xf32, #tpu.memory_space<vmem>>, vector<32x72xf32>
    %40 = arith.maximumf %38, %39 : vector<32x72xf32>
    %c0_35 = arith.constant 0 : index
    %c134_36 = arith.constant 134 : index
    %41 = vector.load %arg15[%c0_35, %c134_36] : memref<32x328xf32, #tpu.memory_space<vmem>>, vector<32x72xf32>
    %42 = arith.maximumf %40, %41 : vector<32x72xf32>
    %c0_37 = arith.constant 0 : index
    %c135_38 = arith.constant 135 : index
    %43 = vector.load %arg15[%c0_37, %c135_38] : memref<32x328xf32, #tpu.memory_space<vmem>>, vector<32x72xf32>
    %44 = arith.maximumf %42, %43 : vector<32x72xf32>
    %45 = arith.truncf %44 : vector<32x72xf32> to vector<32x72xbf16>
    %c0_39 = arith.constant 0 : index
    %c0_40 = arith.constant 0 : index
    %46 = vector.load %arg4[%c0_39, %c0_40] : memref<72x32xbf16, #tpu.memory_space<vmem>>, vector<72x32xbf16>
    %cst_41 = arith.constant dense<0.000000e+00> : vector<32x32xf32>
    %47 = tpu.matmul %45, %46, %cst_41 {dimension_numbers = #tpu.dot_dimension_numbers<[1], [0], [0], [1], [0, 0, 1, 1], [], []>} : vector<32x72xbf16>, vector<72x32xbf16>, vector<32x32xf32> -> vector<32x32xf32>
    %c0_42 = arith.constant 0 : index
    %c0_43 = arith.constant 0 : index
    %48 = vector.load %arg13[%c0_42, %c0_43] : memref<1x32xf32, #tpu.memory_space<vmem>>, vector<1x32xf32>
    %cst_44 = arith.constant 0.000000e+00 : f32
    %49 = vector.broadcast %cst_44 : f32 to vector<32x288xf32>
    %c0_45 = arith.constant 0 : index
    %c0_46 = arith.constant 0 : index
    %50 = vector.load %arg14[%c0_45, %c0_46] : memref<32x288xf32, #tpu.memory_space<vmem>>, vector<32x288xf32>
    tpu.vector_store %arg14[%c0_45, %c0_46], %49 {strides = array<i32>} : memref<32x288xf32, #tpu.memory_space<vmem>>, vector<32x288xf32>,
    %cst_47 = arith.constant 0.000000e+00 : f32
    %51 = vector.broadcast %cst_47 : f32 to vector<32x32xf32>
    %52 = arith.maximumf %47, %51 : vector<32x32xf32>
    %53 = vector.broadcast %48 : vector<1x32xf32> to vector<32x32xf32>
    %54 = arith.mulf %53, %52 : vector<32x32xf32>
    %c0_48 = arith.constant 0 : index
    %c128_49 = arith.constant 128 : index
    %55 = vector.load %arg14[%c0_48, %c128_49] : memref<32x288xf32, #tpu.memory_space<vmem>>, vector<32x32xf32>
    tpu.vector_store %arg14[%c0_48, %c128_49], %54 {strides = array<i32>} : memref<32x288xf32, #tpu.memory_space<vmem>>, vector<32x32xf32>,
    %c0_50 = arith.constant 0 : index
    %c123_51 = arith.constant 123 : index
    %56 = vector.load %arg14[%c0_50, %c123_51] : memref<32x288xf32, #tpu.memory_space<vmem>>, vector<32x32xf32>
    %c0_52 = arith.constant 0 : index
    %c124 = arith.constant 124 : index
    %57 = vector.load %arg14[%c0_52, %c124] : memref<32x288xf32, #tpu.memory_space<vmem>>, vector<32x32xf32>
    %c0_53 = arith.constant 0 : index
    %c125 = arith.constant 125 : index
    %58 = vector.load %arg14[%c0_53, %c125] : memref<32x288xf32, #tpu.memory_space<vmem>>, vector<32x32xf32>
    %c0_54 = arith.constant 0 : index
    %c127_55 = arith.constant 127 : index
    %59 = vector.load %arg14[%c0_54, %c127_55] : memref<32x288xf32, #tpu.memory_space<vmem>>, vector<32x32xf32>
    %c0_56 = arith.constant 0 : index
    %c128_57 = arith.constant 128 : index
    %60 = vector.load %arg14[%c0_56, %c128_57] : memref<32x288xf32, #tpu.memory_space<vmem>>, vector<32x32xf32>
    %c0_58 = arith.constant 0 : index
    %c129_59 = arith.constant 129 : index
    %61 = vector.load %arg14[%c0_58, %c129_59] : memref<32x288xf32, #tpu.memory_space<vmem>>, vector<32x32xf32>
    %c0_60 = arith.constant 0 : index
    %c131 = arith.constant 131 : index
    %62 = vector.load %arg14[%c0_60, %c131] : memref<32x288xf32, #tpu.memory_space<vmem>>, vector<32x32xf32>
    %c0_61 = arith.constant 0 : index
    %c132 = arith.constant 132 : index
    %63 = vector.load %arg14[%c0_61, %c132] : memref<32x288xf32, #tpu.memory_space<vmem>>, vector<32x32xf32>
    %c0_62 = arith.constant 0 : index
    %c133_63 = arith.constant 133 : index
    %64 = vector.load %arg14[%c0_62, %c133_63] : memref<32x288xf32, #tpu.memory_space<vmem>>, vector<32x32xf32>
    %65 = tpu.concatenate %56, %57, %58, %59, %60, %61, %62, %63, %64 in 0 : vector<32x32xf32>, vector<32x32xf32>, vector<32x32xf32>, vector<32x32xf32>, vector<32x32xf32>, vector<32x32xf32>, vector<32x32xf32>, vector<32x32xf32>, vector<32x32xf32> -> vector<288x32xf32>
    %66 = arith.truncf %65 : vector<288x32xf32> to vector<288x32xbf16>
    %c0_64 = arith.constant 0 : index
    %c0_65 = arith.constant 0 : index
    %67 = vector.load %arg5[%c0_64, %c0_65] : memref<32x288xbf16, #tpu.memory_space<vmem>>, vector<32x288xbf16>
    %cst_66 = arith.constant dense<0.000000e+00> : vector<32x32xf32>
    %68 = tpu.matmul %67, %66, %cst_66 {dimension_numbers = #tpu.dot_dimension_numbers<[1], [0], [0], [1], [0, 0, 1, 1], [], []>} : vector<32x288xbf16>, vector<288x32xbf16>, vector<32x32xf32> -> vector<32x32xf32>
    %c0_67 = arith.constant 0 : index
    %c0_68 = arith.constant 0 : index
    %69 = vector.load %arg6[%c0_67, %c0_68] : memref<32x1xf32, #tpu.memory_space<vmem>>, vector<32x1xf32>
    %70 = vector.broadcast %69 : vector<32x1xf32> to vector<32x32xf32>
    %71 = arith.addf %68, %70 : vector<32x32xf32>
    %cst_69 = arith.constant 0.000000e+00 : f32
    %72 = vector.broadcast %cst_69 : f32 to vector<32x32xf32>
    %73 = arith.maximumf %71, %72 : vector<32x32xf32>
    %74 = vector.broadcast %48 : vector<1x32xf32> to vector<32x32xf32>
    %75 = arith.mulf %74, %73 : vector<32x32xf32>
    %c0_70 = arith.constant 0 : index
    %c128_71 = arith.constant 128 : index
    %76 = vector.load %arg14[%c0_70, %c128_71] : memref<32x288xf32, #tpu.memory_space<vmem>>, vector<32x32xf32>
    tpu.vector_store %arg14[%c0_70, %c128_71], %75 {strides = array<i32>} : memref<32x288xf32, #tpu.memory_space<vmem>>, vector<32x32xf32>,
    %c0_72 = arith.constant 0 : index
    %c123_73 = arith.constant 123 : index
    %77 = vector.load %arg14[%c0_72, %c123_73] : memref<32x288xf32, #tpu.memory_space<vmem>>, vector<32x32xf32>
    %c0_74 = arith.constant 0 : index
    %c124_75 = arith.constant 124 : index
    %78 = vector.load %arg14[%c0_74, %c124_75] : memref<32x288xf32, #tpu.memory_space<vmem>>, vector<32x32xf32>
    %c0_76 = arith.constant 0 : index
    %c125_77 = arith.constant 125 : index
    %79 = vector.load %arg14[%c0_76, %c125_77] : memref<32x288xf32, #tpu.memory_space<vmem>>, vector<32x32xf32>
    %c0_78 = arith.constant 0 : index
    %c127_79 = arith.constant 127 : index
    %80 = vector.load %arg14[%c0_78, %c127_79] : memref<32x288xf32, #tpu.memory_space<vmem>>, vector<32x32xf32>
    %c0_80 = arith.constant 0 : index
    %c128_81 = arith.constant 128 : index
    %81 = vector.load %arg14[%c0_80, %c128_81] : memref<32x288xf32, #tpu.memory_space<vmem>>, vector<32x32xf32>
    %c0_82 = arith.constant 0 : index
    %c129_83 = arith.constant 129 : index
    %82 = vector.load %arg14[%c0_82, %c129_83] : memref<32x288xf32, #tpu.memory_space<vmem>>, vector<32x32xf32>
    %c0_84 = arith.constant 0 : index
    %c131_85 = arith.constant 131 : index
    %83 = vector.load %arg14[%c0_84, %c131_85] : memref<32x288xf32, #tpu.memory_space<vmem>>, vector<32x32xf32>
    %c0_86 = arith.constant 0 : index
    %c132_87 = arith.constant 132 : index
    %84 = vector.load %arg14[%c0_86, %c132_87] : memref<32x288xf32, #tpu.memory_space<vmem>>, vector<32x32xf32>
    %c0_88 = arith.constant 0 : index
    %c133_89 = arith.constant 133 : index
    %85 = vector.load %arg14[%c0_88, %c133_89] : memref<32x288xf32, #tpu.memory_space<vmem>>, vector<32x32xf32>
    %86 = tpu.concatenate %77, %78, %79, %80, %81, %82, %83, %84, %85 in 0 : vector<32x32xf32>, vector<32x32xf32>, vector<32x32xf32>, vector<32x32xf32>, vector<32x32xf32>, vector<32x32xf32>, vector<32x32xf32>, vector<32x32xf32>, vector<32x32xf32> -> vector<288x32xf32>
    %87 = arith.truncf %86 : vector<288x32xf32> to vector<288x32xbf16>
    %c0_90 = arith.constant 0 : index
    %c0_91 = arith.constant 0 : index
    %88 = vector.load %arg7[%c0_90, %c0_91] : memref<32x288xbf16, #tpu.memory_space<vmem>>, vector<32x288xbf16>
    %cst_92 = arith.constant dense<0.000000e+00> : vector<32x32xf32>
    %89 = tpu.matmul %88, %87, %cst_92 {dimension_numbers = #tpu.dot_dimension_numbers<[1], [0], [0], [1], [0, 0, 1, 1], [], []>} : vector<32x288xbf16>, vector<288x32xbf16>, vector<32x32xf32> -> vector<32x32xf32>
    %c0_93 = arith.constant 0 : index
    %c0_94 = arith.constant 0 : index
    %90 = vector.load %arg8[%c0_93, %c0_94] : memref<32x1xf32, #tpu.memory_space<vmem>>, vector<32x1xf32>
    %91 = vector.broadcast %90 : vector<32x1xf32> to vector<32x32xf32>
    %92 = arith.addf %89, %91 : vector<32x32xf32>
    %93 = arith.addf %92, %47 : vector<32x32xf32>
    %cst_95 = arith.constant 0.000000e+00 : f32
    %94 = vector.broadcast %cst_95 : f32 to vector<32x32xf32>
    %95 = arith.maximumf %93, %94 : vector<32x32xf32>
    %96 = vector.broadcast %48 : vector<1x32xf32> to vector<32x32xf32>
    %97 = arith.mulf %96, %95 : vector<32x32xf32>
    %c0_96 = arith.constant 0 : index
    %c128_97 = arith.constant 128 : index
    %98 = vector.load %arg14[%c0_96, %c128_97] : memref<32x288xf32, #tpu.memory_space<vmem>>, vector<32x32xf32>
    tpu.vector_store %arg14[%c0_96, %c128_97], %97 {strides = array<i32>} : memref<32x288xf32, #tpu.memory_space<vmem>>, vector<32x32xf32>,
    %c0_98 = arith.constant 0 : index
    %c123_99 = arith.constant 123 : index
    %99 = vector.load %arg14[%c0_98, %c123_99] : memref<32x288xf32, #tpu.memory_space<vmem>>, vector<32x32xf32>
    %c0_100 = arith.constant 0 : index
    %c124_101 = arith.constant 124 : index
    %100 = vector.load %arg14[%c0_100, %c124_101] : memref<32x288xf32, #tpu.memory_space<vmem>>, vector<32x32xf32>
    %c0_102 = arith.constant 0 : index
    %c125_103 = arith.constant 125 : index
    %101 = vector.load %arg14[%c0_102, %c125_103] : memref<32x288xf32, #tpu.memory_space<vmem>>, vector<32x32xf32>
    %c0_104 = arith.constant 0 : index
    %c127_105 = arith.constant 127 : index
    %102 = vector.load %arg14[%c0_104, %c127_105] : memref<32x288xf32, #tpu.memory_space<vmem>>, vector<32x32xf32>
    %c0_106 = arith.constant 0 : index
    %c128_107 = arith.constant 128 : index
    %103 = vector.load %arg14[%c0_106, %c128_107] : memref<32x288xf32, #tpu.memory_space<vmem>>, vector<32x32xf32>
    %c0_108 = arith.constant 0 : index
    %c129_109 = arith.constant 129 : index
    %104 = vector.load %arg14[%c0_108, %c129_109] : memref<32x288xf32, #tpu.memory_space<vmem>>, vector<32x32xf32>
    %c0_110 = arith.constant 0 : index
    %c131_111 = arith.constant 131 : index
    %105 = vector.load %arg14[%c0_110, %c131_111] : memref<32x288xf32, #tpu.memory_space<vmem>>, vector<32x32xf32>
    %c0_112 = arith.constant 0 : index
    %c132_113 = arith.constant 132 : index
    %106 = vector.load %arg14[%c0_112, %c132_113] : memref<32x288xf32, #tpu.memory_space<vmem>>, vector<32x32xf32>
    %c0_114 = arith.constant 0 : index
    %c133_115 = arith.constant 133 : index
    %107 = vector.load %arg14[%c0_114, %c133_115] : memref<32x288xf32, #tpu.memory_space<vmem>>, vector<32x32xf32>
    %108 = tpu.concatenate %99, %100, %101, %102, %103, %104, %105, %106, %107 in 0 : vector<32x32xf32>, vector<32x32xf32>, vector<32x32xf32>, vector<32x32xf32>, vector<32x32xf32>, vector<32x32xf32>, vector<32x32xf32>, vector<32x32xf32>, vector<32x32xf32> -> vector<288x32xf32>
    %109 = arith.truncf %108 : vector<288x32xf32> to vector<288x32xbf16>
    %c0_116 = arith.constant 0 : index
    %c0_117 = arith.constant 0 : index
    %110 = vector.load %arg9[%c0_116, %c0_117] : memref<32x288xbf16, #tpu.memory_space<vmem>>, vector<32x288xbf16>
    %cst_118 = arith.constant dense<0.000000e+00> : vector<32x32xf32>
    %111 = tpu.matmul %110, %109, %cst_118 {dimension_numbers = #tpu.dot_dimension_numbers<[1], [0], [0], [1], [0, 0, 1, 1], [], []>} : vector<32x288xbf16>, vector<288x32xbf16>, vector<32x32xf32> -> vector<32x32xf32>
    %c0_119 = arith.constant 0 : index
    %c0_120 = arith.constant 0 : index
    %112 = vector.load %arg10[%c0_119, %c0_120] : memref<32x1xf32, #tpu.memory_space<vmem>>, vector<32x1xf32>
    %113 = vector.broadcast %112 : vector<32x1xf32> to vector<32x32xf32>
    %114 = arith.addf %111, %113 : vector<32x32xf32>
    %cst_121 = arith.constant 0.000000e+00 : f32
    %115 = vector.broadcast %cst_121 : f32 to vector<32x32xf32>
    %116 = arith.maximumf %114, %115 : vector<32x32xf32>
    %117 = vector.broadcast %48 : vector<1x32xf32> to vector<32x32xf32>
    %118 = arith.mulf %117, %116 : vector<32x32xf32>
    %c0_122 = arith.constant 0 : index
    %c128_123 = arith.constant 128 : index
    %119 = vector.load %arg14[%c0_122, %c128_123] : memref<32x288xf32, #tpu.memory_space<vmem>>, vector<32x32xf32>
    tpu.vector_store %arg14[%c0_122, %c128_123], %118 {strides = array<i32>} : memref<32x288xf32, #tpu.memory_space<vmem>>, vector<32x32xf32>,
    %c0_124 = arith.constant 0 : index
    %c123_125 = arith.constant 123 : index
    %120 = vector.load %arg14[%c0_124, %c123_125] : memref<32x288xf32, #tpu.memory_space<vmem>>, vector<32x32xf32>
    %c0_126 = arith.constant 0 : index
    %c124_127 = arith.constant 124 : index
    %121 = vector.load %arg14[%c0_126, %c124_127] : memref<32x288xf32, #tpu.memory_space<vmem>>, vector<32x32xf32>
    %c0_128 = arith.constant 0 : index
    %c125_129 = arith.constant 125 : index
    %122 = vector.load %arg14[%c0_128, %c125_129] : memref<32x288xf32, #tpu.memory_space<vmem>>, vector<32x32xf32>
    %c0_130 = arith.constant 0 : index
    %c127_131 = arith.constant 127 : index
    %123 = vector.load %arg14[%c0_130, %c127_131] : memref<32x288xf32, #tpu.memory_space<vmem>>, vector<32x32xf32>
    %c0_132 = arith.constant 0 : index
    %c128_133 = arith.constant 128 : index
    %124 = vector.load %arg14[%c0_132, %c128_133] : memref<32x288xf32, #tpu.memory_space<vmem>>, vector<32x32xf32>
    %c0_134 = arith.constant 0 : index
    %c129_135 = arith.constant 129 : index
    %125 = vector.load %arg14[%c0_134, %c129_135] : memref<32x288xf32, #tpu.memory_space<vmem>>, vector<32x32xf32>
    %c0_136 = arith.constant 0 : index
    %c131_137 = arith.constant 131 : index
    %126 = vector.load %arg14[%c0_136, %c131_137] : memref<32x288xf32, #tpu.memory_space<vmem>>, vector<32x32xf32>
    %c0_138 = arith.constant 0 : index
    %c132_139 = arith.constant 132 : index
    %127 = vector.load %arg14[%c0_138, %c132_139] : memref<32x288xf32, #tpu.memory_space<vmem>>, vector<32x32xf32>
    %c0_140 = arith.constant 0 : index
    %c133_141 = arith.constant 133 : index
    %128 = vector.load %arg14[%c0_140, %c133_141] : memref<32x288xf32, #tpu.memory_space<vmem>>, vector<32x32xf32>
    %129 = tpu.concatenate %120, %121, %122, %123, %124, %125, %126, %127, %128 in 0 : vector<32x32xf32>, vector<32x32xf32>, vector<32x32xf32>, vector<32x32xf32>, vector<32x32xf32>, vector<32x32xf32>, vector<32x32xf32>, vector<32x32xf32>, vector<32x32xf32> -> vector<288x32xf32>
    %130 = arith.truncf %129 : vector<288x32xf32> to vector<288x32xbf16>
    %c0_142 = arith.constant 0 : index
    %c0_143 = arith.constant 0 : index
    %131 = vector.load %arg11[%c0_142, %c0_143] : memref<32x288xbf16, #tpu.memory_space<vmem>>, vector<32x288xbf16>
    %cst_144 = arith.constant dense<0.000000e+00> : vector<32x32xf32>
    %132 = tpu.matmul %131, %130, %cst_144 {dimension_numbers = #tpu.dot_dimension_numbers<[1], [0], [0], [1], [0, 0, 1, 1], [], []>} : vector<32x288xbf16>, vector<288x32xbf16>, vector<32x32xf32> -> vector<32x32xf32>
    %c0_145 = arith.constant 0 : index
    %c0_146 = arith.constant 0 : index
    %133 = vector.load %arg12[%c0_145, %c0_146] : memref<32x1xf32, #tpu.memory_space<vmem>>, vector<32x1xf32>
    %134 = vector.broadcast %133 : vector<32x1xf32> to vector<32x32xf32>
    %135 = arith.addf %132, %134 : vector<32x32xf32>
    %136 = arith.addf %135, %93 : vector<32x32xf32>
    %137 = vector.broadcast %48 : vector<1x32xf32> to vector<32x32xf32>
    %138 = arith.mulf %137, %136 : vector<32x32xf32>
    %c0_147 = arith.constant 0 : index
    %c128_148 = arith.constant 128 : index
    %139 = vector.load %arg14[%c0_147, %c128_148] : memref<32x288xf32, #tpu.memory_space<vmem>>, vector<32x32xf32>
    tpu.vector_store %arg14[%c0_147, %c128_148], %138 {strides = array<i32>} : memref<32x288xf32, #tpu.memory_space<vmem>>, vector<32x32xf32>,
    return
  }
}

module attributes {stable_mosaic.version = 11 : i64} {
  func.func @kernel(%arg0: memref<16x456xf32, #tpu.memory_space<vmem>>, %arg1: memref<32x144xbf16, #tpu.memory_space<vmem>>, %arg2: memref<32x1xf32, #tpu.memory_space<vmem>>, %arg3: memref<1x200xf32, #tpu.memory_space<vmem>>, %arg4: memref<200x72xbf16, #tpu.memory_space<vmem>>, %arg5: memref<32x288xbf16, #tpu.memory_space<vmem>>, %arg6: memref<32x1xf32, #tpu.memory_space<vmem>>, %arg7: memref<32x288xbf16, #tpu.memory_space<vmem>>, %arg8: memref<32x1xf32, #tpu.memory_space<vmem>>, %arg9: memref<32x288xbf16, #tpu.memory_space<vmem>>, %arg10: memref<32x1xf32, #tpu.memory_space<vmem>>, %arg11: memref<32x288xbf16, #tpu.memory_space<vmem>>, %arg12: memref<32x1xf32, #tpu.memory_space<vmem>>, %arg13: memref<1x72xf32, #tpu.memory_space<vmem>>, %arg14: memref<32x328xf32, #tpu.memory_space<vmem>>, %arg15: memref<32x456xf32, #tpu.memory_space<vmem>>) attributes {dimension_semantics = [], scalar_prefetch = 0 : i64, scratch_operands = 1 : i64, tpu.core_type = #tpu.core_type<tc>} {
    %c0 = arith.constant 0 : index
    %c117 = arith.constant 117 : index
    %0 = vector.load %arg0[%c0, %c117] : memref<16x456xf32, #tpu.memory_space<vmem>>, vector<16x200xf32>
    %c0_0 = arith.constant 0 : index
    %c118 = arith.constant 118 : index
    %1 = vector.load %arg0[%c0_0, %c118] : memref<16x456xf32, #tpu.memory_space<vmem>>, vector<16x200xf32>
    %c0_1 = arith.constant 0 : index
    %c119 = arith.constant 119 : index
    %2 = vector.load %arg0[%c0_1, %c119] : memref<16x456xf32, #tpu.memory_space<vmem>>, vector<16x200xf32>
    %c0_2 = arith.constant 0 : index
    %c127 = arith.constant 127 : index
    %3 = vector.load %arg0[%c0_2, %c127] : memref<16x456xf32, #tpu.memory_space<vmem>>, vector<16x200xf32>
    %c0_3 = arith.constant 0 : index
    %c128 = arith.constant 128 : index
    %4 = vector.load %arg0[%c0_3, %c128] : memref<16x456xf32, #tpu.memory_space<vmem>>, vector<16x200xf32>
    %c0_4 = arith.constant 0 : index
    %c129 = arith.constant 129 : index
    %5 = vector.load %arg0[%c0_4, %c129] : memref<16x456xf32, #tpu.memory_space<vmem>>, vector<16x200xf32>
    %c0_5 = arith.constant 0 : index
    %c137 = arith.constant 137 : index
    %6 = vector.load %arg0[%c0_5, %c137] : memref<16x456xf32, #tpu.memory_space<vmem>>, vector<16x200xf32>
    %c0_6 = arith.constant 0 : index
    %c138 = arith.constant 138 : index
    %7 = vector.load %arg0[%c0_6, %c138] : memref<16x456xf32, #tpu.memory_space<vmem>>, vector<16x200xf32>
    %c0_7 = arith.constant 0 : index
    %c139 = arith.constant 139 : index
    %8 = vector.load %arg0[%c0_7, %c139] : memref<16x456xf32, #tpu.memory_space<vmem>>, vector<16x200xf32>
    %9 = tpu.concatenate %0, %1, %2, %3, %4, %5, %6, %7, %8 in 0 : vector<16x200xf32>, vector<16x200xf32>, vector<16x200xf32>, vector<16x200xf32>, vector<16x200xf32>, vector<16x200xf32>, vector<16x200xf32>, vector<16x200xf32>, vector<16x200xf32> -> vector<144x200xf32>
    %10 = arith.truncf %9 : vector<144x200xf32> to vector<144x200xbf16>
    %c0_8 = arith.constant 0 : index
    %c0_9 = arith.constant 0 : index
    %11 = vector.load %arg1[%c0_8, %c0_9] : memref<32x144xbf16, #tpu.memory_space<vmem>>, vector<32x144xbf16>
    %cst = arith.constant dense<0.000000e+00> : vector<32x200xf32>
    %12 = tpu.matmul %11, %10, %cst {dimension_numbers = #tpu.dot_dimension_numbers<[1], [0], [0], [1], [0, 0, 1, 1], [], []>} : vector<32x144xbf16>, vector<144x200xbf16>, vector<32x200xf32> -> vector<32x200xf32>
    %c0_10 = arith.constant 0 : index
    %c0_11 = arith.constant 0 : index
    %13 = vector.load %arg2[%c0_10, %c0_11] : memref<32x1xf32, #tpu.memory_space<vmem>>, vector<32x1xf32>
    %14 = vector.broadcast %13 : vector<32x1xf32> to vector<32x200xf32>
    %15 = arith.addf %12, %14 : vector<32x200xf32>
    %c0_12 = arith.constant 0 : index
    %c0_13 = arith.constant 0 : index
    %16 = vector.load %arg3[%c0_12, %c0_13] : memref<1x200xf32, #tpu.memory_space<vmem>>, vector<1x200xf32>
    %cst_14 = arith.constant 0.000000e+00 : f32
    %17 = vector.broadcast %cst_14 : f32 to vector<32x456xf32>
    %c0_15 = arith.constant 0 : index
    %c0_16 = arith.constant 0 : index
    %18 = vector.load %arg15[%c0_15, %c0_16] : memref<32x456xf32, #tpu.memory_space<vmem>>, vector<32x456xf32>
    tpu.vector_store %arg15[%c0_15, %c0_16], %17 {strides = array<i32>} : memref<32x456xf32, #tpu.memory_space<vmem>>, vector<32x456xf32>,
    %19 = vector.broadcast %16 : vector<1x200xf32> to vector<32x200xf32>
    %20 = arith.mulf %19, %15 : vector<32x200xf32>
    %cst_17 = arith.constant 1.000000e+00 : f32
    %21 = vector.broadcast %cst_17 : f32 to vector<1x200xf32>
    %22 = arith.subf %21, %16 : vector<1x200xf32>
    %cst_18 = arith.constant -1.000000e+30 : f32
    %23 = vector.broadcast %cst_18 : f32 to vector<1x200xf32>
    %24 = arith.mulf %22, %23 : vector<1x200xf32>
    %25 = vector.broadcast %24 : vector<1x200xf32> to vector<32x200xf32>
    %26 = arith.addf %20, %25 : vector<32x200xf32>
    %c0_19 = arith.constant 0 : index
    %c128_20 = arith.constant 128 : index
    %27 = vector.load %arg15[%c0_19, %c128_20] : memref<32x456xf32, #tpu.memory_space<vmem>>, vector<32x200xf32>
    tpu.vector_store %arg15[%c0_19, %c128_20], %26 {strides = array<i32>} : memref<32x456xf32, #tpu.memory_space<vmem>>, vector<32x200xf32>,
    %c0_21 = arith.constant 0 : index
    %c117_22 = arith.constant 117 : index
    %28 = vector.load %arg15[%c0_21, %c117_22] : memref<32x456xf32, #tpu.memory_space<vmem>>, vector<32x200xf32>
    %c0_23 = arith.constant 0 : index
    %c118_24 = arith.constant 118 : index
    %29 = vector.load %arg15[%c0_23, %c118_24] : memref<32x456xf32, #tpu.memory_space<vmem>>, vector<32x200xf32>
    %30 = arith.maximumf %28, %29 : vector<32x200xf32>
    %c0_25 = arith.constant 0 : index
    %c119_26 = arith.constant 119 : index
    %31 = vector.load %arg15[%c0_25, %c119_26] : memref<32x456xf32, #tpu.memory_space<vmem>>, vector<32x200xf32>
    %32 = arith.maximumf %30, %31 : vector<32x200xf32>
    %c0_27 = arith.constant 0 : index
    %c127_28 = arith.constant 127 : index
    %33 = vector.load %arg15[%c0_27, %c127_28] : memref<32x456xf32, #tpu.memory_space<vmem>>, vector<32x200xf32>
    %34 = arith.maximumf %32, %33 : vector<32x200xf32>
    %c0_29 = arith.constant 0 : index
    %c128_30 = arith.constant 128 : index
    %35 = vector.load %arg15[%c0_29, %c128_30] : memref<32x456xf32, #tpu.memory_space<vmem>>, vector<32x200xf32>
    %36 = arith.maximumf %34, %35 : vector<32x200xf32>
    %c0_31 = arith.constant 0 : index
    %c129_32 = arith.constant 129 : index
    %37 = vector.load %arg15[%c0_31, %c129_32] : memref<32x456xf32, #tpu.memory_space<vmem>>, vector<32x200xf32>
    %38 = arith.maximumf %36, %37 : vector<32x200xf32>
    %c0_33 = arith.constant 0 : index
    %c137_34 = arith.constant 137 : index
    %39 = vector.load %arg15[%c0_33, %c137_34] : memref<32x456xf32, #tpu.memory_space<vmem>>, vector<32x200xf32>
    %40 = arith.maximumf %38, %39 : vector<32x200xf32>
    %c0_35 = arith.constant 0 : index
    %c138_36 = arith.constant 138 : index
    %41 = vector.load %arg15[%c0_35, %c138_36] : memref<32x456xf32, #tpu.memory_space<vmem>>, vector<32x200xf32>
    %42 = arith.maximumf %40, %41 : vector<32x200xf32>
    %c0_37 = arith.constant 0 : index
    %c139_38 = arith.constant 139 : index
    %43 = vector.load %arg15[%c0_37, %c139_38] : memref<32x456xf32, #tpu.memory_space<vmem>>, vector<32x200xf32>
    %44 = arith.maximumf %42, %43 : vector<32x200xf32>
    %45 = arith.truncf %44 : vector<32x200xf32> to vector<32x200xbf16>
    %c0_39 = arith.constant 0 : index
    %c0_40 = arith.constant 0 : index
    %46 = vector.load %arg4[%c0_39, %c0_40] : memref<200x72xbf16, #tpu.memory_space<vmem>>, vector<200x72xbf16>
    %cst_41 = arith.constant dense<0.000000e+00> : vector<32x72xf32>
    %47 = tpu.matmul %45, %46, %cst_41 {dimension_numbers = #tpu.dot_dimension_numbers<[1], [0], [0], [1], [0, 0, 1, 1], [], []>} : vector<32x200xbf16>, vector<200x72xbf16>, vector<32x72xf32> -> vector<32x72xf32>
    %c0_42 = arith.constant 0 : index
    %c0_43 = arith.constant 0 : index
    %48 = vector.load %arg13[%c0_42, %c0_43] : memref<1x72xf32, #tpu.memory_space<vmem>>, vector<1x72xf32>
    %cst_44 = arith.constant 0.000000e+00 : f32
    %49 = vector.broadcast %cst_44 : f32 to vector<32x328xf32>
    %c0_45 = arith.constant 0 : index
    %c0_46 = arith.constant 0 : index
    %50 = vector.load %arg14[%c0_45, %c0_46] : memref<32x328xf32, #tpu.memory_space<vmem>>, vector<32x328xf32>
    tpu.vector_store %arg14[%c0_45, %c0_46], %49 {strides = array<i32>} : memref<32x328xf32, #tpu.memory_space<vmem>>, vector<32x328xf32>,
    %cst_47 = arith.constant 0.000000e+00 : f32
    %51 = vector.broadcast %cst_47 : f32 to vector<32x72xf32>
    %52 = arith.maximumf %47, %51 : vector<32x72xf32>
    %53 = vector.broadcast %48 : vector<1x72xf32> to vector<32x72xf32>
    %54 = arith.mulf %53, %52 : vector<32x72xf32>
    %c0_48 = arith.constant 0 : index
    %c128_49 = arith.constant 128 : index
    %55 = vector.load %arg14[%c0_48, %c128_49] : memref<32x328xf32, #tpu.memory_space<vmem>>, vector<32x72xf32>
    tpu.vector_store %arg14[%c0_48, %c128_49], %54 {strides = array<i32>} : memref<32x328xf32, #tpu.memory_space<vmem>>, vector<32x72xf32>,
    %c0_50 = arith.constant 0 : index
    %c121 = arith.constant 121 : index
    %56 = vector.load %arg14[%c0_50, %c121] : memref<32x328xf32, #tpu.memory_space<vmem>>, vector<32x72xf32>
    %c0_51 = arith.constant 0 : index
    %c122 = arith.constant 122 : index
    %57 = vector.load %arg14[%c0_51, %c122] : memref<32x328xf32, #tpu.memory_space<vmem>>, vector<32x72xf32>
    %c0_52 = arith.constant 0 : index
    %c123 = arith.constant 123 : index
    %58 = vector.load %arg14[%c0_52, %c123] : memref<32x328xf32, #tpu.memory_space<vmem>>, vector<32x72xf32>
    %c0_53 = arith.constant 0 : index
    %c127_54 = arith.constant 127 : index
    %59 = vector.load %arg14[%c0_53, %c127_54] : memref<32x328xf32, #tpu.memory_space<vmem>>, vector<32x72xf32>
    %c0_55 = arith.constant 0 : index
    %c128_56 = arith.constant 128 : index
    %60 = vector.load %arg14[%c0_55, %c128_56] : memref<32x328xf32, #tpu.memory_space<vmem>>, vector<32x72xf32>
    %c0_57 = arith.constant 0 : index
    %c129_58 = arith.constant 129 : index
    %61 = vector.load %arg14[%c0_57, %c129_58] : memref<32x328xf32, #tpu.memory_space<vmem>>, vector<32x72xf32>
    %c0_59 = arith.constant 0 : index
    %c133 = arith.constant 133 : index
    %62 = vector.load %arg14[%c0_59, %c133] : memref<32x328xf32, #tpu.memory_space<vmem>>, vector<32x72xf32>
    %c0_60 = arith.constant 0 : index
    %c134 = arith.constant 134 : index
    %63 = vector.load %arg14[%c0_60, %c134] : memref<32x328xf32, #tpu.memory_space<vmem>>, vector<32x72xf32>
    %c0_61 = arith.constant 0 : index
    %c135 = arith.constant 135 : index
    %64 = vector.load %arg14[%c0_61, %c135] : memref<32x328xf32, #tpu.memory_space<vmem>>, vector<32x72xf32>
    %65 = tpu.concatenate %56, %57, %58, %59, %60, %61, %62, %63, %64 in 0 : vector<32x72xf32>, vector<32x72xf32>, vector<32x72xf32>, vector<32x72xf32>, vector<32x72xf32>, vector<32x72xf32>, vector<32x72xf32>, vector<32x72xf32>, vector<32x72xf32> -> vector<288x72xf32>
    %66 = arith.truncf %65 : vector<288x72xf32> to vector<288x72xbf16>
    %c0_62 = arith.constant 0 : index
    %c0_63 = arith.constant 0 : index
    %67 = vector.load %arg5[%c0_62, %c0_63] : memref<32x288xbf16, #tpu.memory_space<vmem>>, vector<32x288xbf16>
    %cst_64 = arith.constant dense<0.000000e+00> : vector<32x72xf32>
    %68 = tpu.matmul %67, %66, %cst_64 {dimension_numbers = #tpu.dot_dimension_numbers<[1], [0], [0], [1], [0, 0, 1, 1], [], []>} : vector<32x288xbf16>, vector<288x72xbf16>, vector<32x72xf32> -> vector<32x72xf32>
    %c0_65 = arith.constant 0 : index
    %c0_66 = arith.constant 0 : index
    %69 = vector.load %arg6[%c0_65, %c0_66] : memref<32x1xf32, #tpu.memory_space<vmem>>, vector<32x1xf32>
    %70 = vector.broadcast %69 : vector<32x1xf32> to vector<32x72xf32>
    %71 = arith.addf %68, %70 : vector<32x72xf32>
    %cst_67 = arith.constant 0.000000e+00 : f32
    %72 = vector.broadcast %cst_67 : f32 to vector<32x72xf32>
    %73 = arith.maximumf %71, %72 : vector<32x72xf32>
    %74 = vector.broadcast %48 : vector<1x72xf32> to vector<32x72xf32>
    %75 = arith.mulf %74, %73 : vector<32x72xf32>
    %c0_68 = arith.constant 0 : index
    %c128_69 = arith.constant 128 : index
    %76 = vector.load %arg14[%c0_68, %c128_69] : memref<32x328xf32, #tpu.memory_space<vmem>>, vector<32x72xf32>
    tpu.vector_store %arg14[%c0_68, %c128_69], %75 {strides = array<i32>} : memref<32x328xf32, #tpu.memory_space<vmem>>, vector<32x72xf32>,
    %c0_70 = arith.constant 0 : index
    %c121_71 = arith.constant 121 : index
    %77 = vector.load %arg14[%c0_70, %c121_71] : memref<32x328xf32, #tpu.memory_space<vmem>>, vector<32x72xf32>
    %c0_72 = arith.constant 0 : index
    %c122_73 = arith.constant 122 : index
    %78 = vector.load %arg14[%c0_72, %c122_73] : memref<32x328xf32, #tpu.memory_space<vmem>>, vector<32x72xf32>
    %c0_74 = arith.constant 0 : index
    %c123_75 = arith.constant 123 : index
    %79 = vector.load %arg14[%c0_74, %c123_75] : memref<32x328xf32, #tpu.memory_space<vmem>>, vector<32x72xf32>
    %c0_76 = arith.constant 0 : index
    %c127_77 = arith.constant 127 : index
    %80 = vector.load %arg14[%c0_76, %c127_77] : memref<32x328xf32, #tpu.memory_space<vmem>>, vector<32x72xf32>
    %c0_78 = arith.constant 0 : index
    %c128_79 = arith.constant 128 : index
    %81 = vector.load %arg14[%c0_78, %c128_79] : memref<32x328xf32, #tpu.memory_space<vmem>>, vector<32x72xf32>
    %c0_80 = arith.constant 0 : index
    %c129_81 = arith.constant 129 : index
    %82 = vector.load %arg14[%c0_80, %c129_81] : memref<32x328xf32, #tpu.memory_space<vmem>>, vector<32x72xf32>
    %c0_82 = arith.constant 0 : index
    %c133_83 = arith.constant 133 : index
    %83 = vector.load %arg14[%c0_82, %c133_83] : memref<32x328xf32, #tpu.memory_space<vmem>>, vector<32x72xf32>
    %c0_84 = arith.constant 0 : index
    %c134_85 = arith.constant 134 : index
    %84 = vector.load %arg14[%c0_84, %c134_85] : memref<32x328xf32, #tpu.memory_space<vmem>>, vector<32x72xf32>
    %c0_86 = arith.constant 0 : index
    %c135_87 = arith.constant 135 : index
    %85 = vector.load %arg14[%c0_86, %c135_87] : memref<32x328xf32, #tpu.memory_space<vmem>>, vector<32x72xf32>
    %86 = tpu.concatenate %77, %78, %79, %80, %81, %82, %83, %84, %85 in 0 : vector<32x72xf32>, vector<32x72xf32>, vector<32x72xf32>, vector<32x72xf32>, vector<32x72xf32>, vector<32x72xf32>, vector<32x72xf32>, vector<32x72xf32>, vector<32x72xf32> -> vector<288x72xf32>
    %87 = arith.truncf %86 : vector<288x72xf32> to vector<288x72xbf16>
    %c0_88 = arith.constant 0 : index
    %c0_89 = arith.constant 0 : index
    %88 = vector.load %arg7[%c0_88, %c0_89] : memref<32x288xbf16, #tpu.memory_space<vmem>>, vector<32x288xbf16>
    %cst_90 = arith.constant dense<0.000000e+00> : vector<32x72xf32>
    %89 = tpu.matmul %88, %87, %cst_90 {dimension_numbers = #tpu.dot_dimension_numbers<[1], [0], [0], [1], [0, 0, 1, 1], [], []>} : vector<32x288xbf16>, vector<288x72xbf16>, vector<32x72xf32> -> vector<32x72xf32>
    %c0_91 = arith.constant 0 : index
    %c0_92 = arith.constant 0 : index
    %90 = vector.load %arg8[%c0_91, %c0_92] : memref<32x1xf32, #tpu.memory_space<vmem>>, vector<32x1xf32>
    %91 = vector.broadcast %90 : vector<32x1xf32> to vector<32x72xf32>
    %92 = arith.addf %89, %91 : vector<32x72xf32>
    %93 = arith.addf %92, %47 : vector<32x72xf32>
    %cst_93 = arith.constant 0.000000e+00 : f32
    %94 = vector.broadcast %cst_93 : f32 to vector<32x72xf32>
    %95 = arith.maximumf %93, %94 : vector<32x72xf32>
    %96 = vector.broadcast %48 : vector<1x72xf32> to vector<32x72xf32>
    %97 = arith.mulf %96, %95 : vector<32x72xf32>
    %c0_94 = arith.constant 0 : index
    %c128_95 = arith.constant 128 : index
    %98 = vector.load %arg14[%c0_94, %c128_95] : memref<32x328xf32, #tpu.memory_space<vmem>>, vector<32x72xf32>
    tpu.vector_store %arg14[%c0_94, %c128_95], %97 {strides = array<i32>} : memref<32x328xf32, #tpu.memory_space<vmem>>, vector<32x72xf32>,
    %c0_96 = arith.constant 0 : index
    %c121_97 = arith.constant 121 : index
    %99 = vector.load %arg14[%c0_96, %c121_97] : memref<32x328xf32, #tpu.memory_space<vmem>>, vector<32x72xf32>
    %c0_98 = arith.constant 0 : index
    %c122_99 = arith.constant 122 : index
    %100 = vector.load %arg14[%c0_98, %c122_99] : memref<32x328xf32, #tpu.memory_space<vmem>>, vector<32x72xf32>
    %c0_100 = arith.constant 0 : index
    %c123_101 = arith.constant 123 : index
    %101 = vector.load %arg14[%c0_100, %c123_101] : memref<32x328xf32, #tpu.memory_space<vmem>>, vector<32x72xf32>
    %c0_102 = arith.constant 0 : index
    %c127_103 = arith.constant 127 : index
    %102 = vector.load %arg14[%c0_102, %c127_103] : memref<32x328xf32, #tpu.memory_space<vmem>>, vector<32x72xf32>
    %c0_104 = arith.constant 0 : index
    %c128_105 = arith.constant 128 : index
    %103 = vector.load %arg14[%c0_104, %c128_105] : memref<32x328xf32, #tpu.memory_space<vmem>>, vector<32x72xf32>
    %c0_106 = arith.constant 0 : index
    %c129_107 = arith.constant 129 : index
    %104 = vector.load %arg14[%c0_106, %c129_107] : memref<32x328xf32, #tpu.memory_space<vmem>>, vector<32x72xf32>
    %c0_108 = arith.constant 0 : index
    %c133_109 = arith.constant 133 : index
    %105 = vector.load %arg14[%c0_108, %c133_109] : memref<32x328xf32, #tpu.memory_space<vmem>>, vector<32x72xf32>
    %c0_110 = arith.constant 0 : index
    %c134_111 = arith.constant 134 : index
    %106 = vector.load %arg14[%c0_110, %c134_111] : memref<32x328xf32, #tpu.memory_space<vmem>>, vector<32x72xf32>
    %c0_112 = arith.constant 0 : index
    %c135_113 = arith.constant 135 : index
    %107 = vector.load %arg14[%c0_112, %c135_113] : memref<32x328xf32, #tpu.memory_space<vmem>>, vector<32x72xf32>
    %108 = tpu.concatenate %99, %100, %101, %102, %103, %104, %105, %106, %107 in 0 : vector<32x72xf32>, vector<32x72xf32>, vector<32x72xf32>, vector<32x72xf32>, vector<32x72xf32>, vector<32x72xf32>, vector<32x72xf32>, vector<32x72xf32>, vector<32x72xf32> -> vector<288x72xf32>
    %109 = arith.truncf %108 : vector<288x72xf32> to vector<288x72xbf16>
    %c0_114 = arith.constant 0 : index
    %c0_115 = arith.constant 0 : index
    %110 = vector.load %arg9[%c0_114, %c0_115] : memref<32x288xbf16, #tpu.memory_space<vmem>>, vector<32x288xbf16>
    %cst_116 = arith.constant dense<0.000000e+00> : vector<32x72xf32>
    %111 = tpu.matmul %110, %109, %cst_116 {dimension_numbers = #tpu.dot_dimension_numbers<[1], [0], [0], [1], [0, 0, 1, 1], [], []>} : vector<32x288xbf16>, vector<288x72xbf16>, vector<32x72xf32> -> vector<32x72xf32>
    %c0_117 = arith.constant 0 : index
    %c0_118 = arith.constant 0 : index
    %112 = vector.load %arg10[%c0_117, %c0_118] : memref<32x1xf32, #tpu.memory_space<vmem>>, vector<32x1xf32>
    %113 = vector.broadcast %112 : vector<32x1xf32> to vector<32x72xf32>
    %114 = arith.addf %111, %113 : vector<32x72xf32>
    %cst_119 = arith.constant 0.000000e+00 : f32
    %115 = vector.broadcast %cst_119 : f32 to vector<32x72xf32>
    %116 = arith.maximumf %114, %115 : vector<32x72xf32>
    %117 = vector.broadcast %48 : vector<1x72xf32> to vector<32x72xf32>
    %118 = arith.mulf %117, %116 : vector<32x72xf32>
    %c0_120 = arith.constant 0 : index
    %c128_121 = arith.constant 128 : index
    %119 = vector.load %arg14[%c0_120, %c128_121] : memref<32x328xf32, #tpu.memory_space<vmem>>, vector<32x72xf32>
    tpu.vector_store %arg14[%c0_120, %c128_121], %118 {strides = array<i32>} : memref<32x328xf32, #tpu.memory_space<vmem>>, vector<32x72xf32>,
    %c0_122 = arith.constant 0 : index
    %c121_123 = arith.constant 121 : index
    %120 = vector.load %arg14[%c0_122, %c121_123] : memref<32x328xf32, #tpu.memory_space<vmem>>, vector<32x72xf32>
    %c0_124 = arith.constant 0 : index
    %c122_125 = arith.constant 122 : index
    %121 = vector.load %arg14[%c0_124, %c122_125] : memref<32x328xf32, #tpu.memory_space<vmem>>, vector<32x72xf32>
    %c0_126 = arith.constant 0 : index
    %c123_127 = arith.constant 123 : index
    %122 = vector.load %arg14[%c0_126, %c123_127] : memref<32x328xf32, #tpu.memory_space<vmem>>, vector<32x72xf32>
    %c0_128 = arith.constant 0 : index
    %c127_129 = arith.constant 127 : index
    %123 = vector.load %arg14[%c0_128, %c127_129] : memref<32x328xf32, #tpu.memory_space<vmem>>, vector<32x72xf32>
    %c0_130 = arith.constant 0 : index
    %c128_131 = arith.constant 128 : index
    %124 = vector.load %arg14[%c0_130, %c128_131] : memref<32x328xf32, #tpu.memory_space<vmem>>, vector<32x72xf32>
    %c0_132 = arith.constant 0 : index
    %c129_133 = arith.constant 129 : index
    %125 = vector.load %arg14[%c0_132, %c129_133] : memref<32x328xf32, #tpu.memory_space<vmem>>, vector<32x72xf32>
    %c0_134 = arith.constant 0 : index
    %c133_135 = arith.constant 133 : index
    %126 = vector.load %arg14[%c0_134, %c133_135] : memref<32x328xf32, #tpu.memory_space<vmem>>, vector<32x72xf32>
    %c0_136 = arith.constant 0 : index
    %c134_137 = arith.constant 134 : index
    %127 = vector.load %arg14[%c0_136, %c134_137] : memref<32x328xf32, #tpu.memory_space<vmem>>, vector<32x72xf32>
    %c0_138 = arith.constant 0 : index
    %c135_139 = arith.constant 135 : index
    %128 = vector.load %arg14[%c0_138, %c135_139] : memref<32x328xf32, #tpu.memory_space<vmem>>, vector<32x72xf32>
    %129 = tpu.concatenate %120, %121, %122, %123, %124, %125, %126, %127, %128 in 0 : vector<32x72xf32>, vector<32x72xf32>, vector<32x72xf32>, vector<32x72xf32>, vector<32x72xf32>, vector<32x72xf32>, vector<32x72xf32>, vector<32x72xf32>, vector<32x72xf32> -> vector<288x72xf32>
    %130 = arith.truncf %129 : vector<288x72xf32> to vector<288x72xbf16>
    %c0_140 = arith.constant 0 : index
    %c0_141 = arith.constant 0 : index
    %131 = vector.load %arg11[%c0_140, %c0_141] : memref<32x288xbf16, #tpu.memory_space<vmem>>, vector<32x288xbf16>
    %cst_142 = arith.constant dense<0.000000e+00> : vector<32x72xf32>
    %132 = tpu.matmul %131, %130, %cst_142 {dimension_numbers = #tpu.dot_dimension_numbers<[1], [0], [0], [1], [0, 0, 1, 1], [], []>} : vector<32x288xbf16>, vector<288x72xbf16>, vector<32x72xf32> -> vector<32x72xf32>
    %c0_143 = arith.constant 0 : index
    %c0_144 = arith.constant 0 : index
    %133 = vector.load %arg12[%c0_143, %c0_144] : memref<32x1xf32, #tpu.memory_space<vmem>>, vector<32x1xf32>
    %134 = vector.broadcast %133 : vector<32x1xf32> to vector<32x72xf32>
    %135 = arith.addf %132, %134 : vector<32x72xf32>
    %136 = arith.addf %135, %93 : vector<32x72xf32>
    %137 = vector.broadcast %48 : vector<1x72xf32> to vector<32x72xf32>
    %138 = arith.mulf %137, %136 : vector<32x72xf32>
    %c0_145 = arith.constant 0 : index
    %c128_146 = arith.constant 128 : index
    %139 = vector.load %arg14[%c0_145, %c128_146] : memref<32x328xf32, #tpu.memory_space<vmem>>, vector<32x72xf32>
    tpu.vector_store %arg14[%c0_145, %c128_146], %138 {strides = array<i32>} : memref<32x328xf32, #tpu.memory_space<vmem>>, vector<32x72xf32>,
    return
  }
}

module attributes {stable_mosaic.version = 11 : i64} {
  func.func @_head_kernel(%arg0: memref<2x128xf32, #tpu.memory_space<vmem>>, %arg1: memref<128x256xbf16, #tpu.memory_space<vmem>>, %arg2: memref<1x256xf32, #tpu.memory_space<vmem>>, %arg3: memref<256x15xbf16, #tpu.memory_space<vmem>>, %arg4: memref<1x15xf32, #tpu.memory_space<vmem>>, %arg5: memref<2x15xf32, #tpu.memory_space<vmem>>, %arg6: memref<2x256xf32, #tpu.memory_space<vmem>>) attributes {dimension_semantics = [], scalar_prefetch = 0 : i64, scratch_operands = 0 : i64, tpu.core_type = #tpu.core_type<tc>} {
    %c0 = arith.constant 0 : index
    %c0_0 = arith.constant 0 : index
    %0 = vector.load %arg0[%c0, %c0_0] : memref<2x128xf32, #tpu.memory_space<vmem>>, vector<2x128xf32>
    %cst = arith.constant 0.000000e+00 : f32
    %1 = vector.broadcast %cst : f32 to vector<2x128xf32>
    %2 = arith.maximumf %0, %1 : vector<2x128xf32>
    %3 = arith.truncf %2 : vector<2x128xf32> to vector<2x128xbf16>
    %c0_1 = arith.constant 0 : index
    %c0_2 = arith.constant 0 : index
    %4 = vector.load %arg1[%c0_1, %c0_2] : memref<128x256xbf16, #tpu.memory_space<vmem>>, vector<128x256xbf16>
    %cst_3 = arith.constant dense<0.000000e+00> : vector<2x256xf32>
    %5 = tpu.matmul %3, %4, %cst_3 {dimension_numbers = #tpu.dot_dimension_numbers<[1], [0], [0], [1], [0, 0, 1, 1], [], []>} : vector<2x128xbf16>, vector<128x256xbf16>, vector<2x256xf32> -> vector<2x256xf32>
    %c0_4 = arith.constant 0 : index
    %c0_5 = arith.constant 0 : index
    %6 = vector.load %arg2[%c0_4, %c0_5] : memref<1x256xf32, #tpu.memory_space<vmem>>, vector<1x256xf32>
    %7 = vector.broadcast %6 : vector<1x256xf32> to vector<2x256xf32>
    %8 = arith.addf %5, %7 : vector<2x256xf32>
    %cst_6 = arith.constant 0.000000e+00 : f32
    %9 = vector.broadcast %cst_6 : f32 to vector<2x256xf32>
    %10 = arith.maximumf %8, %9 : vector<2x256xf32>
    %c0_7 = arith.constant 0 : index
    %c0_8 = arith.constant 0 : index
    %11 = vector.load %arg6[%c0_7, %c0_8] : memref<2x256xf32, #tpu.memory_space<vmem>>, vector<2x256xf32>
    tpu.vector_store %arg6[%c0_7, %c0_8], %10 {strides = array<i32>} : memref<2x256xf32, #tpu.memory_space<vmem>>, vector<2x256xf32>,
    %12 = arith.truncf %10 : vector<2x256xf32> to vector<2x256xbf16>
    %c0_9 = arith.constant 0 : index
    %c0_10 = arith.constant 0 : index
    %13 = vector.load %arg3[%c0_9, %c0_10] : memref<256x15xbf16, #tpu.memory_space<vmem>>, vector<256x15xbf16>
    %cst_11 = arith.constant dense<0.000000e+00> : vector<2x15xf32>
    %14 = tpu.matmul %12, %13, %cst_11 {dimension_numbers = #tpu.dot_dimension_numbers<[1], [0], [0], [1], [0, 0, 1, 1], [], []>} : vector<2x256xbf16>, vector<256x15xbf16>, vector<2x15xf32> -> vector<2x15xf32>
    %c0_12 = arith.constant 0 : index
    %c0_13 = arith.constant 0 : index
    %15 = vector.load %arg4[%c0_12, %c0_13] : memref<1x15xf32, #tpu.memory_space<vmem>>, vector<1x15xf32>
    %16 = vector.broadcast %15 : vector<1x15xf32> to vector<2x15xf32>
    %17 = arith.addf %14, %16 : vector<2x15xf32>
    %c0_14 = arith.constant 0 : index
    %c0_15 = arith.constant 0 : index
    %18 = vector.load %arg5[%c0_14, %c0_15] : memref<2x15xf32, #tpu.memory_space<vmem>>, vector<2x15xf32>
    tpu.vector_store %arg5[%c0_14, %c0_15], %17 {strides = array<i32>} : memref<2x15xf32, #tpu.memory_space<vmem>>, vector<2x15xf32>,
    return
  }
}

</mosaic_0001>

<llo_original>
// kernel: impala_policy_forward.7
$region0: #{impala_policy_forward.7}
  #allocation0 [shape = 'u32[]', space=smem, size = 0x4, offset = 0x4, fixed_abs, tag = 'smem constant byte address 0x4 - core index']
  #allocation1 [shape = 'u32[144,128]{1,0:T(1,128)}', space=vmem, size = 0x12000, scoped, tag = 'internal scratch']
  %s0 = inlined_call_operand.vmem [shape: f32[2,128], index: 0, kind: input, shape index: {}]
  %s1 = inlined_call_operand.vmem [shape: bf16[128,256], index: 1, kind: input, shape index: {}]
  %s2 = inlined_call_operand.vmem [shape: f32[1,256], index: 2, kind: input, shape index: {}]
  %s3 = inlined_call_operand.vmem [shape: bf16[256,15], index: 3, kind: input, shape index: {}]
  %s4 = inlined_call_operand.vmem [shape: f32[1,15], index: 4, kind: input, shape index: {}]
  %s5 = inlined_call_operand.hbm [shape: f32[2,15], index: 5, kind: output, shape index: {0}]
  %s6 = inlined_call_operand.hbm [shape: f32[2,256], index: 6, kind: output, shape index: {1}]
  %7 = xla_tuple %s5, %s6
  %s8 = sld [smem:[#allocation0]]
  $region38: #{impala_policy_forward.7} parent=0
    _
  %s10 = ssub.s32 1, %s8
  %s11 = scalar_select 0, %s10, %s8
  $region1: #{impala_policy_forward.7} parent=0
    #allocation2 [shape = 'u8[1024]{0}', space=vmem, size = 0x400, scoped, tag = 'output window, operand 0, single buffered']
    #allocation3 [shape = 's32[1]{0}', space=sflag, size = 0x4, scoped, tag = 'scoped memory for impala_policy_forward.7']
    #allocation4 [shape = 'u8[2048]{0}', space=vmem, size = 0x800, scoped, tag = 'output window, operand 1, single buffered']
    #allocation5 [shape = 's32[1]{0}', space=sflag, size = 0x4, scoped, tag = 'scoped memory for impala_policy_forward.7']
    %12 = vsyncpa [#allocation3], 0
    %13 = vsyncpa [#allocation5], 0
    // Predicated region
    $region2: #{impala_policy_forward.7} parent=1 // pred_check
      _
    $region3: #{impala_policy_forward.7} parent=1 // pred_check_branch
      %15 = sbr.rel (0) target = $region5
    $region4: #{impala_policy_forward.7} parent=1 // pred_region
      _
    $region5: #{impala_policy_forward.7} parent=1 // pred_fallthru
      _
    // Predicated region
    $region6: #{impala_policy_forward.7} parent=1 // pred_check
      _
    $region7: #{impala_policy_forward.7} parent=1 // pred_check_branch
      %17 = sbr.rel (0) target = $region9
    $region8: #{impala_policy_forward.7} parent=1 // pred_region
      _
    $region9: #{impala_policy_forward.7} parent=1 // pred_fallthru
      _
    // Predicated region
    $region10: #{impala_policy_forward.7} parent=1 // pred_check
      _
    $region11: #{impala_policy_forward.7} parent=1 // pred_check_branch
      %19 = sbr.rel (0) target = $region13
    $region12: #{impala_policy_forward.7} parent=1 // pred_region
      _
    $region13: #{impala_policy_forward.7} parent=1 // pred_fallthru
      _
    // Predicated region
    $region14: #{impala_policy_forward.7} parent=1 // pred_check
      _
    $region15: #{impala_policy_forward.7} parent=1 // pred_check_branch
      %21 = sbr.rel (0) target = $region17
    $region16: #{impala_policy_forward.7} parent=1 // pred_region
      _
    $region17: #{impala_policy_forward.7} parent=1 // pred_fallthru
      _
    // Predicated region
    $region18: #{impala_policy_forward.7} parent=1 // pred_check
      _
    $region19: #{impala_policy_forward.7} parent=1 // pred_check_branch
      %23 = sbr.rel (0) target = $region21
    $region20: #{impala_policy_forward.7} parent=1 // pred_region
      _
    $region21: #{impala_policy_forward.7} parent=1 // pred_fallthru
      _
    %v25 = vld [vmem:[%s0] sm:$0x3]
    %v26 = vmax.f32 %v25, 0.0
    %v27 = vpack.c.bf16 %v26, %v26
    %v28 = vld [vmem:[%s1] sm:$0xff]
    %v29 = vld [vmem:[%s1 + $0x8] sm:$0xff]
    %v30 = vld [vmem:[%s1 + $0x10] sm:$0xff]
    %v31 = vld [vmem:[%s1 + $0x18] sm:$0xff]
    %v32 = vld [vmem:[%s1 + $0x20] sm:$0xff]
    %v33 = vld [vmem:[%s1 + $0x28] sm:$0xff]
    %v34 = vld [vmem:[%s1 + $0x30] sm:$0xff]
    %v35 = vld [vmem:[%s1 + $0x38] sm:$0xff]
    %v36 = vld [vmem:[%s1 + $0x40] sm:$0xff]
    %v37 = vld [vmem:[%s1 + $0x48] sm:$0xff]
    %v38 = vld [vmem:[%s1 + $0x50] sm:$0xff]
    %v39 = vld [vmem:[%s1 + $0x58] sm:$0xff]
    %v40 = vld [vmem:[%s1 + $0x60] sm:$0xff]
    %v41 = vld [vmem:[%s1 + $0x68] sm:$0xff]
    %v42 = vld [vmem:[%s1 + $0x70] sm:$0xff]
    %v43 = vld [vmem:[%s1 + $0x78] sm:$0xff]
    %v44 = vld [vmem:[%s2] sm:$0x3]
    %v46 = vlaneseq
    %v47 = vshrl.u32 %v46, 7
    %v48 = vsub.s32 0, %v47
    %v49 = vrot.slane %v44, %v48
    %v50 = vlaneseq
    %v51 = vshrl.u32 %v50, 7
    %v52 = vsub.s32 1, %v51
    %v53 = vrot.slane %v44, %v52
    %v72 = vunpack.c.l.b16 %v28
    %v73 = vunpack.c.h.b16 %v28
    %v74 = vunpack.c.l.b16 %v29
    %v75 = vunpack.c.h.b16 %v29
    %v76 = vunpack.c.l.b16 %v30
    %v77 = vunpack.c.h.b16 %v30
    %v78 = vunpack.c.l.b16 %v31
    %v79 = vunpack.c.h.b16 %v31
    %v80 = vunpack.c.l.b16 %v32
    %v81 = vunpack.c.h.b16 %v32
    %v82 = vunpack.c.l.b16 %v33
    %v83 = vunpack.c.h.b16 %v33
    %v84 = vunpack.c.l.b16 %v34
    %v85 = vunpack.c.h.b16 %v34
    %v86 = vunpack.c.l.b16 %v35
    %v87 = vunpack.c.h.b16 %v35
    %v88 = vunpack.c.l.b16 %v36
    %v89 = vunpack.c.h.b16 %v36
    %v90 = vunpack.c.l.b16 %v37
    %v91 = vunpack.c.h.b16 %v37
    %v92 = vunpack.c.l.b16 %v38
    %v93 = vunpack.c.h.b16 %v38
    %v94 = vunpack.c.l.b16 %v39
    %v95 = vunpack.c.h.b16 %v39
    %v96 = vunpack.c.l.b16 %v40
    %v97 = vunpack.c.h.b16 %v40
    %v98 = vunpack.c.l.b16 %v41
    %v99 = vunpack.c.h.b16 %v41
    %v100 = vunpack.c.l.b16 %v42
    %v101 = vunpack.c.h.b16 %v42
    %v102 = vunpack.c.l.b16 %v43
    %v103 = vunpack.c.h.b16 %v43
    %v104 = vpack.c.b16 %v74, %v72
    %v105 = vpack.c.b16 %v75, %v73
    %v106 = vpack.c.b16 %v78, %v76
    %v107 = vpack.c.b16 %v79, %v77
    %v108 = vpack.c.b16 %v82, %v80
    %v109 = vpack.c.b16 %v83, %v81
    %v110 = vpack.c.b16 %v86, %v84
    %v111 = vpack.c.b16 %v87, %v85
    %v112 = vpack.c.b16 %v90, %v88
    %v113 = vpack.c.b16 %v91, %v89
    %v114 = vpack.c.b16 %v94, %v92
    %v115 = vpack.c.b16 %v95, %v93
    %v116 = vpack.c.b16 %v98, %v96
    %v117 = vpack.c.b16 %v99, %v97
    %v118 = vpack.c.b16 %v102, %v100
    %v119 = vpack.c.b16 %v103, %v101
    %136 = vmatprep.subr.bf16.mxu0 %v105
    %137 = vmatpush1.bf16.msra.mxu0 %v104
    %138 = vmatprep.subr.bf16.mxu0 %v107
    %139 = vmatpush1.bf16.msra.mxu0 %v106
    %140 = vmatprep.subr.bf16.mxu0 %v109
    %141 = vmatpush1.bf16.msra.mxu0 %v108
    %142 = vmatprep.subr.bf16.mxu0 %v111
    %143 = vmatpush1.bf16.msra.mxu0 %v110
    %144 = vmatprep.subr.bf16.mxu0 %v113
    %145 = vmatpush1.bf16.msra.mxu0 %v112
    %146 = vmatprep.subr.bf16.mxu0 %v115
    %147 = vmatpush1.bf16.msra.mxu0 %v114
    %148 = vmatprep.subr.bf16.mxu0 %v117
    %149 = vmatpush1.bf16.msra.mxu0 %v116
    %150 = vmatprep.subr.bf16.mxu0 %v119
    %151 = vmatpush1.bf16.msra.mxu0 %v118
    %152 = vmatprep.subr.bf16.mxu0 0
    %153 = vmatpush1.bf16.msra.mxu0 0
    %154 = vmatprep.subr.bf16.mxu0 0
    %155 = vmatpush1.bf16.msra.mxu0 0
    %156 = vmatprep.subr.bf16.mxu0 0
    %157 = vmatpush1.bf16.msra.mxu0 0
    %158 = vmatprep.subr.bf16.mxu0 0
    %159 = vmatpush1.bf16.msra.mxu0 0
    %160 = vmatprep.subr.bf16.mxu0 0
    %161 = vmatpush1.bf16.msra.mxu0 0
    %162 = vmatprep.subr.bf16.mxu0 0
    %163 = vmatpush1.bf16.msra.mxu0 0
    %164 = vmatprep.subr.bf16.mxu0 0
    %165 = vmatpush1.bf16.msra.mxu0 0
    %166 = vmatprep.subr.bf16.mxu0 0
    %167 = vmatpush1.bf16.msra.mxu0 0
    %168 = vmatprep.mubr.bf16.mxu0 0
    %169 = vmatmul.mubr.bf16.gmra.mrb[0].mxu0 %v27
    %v170 = vpop.f32.mrb[0].mxu0
    %v171 = vadd.f32 %v49, %v170
    %v172 = vpop.f32.mrb[0].mxu0
    %v173 = vadd.f32 %v53, %v172
    %v174 = vpop.f32.mrb[0].mxu0
    %v175 = vpop.f32.mrb[0].mxu0
    %176 = vdwg.mxu0
    %v177 = vmax.f32 %v171, 0.0
    %v178 = vmax.f32 %v173, 0.0
    %v181 = vcombine.low %v177, %v178
    %v183 = vunpack.c.l.s4 1983009808
    %v184 = vunpack.c.0.s8 %v183
    %v185 = vlaneseq
    %v186 = vshrl.u32 %v185, 7
    %v187 = vsub.s32 %v184, %v186
    %v188 = vrot.slane %v181, %v187
    %190 = vst [vmem:[#allocation4] sm:$0xf] %v188
    %v191 = vpack.c.bf16 %v177, %v177
    %v192 = vpack.c.bf16 %v178, %v178
    %v193 = vld [vmem:[%s3] sm:$0xf]
    %v194 = vld [vmem:[%s3 + $0x4] sm:$0xf]
    %v195 = vld [vmem:[%s3 + $0x8] sm:$0xf]
    %v196 = vld [vmem:[%s3 + $0xc] sm:$0xf]
    %v197 = vld [vmem:[%s3 + $0x10] sm:$0xf]
    %v198 = vld [vmem:[%s3 + $0x14] sm:$0xf]
    %v199 = vld [vmem:[%s3 + $0x18] sm:$0xf]
    %v200 = vld [vmem:[%s3 + $0x1c] sm:$0xf]
    %v201 = vld [vmem:[%s3 + $0x20] sm:$0xf]
    %v202 = vld [vmem:[%s3 + $0x24] sm:$0xf]
    %v203 = vld [vmem:[%s3 + $0x28] sm:$0xf]
    %v204 = vld [vmem:[%s3 + $0x2c] sm:$0xf]
    %v205 = vld [vmem:[%s3 + $0x30] sm:$0xf]
    %v206 = vld [vmem:[%s3 + $0x34] sm:$0xf]
    %v207 = vld [vmem:[%s3 + $0x38] sm:$0xf]
    %v208 = vld [vmem:[%s3 + $0x3c] sm:$0xf]
    %v209 = vld [vmem:[%s3 + $0x40] sm:$0xf]
    %v210 = vld [vmem:[%s3 + $0x44] sm:$0xf]
    %v211 = vld [vmem:[%s3 + $0x48] sm:$0xf]
    %v212 = vld [vmem:[%s3 + $0x4c] sm:$0xf]
    %v213 = vld [vmem:[%s3 + $0x50] sm:$0xf]
    %v214 = vld [vmem:[%s3 + $0x54] sm:$0xf]
    %v215 = vld [vmem:[%s3 + $0x58] sm:$0xf]
    %v216 = vld [vmem:[%s3 + $0x5c] sm:$0xf]
    %v217 = vld [vmem:[%s3 + $0x60] sm:$0xf]
    %v218 = vld [vmem:[%s3 + $0x64] sm:$0xf]
    %v219 = vld [vmem:[%s3 + $0x68] sm:$0xf]
    %v220 = vld [vmem:[%s3 + $0x6c] sm:$0xf]
    %v221 = vld [vmem:[%s3 + $0x70] sm:$0xf]
    %v222 = vld [vmem:[%s3 + $0x74] sm:$0xf]
    %v223 = vld [vmem:[%s3 + $0x78] sm:$0xf]
    %v224 = vld [vmem:[%s3 + $0x7c] sm:$0xf]
    %v225 = vld [vmem:[%s4] sm:$0x1]
    %v227 = vlaneseq
    %v228 = vshrl.u32 %v227, 7
    %v229 = vsub.s32 0, %v228
    %v230 = vrot.slane %v225, %v229
    %v264 = vunpack.c.l.b16 %v193
    %v265 = vunpack.c.l.b16 %v194
    %v266 = vunpack.c.l.b16 %v195
    %v267 = vunpack.c.l.b16 %v196
    %v268 = vunpack.c.l.b16 %v197
    %v269 = vunpack.c.l.b16 %v198
    %v270 = vunpack.c.l.b16 %v199
    %v271 = vunpack.c.l.b16 %v200
    %v272 = vunpack.c.l.b16 %v201
    %v273 = vunpack.c.l.b16 %v202
    %v274 = vunpack.c.l.b16 %v203
    %v275 = vunpack.c.l.b16 %v204
    %v276 = vunpack.c.l.b16 %v205
    %v277 = vunpack.c.l.b16 %v206
    %v278 = vunpack.c.l.b16 %v207
    %v279 = vunpack.c.l.b16 %v208
    %v280 = vunpack.c.l.b16 %v209
    %v281 = vunpack.c.l.b16 %v210
    %v282 = vunpack.c.l.b16 %v211
    %v283 = vunpack.c.l.b16 %v212
    %v284 = vunpack.c.l.b16 %v213
    %v285 = vunpack.c.l.b16 %v214
    %v286 = vunpack.c.l.b16 %v215
    %v287 = vunpack.c.l.b16 %v216
    %v288 = vunpack.c.l.b16 %v217
    %v289 = vunpack.c.l.b16 %v218
    %v290 = vunpack.c.l.b16 %v219
    %v291 = vunpack.c.l.b16 %v220
    %v292 = vunpack.c.l.b16 %v221
    %v293 = vunpack.c.l.b16 %v222
    %v294 = vunpack.c.l.b16 %v223
    %v295 = vunpack.c.l.b16 %v224
    %v296 = vpack.c.b16 %v265, %v264
    %v297 = vpack.c.b16 %v267, %v266
    %v298 = vpack.c.b16 %v269, %v268
    %v299 = vpack.c.b16 %v271, %v270
    %v300 = vpack.c.b16 %v273, %v272
    %v301 = vpack.c.b16 %v275, %v274
    %v302 = vpack.c.b16 %v277, %v276
    %v303 = vpack.c.b16 %v279, %v278
    %v304 = vpack.c.b16 %v281, %v280
    %v305 = vpack.c.b16 %v283, %v282
    %v306 = vpack.c.b16 %v285, %v284
    %v307 = vpack.c.b16 %v287, %v286
    %v308 = vpack.c.b16 %v289, %v288
    %v309 = vpack.c.b16 %v291, %v290
    %v310 = vpack.c.b16 %v293, %v292
    %v311 = vpack.c.b16 %v295, %v294
    %328 = vmatprep.subr.bf16.mxu0 0
    %329 = vmatpush1.bf16.msra.mxu0 %v296
    %330 = vmatprep.subr.bf16.mxu0 0
    %331 = vmatpush1.bf16.msra.mxu0 %v297
    %332 = vmatprep.subr.bf16.mxu0 0
    %333 = vmatpush1.bf16.msra.mxu0 %v298
    %334 = vmatprep.subr.bf16.mxu0 0
    %335 = vmatpush1.bf16.msra.mxu0 %v299
    %336 = vmatprep.subr.bf16.mxu0 0
    %337 = vmatpush1.bf16.msra.mxu0 %v300
    %338 = vmatprep.subr.bf16.mxu0 0
    %339 = vmatpush1.bf16.msra.mxu0 %v301
    %340 = vmatprep.subr.bf16.mxu0 0
    %341 = vmatpush1.bf16.msra.mxu0 %v302
    %342 = vmatprep.subr.bf16.mxu0 0
    %343 = vmatpush1.bf16.msra.mxu0 %v303
    %344 = vmatprep.subr.bf16.mxu0 0
    %345 = vmatpush1.bf16.msra.mxu0 %v304
    %346 = vmatprep.subr.bf16.mxu0 0
    %347 = vmatpush1.bf16.msra.mxu0 %v305
    %348 = vmatprep.subr.bf16.mxu0 0
    %349 = vmatpush1.bf16.msra.mxu0 %v306
    %350 = vmatprep.subr.bf16.mxu0 0
    %351 = vmatpush1.bf16.msra.mxu0 %v307
    %352 = vmatprep.subr.bf16.mxu0 0
    %353 = vmatpush1.bf16.msra.mxu0 %v308
    %354 = vmatprep.subr.bf16.mxu0 0
    %355 = vmatpush1.bf16.msra.mxu0 %v309
    %356 = vmatprep.subr.bf16.mxu0 0
    %357 = vmatpush1.bf16.msra.mxu0 %v310
    %358 = vmatprep.subr.bf16.mxu0 0
    %359 = vmatpush1.bf16.msra.mxu0 %v311
    %360 = vmatprep.mubr.bf16.mxu0 %v192
    %361 = vmatmul.mubr.bf16.gmra.mrb[0].mxu0 %v191
    %v362 = vpop.f32.mrb[0].mxu0
    %v363 = vadd.f32 %v230, %v362
    %v364 = vpop.f32.mrb[0].mxu0
    %v365 = vpop.f32.mrb[0].mxu0
    %v366 = vpop.f32.mrb[0].mxu0
    %367 = vdwg.mxu0
    %vm368 = vcmask 115712
    %369 = vst.msk [vmem:[#allocation2] sm:$0x3] %vm368, %v363
    // Predicated region
    $region22: #{impala_policy_forward.7} parent=1 // pred_check
      _
    $region23: #{impala_policy_forward.7} parent=1 // pred_check_branch
      %371 = sbr.rel (0) target = $region25
    $region24: #{impala_policy_forward.7} parent=1 // pred_region
      %s373 = ssub.s32 32, 32
      %374 = vsyncadd [#allocation3], %s373
      %s376 = sshll.u32 [#allocation2], 4
      %s377 = int_to_ptr.vmem [resolvable:$true] %s376
      %379 = dma.vmem_to_hbm [thread:$0]  %s377, 32, %s5, [#allocation3]
    $region25: #{impala_policy_forward.7} parent=1 // pred_fallthru
      _
    // Predicated region
    $region26: #{impala_policy_forward.7} parent=1 // pred_check
      _
    $region27: #{impala_policy_forward.7} parent=1 // pred_check_branch
      %381 = sbr.rel (0) target = $region29
    $region28: #{impala_policy_forward.7} parent=1 // pred_region
      %s383 = ssub.s32 64, 64
      %384 = vsyncadd [#allocation5], %s383
      %s386 = sshll.u32 [#allocation4], 4
      %s387 = int_to_ptr.vmem [resolvable:$true] %s386
      %389 = dma.vmem_to_hbm [thread:$0]  %s387, 64, %s6, [#allocation5]
    $region29: #{impala_policy_forward.7} parent=1 // pred_fallthru
      _
    // Predicated region
    $region30: #{impala_policy_forward.7} parent=1 // pred_check
      _
    $region31: #{impala_policy_forward.7} parent=1 // pred_check_branch
      %391 = sbr.rel (0) target = $region33
    $region32: #{impala_policy_forward.7} parent=1 // pred_region
      %392 = dma.done [#allocation3], 32
    $region33: #{impala_policy_forward.7} parent=1 // pred_fallthru
      _
    // Predicated region
    $region34: #{impala_policy_forward.7} parent=1 // pred_check
      _
    $region35: #{impala_policy_forward.7} parent=1 // pred_check_branch
      %394 = sbr.rel (0) target = $region37
    $region36: #{impala_policy_forward.7} parent=1 // pred_region
      %395 = dma.done [#allocation5], 64
    $region37: #{impala_policy_forward.7} parent=1 // pred_fallthru
      _
    %396 = vsyncpa [#allocation3], 1
    %397 = vsyncpa [#allocation5], 1

// kernel: impala_policy_forward.6
$region0: #{impala_policy_forward.6}
  #allocation0 [shape = 'u32[]', space=smem, size = 0x4, offset = 0x4, fixed_abs, tag = 'smem constant byte address 0x4 - core index']
  #allocation1 [shape = 'u32[144,128]{1,0:T(1,128)}', space=vmem, size = 0x12000, scoped, tag = 'internal scratch']
  #allocation2 [shape = 'f32[32,328]{1,0:T(8,128)}', space=vmem, size = 0xc000, scoped, tag = 'scratch operand']
  %s0 = inlined_call_operand.vmem [shape: f32[32,328], index: 0, kind: input, shape index: {}]
  %s1 = inlined_call_operand.vmem [shape: bf16[32,288], index: 1, kind: input, shape index: {}]
  %s2 = inlined_call_operand.vmem [shape: f32[32,1], index: 2, kind: input, shape index: {}]
  %s3 = inlined_call_operand.vmem [shape: f32[1,72], index: 3, kind: input, shape index: {}]
  %s4 = inlined_call_operand.vmem [shape: bf16[72,32], index: 4, kind: input, shape index: {}]
  %s5 = inlined_call_operand.vmem [shape: bf16[32,288], index: 5, kind: input, shape index: {}]
  %s6 = inlined_call_operand.vmem [shape: f32[32,1], index: 6, kind: input, shape index: {}]
  %s7 = inlined_call_operand.vmem [shape: bf16[32,288], index: 7, kind: input, shape index: {}]
  %s8 = inlined_call_operand.vmem [shape: f32[32,1], index: 8, kind: input, shape index: {}]
  %s9 = inlined_call_operand.vmem [shape: bf16[32,288], index: 9, kind: input, shape index: {}]
  %s10 = inlined_call_operand.vmem [shape: f32[32,1], index: 10, kind: input, shape index: {}]
  %s11 = inlined_call_operand.vmem [shape: bf16[32,288], index: 11, kind: input, shape index: {}]
  %s12 = inlined_call_operand.vmem [shape: f32[32,1], index: 12, kind: input, shape index: {}]
  %s13 = inlined_call_operand.vmem [shape: f32[1,32], index: 13, kind: input, shape index: {}]
  %s14 = inlined_call_operand.vmem [shape: f32[32,288], index: 14, kind: output, shape index: {}]
  %s15 = sld [smem:[#allocation0]]
  $region66: #{impala_policy_forward.6} parent=0
    _
  %s17 = ssub.s32 1, %s15
  %s18 = scalar_select 0, %s17, %s15
  // Predicated region
  $region2: #{impala_policy_forward.6} parent=0 // pred_check
    _
  $region3: #{impala_policy_forward.6} parent=0 // pred_check_branch
    %20 = sbr.rel (0) target = $region5
  $region4: #{impala_policy_forward.6} parent=0 // pred_region
    _
  $region5: #{impala_policy_forward.6} parent=0 // pred_fallthru
    _
  // Predicated region
  $region6: #{impala_policy_forward.6} parent=0 // pred_check
    _
  $region7: #{impala_policy_forward.6} parent=0 // pred_check_branch
    %22 = sbr.rel (0) target = $region9
  $region8: #{impala_policy_forward.6} parent=0 // pred_region
    _
  $region9: #{impala_policy_forward.6} parent=0 // pred_fallthru
    _
  // Predicated region
  $region10: #{impala_policy_forward.6} parent=0 // pred_check
    _
  $region11: #{impala_policy_forward.6} parent=0 // pred_check_branch
    %24 = sbr.rel (0) target = $region13
  $region12: #{impala_policy_forward.6} parent=0 // pred_region
    _
  $region13: #{impala_policy_forward.6} parent=0 // pred_fallthru
    _
  // Predicated region
  $region14: #{impala_policy_forward.6} parent=0 // pred_check
    _
  $region15: #{impala_policy_forward.6} parent=0 // pred_check_branch
    %26 = sbr.rel (0) target = $region17
  $region16: #{impala_policy_forward.6} parent=0 // pred_region
    _
  $region17: #{impala_policy_forward.6} parent=0 // pred_fallthru
    _
  // Predicated region
  $region18: #{impala_policy_forward.6} parent=0 // pred_check
    _
  $region19: #{impala_policy_forward.6} parent=0 // pred_check_branch
    %28 = sbr.rel (0) target = $region21
  $region20: #{impala_policy_forward.6} parent=0 // pred_region
    _
  $region21: #{impala_policy_forward.6} parent=0 // pred_fallthru
    _
  // Predicated region
  $region22: #{impala_policy_forward.6} parent=0 // pred_check
    _
  $region23: #{impala_policy_forward.6} parent=0 // pred_check_branch
    %30 = sbr.rel (0) target = $region25
  $region24: #{impala_policy_forward.6} parent=0 // pred_region
    _
  $region25: #{impala_policy_forward.6} parent=0 // pred_fallthru
    _
  // Predicated region
  $region26: #{impala_policy_forward.6} parent=0 // pred_check
    _
  $region27: #{impala_policy_forward.6} parent=0 // pred_check_branch
    %32 = sbr.rel (0) target = $region29
  $region28: #{impala_policy_forward.6} parent=0 // pred_region
    _
  $region29: #{impala_policy_forward.6} parent=0 // pred_fallthru
    _
  // Predicated region
  $region30: #{impala_policy_forward.6} parent=0 // pred_check
    _
  $region31: #{impala_policy_forward.6} parent=0 // pred_check_branch
    %34 = sbr.rel (0) target = $region33
  $region32: #{impala_policy_forward.6} parent=0 // pred_region
    _
  $region33: #{impala_policy_forward.6} parent=0 // pred_fallthru
    _
  // Predicated region
  $region34: #{impala_policy_forward.6} parent=0 // pred_check
    _
  $region35: #{impala_policy_forward.6} parent=0 // pred_check_branch
    %36 = sbr.rel (0) target = $region37
  $region36: #{impala_policy_forward.6} parent=0 // pred_region
    _
  $region37: #{impala_policy_forward.6} parent=0 // pred_fallthru
    _
  // Predicated region
  $region38: #{impala_policy_forward.6} parent=0 // pred_check
    _
  $region39: #{impala_policy_forward.6} parent=0 // pred_check_branch
    %38 = sbr.rel (0) target = $region41
  $region40: #{impala_policy_forward.6} parent=0 // pred_region
    _
  $region41: #{impala_policy_forward.6} parent=0 // pred_fallthru
    _
  // Predicated region
  $region42: #{impala_policy_forward.6} parent=0 // pred_check
    _
  $region43: #{impala_policy_forward.6} parent=0 // pred_check_branch
    %40 = sbr.rel (0) target = $region45
  $region44: #{impala_policy_forward.6} parent=0 // pred_region
    _
  $region45: #{impala_policy_forward.6} parent=0 // pred_fallthru
    _
  // Predicated region
  $region46: #{impala_policy_forward.6} parent=0 // pred_check
    _
  $region47: #{impala_policy_forward.6} parent=0 // pred_check_branch
    %42 = sbr.rel (0) target = $region49
  $region48: #{impala_policy_forward.6} parent=0 // pred_region
    _
  $region49: #{impala_policy_forward.6} parent=0 // pred_fallthru
    _
  // Predicated region
  $region50: #{impala_policy_forward.6} parent=0 // pred_check
    _
  $region51: #{impala_policy_forward.6} parent=0 // pred_check_branch
    %44 = sbr.rel (0) target = $region53
  $region52: #{impala_policy_forward.6} parent=0 // pred_region
    _
  $region53: #{impala_policy_forward.6} parent=0 // pred_fallthru
    _
  // Predicated region
  $region54: #{impala_policy_forward.6} parent=0 // pred_check
    _
  $region55: #{impala_policy_forward.6} parent=0 // pred_check_branch
    %46 = sbr.rel (0) target = $region57
  $region56: #{impala_policy_forward.6} parent=0 // pred_region
    _
  $region57: #{impala_policy_forward.6} parent=0 // pred_fallthru
    _
  %v48 = vld [vmem:[%s0] sm:$0xff]
  %v49 = vld [vmem:[%s0 + $0x8] sm:$0xff]
  %v50 = vld [vmem:[%s0 + $0x18] sm:$0xff]
  %v51 = vld [vmem:[%s0 + $0x20] sm:$0xff]
  %v52 = vld [vmem:[%s0 + $0x30] sm:$0xff]
  %v53 = vld [vmem:[%s0 + $0x38] sm:$0xff]
  %v54 = vld [vmem:[%s0 + $0x48] sm:$0xff]
  %v55 = vld [vmem:[%s0 + $0x50] sm:$0xff]
  %64 = vrot.lane.b32.xlu0 %v48, 127
  %v65 = vpop.permute.xlu0 %64
  %66 = vrot.lane.b32.xlu0 %v49, 127
  %v67 = vpop.permute.xlu0 %66
  %68 = vrot.lane.b32.xlu0 %v50, 127
  %v69 = vpop.permute.xlu0 %68
  %70 = vrot.lane.b32.xlu0 %v51, 127
  %v71 = vpop.permute.xlu0 %70
  %72 = vrot.lane.b32.xlu0 %v52, 127
  %v73 = vpop.permute.xlu0 %72
  %74 = vrot.lane.b32.xlu0 %v53, 127
  %v75 = vpop.permute.xlu0 %74
  %76 = vrot.lane.b32.xlu0 %v54, 127
  %v77 = vpop.permute.xlu0 %76
  %78 = vrot.lane.b32.xlu0 %v55, 127
  %v79 = vpop.permute.xlu0 %78
  %vm80 = vcmask 1039360
  %v81 = vsel %vm80, %v65, %v67
  %v82 = vsel %vm80, %v69, %v71
  %v83 = vsel %vm80, %v73, %v75
  %v84 = vsel %vm80, %v77, %v79
  %93 = vrot.lane.b32.xlu0 %v48, 126
  %v94 = vpop.permute.xlu0 %93
  %95 = vrot.lane.b32.xlu0 %v49, 126
  %v96 = vpop.permute.xlu0 %95
  %97 = vrot.lane.b32.xlu0 %v50, 126
  %v98 = vpop.permute.xlu0 %97
  %99 = vrot.lane.b32.xlu0 %v51, 126
  %v100 = vpop.permute.xlu0 %99
  %101 = vrot.lane.b32.xlu0 %v52, 126
  %v102 = vpop.permute.xlu0 %101
  %103 = vrot.lane.b32.xlu0 %v53, 126
  %v104 = vpop.permute.xlu0 %103
  %105 = vrot.lane.b32.xlu0 %v54, 126
  %v106 = vpop.permute.xlu0 %105
  %107 = vrot.lane.b32.xlu0 %v55, 126
  %v108 = vpop.permute.xlu0 %107
  %vm109 = vcmask 1031168
  %v110 = vsel %vm109, %v94, %v96
  %v111 = vsel %vm109, %v98, %v100
  %v112 = vsel %vm109, %v102, %v104
  %v113 = vsel %vm109, %v106, %v108
  %122 = vrot.lane.b32.xlu0 %v48, 122
  %v123 = vpop.permute.xlu0 %122
  %124 = vrot.lane.b32.xlu0 %v49, 122
  %v125 = vpop.permute.xlu0 %124
  %126 = vrot.lane.b32.xlu0 %v50, 122
  %v127 = vpop.permute.xlu0 %126
  %128 = vrot.lane.b32.xlu0 %v51, 122
  %v129 = vpop.permute.xlu0 %128
  %130 = vrot.lane.b32.xlu0 %v52, 122
  %v131 = vpop.permute.xlu0 %130
  %132 = vrot.lane.b32.xlu0 %v53, 122
  %v133 = vpop.permute.xlu0 %132
  %134 = vrot.lane.b32.xlu0 %v54, 122
  %v135 = vpop.permute.xlu0 %134
  %136 = vrot.lane.b32.xlu0 %v55, 122
  %v137 = vpop.permute.xlu0 %136
  %vm138 = vcmask 998400
  %v139 = vsel %vm138, %v123, %v125
  %v140 = vsel %vm138, %v127, %v129
  %v141 = vsel %vm138, %v131, %v133
  %v142 = vsel %vm138, %v135, %v137
  %151 = vrot.lane.b32.xlu0 %v49, 121
  %v152 = vpop.permute.xlu0 %151
  %153 = vrot.lane.b32.xlu0 %v51, 121
  %v154 = vpop.permute.xlu0 %153
  %155 = vrot.lane.b32.xlu0 %v53, 121
  %v156 = vpop.permute.xlu0 %155
  %157 = vrot.lane.b32.xlu0 %v55, 121
  %v158 = vpop.permute.xlu0 %157
  %163 = vrot.lane.b32.xlu0 %v49, 120
  %v164 = vpop.permute.xlu0 %163
  %165 = vrot.lane.b32.xlu0 %v51, 120
  %v166 = vpop.permute.xlu0 %165
  %167 = vrot.lane.b32.xlu0 %v53, 120
  %v168 = vpop.permute.xlu0 %167
  %169 = vrot.lane.b32.xlu0 %v55, 120
  %v170 = vpop.permute.xlu0 %169
  %175 = vrot.lane.b32.xlu0 %v49, 116
  %v176 = vpop.permute.xlu0 %175
  %177 = vrot.lane.b32.xlu0 %v51, 116
  %v178 = vpop.permute.xlu0 %177
  %179 = vrot.lane.b32.xlu0 %v53, 116
  %v180 = vpop.permute.xlu0 %179
  %181 = vrot.lane.b32.xlu0 %v55, 116
  %v182 = vpop.permute.xlu0 %181
  %187 = vrot.lane.b32.xlu0 %v49, 115
  %v188 = vpop.permute.xlu0 %187
  %189 = vrot.lane.b32.xlu0 %v51, 115
  %v190 = vpop.permute.xlu0 %189
  %191 = vrot.lane.b32.xlu0 %v53, 115
  %v192 = vpop.permute.xlu0 %191
  %193 = vrot.lane.b32.xlu0 %v55, 115
  %v194 = vpop.permute.xlu0 %193
  %199 = vrot.lane.b32.xlu0 %v49, 114
  %v200 = vpop.permute.xlu0 %199
  %201 = vrot.lane.b32.xlu0 %v51, 114
  %v202 = vpop.permute.xlu0 %201
  %203 = vrot.lane.b32.xlu0 %v53, 114
  %v204 = vpop.permute.xlu0 %203
  %205 = vrot.lane.b32.xlu0 %v55, 114
  %v206 = vpop.permute.xlu0 %205
  %v211 = vpack.c.bf16 %v50, %v48
  %v212 = vpack.c.bf16 %v51, %v49
  %v213 = vpack.c.bf16 %v54, %v52
  %v214 = vpack.c.bf16 %v55, %v53
  %v215 = vpack.c.bf16 %v82, %v81
  %v216 = vpack.c.bf16 %v71, %v67
  %v217 = vpack.c.bf16 %v84, %v83
  %v218 = vpack.c.bf16 %v79, %v75
  %v219 = vpack.c.bf16 %v111, %v110
  %v220 = vpack.c.bf16 %v100, %v96
  %v221 = vpack.c.bf16 %v113, %v112
  %v222 = vpack.c.bf16 %v108, %v104
  %v223 = vpack.c.bf16 %v140, %v139
  %v224 = vpack.c.bf16 %v129, %v125
  %v225 = vpack.c.bf16 %v142, %v141
  %v226 = vpack.c.bf16 %v137, %v133
  %v227 = vpack.c.bf16 %v154, %v152
  %v228 = vpack.c.bf16 %v158, %v156
  %v229 = vpack.c.bf16 %v166, %v164
  %v230 = vpack.c.bf16 %v170, %v168
  %v231 = vpack.c.bf16 %v178, %v176
  %v232 = vpack.c.bf16 %v182, %v180
  %v233 = vpack.c.bf16 %v190, %v188
  %v234 = vpack.c.bf16 %v194, %v192
  %v235 = vpack.c.bf16 %v202, %v200
  %v236 = vpack.c.bf16 %v206, %v204
  %v237 = vld [vmem:[%s1] sm:$0xff]
  %v238 = vld [vmem:[%s1 + $0x8] sm:$0xf]
  %v239 = vld [vmem:[%s1 + $0xc] sm:$0xff]
  %v240 = vld [vmem:[%s1 + $0x14] sm:$0xf]
  %v241 = vld [vmem:[%s1 + $0x18] sm:$0xff]
  %v242 = vld [vmem:[%s1 + $0x20] sm:$0xf]
  %v243 = vld [vmem:[%s1 + $0x24] sm:$0xff]
  %v244 = vld [vmem:[%s1 + $0x2c] sm:$0xf]
  %v245 = vld [vmem:[%s2] sm:$0xff]
  %v246 = vld [vmem:[%s2 + $0x8] sm:$0xff]
  %v247 = vld [vmem:[%s2 + $0x10] sm:$0xff]
  %v248 = vld [vmem:[%s2 + $0x18] sm:$0xff]
  %250 = vset.pattern.permute.xlu0 0
  %251 = vperm.xlu0 %250, %v245
  %v252 = vpop.permute.xlu0 %251
  %255 = vset.pattern.permute.xlu0 0
  %256 = vperm.xlu0 %255, %v246
  %v257 = vpop.permute.xlu0 %256
  %260 = vset.pattern.permute.xlu0 0
  %261 = vperm.xlu0 %260, %v247
  %v262 = vpop.permute.xlu0 %261
  %265 = vset.pattern.permute.xlu0 0
  %266 = vperm.xlu0 %265, %v248
  %v267 = vpop.permute.xlu0 %266
  %v277 = vunpack.c.l.b16 %v237
  %v278 = vunpack.c.h.b16 %v237
  %v279 = vunpack.c.l.b16 %v238
  %v280 = vunpack.c.l.b16 %v239
  %v281 = vunpack.c.h.b16 %v239
  %v282 = vunpack.c.l.b16 %v240
  %v283 = vunpack.c.l.b16 %v241
  %v284 = vunpack.c.h.b16 %v241
  %v285 = vunpack.c.l.b16 %v242
  %v286 = vunpack.c.l.b16 %v243
  %v287 = vunpack.c.h.b16 %v243
  %v288 = vunpack.c.l.b16 %v244
  %v289 = vpack.c.b16 %v280, %v277
  %v290 = vpack.c.b16 %v281, %v278
  %v291 = vpack.c.b16 %v282, %v279
  %v292 = vpack.c.b16 %v286, %v283
  %v293 = vpack.c.b16 %v287, %v284
  %v294 = vpack.c.b16 %v288, %v285
  %325 = vrot.lane.b32.xlu0 %v211, 7
  %v326 = vpop.permute.xlu0 %325
  %327 = vrot.lane.b32.xlu0 %v212, 7
  %v328 = vpop.permute.xlu0 %327
  %329 = vrot.lane.b32.xlu0 %v213, 7
  %v330 = vpop.permute.xlu0 %329
  %331 = vrot.lane.b32.xlu0 %v214, 7
  %v332 = vpop.permute.xlu0 %331
  %333 = vrot.lane.b32.xlu0 %v215, 7
  %v334 = vpop.permute.xlu0 %333
  %335 = vrot.lane.b32.xlu0 %v216, 7
  %v336 = vpop.permute.xlu0 %335
  %337 = vrot.lane.b32.xlu0 %v217, 7
  %v338 = vpop.permute.xlu0 %337
  %339 = vrot.lane.b32.xlu0 %v218, 7
  %v340 = vpop.permute.xlu0 %339
  %341 = vrot.lane.b32.xlu0 %v219, 7
  %v342 = vpop.permute.xlu0 %341
  %343 = vrot.lane.b32.xlu0 %v220, 7
  %v344 = vpop.permute.xlu0 %343
  %345 = vrot.lane.b32.xlu0 %v221, 7
  %v346 = vpop.permute.xlu0 %345
  %347 = vrot.lane.b32.xlu0 %v222, 7
  %v348 = vpop.permute.xlu0 %347
  %349 = vrot.lane.b32.xlu0 %v223, 7
  %v350 = vpop.permute.xlu0 %349
  %351 = vrot.lane.b32.xlu0 %v224, 7
  %v352 = vpop.permute.xlu0 %351
  %353 = vrot.lane.b32.xlu0 %v225, 7
  %v354 = vpop.permute.xlu0 %353
  %355 = vrot.lane.b32.xlu0 %v226, 7
  %v356 = vpop.permute.xlu0 %355
  %357 = vrot.lane.b32.xlu0 %v227, 7
  %v358 = vpop.permute.xlu0 %357
  %359 = vrot.lane.b32.xlu0 %v228, 7
  %v360 = vpop.permute.xlu0 %359
  %361 = vrot.lane.b32.xlu0 %v229, 7
  %v362 = vpop.permute.xlu0 %361
  %363 = vrot.lane.b32.xlu0 %v230, 7
  %v364 = vpop.permute.xlu0 %363
  %365 = vrot.lane.b32.xlu0 %v231, 7
  %v366 = vpop.permute.xlu0 %365
  %367 = vrot.lane.b32.xlu0 %v232, 7
  %v368 = vpop.permute.xlu0 %367
  %369 = vrot.lane.b32.xlu0 %v233, 7
  %v370 = vpop.permute.xlu0 %369
  %371 = vrot.lane.b32.xlu0 %v234, 7
  %v372 = vpop.permute.xlu0 %371
  %373 = vrot.lane.b32.xlu0 %v235, 7
  %v374 = vpop.permute.xlu0 %373
  %375 = vrot.lane.b32.xlu0 %v236, 7
  %v376 = vpop.permute.xlu0 %375
  %vm377 = vcmask 56320
  %v378 = vsel %vm377, %v326, %v328
  %v379 = vsel %vm377, %v330, %v332
  %v380 = vsel %vm377, %v334, %v336
  %v381 = vsel %vm377, %v338, %v340
  %v382 = vsel %vm377, %v342, %v344
  %v383 = vsel %vm377, %v346, %v348
  %v384 = vsel %vm377, %v350, %v352
  %v385 = vsel %vm377, %v354, %v356
  %vm404 = vcmask 261120
  %v406 = vsel %vm404, %v291, 0
  %v409 = vsel %vm404, %v294, 0
  %411 = vmatprep.subr.bf16.mxu0 0
  %412 = vmatpush1.bf16.msra.mxu0 %v378
  %413 = vmatprep.subr.bf16.mxu0 0
  %414 = vmatpush1.bf16.msra.mxu0 %v379
  %415 = vmatprep.subr.bf16.mxu0 0
  %416 = vmatpush1.bf16.msra.mxu0 %v380
  %417 = vmatprep.subr.bf16.mxu0 0
  %418 = vmatpush1.bf16.msra.mxu0 %v381
  %419 = vmatprep.subr.bf16.mxu0 0
  %420 = vmatpush1.bf16.msra.mxu0 %v382
  %421 = vmatprep.subr.bf16.mxu0 0
  %422 = vmatpush1.bf16.msra.mxu0 %v383
  %423 = vmatprep.subr.bf16.mxu0 0
  %424 = vmatpush1.bf16.msra.mxu0 %v384
  %425 = vmatprep.subr.bf16.mxu0 0
  %426 = vmatpush1.bf16.msra.mxu0 %v385
  %427 = vmatprep.subr.bf16.mxu0 0
  %428 = vmatpush1.bf16.msra.mxu0 %v358
  %429 = vmatprep.subr.bf16.mxu0 0
  %430 = vmatpush1.bf16.msra.mxu0 %v360
  %431 = vmatprep.subr.bf16.mxu0 0
  %432 = vmatpush1.bf16.msra.mxu0 %v362
  %433 = vmatprep.subr.bf16.mxu0 0
  %434 = vmatpush1.bf16.msra.mxu0 %v364
  %435 = vmatprep.subr.bf16.mxu0 0
  %436 = vmatpush1.bf16.msra.mxu0 %v366
  %437 = vmatprep.subr.bf16.mxu0 0
  %438 = vmatpush1.bf16.msra.mxu0 %v368
  %439 = vmatprep.subr.bf16.mxu0 0
  %440 = vmatpush1.bf16.msra.mxu0 %v370
  %441 = vmatprep.subr.bf16.mxu0 0
  %442 = vmatpush1.bf16.msra.mxu0 %v372
  %443 = vmatprep.mubr.bf16.mxu0 %v290
  %444 = vmatmul.mubr.bf16.gmra.mrb[0].mxu0 %v289
  %v445 = vpop.f32.mrb[0].mxu0
  %v446 = vadd.f32 %v252, %v445
  %v447 = vpop.f32.mrb[0].mxu0
  %v448 = vpop.f32.mrb[0].mxu0
  %v449 = vadd.f32 %v257, %v448
  %v450 = vpop.f32.mrb[0].mxu0
  %451 = vmatprep.mubr.bf16.mxu0 %v293
  %452 = vmatmul.mubr.bf16.gmra.mrb[0].mxu0 %v292
  %v453 = vpop.f32.mrb[0].mxu0
  %v454 = vadd.f32 %v262, %v453
  %v455 = vpop.f32.mrb[0].mxu0
  %v456 = vpop.f32.mrb[0].mxu0
  %v457 = vadd.f32 %v267, %v456
  %v458 = vpop.f32.mrb[0].mxu0
  %459 = vdwg.mxu0
  %460 = vmatprep.subr.bf16.mxu0 0
  %461 = vmatpush1.bf16.msra.mxu0 %v374
  %462 = vmatprep.subr.bf16.mxu0 0
  %463 = vmatpush1.bf16.msra.mxu0 %v376
  %464 = vmatprep.subr.bf16.mxu0 0
  %465 = vmatpush1.bf16.msra.mxu0 0
  %466 = vmatprep.subr.bf16.mxu0 0
  %467 = vmatpush1.bf16.msra.mxu0 0
  %468 = vmatprep.subr.bf16.mxu0 0
  %469 = vmatpush1.bf16.msra.mxu0 0
  %470 = vmatprep.subr.bf16.mxu0 0
  %471 = vmatpush1.bf16.msra.mxu0 0
  %472 = vmatprep.subr.bf16.mxu0 0
  %473 = vmatpush1.bf16.msra.mxu0 0
  %474 = vmatprep.subr.bf16.mxu0 0
  %475 = vmatpush1.bf16.msra.mxu0 0
  %476 = vmatprep.subr.bf16.mxu0 0
  %477 = vmatpush1.bf16.msra.mxu0 0
  %478 = vmatprep.subr.bf16.mxu0 0
  %479 = vmatpush1.bf16.msra.mxu0 0
  %480 = vmatprep.subr.bf16.mxu0 0
  %481 = vmatpush1.bf16.msra.mxu0 0
  %482 = vmatprep.subr.bf16.mxu0 0
  %483 = vmatpush1.bf16.msra.mxu0 0
  %484 = vmatprep.subr.bf16.mxu0 0
  %485 = vmatpush1.bf16.msra.mxu0 0
  %486 = vmatprep.subr.bf16.mxu0 0
  %487 = vmatpush1.bf16.msra.mxu0 0
  %488 = vmatprep.subr.bf16.mxu0 0
  %489 = vmatpush1.bf16.msra.mxu0 0
  %490 = vmatprep.subr.bf16.mxu0 0
  %491 = vmatpush1.bf16.msra.mxu0 0
  %492 = vmatprep.mubr.bf16.mxu0 0
  %493 = vmatmul.mubr.bf16.gmra.mrb[0].mxu0 %v406
  %v494 = vpop.f32.mrb[0].mxu0
  %v495 = vadd.f32 %v446, %v494
  %v496 = vpop.f32.mrb[0].mxu0
  %v497 = vpop.f32.mrb[0].mxu0
  %v498 = vadd.f32 %v449, %v497
  %v499 = vpop.f32.mrb[0].mxu0
  %500 = vmatprep.mubr.bf16.mxu0 0
  %501 = vmatmul.mubr.bf16.gmra.mrb[0].mxu0 %v409
  %v502 = vpop.f32.mrb[0].mxu0
  %v503 = vadd.f32 %v454, %v502
  %v504 = vpop.f32.mrb[0].mxu0
  %v505 = vpop.f32.mrb[0].mxu0
  %v506 = vadd.f32 %v457, %v505
  %v507 = vpop.f32.mrb[0].mxu0
  %508 = vdwg.mxu0
  %v509 = vld [vmem:[%s3] sm:$0x1]
  %510 = vst [vmem:[#allocation2] sm:$0xff] 0.0
  %511 = vst [vmem:[#allocation2 + $0x8] sm:$0xff] 0.0
  %vm512 = vcmask 588800
  %513 = vst.msk [vmem:[#allocation2 + $0x10] sm:$0xff] %vm512, 0.0
  %514 = vst [vmem:[#allocation2 + $0x18] sm:$0xff] 0.0
  %515 = vst [vmem:[#allocation2 + $0x20] sm:$0xff] 0.0
  %516 = vst.msk [vmem:[#allocation2 + $0x28] sm:$0xff] %vm512, 0.0
  %517 = vst [vmem:[#allocation2 + $0x30] sm:$0xff] 0.0
  %518 = vst [vmem:[#allocation2 + $0x38] sm:$0xff] 0.0
  %519 = vst.msk [vmem:[#allocation2 + $0x40] sm:$0xff] %vm512, 0.0
  %520 = vst [vmem:[#allocation2 + $0x48] sm:$0xff] 0.0
  %521 = vst [vmem:[#allocation2 + $0x50] sm:$0xff] 0.0
  %522 = vst.msk [vmem:[#allocation2 + $0x58] sm:$0xff] %vm512, 0.0
  %v524 = vlaneseq
  %v525 = vshrl.u32 %v524, 7
  %v526 = vsub.s32 0, %v525
  %v527 = vrot.slane %v509, %v526
  %v529 = vmul.f32 %v527, %v495
  %v530 = vmul.f32 %v527, %v498
  %v531 = vmul.f32 %v527, %v503
  %v532 = vmul.f32 %v527, %v506
  %v533 = vsub.f32 1.0, %v509
  %v534 = vmul.f32 %v533, -1e+30
  %v536 = vlaneseq
  %v537 = vshrl.u32 %v536, 7
  %v538 = vsub.s32 0, %v537
  %v539 = vrot.slane %v534, %v538
  %v541 = vadd.f32 %v529, %v539
  %v542 = vadd.f32 %v530, %v539
  %v543 = vadd.f32 %v531, %v539
  %v544 = vadd.f32 %v532, %v539
  %545 = vst.msk [vmem:[#allocation2 + $0x8] sm:$0xff] %vm512, %v541
  %546 = vst.msk [vmem:[#allocation2 + $0x20] sm:$0xff] %vm512, %v542
  %547 = vst.msk [vmem:[#allocation2 + $0x38] sm:$0xff] %vm512, %v543
  %548 = vst.msk [vmem:[#allocation2 + $0x50] sm:$0xff] %vm512, %v544
  %v549 = vld [vmem:[#allocation2] sm:$0xff]
  %v550 = vld [vmem:[#allocation2 + $0x8] sm:$0xff]
  %v551 = vld [vmem:[#allocation2 + $0x18] sm:$0xff]
  %v552 = vld [vmem:[#allocation2 + $0x20] sm:$0xff]
  %v553 = vld [vmem:[#allocation2 + $0x30] sm:$0xff]
  %v554 = vld [vmem:[#allocation2 + $0x38] sm:$0xff]
  %v555 = vld [vmem:[#allocation2 + $0x48] sm:$0xff]
  %v556 = vld [vmem:[#allocation2 + $0x50] sm:$0xff]
  %565 = vrot.lane.b32.xlu0 %v549, 127
  %v566 = vpop.permute.xlu0 %565
  %567 = vrot.lane.b32.xlu0 %v550, 127
  %v568 = vpop.permute.xlu0 %567
  %569 = vrot.lane.b32.xlu0 %v551, 127
  %v570 = vpop.permute.xlu0 %569
  %571 = vrot.lane.b32.xlu0 %v552, 127
  %v572 = vpop.permute.xlu0 %571
  %573 = vrot.lane.b32.xlu0 %v553, 127
  %v574 = vpop.permute.xlu0 %573
  %575 = vrot.lane.b32.xlu0 %v554, 127
  %v576 = vpop.permute.xlu0 %575
  %577 = vrot.lane.b32.xlu0 %v555, 127
  %v578 = vpop.permute.xlu0 %577
  %579 = vrot.lane.b32.xlu0 %v556, 127
  %v580 = vpop.permute.xlu0 %579
  %v581 = vsel %vm80, %v566, %v568
  %v582 = vsel %vm80, %v570, %v572
  %v583 = vsel %vm80, %v574, %v576
  %v584 = vsel %vm80, %v578, %v580
  %v593 = vmax.f32 %v549, %v581
  %v594 = vmax.f32 %v550, %v568
  %v595 = vmax.f32 %v551, %v582
  %v596 = vmax.f32 %v552, %v572
  %v597 = vmax.f32 %v553, %v583
  %v598 = vmax.f32 %v554, %v576
  %v599 = vmax.f32 %v555, %v584
  %v600 = vmax.f32 %v556, %v580
  %601 = vrot.lane.b32.xlu0 %v549, 126
  %v602 = vpop.permute.xlu0 %601
  %603 = vrot.lane.b32.xlu0 %v550, 126
  %v604 = vpop.permute.xlu0 %603
  %605 = vrot.lane.b32.xlu0 %v551, 126
  %v606 = vpop.permute.xlu0 %605
  %607 = vrot.lane.b32.xlu0 %v552, 126
  %v608 = vpop.permute.xlu0 %607
  %609 = vrot.lane.b32.xlu0 %v553, 126
  %v610 = vpop.permute.xlu0 %609
  %611 = vrot.lane.b32.xlu0 %v554, 126
  %v612 = vpop.permute.xlu0 %611
  %613 = vrot.lane.b32.xlu0 %v555, 126
  %v614 = vpop.permute.xlu0 %613
  %615 = vrot.lane.b32.xlu0 %v556, 126
  %v616 = vpop.permute.xlu0 %615
  %v617 = vsel %vm109, %v602, %v604
  %v618 = vsel %vm109, %v606, %v608
  %v619 = vsel %vm109, %v610, %v612
  %v620 = vsel %vm109, %v614, %v616
  %v629 = vmax.f32 %v593, %v617
  %v630 = vmax.f32 %v594, %v604
  %v631 = vmax.f32 %v595, %v618
  %v632 = vmax.f32 %v596, %v608
  %v633 = vmax.f32 %v597, %v619
  %v634 = vmax.f32 %v598, %v612
  %v635 = vmax.f32 %v599, %v620
  %v636 = vmax.f32 %v600, %v616
  %637 = vrot.lane.b32.xlu0 %v549, 122
  %v638 = vpop.permute.xlu0 %637
  %639 = vrot.lane.b32.xlu0 %v550, 122
  %v640 = vpop.permute.xlu0 %639
  %641 = vrot.lane.b32.xlu0 %v551, 122
  %v642 = vpop.permute.xlu0 %641
  %643 = vrot.lane.b32.xlu0 %v552, 122
  %v644 = vpop.permute.xlu0 %643
  %645 = vrot.lane.b32.xlu0 %v553, 122
  %v646 = vpop.permute.xlu0 %645
  %647 = vrot.lane.b32.xlu0 %v554, 122
  %v648 = vpop.permute.xlu0 %647
  %649 = vrot.lane.b32.xlu0 %v555, 122
  %v650 = vpop.permute.xlu0 %649
  %651 = vrot.lane.b32.xlu0 %v556, 122
  %v652 = vpop.permute.xlu0 %651
  %v653 = vsel %vm138, %v638, %v640
  %v654 = vsel %vm138, %v642, %v644
  %v655 = vsel %vm138, %v646, %v648
  %v656 = vsel %vm138, %v650, %v652
  %v665 = vmax.f32 %v629, %v653
  %v666 = vmax.f32 %v630, %v640
  %v667 = vmax.f32 %v631, %v654
  %v668 = vmax.f32 %v632, %v644
  %v669 = vmax.f32 %v633, %v655
  %v670 = vmax.f32 %v634, %v648
  %v671 = vmax.f32 %v635, %v656
  %v672 = vmax.f32 %v636, %v652
  %673 = vrot.lane.b32.xlu0 %v550, 121
  %v674 = vpop.permute.xlu0 %673
  %675 = vrot.lane.b32.xlu0 %v552, 121
  %v676 = vpop.permute.xlu0 %675
  %677 = vrot.lane.b32.xlu0 %v554, 121
  %v678 = vpop.permute.xlu0 %677
  %679 = vrot.lane.b32.xlu0 %v556, 121
  %v680 = vpop.permute.xlu0 %679
  %v685 = vmax.f32 %v665, %v674
  %v686 = vmax.f32 %v666, %v674
  %v687 = vmax.f32 %v667, %v676
  %v688 = vmax.f32 %v668, %v676
  %v689 = vmax.f32 %v669, %v678
  %v690 = vmax.f32 %v670, %v678
  %v691 = vmax.f32 %v671, %v680
  %v692 = vmax.f32 %v672, %v680
  %693 = vrot.lane.b32.xlu0 %v550, 120
  %v694 = vpop.permute.xlu0 %693
  %695 = vrot.lane.b32.xlu0 %v552, 120
  %v696 = vpop.permute.xlu0 %695
  %697 = vrot.lane.b32.xlu0 %v554, 120
  %v698 = vpop.permute.xlu0 %697
  %699 = vrot.lane.b32.xlu0 %v556, 120
  %v700 = vpop.permute.xlu0 %699
  %v705 = vmax.f32 %v685, %v694
  %v706 = vmax.f32 %v686, %v694
  %v707 = vmax.f32 %v687, %v696
  %v708 = vmax.f32 %v688, %v696
  %v709 = vmax.f32 %v689, %v698
  %v710 = vmax.f32 %v690, %v698
  %v711 = vmax.f32 %v691, %v700
  %v712 = vmax.f32 %v692, %v700
  %713 = vrot.lane.b32.xlu0 %v550, 116
  %v714 = vpop.permute.xlu0 %713
  %715 = vrot.lane.b32.xlu0 %v552, 116
  %v716 = vpop.permute.xlu0 %715
  %717 = vrot.lane.b32.xlu0 %v554, 116
  %v718 = vpop.permute.xlu0 %717
  %719 = vrot.lane.b32.xlu0 %v556, 116
  %v720 = vpop.permute.xlu0 %719
  %v725 = vmax.f32 %v705, %v714
  %v726 = vmax.f32 %v706, %v714
  %v727 = vmax.f32 %v707, %v716
  %v728 = vmax.f32 %v708, %v716
  %v729 = vmax.f32 %v709, %v718
  %v730 = vmax.f32 %v710, %v718
  %v731 = vmax.f32 %v711, %v720
  %v732 = vmax.f32 %v712, %v720
  %733 = vrot.lane.b32.xlu0 %v550, 115
  %v734 = vpop.permute.xlu0 %733
  %735 = vrot.lane.b32.xlu0 %v552, 115
  %v736 = vpop.permute.xlu0 %735
  %737 = vrot.lane.b32.xlu0 %v554, 115
  %v738 = vpop.permute.xlu0 %737
  %739 = vrot.lane.b32.xlu0 %v556, 115
  %v740 = vpop.permute.xlu0 %739
  %v745 = vmax.f32 %v725, %v734
  %v746 = vmax.f32 %v726, %v734
  %v747 = vmax.f32 %v727, %v736
  %v748 = vmax.f32 %v728, %v736
  %v749 = vmax.f32 %v729, %v738
  %v750 = vmax.f32 %v730, %v738
  %v751 = vmax.f32 %v731, %v740
  %v752 = vmax.f32 %v732, %v740
  %753 = vrot.lane.b32.xlu0 %v550, 114
  %v754 = vpop.permute.xlu0 %753
  %755 = vrot.lane.b32.xlu0 %v552, 114
  %v756 = vpop.permute.xlu0 %755
  %757 = vrot.lane.b32.xlu0 %v554, 114
  %v758 = vpop.permute.xlu0 %757
  %759 = vrot.lane.b32.xlu0 %v556, 114
  %v760 = vpop.permute.xlu0 %759
  %v765 = vmax.f32 %v745, %v754
  %v766 = vmax.f32 %v746, %v754
  %v767 = vmax.f32 %v747, %v756
  %v768 = vmax.f32 %v748, %v756
  %v769 = vmax.f32 %v749, %v758
  %v770 = vmax.f32 %v750, %v758
  %v771 = vmax.f32 %v751, %v760
  %v772 = vmax.f32 %v752, %v760
  %v773 = vpack.c.bf16 %v767, %v765
  %v774 = vpack.c.bf16 %v768, %v766
  %v775 = vpack.c.bf16 %v771, %v769
  %v776 = vpack.c.bf16 %v772, %v770
  %v777 = vld [vmem:[%s4] sm:$0xf]
  %v778 = vld [vmem:[%s4 + $0x4] sm:$0xf]
  %v779 = vld [vmem:[%s4 + $0x8] sm:$0xf]
  %v780 = vld [vmem:[%s4 + $0xc] sm:$0xf]
  %v781 = vld [vmem:[%s4 + $0x10] sm:$0xf]
  %v782 = vld [vmem:[%s4 + $0x14] sm:$0xf]
  %v783 = vld [vmem:[%s4 + $0x18] sm:$0xf]
  %v784 = vld [vmem:[%s4 + $0x1c] sm:$0xf]
  %v785 = vld [vmem:[%s4 + $0x20] sm:$0xf]
  %790 = vrot.lane.b32.xlu0 %v773, 7
  %v791 = vpop.permute.xlu0 %790
  %792 = vrot.lane.b32.xlu0 %v774, 7
  %v793 = vpop.permute.xlu0 %792
  %794 = vrot.lane.b32.xlu0 %v775, 7
  %v795 = vpop.permute.xlu0 %794
  %796 = vrot.lane.b32.xlu0 %v776, 7
  %v797 = vpop.permute.xlu0 %796
  %v798 = vsel %vm377, %v791, %v793
  %v799 = vsel %vm377, %v795, %v797
  %v809 = vunpack.c.l.b16 %v777
  %v810 = vunpack.c.l.b16 %v778
  %v811 = vunpack.c.l.b16 %v779
  %v812 = vunpack.c.l.b16 %v780
  %v813 = vunpack.c.l.b16 %v781
  %v814 = vunpack.c.l.b16 %v782
  %v815 = vunpack.c.l.b16 %v783
  %v816 = vunpack.c.l.b16 %v784
  %v817 = vunpack.c.l.b16 %v785
  %v818 = vpack.c.b16 %v810, %v809
  %v819 = vpack.c.b16 %v812, %v811
  %v820 = vpack.c.b16 %v814, %v813
  %v821 = vpack.c.b16 %v816, %v815
  %v822 = vpack.c.b16 %v817, %v817
  %v828 = vsel %vm512, %v798, 0
  %v831 = vsel %vm512, %v799, 0
  %vm833 = vcmask 1043456
  %v835 = vsel %vm833, %v822, 0
  %837 = vmatprep.subr.bf16.mxu0 0
  %838 = vmatpush1.bf16.msra.mxu0 %v818
  %839 = vmatprep.subr.bf16.mxu0 0
  %840 = vmatpush1.bf16.msra.mxu0 %v819
  %841 = vmatprep.subr.bf16.mxu0 0
  %842 = vmatpush1.bf16.msra.mxu0 %v820
  %843 = vmatprep.subr.bf16.mxu0 0
  %844 = vmatpush1.bf16.msra.mxu0 %v821
  %845 = vmatprep.subr.bf16.mxu0 0
  %846 = vmatpush1.bf16.msra.mxu0 %v835
  %847 = vmatprep.subr.bf16.mxu0 0
  %848 = vmatpush1.bf16.msra.mxu0 0
  %849 = vmatprep.subr.bf16.mxu0 0
  %850 = vmatpush1.bf16.msra.mxu0 0
  %851 = vmatprep.subr.bf16.mxu0 0
  %852 = vmatpush1.bf16.msra.mxu0 0
  %853 = vmatprep.subr.bf16.mxu0 0
  %854 = vmatpush1.bf16.msra.mxu0 0
  %855 = vmatprep.subr.bf16.mxu0 0
  %856 = vmatpush1.bf16.msra.mxu0 0
  %857 = vmatprep.subr.bf16.mxu0 0
  %858 = vmatpush1.bf16.msra.mxu0 0
  %859 = vmatprep.subr.bf16.mxu0 0
  %860 = vmatpush1.bf16.msra.mxu0 0
  %861 = vmatprep.subr.bf16.mxu0 0
  %862 = vmatpush1.bf16.msra.mxu0 0
  %863 = vmatprep.subr.bf16.mxu0 0
  %864 = vmatpush1.bf16.msra.mxu0 0
  %865 = vmatprep.subr.bf16.mxu0 0
  %866 = vmatpush1.bf16.msra.mxu0 0
  %867 = vmatprep.subr.bf16.mxu0 0
  %868 = vmatpush1.bf16.msra.mxu0 0
  %869 = vmatprep.mubr.bf16.mxu0 0
  %870 = vmatmul.mubr.bf16.gmra.mrb[0].mxu0 %v828
  %v871 = vpop.f32.mrb[0].mxu0
  %v872 = vadd.f32 0.0, %v871
  %v873 = vpop.f32.mrb[0].mxu0
  %v874 = vpop.f32.mrb[0].mxu0
  %v875 = vadd.f32 0.0, %v874
  %v876 = vpop.f32.mrb[0].mxu0
  %877 = vmatprep.mubr.bf16.mxu0 0
  %878 = vmatmul.mubr.bf16.gmra.mrb[0].mxu0 %v831
  %v879 = vpop.f32.mrb[0].mxu0
  %v880 = vadd.f32 0.0, %v879
  %v881 = vpop.f32.mrb[0].mxu0
  %v882 = vpop.f32.mrb[0].mxu0
  %v883 = vadd.f32 0.0, %v882
  %v884 = vpop.f32.mrb[0].mxu0
  %885 = vdwg.mxu0
  %v886 = vld [vmem:[%s13] sm:$0x1]
  %887 = vst [vmem:[%s14] sm:$0xff] 0.0
  %888 = vst [vmem:[%s14 + $0x8] sm:$0xff] 0.0
  %889 = vst.msk [vmem:[%s14 + $0x10] sm:$0xff] %vm404, 0.0
  %890 = vst [vmem:[%s14 + $0x18] sm:$0xff] 0.0
  %891 = vst [vmem:[%s14 + $0x20] sm:$0xff] 0.0
  %892 = vst.msk [vmem:[%s14 + $0x28] sm:$0xff] %vm404, 0.0
  %893 = vst [vmem:[%s14 + $0x30] sm:$0xff] 0.0
  %894 = vst [vmem:[%s14 + $0x38] sm:$0xff] 0.0
  %895 = vst.msk [vmem:[%s14 + $0x40] sm:$0xff] %vm404, 0.0
  %896 = vst [vmem:[%s14 + $0x48] sm:$0xff] 0.0
  %897 = vst [vmem:[%s14 + $0x50] sm:$0xff] 0.0
  %898 = vst.msk [vmem:[%s14 + $0x58] sm:$0xff] %vm404, 0.0
  %v899 = vmax.f32 %v872, 0.0
  %v900 = vmax.f32 %v875, 0.0
  %v901 = vmax.f32 %v880, 0.0
  %v902 = vmax.f32 %v883, 0.0
  %v904 = vlaneseq
  %v905 = vshrl.u32 %v904, 7
  %v906 = vsub.s32 0, %v905
  %v907 = vrot.slane %v886, %v906
  %v909 = vmul.f32 %v907, %v899
  %v910 = vmul.f32 %v907, %v900
  %v911 = vmul.f32 %v907, %v901
  %v912 = vmul.f32 %v907, %v902
  %913 = vst.msk [vmem:[%s14 + $0x8] sm:$0xff] %vm404, %v909
  %914 = vst.msk [vmem:[%s14 + $0x20] sm:$0xff] %vm404, %v910
  %915 = vst.msk [vmem:[%s14 + $0x38] sm:$0xff] %vm404, %v911
  %916 = vst.msk [vmem:[%s14 + $0x50] sm:$0xff] %vm404, %v912
  %v917 = vld [vmem:[%s14] sm:$0xff]
  %v918 = vld [vmem:[%s14 + $0x8] sm:$0xff]
  %v919 = vld [vmem:[%s14 + $0x18] sm:$0xff]
  %v920 = vld [vmem:[%s14 + $0x20] sm:$0xff]
  %v921 = vld [vmem:[%s14 + $0x30] sm:$0xff]
  %v922 = vld [vmem:[%s14 + $0x38] sm:$0xff]
  %v923 = vld [vmem:[%s14 + $0x48] sm:$0xff]
  %v924 = vld [vmem:[%s14 + $0x50] sm:$0xff]
  %933 = vrot.lane.b32.xlu0 %v917, 127
  %v934 = vpop.permute.xlu0 %933
  %935 = vrot.lane.b32.xlu0 %v918, 127
  %v936 = vpop.permute.xlu0 %935
  %937 = vrot.lane.b32.xlu0 %v919, 127
  %v938 = vpop.permute.xlu0 %937
  %939 = vrot.lane.b32.xlu0 %v920, 127
  %v940 = vpop.permute.xlu0 %939
  %941 = vrot.lane.b32.xlu0 %v921, 127
  %v942 = vpop.permute.xlu0 %941
  %943 = vrot.lane.b32.xlu0 %v922, 127
  %v944 = vpop.permute.xlu0 %943
  %945 = vrot.lane.b32.xlu0 %v923, 127
  %v946 = vpop.permute.xlu0 %945
  %947 = vrot.lane.b32.xlu0 %v924, 127
  %v948 = vpop.permute.xlu0 %947
  %v949 = vsel %vm80, %v934, %v936
  %v950 = vsel %vm80, %v938, %v940
  %v951 = vsel %vm80, %v942, %v944
  %v952 = vsel %vm80, %v946, %v948
  %961 = vrot.lane.b32.xlu0 %v917, 126
  %v962 = vpop.permute.xlu0 %961
  %963 = vrot.lane.b32.xlu0 %v918, 126
  %v964 = vpop.permute.xlu0 %963
  %965 = vrot.lane.b32.xlu0 %v919, 126
  %v966 = vpop.permute.xlu0 %965
  %967 = vrot.lane.b32.xlu0 %v920, 126
  %v968 = vpop.permute.xlu0 %967
  %969 = vrot.lane.b32.xlu0 %v921, 126
  %v970 = vpop.permute.xlu0 %969
  %971 = vrot.lane.b32.xlu0 %v922, 126
  %v972 = vpop.permute.xlu0 %971
  %973 = vrot.lane.b32.xlu0 %v923, 126
  %v974 = vpop.permute.xlu0 %973
  %975 = vrot.lane.b32.xlu0 %v924, 126
  %v976 = vpop.permute.xlu0 %975
  %v977 = vsel %vm109, %v962, %v964
  %v978 = vsel %vm109, %v966, %v968
  %v979 = vsel %vm109, %v970, %v972
  %v980 = vsel %vm109, %v974, %v976
  %989 = vrot.lane.b32.xlu0 %v917, 124
  %v990 = vpop.permute.xlu0 %989
  %991 = vrot.lane.b32.xlu0 %v918, 124
  %v992 = vpop.permute.xlu0 %991
  %993 = vrot.lane.b32.xlu0 %v919, 124
  %v994 = vpop.permute.xlu0 %993
  %995 = vrot.lane.b32.xlu0 %v920, 124
  %v996 = vpop.permute.xlu0 %995
  %997 = vrot.lane.b32.xlu0 %v921, 124
  %v998 = vpop.permute.xlu0 %997
  %999 = vrot.lane.b32.xlu0 %v922, 124
  %v1000 = vpop.permute.xlu0 %999
  %1001 = vrot.lane.b32.xlu0 %v923, 124
  %v1002 = vpop.permute.xlu0 %1001
  %1003 = vrot.lane.b32.xlu0 %v924, 124
  %v1004 = vpop.permute.xlu0 %1003
  %vm1005 = vcmask 1014784
  %v1006 = vsel %vm1005, %v990, %v992
  %v1007 = vsel %vm1005, %v994, %v996
  %v1008 = vsel %vm1005, %v998, %v1000
  %v1009 = vsel %vm1005, %v1002, %v1004
  %1018 = vrot.lane.b32.xlu0 %v918, 123
  %v1019 = vpop.permute.xlu0 %1018
  %1020 = vrot.lane.b32.xlu0 %v920, 123
  %v1021 = vpop.permute.xlu0 %1020
  %1022 = vrot.lane.b32.xlu0 %v922, 123
  %v1023 = vpop.permute.xlu0 %1022
  %1024 = vrot.lane.b32.xlu0 %v924, 123
  %v1025 = vpop.permute.xlu0 %1024
  %1030 = vrot.lane.b32.xlu0 %v918, 122
  %v1031 = vpop.permute.xlu0 %1030
  %1032 = vrot.lane.b32.xlu0 %v920, 122
  %v1033 = vpop.permute.xlu0 %1032
  %1034 = vrot.lane.b32.xlu0 %v922, 122
  %v1035 = vpop.permute.xlu0 %1034
  %1036 = vrot.lane.b32.xlu0 %v924, 122
  %v1037 = vpop.permute.xlu0 %1036
  %1042 = vrot.lane.b32.xlu0 %v918, 120
  %v1043 = vpop.permute.xlu0 %1042
  %1044 = vrot.lane.b32.xlu0 %v920, 120
  %v1045 = vpop.permute.xlu0 %1044
  %1046 = vrot.lane.b32.xlu0 %v922, 120
  %v1047 = vpop.permute.xlu0 %1046
  %1048 = vrot.lane.b32.xlu0 %v924, 120
  %v1049 = vpop.permute.xlu0 %1048
  %1054 = vrot.lane.b32.xlu0 %v918, 119
  %v1055 = vpop.permute.xlu0 %1054
  %1056 = vrot.lane.b32.xlu0 %v920, 119
  %v1057 = vpop.permute.xlu0 %1056
  %1058 = vrot.lane.b32.xlu0 %v922, 119
  %v1059 = vpop.permute.xlu0 %1058
  %1060 = vrot.lane.b32.xlu0 %v924, 119
  %v1061 = vpop.permute.xlu0 %1060
  %1066 = vrot.lane.b32.xlu0 %v918, 118
  %v1067 = vpop.permute.xlu0 %1066
  %1068 = vrot.lane.b32.xlu0 %v920, 118
  %v1069 = vpop.permute.xlu0 %1068
  %1070 = vrot.lane.b32.xlu0 %v922, 118
  %v1071 = vpop.permute.xlu0 %1070
  %1072 = vrot.lane.b32.xlu0 %v924, 118
  %v1073 = vpop.permute.xlu0 %1072
  %v1078 = vpack.c.bf16 %v919, %v917
  %v1079 = vpack.c.bf16 %v920, %v918
  %v1080 = vpack.c.bf16 %v923, %v921
  %v1081 = vpack.c.bf16 %v924, %v922
  %v1082 = vpack.c.bf16 %v950, %v949
  %v1083 = vpack.c.bf16 %v940, %v936
  %v1084 = vpack.c.bf16 %v952, %v951
  %v1085 = vpack.c.bf16 %v948, %v944
  %v1086 = vpack.c.bf16 %v978, %v977
  %v1087 = vpack.c.bf16 %v968, %v964
  %v1088 = vpack.c.bf16 %v980, %v979
  %v1089 = vpack.c.bf16 %v976, %v972
  %v1090 = vpack.c.bf16 %v1007, %v1006
  %v1091 = vpack.c.bf16 %v996, %v992
  %v1092 = vpack.c.bf16 %v1009, %v1008
  %v1093 = vpack.c.bf16 %v1004, %v1000
  %v1094 = vpack.c.bf16 %v1021, %v1019
  %v1095 = vpack.c.bf16 %v1025, %v1023
  %v1096 = vpack.c.bf16 %v1033, %v1031
  %v1097 = vpack.c.bf16 %v1037, %v1035
  %v1098 = vpack.c.bf16 %v1045, %v1043
  %v1099 = vpack.c.bf16 %v1049, %v1047
  %v1100 = vpack.c.bf16 %v1057, %v1055
  %v1101 = vpack.c.bf16 %v1061, %v1059
  %v1102 = vpack.c.bf16 %v1069, %v1067
  %v1103 = vpack.c.bf16 %v1073, %v1071
  %v1104 = vld [vmem:[%s5] sm:$0xff]
  %v1105 = vld [vmem:[%s5 + $0x8] sm:$0xf]
  %v1106 = vld [vmem:[%s5 + $0xc] sm:$0xff]
  %v1107 = vld [vmem:[%s5 + $0x14] sm:$0xf]
  %v1108 = vld [vmem:[%s5 + $0x18] sm:$0xff]
  %v1109 = vld [vmem:[%s5 + $0x20] sm:$0xf]
  %v1110 = vld [vmem:[%s5 + $0x24] sm:$0xff]
  %v1111 = vld [vmem:[%s5 + $0x2c] sm:$0xf]
  %v1112 = vld [vmem:[%s6] sm:$0xff]
  %v1113 = vld [vmem:[%s6 + $0x8] sm:$0xff]
  %v1114 = vld [vmem:[%s6 + $0x10] sm:$0xff]
  %v1115 = vld [vmem:[%s6 + $0x18] sm:$0xff]
  %1117 = vset.pattern.permute.xlu0 0
  %1118 = vperm.xlu0 %1117, %v1112
  %v1119 = vpop.permute.xlu0 %1118
  %1122 = vset.pattern.permute.xlu0 0
  %1123 = vperm.xlu0 %1122, %v1113
  %v1124 = vpop.permute.xlu0 %1123
  %1127 = vset.pattern.permute.xlu0 0
  %1128 = vperm.xlu0 %1127, %v1114
  %v1129 = vpop.permute.xlu0 %1128
  %1132 = vset.pattern.permute.xlu0 0
  %1133 = vperm.xlu0 %1132, %v1115
  %v1134 = vpop.permute.xlu0 %1133
  %v1144 = vunpack.c.l.b16 %v1104
  %v1145 = vunpack.c.h.b16 %v1104
  %v1146 = vunpack.c.l.b16 %v1105
  %v1147 = vunpack.c.l.b16 %v1106
  %v1148 = vunpack.c.h.b16 %v1106
  %v1149 = vunpack.c.l.b16 %v1107
  %v1150 = vunpack.c.l.b16 %v1108
  %v1151 = vunpack.c.h.b16 %v1108
  %v1152 = vunpack.c.l.b16 %v1109
  %v1153 = vunpack.c.l.b16 %v1110
  %v1154 = vunpack.c.h.b16 %v1110
  %v1155 = vunpack.c.l.b16 %v1111
  %v1156 = vpack.c.b16 %v1147, %v1144
  %v1157 = vpack.c.b16 %v1148, %v1145
  %v1158 = vpack.c.b16 %v1149, %v1146
  %v1159 = vpack.c.b16 %v1153, %v1150
  %v1160 = vpack.c.b16 %v1154, %v1151
  %v1161 = vpack.c.b16 %v1155, %v1152
  %1192 = vrot.lane.b32.xlu0 %v1078, 5
  %v1193 = vpop.permute.xlu0 %1192
  %1194 = vrot.lane.b32.xlu0 %v1079, 5
  %v1195 = vpop.permute.xlu0 %1194
  %1196 = vrot.lane.b32.xlu0 %v1080, 5
  %v1197 = vpop.permute.xlu0 %1196
  %1198 = vrot.lane.b32.xlu0 %v1081, 5
  %v1199 = vpop.permute.xlu0 %1198
  %1200 = vrot.lane.b32.xlu0 %v1082, 5
  %v1201 = vpop.permute.xlu0 %1200
  %1202 = vrot.lane.b32.xlu0 %v1083, 5
  %v1203 = vpop.permute.xlu0 %1202
  %1204 = vrot.lane.b32.xlu0 %v1084, 5
  %v1205 = vpop.permute.xlu0 %1204
  %1206 = vrot.lane.b32.xlu0 %v1085, 5
  %v1207 = vpop.permute.xlu0 %1206
  %1208 = vrot.lane.b32.xlu0 %v1086, 5
  %v1209 = vpop.permute.xlu0 %1208
  %1210 = vrot.lane.b32.xlu0 %v1087, 5
  %v1211 = vpop.permute.xlu0 %1210
  %1212 = vrot.lane.b32.xlu0 %v1088, 5
  %v1213 = vpop.permute.xlu0 %1212
  %1214 = vrot.lane.b32.xlu0 %v1089, 5
  %v1215 = vpop.permute.xlu0 %1214
  %1216 = vrot.lane.b32.xlu0 %v1090, 5
  %v1217 = vpop.permute.xlu0 %1216
  %1218 = vrot.lane.b32.xlu0 %v1091, 5
  %v1219 = vpop.permute.xlu0 %1218
  %1220 = vrot.lane.b32.xlu0 %v1092, 5
  %v1221 = vpop.permute.xlu0 %1220
  %1222 = vrot.lane.b32.xlu0 %v1093, 5
  %v1223 = vpop.permute.xlu0 %1222
  %1224 = vrot.lane.b32.xlu0 %v1094, 5
  %v1225 = vpop.permute.xlu0 %1224
  %1226 = vrot.lane.b32.xlu0 %v1095, 5
  %v1227 = vpop.permute.xlu0 %1226
  %1228 = vrot.lane.b32.xlu0 %v1096, 5
  %v1229 = vpop.permute.xlu0 %1228
  %1230 = vrot.lane.b32.xlu0 %v1097, 5
  %v1231 = vpop.permute.xlu0 %1230
  %1232 = vrot.lane.b32.xlu0 %v1098, 5
  %v1233 = vpop.permute.xlu0 %1232
  %1234 = vrot.lane.b32.xlu0 %v1099, 5
  %v1235 = vpop.permute.xlu0 %1234
  %1236 = vrot.lane.b32.xlu0 %v1100, 5
  %v1237 = vpop.permute.xlu0 %1236
  %1238 = vrot.lane.b32.xlu0 %v1101, 5
  %v1239 = vpop.permute.xlu0 %1238
  %1240 = vrot.lane.b32.xlu0 %v1102, 5
  %v1241 = vpop.permute.xlu0 %1240
  %1242 = vrot.lane.b32.xlu0 %v1103, 5
  %v1243 = vpop.permute.xlu0 %1242
  %vm1244 = vcmask 39936
  %v1245 = vsel %vm1244, %v1193, %v1195
  %v1246 = vsel %vm1244, %v1197, %v1199
  %v1247 = vsel %vm1244, %v1201, %v1203
  %v1248 = vsel %vm1244, %v1205, %v1207
  %v1249 = vsel %vm1244, %v1209, %v1211
  %v1250 = vsel %vm1244, %v1213, %v1215
  %v1251 = vsel %vm1244, %v1217, %v1219
  %v1252 = vsel %vm1244, %v1221, %v1223
  %v1272 = vsel %vm404, %v1158, 0
  %v1275 = vsel %vm404, %v1161, 0
  %1277 = vmatprep.subr.bf16.mxu0 0
  %1278 = vmatpush1.bf16.msra.mxu0 %v1245
  %1279 = vmatprep.subr.bf16.mxu0 0
  %1280 = vmatpush1.bf16.msra.mxu0 %v1246
  %1281 = vmatprep.subr.bf16.mxu0 0
  %1282 = vmatpush1.bf16.msra.mxu0 %v1247
  %1283 = vmatprep.subr.bf16.mxu0 0
  %1284 = vmatpush1.bf16.msra.mxu0 %v1248
  %1285 = vmatprep.subr.bf16.mxu0 0
  %1286 = vmatpush1.bf16.msra.mxu0 %v1249
  %1287 = vmatprep.subr.bf16.mxu0 0
  %1288 = vmatpush1.bf16.msra.mxu0 %v1250
  %1289 = vmatprep.subr.bf16.mxu0 0
  %1290 = vmatpush1.bf16.msra.mxu0 %v1251
  %1291 = vmatprep.subr.bf16.mxu0 0
  %1292 = vmatpush1.bf16.msra.mxu0 %v1252
  %1293 = vmatprep.subr.bf16.mxu0 0
  %1294 = vmatpush1.bf16.msra.mxu0 %v1225
  %1295 = vmatprep.subr.bf16.mxu0 0
  %1296 = vmatpush1.bf16.msra.mxu0 %v1227
  %1297 = vmatprep.subr.bf16.mxu0 0
  %1298 = vmatpush1.bf16.msra.mxu0 %v1229
  %1299 = vmatprep.subr.bf16.mxu0 0
  %1300 = vmatpush1.bf16.msra.mxu0 %v1231
  %1301 = vmatprep.subr.bf16.mxu0 0
  %1302 = vmatpush1.bf16.msra.mxu0 %v1233
  %1303 = vmatprep.subr.bf16.mxu0 0
  %1304 = vmatpush1.bf16.msra.mxu0 %v1235
  %1305 = vmatprep.subr.bf16.mxu0 0
  %1306 = vmatpush1.bf16.msra.mxu0 %v1237
  %1307 = vmatprep.subr.bf16.mxu0 0
  %1308 = vmatpush1.bf16.msra.mxu0 %v1239
  %1309 = vmatprep.mubr.bf16.mxu0 %v1157
  %1310 = vmatmul.mubr.bf16.gmra.mrb[0].mxu0 %v1156
  %v1311 = vpop.f32.mrb[0].mxu0
  %v1312 = vadd.f32 %v1119, %v1311
  %v1313 = vpop.f32.mrb[0].mxu0
  %v1314 = vpop.f32.mrb[0].mxu0
  %v1315 = vadd.f32 %v1124, %v1314
  %v1316 = vpop.f32.mrb[0].mxu0
  %1317 = vmatprep.mubr.bf16.mxu0 %v1160
  %1318 = vmatmul.mubr.bf16.gmra.mrb[0].mxu0 %v1159
  %v1319 = vpop.f32.mrb[0].mxu0
  %v1320 = vadd.f32 %v1129, %v1319
  %v1321 = vpop.f32.mrb[0].mxu0
  %v1322 = vpop.f32.mrb[0].mxu0
  %v1323 = vadd.f32 %v1134, %v1322
  %v1324 = vpop.f32.mrb[0].mxu0
  %1325 = vdwg.mxu0
  %1326 = vmatprep.subr.bf16.mxu0 0
  %1327 = vmatpush1.bf16.msra.mxu0 %v1241
  %1328 = vmatprep.subr.bf16.mxu0 0
  %1329 = vmatpush1.bf16.msra.mxu0 %v1243
  %1330 = vmatprep.subr.bf16.mxu0 0
  %1331 = vmatpush1.bf16.msra.mxu0 0
  %1332 = vmatprep.subr.bf16.mxu0 0
  %1333 = vmatpush1.bf16.msra.mxu0 0
  %1334 = vmatprep.subr.bf16.mxu0 0
  %1335 = vmatpush1.bf16.msra.mxu0 0
  %1336 = vmatprep.subr.bf16.mxu0 0
  %1337 = vmatpush1.bf16.msra.mxu0 0
  %1338 = vmatprep.subr.bf16.mxu0 0
  %1339 = vmatpush1.bf16.msra.mxu0 0
  %1340 = vmatprep.subr.bf16.mxu0 0
  %1341 = vmatpush1.bf16.msra.mxu0 0
  %1342 = vmatprep.subr.bf16.mxu0 0
  %1343 = vmatpush1.bf16.msra.mxu0 0
  %1344 = vmatprep.subr.bf16.mxu0 0
  %1345 = vmatpush1.bf16.msra.mxu0 0
  %1346 = vmatprep.subr.bf16.mxu0 0
  %1347 = vmatpush1.bf16.msra.mxu0 0
  %1348 = vmatprep.subr.bf16.mxu0 0
  %1349 = vmatpush1.bf16.msra.mxu0 0
  %1350 = vmatprep.subr.bf16.mxu0 0
  %1351 = vmatpush1.bf16.msra.mxu0 0
  %1352 = vmatprep.subr.bf16.mxu0 0
  %1353 = vmatpush1.bf16.msra.mxu0 0
  %1354 = vmatprep.subr.bf16.mxu0 0
  %1355 = vmatpush1.bf16.msra.mxu0 0
  %1356 = vmatprep.subr.bf16.mxu0 0
  %1357 = vmatpush1.bf16.msra.mxu0 0
  %1358 = vmatprep.mubr.bf16.mxu0 0
  %1359 = vmatmul.mubr.bf16.gmra.mrb[0].mxu0 %v1272
  %v1360 = vpop.f32.mrb[0].mxu0
  %v1361 = vadd.f32 %v1312, %v1360
  %v1362 = vpop.f32.mrb[0].mxu0
  %v1363 = vpop.f32.mrb[0].mxu0
  %v1364 = vadd.f32 %v1315, %v1363
  %v1365 = vpop.f32.mrb[0].mxu0
  %1366 = vmatprep.mubr.bf16.mxu0 0
  %1367 = vmatmul.mubr.bf16.gmra.mrb[0].mxu0 %v1275
  %v1368 = vpop.f32.mrb[0].mxu0
  %v1369 = vadd.f32 %v1320, %v1368
  %v1370 = vpop.f32.mrb[0].mxu0
  %v1371 = vpop.f32.mrb[0].mxu0
  %v1372 = vadd.f32 %v1323, %v1371
  %v1373 = vpop.f32.mrb[0].mxu0
  %1374 = vdwg.mxu0
  %v1375 = vmax.f32 %v1361, 0.0
  %v1376 = vmax.f32 %v1364, 0.0
  %v1377 = vmax.f32 %v1369, 0.0
  %v1378 = vmax.f32 %v1372, 0.0
  %v1379 = vmul.f32 %v907, %v1375
  %v1380 = vmul.f32 %v907, %v1376
  %v1381 = vmul.f32 %v907, %v1377
  %v1382 = vmul.f32 %v907, %v1378
  %1383 = vst.msk [vmem:[%s14 + $0x8] sm:$0xff] %vm404, %v1379
  %1384 = vst.msk [vmem:[%s14 + $0x20] sm:$0xff] %vm404, %v1380
  %1385 = vst.msk [vmem:[%s14 + $0x38] sm:$0xff] %vm404, %v1381
  %1386 = vst.msk [vmem:[%s14 + $0x50] sm:$0xff] %vm404, %v1382
  %v1387 = vld [vmem:[%s14] sm:$0xff]
  %v1388 = vld [vmem:[%s14 + $0x8] sm:$0xff]
  %v1389 = vld [vmem:[%s14 + $0x18] sm:$0xff]
  %v1390 = vld [vmem:[%s14 + $0x20] sm:$0xff]
  %v1391 = vld [vmem:[%s14 + $0x30] sm:$0xff]
  %v1392 = vld [vmem:[%s14 + $0x38] sm:$0xff]
  %v1393 = vld [vmem:[%s14 + $0x48] sm:$0xff]
  %v1394 = vld [vmem:[%s14 + $0x50] sm:$0xff]
  %1403 = vrot.lane.b32.xlu0 %v1387, 127
  %v1404 = vpop.permute.xlu0 %1403
  %1405 = vrot.lane.b32.xlu0 %v1388, 127
  %v1406 = vpop.permute.xlu0 %1405
  %1407 = vrot.lane.b32.xlu0 %v1389, 127
  %v1408 = vpop.permute.xlu0 %1407
  %1409 = vrot.lane.b32.xlu0 %v1390, 127
  %v1410 = vpop.permute.xlu0 %1409
  %1411 = vrot.lane.b32.xlu0 %v1391, 127
  %v1412 = vpop.permute.xlu0 %1411
  %1413 = vrot.lane.b32.xlu0 %v1392, 127
  %v1414 = vpop.permute.xlu0 %1413
  %1415 = vrot.lane.b32.xlu0 %v1393, 127
  %v1416 = vpop.permute.xlu0 %1415
  %1417 = vrot.lane.b32.xlu0 %v1394, 127
  %v1418 = vpop.permute.xlu0 %1417
  %v1419 = vsel %vm80, %v1404, %v1406
  %v1420 = vsel %vm80, %v1408, %v1410
  %v1421 = vsel %vm80, %v1412, %v1414
  %v1422 = vsel %vm80, %v1416, %v1418
  %1431 = vrot.lane.b32.xlu0 %v1387, 126
  %v1432 = vpop.permute.xlu0 %1431
  %1433 = vrot.lane.b32.xlu0 %v1388, 126
  %v1434 = vpop.permute.xlu0 %1433
  %1435 = vrot.lane.b32.xlu0 %v1389, 126
  %v1436 = vpop.permute.xlu0 %1435
  %1437 = vrot.lane.b32.xlu0 %v1390, 126
  %v1438 = vpop.permute.xlu0 %1437
  %1439 = vrot.lane.b32.xlu0 %v1391, 126
  %v1440 = vpop.permute.xlu0 %1439
  %1441 = vrot.lane.b32.xlu0 %v1392, 126
  %v1442 = vpop.permute.xlu0 %1441
  %1443 = vrot.lane.b32.xlu0 %v1393, 126
  %v1444 = vpop.permute.xlu0 %1443
  %1445 = vrot.lane.b32.xlu0 %v1394, 126
  %v1446 = vpop.permute.xlu0 %1445
  %v1447 = vsel %vm109, %v1432, %v1434
  %v1448 = vsel %vm109, %v1436, %v1438
  %v1449 = vsel %vm109, %v1440, %v1442
  %v1450 = vsel %vm109, %v1444, %v1446
  %1459 = vrot.lane.b32.xlu0 %v1387, 124
  %v1460 = vpop.permute.xlu0 %1459
  %1461 = vrot.lane.b32.xlu0 %v1388, 124
  %v1462 = vpop.permute.xlu0 %1461
  %1463 = vrot.lane.b32.xlu0 %v1389, 124
  %v1464 = vpop.permute.xlu0 %1463
  %1465 = vrot.lane.b32.xlu0 %v1390, 124
  %v1466 = vpop.permute.xlu0 %1465
  %1467 = vrot.lane.b32.xlu0 %v1391, 124
  %v1468 = vpop.permute.xlu0 %1467
  %1469 = vrot.lane.b32.xlu0 %v1392, 124
  %v1470 = vpop.permute.xlu0 %1469
  %1471 = vrot.lane.b32.xlu0 %v1393, 124
  %v1472 = vpop.permute.xlu0 %1471
  %1473 = vrot.lane.b32.xlu0 %v1394, 124
  %v1474 = vpop.permute.xlu0 %1473
  %v1475 = vsel %vm1005, %v1460, %v1462
  %v1476 = vsel %vm1005, %v1464, %v1466
  %v1477 = vsel %vm1005, %v1468, %v1470
  %v1478 = vsel %vm1005, %v1472, %v1474
  %1487 = vrot.lane.b32.xlu0 %v1388, 123
  %v1488 = vpop.permute.xlu0 %1487
  %1489 = vrot.lane.b32.xlu0 %v1390, 123
  %v1490 = vpop.permute.xlu0 %1489
  %1491 = vrot.lane.b32.xlu0 %v1392, 123
  %v1492 = vpop.permute.xlu0 %1491
  %1493 = vrot.lane.b32.xlu0 %v1394, 123
  %v1494 = vpop.permute.xlu0 %1493
  %1499 = vrot.lane.b32.xlu0 %v1388, 122
  %v1500 = vpop.permute.xlu0 %1499
  %1501 = vrot.lane.b32.xlu0 %v1390, 122
  %v1502 = vpop.permute.xlu0 %1501
  %1503 = vrot.lane.b32.xlu0 %v1392, 122
  %v1504 = vpop.permute.xlu0 %1503
  %1505 = vrot.lane.b32.xlu0 %v1394, 122
  %v1506 = vpop.permute.xlu0 %1505
  %1511 = vrot.lane.b32.xlu0 %v1388, 120
  %v1512 = vpop.permute.xlu0 %1511
  %1513 = vrot.lane.b32.xlu0 %v1390, 120
  %v1514 = vpop.permute.xlu0 %1513
  %1515 = vrot.lane.b32.xlu0 %v1392, 120
  %v1516 = vpop.permute.xlu0 %1515
  %1517 = vrot.lane.b32.xlu0 %v1394, 120
  %v1518 = vpop.permute.xlu0 %1517
  %1523 = vrot.lane.b32.xlu0 %v1388, 119
  %v1524 = vpop.permute.xlu0 %1523
  %1525 = vrot.lane.b32.xlu0 %v1390, 119
  %v1526 = vpop.permute.xlu0 %1525
  %1527 = vrot.lane.b32.xlu0 %v1392, 119
  %v1528 = vpop.permute.xlu0 %1527
  %1529 = vrot.lane.b32.xlu0 %v1394, 119
  %v1530 = vpop.permute.xlu0 %1529
  %1535 = vrot.lane.b32.xlu0 %v1388, 118
  %v1536 = vpop.permute.xlu0 %1535
  %1537 = vrot.lane.b32.xlu0 %v1390, 118
  %v1538 = vpop.permute.xlu0 %1537
  %1539 = vrot.lane.b32.xlu0 %v1392, 118
  %v1540 = vpop.permute.xlu0 %1539
  %1541 = vrot.lane.b32.xlu0 %v1394, 118
  %v1542 = vpop.permute.xlu0 %1541
  %v1547 = vpack.c.bf16 %v1389, %v1387
  %v1548 = vpack.c.bf16 %v1390, %v1388
  %v1549 = vpack.c.bf16 %v1393, %v1391
  %v1550 = vpack.c.bf16 %v1394, %v1392
  %v1551 = vpack.c.bf16 %v1420, %v1419
  %v1552 = vpack.c.bf16 %v1410, %v1406
  %v1553 = vpack.c.bf16 %v1422, %v1421
  %v1554 = vpack.c.bf16 %v1418, %v1414
  %v1555 = vpack.c.bf16 %v1448, %v1447
  %v1556 = vpack.c.bf16 %v1438, %v1434
  %v1557 = vpack.c.bf16 %v1450, %v1449
  %v1558 = vpack.c.bf16 %v1446, %v1442
  %v1559 = vpack.c.bf16 %v1476, %v1475
  %v1560 = vpack.c.bf16 %v1466, %v1462
  %v1561 = vpack.c.bf16 %v1478, %v1477
  %v1562 = vpack.c.bf16 %v1474, %v1470
  %v1563 = vpack.c.bf16 %v1490, %v1488
  %v1564 = vpack.c.bf16 %v1494, %v1492
  %v1565 = vpack.c.bf16 %v1502, %v1500
  %v1566 = vpack.c.bf16 %v1506, %v1504
  %v1567 = vpack.c.bf16 %v1514, %v1512
  %v1568 = vpack.c.bf16 %v1518, %v1516
  %v1569 = vpack.c.bf16 %v1526, %v1524
  %v1570 = vpack.c.bf16 %v1530, %v1528
  %v1571 = vpack.c.bf16 %v1538, %v1536
  %v1572 = vpack.c.bf16 %v1542, %v1540
  %v1573 = vld [vmem:[%s7] sm:$0xff]
  %v1574 = vld [vmem:[%s7 + $0x8] sm:$0xf]
  %v1575 = vld [vmem:[%s7 + $0xc] sm:$0xff]
  %v1576 = vld [vmem:[%s7 + $0x14] sm:$0xf]
  %v1577 = vld [vmem:[%s7 + $0x18] sm:$0xff]
  %v1578 = vld [vmem:[%s7 + $0x20] sm:$0xf]
  %v1579 = vld [vmem:[%s7 + $0x24] sm:$0xff]
  %v1580 = vld [vmem:[%s7 + $0x2c] sm:$0xf]
  %v1581 = vld [vmem:[%s8] sm:$0xff]
  %v1582 = vld [vmem:[%s8 + $0x8] sm:$0xff]
  %v1583 = vld [vmem:[%s8 + $0x10] sm:$0xff]
  %v1584 = vld [vmem:[%s8 + $0x18] sm:$0xff]
  %1586 = vset.pattern.permute.xlu0 0
  %1587 = vperm.xlu0 %1586, %v1581
  %v1588 = vpop.permute.xlu0 %1587
  %1591 = vset.pattern.permute.xlu0 0
  %1592 = vperm.xlu0 %1591, %v1582
  %v1593 = vpop.permute.xlu0 %1592
  %1596 = vset.pattern.permute.xlu0 0
  %1597 = vperm.xlu0 %1596, %v1583
  %v1598 = vpop.permute.xlu0 %1597
  %1601 = vset.pattern.permute.xlu0 0
  %1602 = vperm.xlu0 %1601, %v1584
  %v1603 = vpop.permute.xlu0 %1602
  %v1613 = vunpack.c.l.b16 %v1573
  %v1614 = vunpack.c.h.b16 %v1573
  %v1615 = vunpack.c.l.b16 %v1574
  %v1616 = vunpack.c.l.b16 %v1575
  %v1617 = vunpack.c.h.b16 %v1575
  %v1618 = vunpack.c.l.b16 %v1576
  %v1619 = vunpack.c.l.b16 %v1577
  %v1620 = vunpack.c.h.b16 %v1577
  %v1621 = vunpack.c.l.b16 %v1578
  %v1622 = vunpack.c.l.b16 %v1579
  %v1623 = vunpack.c.h.b16 %v1579
  %v1624 = vunpack.c.l.b16 %v1580
  %v1625 = vpack.c.b16 %v1616, %v1613
  %v1626 = vpack.c.b16 %v1617, %v1614
  %v1627 = vpack.c.b16 %v1618, %v1615
  %v1628 = vpack.c.b16 %v1622, %v1619
  %v1629 = vpack.c.b16 %v1623, %v1620
  %v1630 = vpack.c.b16 %v1624, %v1621
  %1661 = vrot.lane.b32.xlu0 %v1547, 5
  %v1662 = vpop.permute.xlu0 %1661
  %1663 = vrot.lane.b32.xlu0 %v1548, 5
  %v1664 = vpop.permute.xlu0 %1663
  %1665 = vrot.lane.b32.xlu0 %v1549, 5
  %v1666 = vpop.permute.xlu0 %1665
  %1667 = vrot.lane.b32.xlu0 %v1550, 5
  %v1668 = vpop.permute.xlu0 %1667
  %1669 = vrot.lane.b32.xlu0 %v1551, 5
  %v1670 = vpop.permute.xlu0 %1669
  %1671 = vrot.lane.b32.xlu0 %v1552, 5
  %v1672 = vpop.permute.xlu0 %1671
  %1673 = vrot.lane.b32.xlu0 %v1553, 5
  %v1674 = vpop.permute.xlu0 %1673
  %1675 = vrot.lane.b32.xlu0 %v1554, 5
  %v1676 = vpop.permute.xlu0 %1675
  %1677 = vrot.lane.b32.xlu0 %v1555, 5
  %v1678 = vpop.permute.xlu0 %1677
  %1679 = vrot.lane.b32.xlu0 %v1556, 5
  %v1680 = vpop.permute.xlu0 %1679
  %1681 = vrot.lane.b32.xlu0 %v1557, 5
  %v1682 = vpop.permute.xlu0 %1681
  %1683 = vrot.lane.b32.xlu0 %v1558, 5
  %v1684 = vpop.permute.xlu0 %1683
  %1685 = vrot.lane.b32.xlu0 %v1559, 5
  %v1686 = vpop.permute.xlu0 %1685
  %1687 = vrot.lane.b32.xlu0 %v1560, 5
  %v1688 = vpop.permute.xlu0 %1687
  %1689 = vrot.lane.b32.xlu0 %v1561, 5
  %v1690 = vpop.permute.xlu0 %1689
  %1691 = vrot.lane.b32.xlu0 %v1562, 5
  %v1692 = vpop.permute.xlu0 %1691
  %1693 = vrot.lane.b32.xlu0 %v1563, 5
  %v1694 = vpop.permute.xlu0 %1693
  %1695 = vrot.lane.b32.xlu0 %v1564, 5
  %v1696 = vpop.permute.xlu0 %1695
  %1697 = vrot.lane.b32.xlu0 %v1565, 5
  %v1698 = vpop.permute.xlu0 %1697
  %1699 = vrot.lane.b32.xlu0 %v1566, 5
  %v1700 = vpop.permute.xlu0 %1699
  %1701 = vrot.lane.b32.xlu0 %v1567, 5
  %v1702 = vpop.permute.xlu0 %1701
  %1703 = vrot.lane.b32.xlu0 %v1568, 5
  %v1704 = vpop.permute.xlu0 %1703
  %1705 = vrot.lane.b32.xlu0 %v1569, 5
  %v1706 = vpop.permute.xlu0 %1705
  %1707 = vrot.lane.b32.xlu0 %v1570, 5
  %v1708 = vpop.permute.xlu0 %1707
  %1709 = vrot.lane.b32.xlu0 %v1571, 5
  %v1710 = vpop.permute.xlu0 %1709
  %1711 = vrot.lane.b32.xlu0 %v1572, 5
  %v1712 = vpop.permute.xlu0 %1711
  %v1713 = vsel %vm1244, %v1662, %v1664
  %v1714 = vsel %vm1244, %v1666, %v1668
  %v1715 = vsel %vm1244, %v1670, %v1672
  %v1716 = vsel %vm1244, %v1674, %v1676
  %v1717 = vsel %vm1244, %v1678, %v1680
  %v1718 = vsel %vm1244, %v1682, %v1684
  %v1719 = vsel %vm1244, %v1686, %v1688
  %v1720 = vsel %vm1244, %v1690, %v1692
  %v1740 = vsel %vm404, %v1627, 0
  %v1743 = vsel %vm404, %v1630, 0
  %1745 = vmatprep.subr.bf16.mxu0 0
  %1746 = vmatpush1.bf16.msra.mxu0 %v1713
  %1747 = vmatprep.subr.bf16.mxu0 0
  %1748 = vmatpush1.bf16.msra.mxu0 %v1714
  %1749 = vmatprep.subr.bf16.mxu0 0
  %1750 = vmatpush1.bf16.msra.mxu0 %v1715
  %1751 = vmatprep.subr.bf16.mxu0 0
  %1752 = vmatpush1.bf16.msra.mxu0 %v1716
  %1753 = vmatprep.subr.bf16.mxu0 0
  %1754 = vmatpush1.bf16.msra.mxu0 %v1717
  %1755 = vmatprep.subr.bf16.mxu0 0
  %1756 = vmatpush1.bf16.msra.mxu0 %v1718
  %1757 = vmatprep.subr.bf16.mxu0 0
  %1758 = vmatpush1.bf16.msra.mxu0 %v1719
  %1759 = vmatprep.subr.bf16.mxu0 0
  %1760 = vmatpush1.bf16.msra.mxu0 %v1720
  %1761 = vmatprep.subr.bf16.mxu0 0
  %1762 = vmatpush1.bf16.msra.mxu0 %v1694
  %1763 = vmatprep.subr.bf16.mxu0 0
  %1764 = vmatpush1.bf16.msra.mxu0 %v1696
  %1765 = vmatprep.subr.bf16.mxu0 0
  %1766 = vmatpush1.bf16.msra.mxu0 %v1698
  %1767 = vmatprep.subr.bf16.mxu0 0
  %1768 = vmatpush1.bf16.msra.mxu0 %v1700
  %1769 = vmatprep.subr.bf16.mxu0 0
  %1770 = vmatpush1.bf16.msra.mxu0 %v1702
  %1771 = vmatprep.subr.bf16.mxu0 0
  %1772 = vmatpush1.bf16.msra.mxu0 %v1704
  %1773 = vmatprep.subr.bf16.mxu0 0
  %1774 = vmatpush1.bf16.msra.mxu0 %v1706
  %1775 = vmatprep.subr.bf16.mxu0 0
  %1776 = vmatpush1.bf16.msra.mxu0 %v1708
  %1777 = vmatprep.mubr.bf16.mxu0 %v1626
  %1778 = vmatmul.mubr.bf16.gmra.mrb[0].mxu0 %v1625
  %v1779 = vpop.f32.mrb[0].mxu0
  %v1780 = vadd.f32 %v1588, %v1779
  %v1781 = vpop.f32.mrb[0].mxu0
  %v1782 = vpop.f32.mrb[0].mxu0
  %v1783 = vadd.f32 %v1593, %v1782
  %v1784 = vpop.f32.mrb[0].mxu0
  %1785 = vmatprep.mubr.bf16.mxu0 %v1629
  %1786 = vmatmul.mubr.bf16.gmra.mrb[0].mxu0 %v1628
  %v1787 = vpop.f32.mrb[0].mxu0
  %v1788 = vadd.f32 %v1598, %v1787
  %v1789 = vpop.f32.mrb[0].mxu0
  %v1790 = vpop.f32.mrb[0].mxu0
  %v1791 = vadd.f32 %v1603, %v1790
  %v1792 = vpop.f32.mrb[0].mxu0
  %1793 = vdwg.mxu0
  %1794 = vmatprep.subr.bf16.mxu0 0
  %1795 = vmatpush1.bf16.msra.mxu0 %v1710
  %1796 = vmatprep.subr.bf16.mxu0 0
  %1797 = vmatpush1.bf16.msra.mxu0 %v1712
  %1798 = vmatprep.subr.bf16.mxu0 0
  %1799 = vmatpush1.bf16.msra.mxu0 0
  %1800 = vmatprep.subr.bf16.mxu0 0
  %1801 = vmatpush1.bf16.msra.mxu0 0
  %1802 = vmatprep.subr.bf16.mxu0 0
  %1803 = vmatpush1.bf16.msra.mxu0 0
  %1804 = vmatprep.subr.bf16.mxu0 0
  %1805 = vmatpush1.bf16.msra.mxu0 0
  %1806 = vmatprep.subr.bf16.mxu0 0
  %1807 = vmatpush1.bf16.msra.mxu0 0
  %1808 = vmatprep.subr.bf16.mxu0 0
  %1809 = vmatpush1.bf16.msra.mxu0 0
  %1810 = vmatprep.subr.bf16.mxu0 0
  %1811 = vmatpush1.bf16.msra.mxu0 0
  %1812 = vmatprep.subr.bf16.mxu0 0
  %1813 = vmatpush1.bf16.msra.mxu0 0
  %1814 = vmatprep.subr.bf16.mxu0 0
  %1815 = vmatpush1.bf16.msra.mxu0 0
  %1816 = vmatprep.subr.bf16.mxu0 0
  %1817 = vmatpush1.bf16.msra.mxu0 0
  %1818 = vmatprep.subr.bf16.mxu0 0
  %1819 = vmatpush1.bf16.msra.mxu0 0
  %1820 = vmatprep.subr.bf16.mxu0 0
  %1821 = vmatpush1.bf16.msra.mxu0 0
  %1822 = vmatprep.subr.bf16.mxu0 0
  %1823 = vmatpush1.bf16.msra.mxu0 0
  %1824 = vmatprep.subr.bf16.mxu0 0
  %1825 = vmatpush1.bf16.msra.mxu0 0
  %1826 = vmatprep.mubr.bf16.mxu0 0
  %1827 = vmatmul.mubr.bf16.gmra.mrb[0].mxu0 %v1740
  %v1828 = vpop.f32.mrb[0].mxu0
  %v1829 = vadd.f32 %v1780, %v1828
  %v1830 = vpop.f32.mrb[0].mxu0
  %v1831 = vpop.f32.mrb[0].mxu0
  %v1832 = vadd.f32 %v1783, %v1831
  %v1833 = vpop.f32.mrb[0].mxu0
  %1834 = vmatprep.mubr.bf16.mxu0 0
  %1835 = vmatmul.mubr.bf16.gmra.mrb[0].mxu0 %v1743
  %v1836 = vpop.f32.mrb[0].mxu0
  %v1837 = vadd.f32 %v1788, %v1836
  %v1838 = vpop.f32.mrb[0].mxu0
  %v1839 = vpop.f32.mrb[0].mxu0
  %v1840 = vadd.f32 %v1791, %v1839
  %v1841 = vpop.f32.mrb[0].mxu0
  %1842 = vdwg.mxu0
  %v1843 = vadd.f32 %v1829, %v872
  %v1844 = vadd.f32 %v1832, %v875
  %v1845 = vadd.f32 %v1837, %v880
  %v1846 = vadd.f32 %v1840, %v883
  %v1847 = vmax.f32 %v1843, 0.0
  %v1848 = vmax.f32 %v1844, 0.0
  %v1849 = vmax.f32 %v1845, 0.0
  %v1850 = vmax.f32 %v1846, 0.0
  %v1851 = vmul.f32 %v907, %v1847
  %v1852 = vmul.f32 %v907, %v1848
  %v1853 = vmul.f32 %v907, %v1849
  %v1854 = vmul.f32 %v907, %v1850
  %1855 = vst.msk [vmem:[%s14 + $0x8] sm:$0xff] %vm404, %v1851
  %1856 = vst.msk [vmem:[%s14 + $0x20] sm:$0xff] %vm404, %v1852
  %1857 = vst.msk [vmem:[%s14 + $0x38] sm:$0xff] %vm404, %v1853
  %1858 = vst.msk [vmem:[%s14 + $0x50] sm:$0xff] %vm404, %v1854
  %v1859 = vld [vmem:[%s14] sm:$0xff]
  %v1860 = vld [vmem:[%s14 + $0x8] sm:$0xff]
  %v1861 = vld [vmem:[%s14 + $0x18] sm:$0xff]
  %v1862 = vld [vmem:[%s14 + $0x20] sm:$0xff]
  %v1863 = vld [vmem:[%s14 + $0x30] sm:$0xff]
  %v1864 = vld [vmem:[%s14 + $0x38] sm:$0xff]
  %v1865 = vld [vmem:[%s14 + $0x48] sm:$0xff]
  %v1866 = vld [vmem:[%s14 + $0x50] sm:$0xff]
  %1875 = vrot.lane.b32.xlu0 %v1859, 127
  %v1876 = vpop.permute.xlu0 %1875
  %1877 = vrot.lane.b32.xlu0 %v1860, 127
  %v1878 = vpop.permute.xlu0 %1877
  %1879 = vrot.lane.b32.xlu0 %v1861, 127
  %v1880 = vpop.permute.xlu0 %1879
  %1881 = vrot.lane.b32.xlu0 %v1862, 127
  %v1882 = vpop.permute.xlu0 %1881
  %1883 = vrot.lane.b32.xlu0 %v1863, 127
  %v1884 = vpop.permute.xlu0 %1883
  %1885 = vrot.lane.b32.xlu0 %v1864, 127
  %v1886 = vpop.permute.xlu0 %1885
  %1887 = vrot.lane.b32.xlu0 %v1865, 127
  %v1888 = vpop.permute.xlu0 %1887
  %1889 = vrot.lane.b32.xlu0 %v1866, 127
  %v1890 = vpop.permute.xlu0 %1889
  %v1891 = vsel %vm80, %v1876, %v1878
  %v1892 = vsel %vm80, %v1880, %v1882
  %v1893 = vsel %vm80, %v1884, %v1886
  %v1894 = vsel %vm80, %v1888, %v1890
  %1903 = vrot.lane.b32.xlu0 %v1859, 126
  %v1904 = vpop.permute.xlu0 %1903
  %1905 = vrot.lane.b32.xlu0 %v1860, 126
  %v1906 = vpop.permute.xlu0 %1905
  %1907 = vrot.lane.b32.xlu0 %v1861, 126
  %v1908 = vpop.permute.xlu0 %1907
  %1909 = vrot.lane.b32.xlu0 %v1862, 126
  %v1910 = vpop.permute.xlu0 %1909
  %1911 = vrot.lane.b32.xlu0 %v1863, 126
  %v1912 = vpop.permute.xlu0 %1911
  %1913 = vrot.lane.b32.xlu0 %v1864, 126
  %v1914 = vpop.permute.xlu0 %1913
  %1915 = vrot.lane.b32.xlu0 %v1865, 126
  %v1916 = vpop.permute.xlu0 %1915
  %1917 = vrot.lane.b32.xlu0 %v1866, 126
  %v1918 = vpop.permute.xlu0 %1917
  %v1919 = vsel %vm109, %v1904, %v1906
  %v1920 = vsel %vm109, %v1908, %v1910
  %v1921 = vsel %vm109, %v1912, %v1914
  %v1922 = vsel %vm109, %v1916, %v1918
  %1931 = vrot.lane.b32.xlu0 %v1859, 124
  %v1932 = vpop.permute.xlu0 %1931
  %1933 = vrot.lane.b32.xlu0 %v1860, 124
  %v1934 = vpop.permute.xlu0 %1933
  %1935 = vrot.lane.b32.xlu0 %v1861, 124
  %v1936 = vpop.permute.xlu0 %1935
  %1937 = vrot.lane.b32.xlu0 %v1862, 124
  %v1938 = vpop.permute.xlu0 %1937
  %1939 = vrot.lane.b32.xlu0 %v1863, 124
  %v1940 = vpop.permute.xlu0 %1939
  %1941 = vrot.lane.b32.xlu0 %v1864, 124
  %v1942 = vpop.permute.xlu0 %1941
  %1943 = vrot.lane.b32.xlu0 %v1865, 124
  %v1944 = vpop.permute.xlu0 %1943
  %1945 = vrot.lane.b32.xlu0 %v1866, 124
  %v1946 = vpop.permute.xlu0 %1945
  %v1947 = vsel %vm1005, %v1932, %v1934
  %v1948 = vsel %vm1005, %v1936, %v1938
  %v1949 = vsel %vm1005, %v1940, %v1942
  %v1950 = vsel %vm1005, %v1944, %v1946
  %1959 = vrot.lane.b32.xlu0 %v1860, 123
  %v1960 = vpop.permute.xlu0 %1959
  %1961 = vrot.lane.b32.xlu0 %v1862, 123
  %v1962 = vpop.permute.xlu0 %1961
  %1963 = vrot.lane.b32.xlu0 %v1864, 123
  %v1964 = vpop.permute.xlu0 %1963
  %1965 = vrot.lane.b32.xlu0 %v1866, 123
  %v1966 = vpop.permute.xlu0 %1965
  %1971 = vrot.lane.b32.xlu0 %v1860, 122
  %v1972 = vpop.permute.xlu0 %1971
  %1973 = vrot.lane.b32.xlu0 %v1862, 122
  %v1974 = vpop.permute.xlu0 %1973
  %1975 = vrot.lane.b32.xlu0 %v1864, 122
  %v1976 = vpop.permute.xlu0 %1975
  %1977 = vrot.lane.b32.xlu0 %v1866, 122
  %v1978 = vpop.permute.xlu0 %1977
  %1983 = vrot.lane.b32.xlu0 %v1860, 120
  %v1984 = vpop.permute.xlu0 %1983
  %1985 = vrot.lane.b32.xlu0 %v1862, 120
  %v1986 = vpop.permute.xlu0 %1985
  %1987 = vrot.lane.b32.xlu0 %v1864, 120
  %v1988 = vpop.permute.xlu0 %1987
  %1989 = vrot.lane.b32.xlu0 %v1866, 120
  %v1990 = vpop.permute.xlu0 %1989
  %1995 = vrot.lane.b32.xlu0 %v1860, 119
  %v1996 = vpop.permute.xlu0 %1995
  %1997 = vrot.lane.b32.xlu0 %v1862, 119
  %v1998 = vpop.permute.xlu0 %1997
  %1999 = vrot.lane.b32.xlu0 %v1864, 119
  %v2000 = vpop.permute.xlu0 %1999
  %2001 = vrot.lane.b32.xlu0 %v1866, 119
  %v2002 = vpop.permute.xlu0 %2001
  %2007 = vrot.lane.b32.xlu0 %v1860, 118
  %v2008 = vpop.permute.xlu0 %2007
  %2009 = vrot.lane.b32.xlu0 %v1862, 118
  %v2010 = vpop.permute.xlu0 %2009
  %2011 = vrot.lane.b32.xlu0 %v1864, 118
  %v2012 = vpop.permute.xlu0 %2011
  %2013 = vrot.lane.b32.xlu0 %v1866, 118
  %v2014 = vpop.permute.xlu0 %2013
  %v2019 = vpack.c.bf16 %v1861, %v1859
  %v2020 = vpack.c.bf16 %v1862, %v1860
  %v2021 = vpack.c.bf16 %v1865, %v1863
  %v2022 = vpack.c.bf16 %v1866, %v1864
  %v2023 = vpack.c.bf16 %v1892, %v1891
  %v2024 = vpack.c.bf16 %v1882, %v1878
  %v2025 = vpack.c.bf16 %v1894, %v1893
  %v2026 = vpack.c.bf16 %v1890, %v1886
  %v2027 = vpack.c.bf16 %v1920, %v1919
  %v2028 = vpack.c.bf16 %v1910, %v1906
  %v2029 = vpack.c.bf16 %v1922, %v1921
  %v2030 = vpack.c.bf16 %v1918, %v1914
  %v2031 = vpack.c.bf16 %v1948, %v1947
  %v2032 = vpack.c.bf16 %v1938, %v1934
  %v2033 = vpack.c.bf16 %v1950, %v1949
  %v2034 = vpack.c.bf16 %v1946, %v1942
  %v2035 = vpack.c.bf16 %v1962, %v1960
  %v2036 = vpack.c.bf16 %v1966, %v1964
  %v2037 = vpack.c.bf16 %v1974, %v1972
  %v2038 = vpack.c.bf16 %v1978, %v1976
  %v2039 = vpack.c.bf16 %v1986, %v1984
  %v2040 = vpack.c.bf16 %v1990, %v1988
  %v2041 = vpack.c.bf16 %v1998, %v1996
  %v2042 = vpack.c.bf16 %v2002, %v2000
  %v2043 = vpack.c.bf16 %v2010, %v2008
  %v2044 = vpack.c.bf16 %v2014, %v2012
  %v2045 = vld [vmem:[%s9] sm:$0xff]
  %v2046 = vld [vmem:[%s9 + $0x8] sm:$0xf]
  %v2047 = vld [vmem:[%s9 + $0xc] sm:$0xff]
  %v2048 = vld [vmem:[%s9 + $0x14] sm:$0xf]
  %v2049 = vld [vmem:[%s9 + $0x18] sm:$0xff]
  %v2050 = vld [vmem:[%s9 + $0x20] sm:$0xf]
  %v2051 = vld [vmem:[%s9 + $0x24] sm:$0xff]
  %v2052 = vld [vmem:[%s9 + $0x2c] sm:$0xf]
  %v2053 = vld [vmem:[%s10] sm:$0xff]
  %v2054 = vld [vmem:[%s10 + $0x8] sm:$0xff]
  %v2055 = vld [vmem:[%s10 + $0x10] sm:$0xff]
  %v2056 = vld [vmem:[%s10 + $0x18] sm:$0xff]
  %2058 = vset.pattern.permute.xlu0 0
  %2059 = vperm.xlu0 %2058, %v2053
  %v2060 = vpop.permute.xlu0 %2059
  %2063 = vset.pattern.permute.xlu0 0
  %2064 = vperm.xlu0 %2063, %v2054
  %v2065 = vpop.permute.xlu0 %2064
  %2068 = vset.pattern.permute.xlu0 0
  %2069 = vperm.xlu0 %2068, %v2055
  %v2070 = vpop.permute.xlu0 %2069
  %2073 = vset.pattern.permute.xlu0 0
  %2074 = vperm.xlu0 %2073, %v2056
  %v2075 = vpop.permute.xlu0 %2074
  %v2085 = vunpack.c.l.b16 %v2045
  %v2086 = vunpack.c.h.b16 %v2045
  %v2087 = vunpack.c.l.b16 %v2046
  %v2088 = vunpack.c.l.b16 %v2047
  %v2089 = vunpack.c.h.b16 %v2047
  %v2090 = vunpack.c.l.b16 %v2048
  %v2091 = vunpack.c.l.b16 %v2049
  %v2092 = vunpack.c.h.b16 %v2049
  %v2093 = vunpack.c.l.b16 %v2050
  %v2094 = vunpack.c.l.b16 %v2051
  %v2095 = vunpack.c.h.b16 %v2051
  %v2096 = vunpack.c.l.b16 %v2052
  %v2097 = vpack.c.b16 %v2088, %v2085
  %v2098 = vpack.c.b16 %v2089, %v2086
  %v2099 = vpack.c.b16 %v2090, %v2087
  %v2100 = vpack.c.b16 %v2094, %v2091
  %v2101 = vpack.c.b16 %v2095, %v2092
  %v2102 = vpack.c.b16 %v2096, %v2093
  %2133 = vrot.lane.b32.xlu0 %v2019, 5
  %v2134 = vpop.permute.xlu0 %2133
  %2135 = vrot.lane.b32.xlu0 %v2020, 5
  %v2136 = vpop.permute.xlu0 %2135
  %2137 = vrot.lane.b32.xlu0 %v2021, 5
  %v2138 = vpop.permute.xlu0 %2137
  %2139 = vrot.lane.b32.xlu0 %v2022, 5
  %v2140 = vpop.permute.xlu0 %2139
  %2141 = vrot.lane.b32.xlu0 %v2023, 5
  %v2142 = vpop.permute.xlu0 %2141
  %2143 = vrot.lane.b32.xlu0 %v2024, 5
  %v2144 = vpop.permute.xlu0 %2143
  %2145 = vrot.lane.b32.xlu0 %v2025, 5
  %v2146 = vpop.permute.xlu0 %2145
  %2147 = vrot.lane.b32.xlu0 %v2026, 5
  %v2148 = vpop.permute.xlu0 %2147
  %2149 = vrot.lane.b32.xlu0 %v2027, 5
  %v2150 = vpop.permute.xlu0 %2149
  %2151 = vrot.lane.b32.xlu0 %v2028, 5
  %v2152 = vpop.permute.xlu0 %2151
  %2153 = vrot.lane.b32.xlu0 %v2029, 5
  %v2154 = vpop.permute.xlu0 %2153
  %2155 = vrot.lane.b32.xlu0 %v2030, 5
  %v2156 = vpop.permute.xlu0 %2155
  %2157 = vrot.lane.b32.xlu0 %v2031, 5
  %v2158 = vpop.permute.xlu0 %2157
  %2159 = vrot.lane.b32.xlu0 %v2032, 5
  %v2160 = vpop.permute.xlu0 %2159
  %2161 = vrot.lane.b32.xlu0 %v2033, 5
  %v2162 = vpop.permute.xlu0 %2161
  %2163 = vrot.lane.b32.xlu0 %v2034, 5
  %v2164 = vpop.permute.xlu0 %2163
  %2165 = vrot.lane.b32.xlu0 %v2035, 5
  %v2166 = vpop.permute.xlu0 %2165
  %2167 = vrot.lane.b32.xlu0 %v2036, 5
  %v2168 = vpop.permute.xlu0 %2167
  %2169 = vrot.lane.b32.xlu0 %v2037, 5
  %v2170 = vpop.permute.xlu0 %2169
  %2171 = vrot.lane.b32.xlu0 %v2038, 5
  %v2172 = vpop.permute.xlu0 %2171
  %2173 = vrot.lane.b32.xlu0 %v2039, 5
  %v2174 = vpop.permute.xlu0 %2173
  %2175 = vrot.lane.b32.xlu0 %v2040, 5
  %v2176 = vpop.permute.xlu0 %2175
  %2177 = vrot.lane.b32.xlu0 %v2041, 5
  %v2178 = vpop.permute.xlu0 %2177
  %2179 = vrot.lane.b32.xlu0 %v2042, 5
  %v2180 = vpop.permute.xlu0 %2179
  %2181 = vrot.lane.b32.xlu0 %v2043, 5
  %v2182 = vpop.permute.xlu0 %2181
  %2183 = vrot.lane.b32.xlu0 %v2044, 5
  %v2184 = vpop.permute.xlu0 %2183
  %v2185 = vsel %vm1244, %v2134, %v2136
  %v2186 = vsel %vm1244, %v2138, %v2140
  %v2187 = vsel %vm1244, %v2142, %v2144
  %v2188 = vsel %vm1244, %v2146, %v2148
  %v2189 = vsel %vm1244, %v2150, %v2152
  %v2190 = vsel %vm1244, %v2154, %v2156
  %v2191 = vsel %vm1244, %v2158, %v2160
  %v2192 = vsel %vm1244, %v2162, %v2164
  %v2212 = vsel %vm404, %v2099, 0
  %v2215 = vsel %vm404, %v2102, 0
  %2217 = vmatprep.subr.bf16.mxu0 0
  %2218 = vmatpush1.bf16.msra.mxu0 %v2185
  %2219 = vmatprep.subr.bf16.mxu0 0
  %2220 = vmatpush1.bf16.msra.mxu0 %v2186
  %2221 = vmatprep.subr.bf16.mxu0 0
  %2222 = vmatpush1.bf16.msra.mxu0 %v2187
  %2223 = vmatprep.subr.bf16.mxu0 0
  %2224 = vmatpush1.bf16.msra.mxu0 %v2188
  %2225 = vmatprep.subr.bf16.mxu0 0
  %2226 = vmatpush1.bf16.msra.mxu0 %v2189
  %2227 = vmatprep.subr.bf16.mxu0 0
  %2228 = vmatpush1.bf16.msra.mxu0 %v2190
  %2229 = vmatprep.subr.bf16.mxu0 0
  %2230 = vmatpush1.bf16.msra.mxu0 %v2191
  %2231 = vmatprep.subr.bf16.mxu0 0
  %2232 = vmatpush1.bf16.msra.mxu0 %v2192
  %2233 = vmatprep.subr.bf16.mxu0 0
  %2234 = vmatpush1.bf16.msra.mxu0 %v2166
  %2235 = vmatprep.subr.bf16.mxu0 0
  %2236 = vmatpush1.bf16.msra.mxu0 %v2168
  %2237 = vmatprep.subr.bf16.mxu0 0
  %2238 = vmatpush1.bf16.msra.mxu0 %v2170
  %2239 = vmatprep.subr.bf16.mxu0 0
  %2240 = vmatpush1.bf16.msra.mxu0 %v2172
  %2241 = vmatprep.subr.bf16.mxu0 0
  %2242 = vmatpush1.bf16.msra.mxu0 %v2174
  %2243 = vmatprep.subr.bf16.mxu0 0
  %2244 = vmatpush1.bf16.msra.mxu0 %v2176
  %2245 = vmatprep.subr.bf16.mxu0 0
  %2246 = vmatpush1.bf16.msra.mxu0 %v2178
  %2247 = vmatprep.subr.bf16.mxu0 0
  %2248 = vmatpush1.bf16.msra.mxu0 %v2180
  %2249 = vmatprep.mubr.bf16.mxu0 %v2098
  %2250 = vmatmul.mubr.bf16.gmra.mrb[0].mxu0 %v2097
  %v2251 = vpop.f32.mrb[0].mxu0
  %v2252 = vadd.f32 %v2060, %v2251
  %v2253 = vpop.f32.mrb[0].mxu0
  %v2254 = vpop.f32.mrb[0].mxu0
  %v2255 = vadd.f32 %v2065, %v2254
  %v2256 = vpop.f32.mrb[0].mxu0
  %2257 = vmatprep.mubr.bf16.mxu0 %v2101
  %2258 = vmatmul.mubr.bf16.gmra.mrb[0].mxu0 %v2100
  %v2259 = vpop.f32.mrb[0].mxu0
  %v2260 = vadd.f32 %v2070, %v2259
  %v2261 = vpop.f32.mrb[0].mxu0
  %v2262 = vpop.f32.mrb[0].mxu0
  %v2263 = vadd.f32 %v2075, %v2262
  %v2264 = vpop.f32.mrb[0].mxu0
  %2265 = vdwg.mxu0
  %2266 = vmatprep.subr.bf16.mxu0 0
  %2267 = vmatpush1.bf16.msra.mxu0 %v2182
  %2268 = vmatprep.subr.bf16.mxu0 0
  %2269 = vmatpush1.bf16.msra.mxu0 %v2184
  %2270 = vmatprep.subr.bf16.mxu0 0
  %2271 = vmatpush1.bf16.msra.mxu0 0
  %2272 = vmatprep.subr.bf16.mxu0 0
  %2273 = vmatpush1.bf16.msra.mxu0 0
  %2274 = vmatprep.subr.bf16.mxu0 0
  %2275 = vmatpush1.bf16.msra.mxu0 0
  %2276 = vmatprep.subr.bf16.mxu0 0
  %2277 = vmatpush1.bf16.msra.mxu0 0
  %2278 = vmatprep.subr.bf16.mxu0 0
  %2279 = vmatpush1.bf16.msra.mxu0 0
  %2280 = vmatprep.subr.bf16.mxu0 0
  %2281 = vmatpush1.bf16.msra.mxu0 0
  %2282 = vmatprep.subr.bf16.mxu0 0
  %2283 = vmatpush1.bf16.msra.mxu0 0
  %2284 = vmatprep.subr.bf16.mxu0 0
  %2285 = vmatpush1.bf16.msra.mxu0 0
  %2286 = vmatprep.subr.bf16.mxu0 0
  %2287 = vmatpush1.bf16.msra.mxu0 0
  %2288 = vmatprep.subr.bf16.mxu0 0
  %2289 = vmatpush1.bf16.msra.mxu0 0
  %2290 = vmatprep.subr.bf16.mxu0 0
  %2291 = vmatpush1.bf16.msra.mxu0 0
  %2292 = vmatprep.subr.bf16.mxu0 0
  %2293 = vmatpush1.bf16.msra.mxu0 0
  %2294 = vmatprep.subr.bf16.mxu0 0
  %2295 = vmatpush1.bf16.msra.mxu0 0
  %2296 = vmatprep.subr.bf16.mxu0 0
  %2297 = vmatpush1.bf16.msra.mxu0 0
  %2298 = vmatprep.mubr.bf16.mxu0 0
  %2299 = vmatmul.mubr.bf16.gmra.mrb[0].mxu0 %v2212
  %v2300 = vpop.f32.mrb[0].mxu0
  %v2301 = vadd.f32 %v2252, %v2300
  %v2302 = vpop.f32.mrb[0].mxu0
  %v2303 = vpop.f32.mrb[0].mxu0
  %v2304 = vadd.f32 %v2255, %v2303
  %v2305 = vpop.f32.mrb[0].mxu0
  %2306 = vmatprep.mubr.bf16.mxu0 0
  %2307 = vmatmul.mubr.bf16.gmra.mrb[0].mxu0 %v2215
  %v2308 = vpop.f32.mrb[0].mxu0
  %v2309 = vadd.f32 %v2260, %v2308
  %v2310 = vpop.f32.mrb[0].mxu0
  %v2311 = vpop.f32.mrb[0].mxu0
  %v2312 = vadd.f32 %v2263, %v2311
  %v2313 = vpop.f32.mrb[0].mxu0
  %2314 = vdwg.mxu0
  %v2315 = vmax.f32 %v2301, 0.0
  %v2316 = vmax.f32 %v2304, 0.0
  %v2317 = vmax.f32 %v2309, 0.0
  %v2318 = vmax.f32 %v2312, 0.0
  %v2319 = vmul.f32 %v907, %v2315
  %v2320 = vmul.f32 %v907, %v2316
  %v2321 = vmul.f32 %v907, %v2317
  %v2322 = vmul.f32 %v907, %v2318
  %2323 = vst.msk [vmem:[%s14 + $0x8] sm:$0xff] %vm404, %v2319
  %2324 = vst.msk [vmem:[%s14 + $0x20] sm:$0xff] %vm404, %v2320
  %2325 = vst.msk [vmem:[%s14 + $0x38] sm:$0xff] %vm404, %v2321
  %2326 = vst.msk [vmem:[%s14 + $0x50] sm:$0xff] %vm404, %v2322
  %v2327 = vld [vmem:[%s14] sm:$0xff]
  %v2328 = vld [vmem:[%s14 + $0x8] sm:$0xff]
  %v2329 = vld [vmem:[%s14 + $0x18] sm:$0xff]
  %v2330 = vld [vmem:[%s14 + $0x20] sm:$0xff]
  %v2331 = vld [vmem:[%s14 + $0x30] sm:$0xff]
  %v2332 = vld [vmem:[%s14 + $0x38] sm:$0xff]
  %v2333 = vld [vmem:[%s14 + $0x48] sm:$0xff]
  %v2334 = vld [vmem:[%s14 + $0x50] sm:$0xff]
  %2343 = vrot.lane.b32.xlu0 %v2327, 127
  %v2344 = vpop.permute.xlu0 %2343
  %2345 = vrot.lane.b32.xlu0 %v2328, 127
  %v2346 = vpop.permute.xlu0 %2345
  %2347 = vrot.lane.b32.xlu0 %v2329, 127
  %v2348 = vpop.permute.xlu0 %2347
  %2349 = vrot.lane.b32.xlu0 %v2330, 127
  %v2350 = vpop.permute.xlu0 %2349
  %2351 = vrot.lane.b32.xlu0 %v2331, 127
  %v2352 = vpop.permute.xlu0 %2351
  %2353 = vrot.lane.b32.xlu0 %v2332, 127
  %v2354 = vpop.permute.xlu0 %2353
  %2355 = vrot.lane.b32.xlu0 %v2333, 127
  %v2356 = vpop.permute.xlu0 %2355
  %2357 = vrot.lane.b32.xlu0 %v2334, 127
  %v2358 = vpop.permute.xlu0 %2357
  %v2359 = vsel %vm80, %v2344, %v2346
  %v2360 = vsel %vm80, %v2348, %v2350
  %v2361 = vsel %vm80, %v2352, %v2354
  %v2362 = vsel %vm80, %v2356, %v2358
  %2371 = vrot.lane.b32.xlu0 %v2327, 126
  %v2372 = vpop.permute.xlu0 %2371
  %2373 = vrot.lane.b32.xlu0 %v2328, 126
  %v2374 = vpop.permute.xlu0 %2373
  %2375 = vrot.lane.b32.xlu0 %v2329, 126
  %v2376 = vpop.permute.xlu0 %2375
  %2377 = vrot.lane.b32.xlu0 %v2330, 126
  %v2378 = vpop.permute.xlu0 %2377
  %2379 = vrot.lane.b32.xlu0 %v2331, 126
  %v2380 = vpop.permute.xlu0 %2379
  %2381 = vrot.lane.b32.xlu0 %v2332, 126
  %v2382 = vpop.permute.xlu0 %2381
  %2383 = vrot.lane.b32.xlu0 %v2333, 126
  %v2384 = vpop.permute.xlu0 %2383
  %2385 = vrot.lane.b32.xlu0 %v2334, 126
  %v2386 = vpop.permute.xlu0 %2385
  %v2387 = vsel %vm109, %v2372, %v2374
  %v2388 = vsel %vm109, %v2376, %v2378
  %v2389 = vsel %vm109, %v2380, %v2382
  %v2390 = vsel %vm109, %v2384, %v2386
  %2399 = vrot.lane.b32.xlu0 %v2327, 124
  %v2400 = vpop.permute.xlu0 %2399
  %2401 = vrot.lane.b32.xlu0 %v2328, 124
  %v2402 = vpop.permute.xlu0 %2401
  %2403 = vrot.lane.b32.xlu0 %v2329, 124
  %v2404 = vpop.permute.xlu0 %2403
  %2405 = vrot.lane.b32.xlu0 %v2330, 124
  %v2406 = vpop.permute.xlu0 %2405
  %2407 = vrot.lane.b32.xlu0 %v2331, 124
  %v2408 = vpop.permute.xlu0 %2407
  %2409 = vrot.lane.b32.xlu0 %v2332, 124
  %v2410 = vpop.permute.xlu0 %2409
  %2411 = vrot.lane.b32.xlu0 %v2333, 124
  %v2412 = vpop.permute.xlu0 %2411
  %2413 = vrot.lane.b32.xlu0 %v2334, 124
  %v2414 = vpop.permute.xlu0 %2413
  %v2415 = vsel %vm1005, %v2400, %v2402
  %v2416 = vsel %vm1005, %v2404, %v2406
  %v2417 = vsel %vm1005, %v2408, %v2410
  %v2418 = vsel %vm1005, %v2412, %v2414
  %2427 = vrot.lane.b32.xlu0 %v2328, 123
  %v2428 = vpop.permute.xlu0 %2427
  %2429 = vrot.lane.b32.xlu0 %v2330, 123
  %v2430 = vpop.permute.xlu0 %2429
  %2431 = vrot.lane.b32.xlu0 %v2332, 123
  %v2432 = vpop.permute.xlu0 %2431
  %2433 = vrot.lane.b32.xlu0 %v2334, 123
  %v2434 = vpop.permute.xlu0 %2433
  %2439 = vrot.lane.b32.xlu0 %v2328, 122
  %v2440 = vpop.permute.xlu0 %2439
  %2441 = vrot.lane.b32.xlu0 %v2330, 122
  %v2442 = vpop.permute.xlu0 %2441
  %2443 = vrot.lane.b32.xlu0 %v2332, 122
  %v2444 = vpop.permute.xlu0 %2443
  %2445 = vrot.lane.b32.xlu0 %v2334, 122
  %v2446 = vpop.permute.xlu0 %2445
  %2451 = vrot.lane.b32.xlu0 %v2328, 120
  %v2452 = vpop.permute.xlu0 %2451
  %2453 = vrot.lane.b32.xlu0 %v2330, 120
  %v2454 = vpop.permute.xlu0 %2453
  %2455 = vrot.lane.b32.xlu0 %v2332, 120
  %v2456 = vpop.permute.xlu0 %2455
  %2457 = vrot.lane.b32.xlu0 %v2334, 120
  %v2458 = vpop.permute.xlu0 %2457
  %2463 = vrot.lane.b32.xlu0 %v2328, 119
  %v2464 = vpop.permute.xlu0 %2463
  %2465 = vrot.lane.b32.xlu0 %v2330, 119
  %v2466 = vpop.permute.xlu0 %2465
  %2467 = vrot.lane.b32.xlu0 %v2332, 119
  %v2468 = vpop.permute.xlu0 %2467
  %2469 = vrot.lane.b32.xlu0 %v2334, 119
  %v2470 = vpop.permute.xlu0 %2469
  %2475 = vrot.lane.b32.xlu0 %v2328, 118
  %v2476 = vpop.permute.xlu0 %2475
  %2477 = vrot.lane.b32.xlu0 %v2330, 118
  %v2478 = vpop.permute.xlu0 %2477
  %2479 = vrot.lane.b32.xlu0 %v2332, 118
  %v2480 = vpop.permute.xlu0 %2479
  %2481 = vrot.lane.b32.xlu0 %v2334, 118
  %v2482 = vpop.permute.xlu0 %2481
  %v2487 = vpack.c.bf16 %v2329, %v2327
  %v2488 = vpack.c.bf16 %v2330, %v2328
  %v2489 = vpack.c.bf16 %v2333, %v2331
  %v2490 = vpack.c.bf16 %v2334, %v2332
  %v2491 = vpack.c.bf16 %v2360, %v2359
  %v2492 = vpack.c.bf16 %v2350, %v2346
  %v2493 = vpack.c.bf16 %v2362, %v2361
  %v2494 = vpack.c.bf16 %v2358, %v2354
  %v2495 = vpack.c.bf16 %v2388, %v2387
  %v2496 = vpack.c.bf16 %v2378, %v2374
  %v2497 = vpack.c.bf16 %v2390, %v2389
  %v2498 = vpack.c.bf16 %v2386, %v2382
  %v2499 = vpack.c.bf16 %v2416, %v2415
  %v2500 = vpack.c.bf16 %v2406, %v2402
  %v2501 = vpack.c.bf16 %v2418, %v2417
  %v2502 = vpack.c.bf16 %v2414, %v2410
  %v2503 = vpack.c.bf16 %v2430, %v2428
  %v2504 = vpack.c.bf16 %v2434, %v2432
  %v2505 = vpack.c.bf16 %v2442, %v2440
  %v2506 = vpack.c.bf16 %v2446, %v2444
  %v2507 = vpack.c.bf16 %v2454, %v2452
  %v2508 = vpack.c.bf16 %v2458, %v2456
  %v2509 = vpack.c.bf16 %v2466, %v2464
  %v2510 = vpack.c.bf16 %v2470, %v2468
  %v2511 = vpack.c.bf16 %v2478, %v2476
  %v2512 = vpack.c.bf16 %v2482, %v2480
  %v2513 = vld [vmem:[%s11] sm:$0xff]
  %v2514 = vld [vmem:[%s11 + $0x8] sm:$0xf]
  %v2515 = vld [vmem:[%s11 + $0xc] sm:$0xff]
  %v2516 = vld [vmem:[%s11 + $0x14] sm:$0xf]
  %v2517 = vld [vmem:[%s11 + $0x18] sm:$0xff]
  %v2518 = vld [vmem:[%s11 + $0x20] sm:$0xf]
  %v2519 = vld [vmem:[%s11 + $0x24] sm:$0xff]
  %v2520 = vld [vmem:[%s11 + $0x2c] sm:$0xf]
  %v2521 = vld [vmem:[%s12] sm:$0xff]
  %v2522 = vld [vmem:[%s12 + $0x8] sm:$0xff]
  %v2523 = vld [vmem:[%s12 + $0x10] sm:$0xff]
  %v2524 = vld [vmem:[%s12 + $0x18] sm:$0xff]
  %2526 = vset.pattern.permute.xlu0 0
  %2527 = vperm.xlu0 %2526, %v2521
  %v2528 = vpop.permute.xlu0 %2527
  %2531 = vset.pattern.permute.xlu0 0
  %2532 = vperm.xlu0 %2531, %v2522
  %v2533 = vpop.permute.xlu0 %2532
  %2536 = vset.pattern.permute.xlu0 0
  %2537 = vperm.xlu0 %2536, %v2523
  %v2538 = vpop.permute.xlu0 %2537
  %2541 = vset.pattern.permute.xlu0 0
  %2542 = vperm.xlu0 %2541, %v2524
  %v2543 = vpop.permute.xlu0 %2542
  %v2553 = vunpack.c.l.b16 %v2513
  %v2554 = vunpack.c.h.b16 %v2513
  %v2555 = vunpack.c.l.b16 %v2514
  %v2556 = vunpack.c.l.b16 %v2515
  %v2557 = vunpack.c.h.b16 %v2515
  %v2558 = vunpack.c.l.b16 %v2516
  %v2559 = vunpack.c.l.b16 %v2517
  %v2560 = vunpack.c.h.b16 %v2517
  %v2561 = vunpack.c.l.b16 %v2518
  %v2562 = vunpack.c.l.b16 %v2519
  %v2563 = vunpack.c.h.b16 %v2519
  %v2564 = vunpack.c.l.b16 %v2520
  %v2565 = vpack.c.b16 %v2556, %v2553
  %v2566 = vpack.c.b16 %v2557, %v2554
  %v2567 = vpack.c.b16 %v2558, %v2555
  %v2568 = vpack.c.b16 %v2562, %v2559
  %v2569 = vpack.c.b16 %v2563, %v2560
  %v2570 = vpack.c.b16 %v2564, %v2561
  %2601 = vrot.lane.b32.xlu0 %v2487, 5
  %v2602 = vpop.permute.xlu0 %2601
  %2603 = vrot.lane.b32.xlu0 %v2488, 5
  %v2604 = vpop.permute.xlu0 %2603
  %2605 = vrot.lane.b32.xlu0 %v2489, 5
  %v2606 = vpop.permute.xlu0 %2605
  %2607 = vrot.lane.b32.xlu0 %v2490, 5
  %v2608 = vpop.permute.xlu0 %2607
  %2609 = vrot.lane.b32.xlu0 %v2491, 5
  %v2610 = vpop.permute.xlu0 %2609
  %2611 = vrot.lane.b32.xlu0 %v2492, 5
  %v2612 = vpop.permute.xlu0 %2611
  %2613 = vrot.lane.b32.xlu0 %v2493, 5
  %v2614 = vpop.permute.xlu0 %2613
  %2615 = vrot.lane.b32.xlu0 %v2494, 5
  %v2616 = vpop.permute.xlu0 %2615
  %2617 = vrot.lane.b32.xlu0 %v2495, 5
  %v2618 = vpop.permute.xlu0 %2617
  %2619 = vrot.lane.b32.xlu0 %v2496, 5
  %v2620 = vpop.permute.xlu0 %2619
  %2621 = vrot.lane.b32.xlu0 %v2497, 5
  %v2622 = vpop.permute.xlu0 %2621
  %2623 = vrot.lane.b32.xlu0 %v2498, 5
  %v2624 = vpop.permute.xlu0 %2623
  %2625 = vrot.lane.b32.xlu0 %v2499, 5
  %v2626 = vpop.permute.xlu0 %2625
  %2627 = vrot.lane.b32.xlu0 %v2500, 5
  %v2628 = vpop.permute.xlu0 %2627
  %2629 = vrot.lane.b32.xlu0 %v2501, 5
  %v2630 = vpop.permute.xlu0 %2629
  %2631 = vrot.lane.b32.xlu0 %v2502, 5
  %v2632 = vpop.permute.xlu0 %2631
  %2633 = vrot.lane.b32.xlu0 %v2503, 5
  %v2634 = vpop.permute.xlu0 %2633
  %2635 = vrot.lane.b32.xlu0 %v2504, 5
  %v2636 = vpop.permute.xlu0 %2635
  %2637 = vrot.lane.b32.xlu0 %v2505, 5
  %v2638 = vpop.permute.xlu0 %2637
  %2639 = vrot.lane.b32.xlu0 %v2506, 5
  %v2640 = vpop.permute.xlu0 %2639
  %2641 = vrot.lane.b32.xlu0 %v2507, 5
  %v2642 = vpop.permute.xlu0 %2641
  %2643 = vrot.lane.b32.xlu0 %v2508, 5
  %v2644 = vpop.permute.xlu0 %2643
  %2645 = vrot.lane.b32.xlu0 %v2509, 5
  %v2646 = vpop.permute.xlu0 %2645
  %2647 = vrot.lane.b32.xlu0 %v2510, 5
  %v2648 = vpop.permute.xlu0 %2647
  %2649 = vrot.lane.b32.xlu0 %v2511, 5
  %v2650 = vpop.permute.xlu0 %2649
  %2651 = vrot.lane.b32.xlu0 %v2512, 5
  %v2652 = vpop.permute.xlu0 %2651
  %v2653 = vsel %vm1244, %v2602, %v2604
  %v2654 = vsel %vm1244, %v2606, %v2608
  %v2655 = vsel %vm1244, %v2610, %v2612
  %v2656 = vsel %vm1244, %v2614, %v2616
  %v2657 = vsel %vm1244, %v2618, %v2620
  %v2658 = vsel %vm1244, %v2622, %v2624
  %v2659 = vsel %vm1244, %v2626, %v2628
  %v2660 = vsel %vm1244, %v2630, %v2632
  %v2680 = vsel %vm404, %v2567, 0
  %v2683 = vsel %vm404, %v2570, 0
  %2685 = vmatprep.subr.bf16.mxu0 0
  %2686 = vmatpush1.bf16.msra.mxu0 %v2653
  %2687 = vmatprep.subr.bf16.mxu0 0
  %2688 = vmatpush1.bf16.msra.mxu0 %v2654
  %2689 = vmatprep.subr.bf16.mxu0 0
  %2690 = vmatpush1.bf16.msra.mxu0 %v2655
  %2691 = vmatprep.subr.bf16.mxu0 0
  %2692 = vmatpush1.bf16.msra.mxu0 %v2656
  %2693 = vmatprep.subr.bf16.mxu0 0
  %2694 = vmatpush1.bf16.msra.mxu0 %v2657
  %2695 = vmatprep.subr.bf16.mxu0 0
  %2696 = vmatpush1.bf16.msra.mxu0 %v2658
  %2697 = vmatprep.subr.bf16.mxu0 0
  %2698 = vmatpush1.bf16.msra.mxu0 %v2659
  %2699 = vmatprep.subr.bf16.mxu0 0
  %2700 = vmatpush1.bf16.msra.mxu0 %v2660
  %2701 = vmatprep.subr.bf16.mxu0 0
  %2702 = vmatpush1.bf16.msra.mxu0 %v2634
  %2703 = vmatprep.subr.bf16.mxu0 0
  %2704 = vmatpush1.bf16.msra.mxu0 %v2636
  %2705 = vmatprep.subr.bf16.mxu0 0
  %2706 = vmatpush1.bf16.msra.mxu0 %v2638
  %2707 = vmatprep.subr.bf16.mxu0 0
  %2708 = vmatpush1.bf16.msra.mxu0 %v2640
  %2709 = vmatprep.subr.bf16.mxu0 0
  %2710 = vmatpush1.bf16.msra.mxu0 %v2642
  %2711 = vmatprep.subr.bf16.mxu0 0
  %2712 = vmatpush1.bf16.msra.mxu0 %v2644
  %2713 = vmatprep.subr.bf16.mxu0 0
  %2714 = vmatpush1.bf16.msra.mxu0 %v2646
  %2715 = vmatprep.subr.bf16.mxu0 0
  %2716 = vmatpush1.bf16.msra.mxu0 %v2648
  %2717 = vmatprep.mubr.bf16.mxu0 %v2566
  %2718 = vmatmul.mubr.bf16.gmra.mrb[0].mxu0 %v2565
  %v2719 = vpop.f32.mrb[0].mxu0
  %v2720 = vadd.f32 %v2528, %v2719
  %v2721 = vpop.f32.mrb[0].mxu0
  %v2722 = vpop.f32.mrb[0].mxu0
  %v2723 = vadd.f32 %v2533, %v2722
  %v2724 = vpop.f32.mrb[0].mxu0
  %2725 = vmatprep.mubr.bf16.mxu0 %v2569
  %2726 = vmatmul.mubr.bf16.gmra.mrb[0].mxu0 %v2568
  %v2727 = vpop.f32.mrb[0].mxu0
  %v2728 = vadd.f32 %v2538, %v2727
  %v2729 = vpop.f32.mrb[0].mxu0
  %v2730 = vpop.f32.mrb[0].mxu0
  %v2731 = vadd.f32 %v2543, %v2730
  %v2732 = vpop.f32.mrb[0].mxu0
  %2733 = vdwg.mxu0
  %2734 = vmatprep.subr.bf16.mxu0 0
  %2735 = vmatpush1.bf16.msra.mxu0 %v2650
  %2736 = vmatprep.subr.bf16.mxu0 0
  %2737 = vmatpush1.bf16.msra.mxu0 %v2652
  %2738 = vmatprep.subr.bf16.mxu0 0
  %2739 = vmatpush1.bf16.msra.mxu0 0
  %2740 = vmatprep.subr.bf16.mxu0 0
  %2741 = vmatpush1.bf16.msra.mxu0 0
  %2742 = vmatprep.subr.bf16.mxu0 0
  %2743 = vmatpush1.bf16.msra.mxu0 0
  %2744 = vmatprep.subr.bf16.mxu0 0
  %2745 = vmatpush1.bf16.msra.mxu0 0
  %2746 = vmatprep.subr.bf16.mxu0 0
  %2747 = vmatpush1.bf16.msra.mxu0 0
  %2748 = vmatprep.subr.bf16.mxu0 0
  %2749 = vmatpush1.bf16.msra.mxu0 0
  %2750 = vmatprep.subr.bf16.mxu0 0
  %2751 = vmatpush1.bf16.msra.mxu0 0
  %2752 = vmatprep.subr.bf16.mxu0 0
  %2753 = vmatpush1.bf16.msra.mxu0 0
  %2754 = vmatprep.subr.bf16.mxu0 0
  %2755 = vmatpush1.bf16.msra.mxu0 0
  %2756 = vmatprep.subr.bf16.mxu0 0
  %2757 = vmatpush1.bf16.msra.mxu0 0
  %2758 = vmatprep.subr.bf16.mxu0 0
  %2759 = vmatpush1.bf16.msra.mxu0 0
  %2760 = vmatprep.subr.bf16.mxu0 0
  %2761 = vmatpush1.bf16.msra.mxu0 0
  %2762 = vmatprep.subr.bf16.mxu0 0
  %2763 = vmatpush1.bf16.msra.mxu0 0
  %2764 = vmatprep.subr.bf16.mxu0 0
  %2765 = vmatpush1.bf16.msra.mxu0 0
  %2766 = vmatprep.mubr.bf16.mxu0 0
  %2767 = vmatmul.mubr.bf16.gmra.mrb[0].mxu0 %v2680
  %v2768 = vpop.f32.mrb[0].mxu0
  %v2769 = vadd.f32 %v2720, %v2768
  %v2770 = vpop.f32.mrb[0].mxu0
  %v2771 = vpop.f32.mrb[0].mxu0
  %v2772 = vadd.f32 %v2723, %v2771
  %v2773 = vpop.f32.mrb[0].mxu0
  %2774 = vmatprep.mubr.bf16.mxu0 0
  %2775 = vmatmul.mubr.bf16.gmra.mrb[0].mxu0 %v2683
  %v2776 = vpop.f32.mrb[0].mxu0
  %v2777 = vadd.f32 %v2728, %v2776
  %v2778 = vpop.f32.mrb[0].mxu0
  %v2779 = vpop.f32.mrb[0].mxu0
  %v2780 = vadd.f32 %v2731, %v2779
  %v2781 = vpop.f32.mrb[0].mxu0
  %2782 = vdwg.mxu0
  %v2783 = vadd.f32 %v2769, %v1843
  %v2784 = vadd.f32 %v2772, %v1844
  %v2785 = vadd.f32 %v2777, %v1845
  %v2786 = vadd.f32 %v2780, %v1846
  %v2787 = vmul.f32 %v907, %v2783
  %v2788 = vmul.f32 %v907, %v2784
  %v2789 = vmul.f32 %v907, %v2785
  %v2790 = vmul.f32 %v907, %v2786
  %2791 = vst.msk [vmem:[%s14 + $0x8] sm:$0xff] %vm404, %v2787
  %2792 = vst.msk [vmem:[%s14 + $0x20] sm:$0xff] %vm404, %v2788
  %2793 = vst.msk [vmem:[%s14 + $0x38] sm:$0xff] %vm404, %v2789
  %2794 = vst.msk [vmem:[%s14 + $0x50] sm:$0xff] %vm404, %v2790
  // Predicated region
  $region58: #{impala_policy_forward.6} parent=0 // pred_check
    _
  $region59: #{impala_policy_forward.6} parent=0 // pred_check_branch
    %2796 = sbr.rel (0) target = $region61
  $region60: #{impala_policy_forward.6} parent=0 // pred_region
    _
  $region61: #{impala_policy_forward.6} parent=0 // pred_fallthru
    _
  // Predicated region
  $region62: #{impala_policy_forward.6} parent=0 // pred_check
    _
  $region63: #{impala_policy_forward.6} parent=0 // pred_check_branch
    %2798 = sbr.rel (0) target = $region65
  $region64: #{impala_policy_forward.6} parent=0 // pred_region
    _
  $region65: #{impala_policy_forward.6} parent=0 // pred_fallthru
    _

// kernel: impala_policy_forward.5
$region0: #{impala_policy_forward.5}
  #allocation0 [shape = 'u32[]', space=smem, size = 0x4, offset = 0x4, fixed_abs, tag = 'smem constant byte address 0x4 - core index']
  #allocation1 [shape = 'u32[144,128]{1,0:T(1,128)}', space=vmem, size = 0x12000, scoped, tag = 'internal scratch']
  #allocation2 [shape = 'f32[32,456]{1,0:T(8,128)}', space=vmem, size = 0x10000, scoped, tag = 'scratch operand']
  %s0 = inlined_call_operand.vmem [shape: f32[16,456], index: 0, kind: input, shape index: {}]
  %s1 = inlined_call_operand.vmem [shape: bf16[32,144], index: 1, kind: input, shape index: {}]
  %s2 = inlined_call_operand.vmem [shape: f32[32,1], index: 2, kind: input, shape index: {}]
  %s3 = inlined_call_operand.vmem [shape: f32[1,200], index: 3, kind: input, shape index: {}]
  %s4 = inlined_call_operand.vmem [shape: bf16[200,72], index: 4, kind: input, shape index: {}]
  %s5 = inlined_call_operand.vmem [shape: bf16[32,288], index: 5, kind: input, shape index: {}]
  %s6 = inlined_call_operand.vmem [shape: f32[32,1], index: 6, kind: input, shape index: {}]
  %s7 = inlined_call_operand.vmem [shape: bf16[32,288], index: 7, kind: input, shape index: {}]
  %s8 = inlined_call_operand.vmem [shape: f32[32,1], index: 8, kind: input, shape index: {}]
  %s9 = inlined_call_operand.vmem [shape: bf16[32,288], index: 9, kind: input, shape index: {}]
  %s10 = inlined_call_operand.vmem [shape: f32[32,1], index: 10, kind: input, shape index: {}]
  %s11 = inlined_call_operand.vmem [shape: bf16[32,288], index: 11, kind: input, shape index: {}]
  %s12 = inlined_call_operand.vmem [shape: f32[32,1], index: 12, kind: input, shape index: {}]
  %s13 = inlined_call_operand.vmem [shape: f32[1,72], index: 13, kind: input, shape index: {}]
  %s14 = inlined_call_operand.vmem [shape: f32[32,328], index: 14, kind: output, shape index: {}]
  %s15 = sld [smem:[#allocation0]]
  $region66: #{impala_policy_forward.5} parent=0
    _
  %s17 = ssub.s32 1, %s15
  %s18 = scalar_select 0, %s17, %s15
  // Predicated region
  $region2: #{impala_policy_forward.5} parent=0 // pred_check
    _
  $region3: #{impala_policy_forward.5} parent=0 // pred_check_branch
    %20 = sbr.rel (0) target = $region5
  $region4: #{impala_policy_forward.5} parent=0 // pred_region
    _
  $region5: #{impala_policy_forward.5} parent=0 // pred_fallthru
    _
  // Predicated region
  $region6: #{impala_policy_forward.5} parent=0 // pred_check
    _
  $region7: #{impala_policy_forward.5} parent=0 // pred_check_branch
    %22 = sbr.rel (0) target = $region9
  $region8: #{impala_policy_forward.5} parent=0 // pred_region
    _
  $region9: #{impala_policy_forward.5} parent=0 // pred_fallthru
    _
  // Predicated region
  $region10: #{impala_policy_forward.5} parent=0 // pred_check
    _
  $region11: #{impala_policy_forward.5} parent=0 // pred_check_branch
    %24 = sbr.rel (0) target = $region13
  $region12: #{impala_policy_forward.5} parent=0 // pred_region
    _
  $region13: #{impala_policy_forward.5} parent=0 // pred_fallthru
    _
  // Predicated region
  $region14: #{impala_policy_forward.5} parent=0 // pred_check
    _
  $region15: #{impala_policy_forward.5} parent=0 // pred_check_branch
    %26 = sbr.rel (0) target = $region17
  $region16: #{impala_policy_forward.5} parent=0 // pred_region
    _
  $region17: #{impala_policy_forward.5} parent=0 // pred_fallthru
    _
  // Predicated region
  $region18: #{impala_policy_forward.5} parent=0 // pred_check
    _
  $region19: #{impala_policy_forward.5} parent=0 // pred_check_branch
    %28 = sbr.rel (0) target = $region21
  $region20: #{impala_policy_forward.5} parent=0 // pred_region
    _
  $region21: #{impala_policy_forward.5} parent=0 // pred_fallthru
    _
  // Predicated region
  $region22: #{impala_policy_forward.5} parent=0 // pred_check
    _
  $region23: #{impala_policy_forward.5} parent=0 // pred_check_branch
    %30 = sbr.rel (0) target = $region25
  $region24: #{impala_policy_forward.5} parent=0 // pred_region
    _
  $region25: #{impala_policy_forward.5} parent=0 // pred_fallthru
    _
  // Predicated region
  $region26: #{impala_policy_forward.5} parent=0 // pred_check
    _
  $region27: #{impala_policy_forward.5} parent=0 // pred_check_branch
    %32 = sbr.rel (0) target = $region29
  $region28: #{impala_policy_forward.5} parent=0 // pred_region
    _
  $region29: #{impala_policy_forward.5} parent=0 // pred_fallthru
    _
  // Predicated region
  $region30: #{impala_policy_forward.5} parent=0 // pred_check
    _
  $region31: #{impala_policy_forward.5} parent=0 // pred_check_branch
    %34 = sbr.rel (0) target = $region33
  $region32: #{impala_policy_forward.5} parent=0 // pred_region
    _
  $region33: #{impala_policy_forward.5} parent=0 // pred_fallthru
    _
  // Predicated region
  $region34: #{impala_policy_forward.5} parent=0 // pred_check
    _
  $region35: #{impala_policy_forward.5} parent=0 // pred_check_branch
    %36 = sbr.rel (0) target = $region37
  $region36: #{impala_policy_forward.5} parent=0 // pred_region
    _
  $region37: #{impala_policy_forward.5} parent=0 // pred_fallthru
    _
  // Predicated region
  $region38: #{impala_policy_forward.5} parent=0 // pred_check
    _
  $region39: #{impala_policy_forward.5} parent=0 // pred_check_branch
    %38 = sbr.rel (0) target = $region41
  $region40: #{impala_policy_forward.5} parent=0 // pred_region
    _
  $region41: #{impala_policy_forward.5} parent=0 // pred_fallthru
    _
  // Predicated region
  $region42: #{impala_policy_forward.5} parent=0 // pred_check
    _
  $region43: #{impala_policy_forward.5} parent=0 // pred_check_branch
    %40 = sbr.rel (0) target = $region45
  $region44: #{impala_policy_forward.5} parent=0 // pred_region
    _
  $region45: #{impala_policy_forward.5} parent=0 // pred_fallthru
    _
  // Predicated region
  $region46: #{impala_policy_forward.5} parent=0 // pred_check
    _
  $region47: #{impala_policy_forward.5} parent=0 // pred_check_branch
    %42 = sbr.rel (0) target = $region49
  $region48: #{impala_policy_forward.5} parent=0 // pred_region
    _
  $region49: #{impala_policy_forward.5} parent=0 // pred_fallthru
    _
  // Predicated region
  $region50: #{impala_policy_forward.5} parent=0 // pred_check
    _
  $region51: #{impala_policy_forward.5} parent=0 // pred_check_branch
    %44 = sbr.rel (0) target = $region53
  $region52: #{impala_policy_forward.5} parent=0 // pred_region
    _
  $region53: #{impala_policy_forward.5} parent=0 // pred_fallthru
    _
  // Predicated region
  $region54: #{impala_policy_forward.5} parent=0 // pred_check
    _
  $region55: #{impala_policy_forward.5} parent=0 // pred_check_branch
    %46 = sbr.rel (0) target = $region57
  $region56: #{impala_policy_forward.5} parent=0 // pred_region
    _
  $region57: #{impala_policy_forward.5} parent=0 // pred_fallthru
    _
  %v48 = vld [vmem:[%s0] sm:$0xff]
  %v49 = vld [vmem:[%s0 + $0x8] sm:$0xff]
  %v50 = vld [vmem:[%s0 + $0x10] sm:$0xff]
  %v51 = vld [vmem:[%s0 + $0x20] sm:$0xff]
  %v52 = vld [vmem:[%s0 + $0x28] sm:$0xff]
  %v53 = vld [vmem:[%s0 + $0x30] sm:$0xff]
  %60 = vrot.lane.b32.xlu0 %v48, 127
  %v61 = vpop.permute.xlu0 %60
  %62 = vrot.lane.b32.xlu0 %v49, 127
  %v63 = vpop.permute.xlu0 %62
  %64 = vrot.lane.b32.xlu0 %v50, 127
  %v65 = vpop.permute.xlu0 %64
  %66 = vrot.lane.b32.xlu0 %v51, 127
  %v67 = vpop.permute.xlu0 %66
  %68 = vrot.lane.b32.xlu0 %v52, 127
  %v69 = vpop.permute.xlu0 %68
  %70 = vrot.lane.b32.xlu0 %v53, 127
  %v71 = vpop.permute.xlu0 %70
  %vm72 = vcmask 1039360
  %v73 = vsel %vm72, %v61, %v63
  %v74 = vsel %vm72, %v63, %v65
  %v75 = vsel %vm72, %v67, %v69
  %v76 = vsel %vm72, %v69, %v71
  %83 = vrot.lane.b32.xlu0 %v48, 126
  %v84 = vpop.permute.xlu0 %83
  %85 = vrot.lane.b32.xlu0 %v49, 126
  %v86 = vpop.permute.xlu0 %85
  %87 = vrot.lane.b32.xlu0 %v50, 126
  %v88 = vpop.permute.xlu0 %87
  %89 = vrot.lane.b32.xlu0 %v51, 126
  %v90 = vpop.permute.xlu0 %89
  %91 = vrot.lane.b32.xlu0 %v52, 126
  %v92 = vpop.permute.xlu0 %91
  %93 = vrot.lane.b32.xlu0 %v53, 126
  %v94 = vpop.permute.xlu0 %93
  %vm95 = vcmask 1031168
  %v96 = vsel %vm95, %v84, %v86
  %v97 = vsel %vm95, %v86, %v88
  %v98 = vsel %vm95, %v90, %v92
  %v99 = vsel %vm95, %v92, %v94
  %106 = vrot.lane.b32.xlu0 %v48, 118
  %v107 = vpop.permute.xlu0 %106
  %108 = vrot.lane.b32.xlu0 %v49, 118
  %v109 = vpop.permute.xlu0 %108
  %110 = vrot.lane.b32.xlu0 %v50, 118
  %v111 = vpop.permute.xlu0 %110
  %112 = vrot.lane.b32.xlu0 %v51, 118
  %v113 = vpop.permute.xlu0 %112
  %114 = vrot.lane.b32.xlu0 %v52, 118
  %v115 = vpop.permute.xlu0 %114
  %116 = vrot.lane.b32.xlu0 %v53, 118
  %v117 = vpop.permute.xlu0 %116
  %vm118 = vcmask 965632
  %v119 = vsel %vm118, %v107, %v109
  %v120 = vsel %vm118, %v109, %v111
  %v121 = vsel %vm118, %v113, %v115
  %v122 = vsel %vm118, %v115, %v117
  %129 = vrot.lane.b32.xlu0 %v49, 117
  %v130 = vpop.permute.xlu0 %129
  %131 = vrot.lane.b32.xlu0 %v50, 117
  %v132 = vpop.permute.xlu0 %131
  %133 = vrot.lane.b32.xlu0 %v52, 117
  %v134 = vpop.permute.xlu0 %133
  %135 = vrot.lane.b32.xlu0 %v53, 117
  %v136 = vpop.permute.xlu0 %135
  %vm137 = vcmask 957440
  %v138 = vsel %vm137, %v130, %v132
  %v139 = vsel %vm137, %v134, %v136
  %146 = vrot.lane.b32.xlu0 %v49, 116
  %v147 = vpop.permute.xlu0 %146
  %148 = vrot.lane.b32.xlu0 %v50, 116
  %v149 = vpop.permute.xlu0 %148
  %150 = vrot.lane.b32.xlu0 %v52, 116
  %v151 = vpop.permute.xlu0 %150
  %152 = vrot.lane.b32.xlu0 %v53, 116
  %v153 = vpop.permute.xlu0 %152
  %vm154 = vcmask 949248
  %v155 = vsel %vm154, %v147, %v149
  %v156 = vsel %vm154, %v151, %v153
  %163 = vrot.lane.b32.xlu0 %v49, 108
  %v164 = vpop.permute.xlu0 %163
  %165 = vrot.lane.b32.xlu0 %v50, 108
  %v166 = vpop.permute.xlu0 %165
  %167 = vrot.lane.b32.xlu0 %v52, 108
  %v168 = vpop.permute.xlu0 %167
  %169 = vrot.lane.b32.xlu0 %v53, 108
  %v170 = vpop.permute.xlu0 %169
  %vm171 = vcmask 883712
  %v172 = vsel %vm171, %v164, %v166
  %v173 = vsel %vm171, %v168, %v170
  %180 = vrot.lane.b32.xlu0 %v49, 107
  %v181 = vpop.permute.xlu0 %180
  %182 = vrot.lane.b32.xlu0 %v50, 107
  %v183 = vpop.permute.xlu0 %182
  %184 = vrot.lane.b32.xlu0 %v52, 107
  %v185 = vpop.permute.xlu0 %184
  %186 = vrot.lane.b32.xlu0 %v53, 107
  %v187 = vpop.permute.xlu0 %186
  %vm188 = vcmask 875520
  %v189 = vsel %vm188, %v181, %v183
  %v190 = vsel %vm188, %v185, %v187
  %197 = vrot.lane.b32.xlu0 %v49, 106
  %v198 = vpop.permute.xlu0 %197
  %199 = vrot.lane.b32.xlu0 %v50, 106
  %v200 = vpop.permute.xlu0 %199
  %201 = vrot.lane.b32.xlu0 %v52, 106
  %v202 = vpop.permute.xlu0 %201
  %203 = vrot.lane.b32.xlu0 %v53, 106
  %v204 = vpop.permute.xlu0 %203
  %vm205 = vcmask 867328
  %v206 = vsel %vm205, %v198, %v200
  %v207 = vsel %vm205, %v202, %v204
  %v214 = vpack.c.bf16 %v51, %v48
  %v215 = vpack.c.bf16 %v52, %v49
  %v216 = vpack.c.bf16 %v53, %v50
  %v217 = vpack.c.bf16 %v75, %v73
  %v218 = vpack.c.bf16 %v76, %v74
  %v219 = vpack.c.bf16 %v71, %v65
  %v220 = vpack.c.bf16 %v98, %v96
  %v221 = vpack.c.bf16 %v99, %v97
  %v222 = vpack.c.bf16 %v94, %v88
  %v223 = vpack.c.bf16 %v121, %v119
  %v224 = vpack.c.bf16 %v122, %v120
  %v225 = vpack.c.bf16 %v117, %v111
  %v226 = vpack.c.bf16 %v134, %v130
  %v227 = vpack.c.bf16 %v139, %v138
  %v228 = vpack.c.bf16 %v136, %v132
  %v229 = vpack.c.bf16 %v151, %v147
  %v230 = vpack.c.bf16 %v156, %v155
  %v231 = vpack.c.bf16 %v153, %v149
  %v232 = vpack.c.bf16 %v168, %v164
  %v233 = vpack.c.bf16 %v173, %v172
  %v234 = vpack.c.bf16 %v170, %v166
  %v235 = vpack.c.bf16 %v185, %v181
  %v236 = vpack.c.bf16 %v190, %v189
  %v237 = vpack.c.bf16 %v187, %v183
  %v238 = vpack.c.bf16 %v202, %v198
  %v239 = vpack.c.bf16 %v207, %v206
  %v240 = vpack.c.bf16 %v204, %v200
  %v241 = vld [vmem:[%s1] sm:$0xff]
  %v242 = vld [vmem:[%s1 + $0x8] sm:$0xff]
  %v243 = vld [vmem:[%s1 + $0x10] sm:$0xff]
  %v244 = vld [vmem:[%s1 + $0x18] sm:$0xff]
  %v245 = vld [vmem:[%s2] sm:$0xff]
  %v246 = vld [vmem:[%s2 + $0x8] sm:$0xff]
  %v247 = vld [vmem:[%s2 + $0x10] sm:$0xff]
  %v248 = vld [vmem:[%s2 + $0x18] sm:$0xff]
  %250 = vset.pattern.permute.xlu0 0
  %251 = vperm.xlu0 %250, %v245
  %v252 = vpop.permute.xlu0 %251
  %255 = vset.pattern.permute.xlu0 0
  %256 = vperm.xlu0 %255, %v246
  %v257 = vpop.permute.xlu0 %256
  %260 = vset.pattern.permute.xlu0 0
  %261 = vperm.xlu0 %260, %v247
  %v262 = vpop.permute.xlu0 %261
  %265 = vset.pattern.permute.xlu0 0
  %266 = vperm.xlu0 %265, %v248
  %v267 = vpop.permute.xlu0 %266
  %v273 = vunpack.c.l.b16 %v241
  %v274 = vunpack.c.h.b16 %v241
  %v275 = vunpack.c.l.b16 %v242
  %v276 = vunpack.c.h.b16 %v242
  %v277 = vunpack.c.l.b16 %v243
  %v278 = vunpack.c.h.b16 %v243
  %v279 = vunpack.c.l.b16 %v244
  %v280 = vunpack.c.h.b16 %v244
  %v281 = vpack.c.b16 %v275, %v273
  %v282 = vpack.c.b16 %v276, %v274
  %v283 = vpack.c.b16 %v279, %v277
  %v284 = vpack.c.b16 %v280, %v278
  %314 = vrot.lane.b32.xlu0 %v214, 11
  %v315 = vpop.permute.xlu0 %314
  %316 = vrot.lane.b32.xlu0 %v215, 11
  %v317 = vpop.permute.xlu0 %316
  %318 = vrot.lane.b32.xlu0 %v216, 11
  %v319 = vpop.permute.xlu0 %318
  %320 = vrot.lane.b32.xlu0 %v217, 11
  %v321 = vpop.permute.xlu0 %320
  %322 = vrot.lane.b32.xlu0 %v218, 11
  %v323 = vpop.permute.xlu0 %322
  %324 = vrot.lane.b32.xlu0 %v219, 11
  %v325 = vpop.permute.xlu0 %324
  %326 = vrot.lane.b32.xlu0 %v220, 11
  %v327 = vpop.permute.xlu0 %326
  %328 = vrot.lane.b32.xlu0 %v221, 11
  %v329 = vpop.permute.xlu0 %328
  %330 = vrot.lane.b32.xlu0 %v222, 11
  %v331 = vpop.permute.xlu0 %330
  %332 = vrot.lane.b32.xlu0 %v223, 11
  %v333 = vpop.permute.xlu0 %332
  %334 = vrot.lane.b32.xlu0 %v224, 11
  %v335 = vpop.permute.xlu0 %334
  %336 = vrot.lane.b32.xlu0 %v225, 11
  %v337 = vpop.permute.xlu0 %336
  %338 = vrot.lane.b32.xlu0 %v226, 11
  %v339 = vpop.permute.xlu0 %338
  %340 = vrot.lane.b32.xlu0 %v227, 11
  %v341 = vpop.permute.xlu0 %340
  %342 = vrot.lane.b32.xlu0 %v228, 11
  %v343 = vpop.permute.xlu0 %342
  %344 = vrot.lane.b32.xlu0 %v229, 11
  %v345 = vpop.permute.xlu0 %344
  %346 = vrot.lane.b32.xlu0 %v230, 11
  %v347 = vpop.permute.xlu0 %346
  %348 = vrot.lane.b32.xlu0 %v231, 11
  %v349 = vpop.permute.xlu0 %348
  %350 = vrot.lane.b32.xlu0 %v232, 11
  %v351 = vpop.permute.xlu0 %350
  %352 = vrot.lane.b32.xlu0 %v233, 11
  %v353 = vpop.permute.xlu0 %352
  %354 = vrot.lane.b32.xlu0 %v234, 11
  %v355 = vpop.permute.xlu0 %354
  %356 = vrot.lane.b32.xlu0 %v235, 11
  %v357 = vpop.permute.xlu0 %356
  %358 = vrot.lane.b32.xlu0 %v236, 11
  %v359 = vpop.permute.xlu0 %358
  %360 = vrot.lane.b32.xlu0 %v237, 11
  %v361 = vpop.permute.xlu0 %360
  %362 = vrot.lane.b32.xlu0 %v238, 11
  %v363 = vpop.permute.xlu0 %362
  %364 = vrot.lane.b32.xlu0 %v239, 11
  %v365 = vpop.permute.xlu0 %364
  %366 = vrot.lane.b32.xlu0 %v240, 11
  %v367 = vpop.permute.xlu0 %366
  %vm368 = vcmask 89088
  %v369 = vsel %vm368, %v315, %v317
  %v370 = vsel %vm368, %v317, %v319
  %v371 = vsel %vm368, %v321, %v323
  %v372 = vsel %vm368, %v323, %v325
  %v373 = vsel %vm368, %v327, %v329
  %v374 = vsel %vm368, %v329, %v331
  %v375 = vsel %vm368, %v333, %v335
  %v376 = vsel %vm368, %v335, %v337
  %v377 = vsel %vm368, %v339, %v341
  %v378 = vsel %vm368, %v341, %v343
  %v379 = vsel %vm368, %v345, %v347
  %v380 = vsel %vm368, %v347, %v349
  %v381 = vsel %vm368, %v351, %v353
  %v382 = vsel %vm368, %v353, %v355
  %v383 = vsel %vm368, %v357, %v359
  %v384 = vsel %vm368, %v359, %v361
  %v385 = vsel %vm368, %v363, %v365
  %v386 = vsel %vm368, %v365, %v367
  %vm405 = vcmask 130048
  %v407 = vsel %vm405, %v282, 0
  %v410 = vsel %vm405, %v284, 0
  %412 = vmatprep.subr.bf16.mxu0 %v370
  %413 = vmatpush1.bf16.msra.mxu0 %v369
  %414 = vmatprep.subr.bf16.mxu0 %v372
  %415 = vmatpush1.bf16.msra.mxu0 %v371
  %416 = vmatprep.subr.bf16.mxu0 %v374
  %417 = vmatpush1.bf16.msra.mxu0 %v373
  %418 = vmatprep.subr.bf16.mxu0 %v376
  %419 = vmatpush1.bf16.msra.mxu0 %v375
  %420 = vmatprep.subr.bf16.mxu0 %v378
  %421 = vmatpush1.bf16.msra.mxu0 %v377
  %422 = vmatprep.subr.bf16.mxu0 %v380
  %423 = vmatpush1.bf16.msra.mxu0 %v379
  %424 = vmatprep.subr.bf16.mxu0 %v382
  %425 = vmatpush1.bf16.msra.mxu0 %v381
  %426 = vmatprep.subr.bf16.mxu0 %v384
  %427 = vmatpush1.bf16.msra.mxu0 %v383
  %428 = vmatprep.subr.bf16.mxu0 %v386
  %429 = vmatpush1.bf16.msra.mxu0 %v385
  %430 = vmatprep.subr.bf16.mxu0 0
  %431 = vmatpush1.bf16.msra.mxu0 0
  %432 = vmatprep.subr.bf16.mxu0 0
  %433 = vmatpush1.bf16.msra.mxu0 0
  %434 = vmatprep.subr.bf16.mxu0 0
  %435 = vmatpush1.bf16.msra.mxu0 0
  %436 = vmatprep.subr.bf16.mxu0 0
  %437 = vmatpush1.bf16.msra.mxu0 0
  %438 = vmatprep.subr.bf16.mxu0 0
  %439 = vmatpush1.bf16.msra.mxu0 0
  %440 = vmatprep.subr.bf16.mxu0 0
  %441 = vmatpush1.bf16.msra.mxu0 0
  %442 = vmatprep.subr.bf16.mxu0 0
  %443 = vmatpush1.bf16.msra.mxu0 0
  %444 = vmatprep.mubr.bf16.mxu0 %v407
  %445 = vmatmul.mubr.bf16.gmra.mrb[0].mxu0 %v281
  %v446 = vpop.f32.mrb[0].mxu0
  %v447 = vadd.f32 %v252, %v446
  %v448 = vpop.f32.mrb[0].mxu0
  %v449 = vadd.f32 %v252, %v448
  %v450 = vpop.f32.mrb[0].mxu0
  %v451 = vadd.f32 %v257, %v450
  %v452 = vpop.f32.mrb[0].mxu0
  %v453 = vadd.f32 %v257, %v452
  %454 = vmatprep.mubr.bf16.mxu0 %v410
  %455 = vmatmul.mubr.bf16.gmra.mrb[0].mxu0 %v283
  %v456 = vpop.f32.mrb[0].mxu0
  %v457 = vadd.f32 %v262, %v456
  %v458 = vpop.f32.mrb[0].mxu0
  %v459 = vadd.f32 %v262, %v458
  %v460 = vpop.f32.mrb[0].mxu0
  %v461 = vadd.f32 %v267, %v460
  %v462 = vpop.f32.mrb[0].mxu0
  %v463 = vadd.f32 %v267, %v462
  %464 = vdwg.mxu0
  %v465 = vld [vmem:[%s3] sm:$0x3]
  %466 = vst [vmem:[#allocation2] sm:$0xff] 0.0
  %467 = vst [vmem:[#allocation2 + $0x8] sm:$0xff] 0.0
  %468 = vst [vmem:[#allocation2 + $0x10] sm:$0xff] 0.0
  %vm469 = vcmask 588800
  %470 = vst.msk [vmem:[#allocation2 + $0x18] sm:$0xff] %vm469, 0.0
  %471 = vst [vmem:[#allocation2 + $0x20] sm:$0xff] 0.0
  %472 = vst [vmem:[#allocation2 + $0x28] sm:$0xff] 0.0
  %473 = vst [vmem:[#allocation2 + $0x30] sm:$0xff] 0.0
  %474 = vst.msk [vmem:[#allocation2 + $0x38] sm:$0xff] %vm469, 0.0
  %475 = vst [vmem:[#allocation2 + $0x40] sm:$0xff] 0.0
  %476 = vst [vmem:[#allocation2 + $0x48] sm:$0xff] 0.0
  %477 = vst [vmem:[#allocation2 + $0x50] sm:$0xff] 0.0
  %478 = vst.msk [vmem:[#allocation2 + $0x58] sm:$0xff] %vm469, 0.0
  %479 = vst [vmem:[#allocation2 + $0x60] sm:$0xff] 0.0
  %480 = vst [vmem:[#allocation2 + $0x68] sm:$0xff] 0.0
  %481 = vst [vmem:[#allocation2 + $0x70] sm:$0xff] 0.0
  %482 = vst.msk [vmem:[#allocation2 + $0x78] sm:$0xff] %vm469, 0.0
  %v484 = vlaneseq
  %v485 = vshrl.u32 %v484, 7
  %v486 = vsub.s32 0, %v485
  %v487 = vrot.slane %v465, %v486
  %v488 = vlaneseq
  %v489 = vshrl.u32 %v488, 7
  %v490 = vsub.s32 1, %v489
  %v491 = vrot.slane %v465, %v490
  %v494 = vmul.f32 %v487, %v447
  %v495 = vmul.f32 %v491, %v449
  %v496 = vmul.f32 %v487, %v451
  %v497 = vmul.f32 %v491, %v453
  %v498 = vmul.f32 %v487, %v457
  %v499 = vmul.f32 %v491, %v459
  %v500 = vmul.f32 %v487, %v461
  %v501 = vmul.f32 %v491, %v463
  %v502 = vsub.f32 1.0, %v465
  %v503 = vmul.f32 %v502, -1e+30
  %v505 = vlaneseq
  %v506 = vshrl.u32 %v505, 7
  %v507 = vsub.s32 0, %v506
  %v508 = vrot.slane %v503, %v507
  %v509 = vlaneseq
  %v510 = vshrl.u32 %v509, 7
  %v511 = vsub.s32 1, %v510
  %v512 = vrot.slane %v503, %v511
  %v515 = vadd.f32 %v494, %v508
  %v516 = vadd.f32 %v495, %v512
  %v517 = vadd.f32 %v496, %v508
  %v518 = vadd.f32 %v497, %v512
  %v519 = vadd.f32 %v498, %v508
  %v520 = vadd.f32 %v499, %v512
  %v521 = vadd.f32 %v500, %v508
  %v522 = vadd.f32 %v501, %v512
  %523 = vst [vmem:[#allocation2 + $0x8] sm:$0xff] %v515
  %524 = vst.msk [vmem:[#allocation2 + $0x10] sm:$0xff] %vm469, %v516
  %525 = vst [vmem:[#allocation2 + $0x28] sm:$0xff] %v517
  %526 = vst.msk [vmem:[#allocation2 + $0x30] sm:$0xff] %vm469, %v518
  %527 = vst [vmem:[#allocation2 + $0x48] sm:$0xff] %v519
  %528 = vst.msk [vmem:[#allocation2 + $0x50] sm:$0xff] %vm469, %v520
  %529 = vst [vmem:[#allocation2 + $0x68] sm:$0xff] %v521
  %530 = vst.msk [vmem:[#allocation2 + $0x70] sm:$0xff] %vm469, %v522
  %v531 = vld [vmem:[#allocation2] sm:$0xff]
  %v532 = vld [vmem:[#allocation2 + $0x8] sm:$0xff]
  %v533 = vld [vmem:[#allocation2 + $0x10] sm:$0xff]
  %v534 = vld [vmem:[#allocation2 + $0x20] sm:$0xff]
  %v535 = vld [vmem:[#allocation2 + $0x28] sm:$0xff]
  %v536 = vld [vmem:[#allocation2 + $0x30] sm:$0xff]
  %v537 = vld [vmem:[#allocation2 + $0x40] sm:$0xff]
  %v538 = vld [vmem:[#allocation2 + $0x48] sm:$0xff]
  %v539 = vld [vmem:[#allocation2 + $0x50] sm:$0xff]
  %v540 = vld [vmem:[#allocation2 + $0x60] sm:$0xff]
  %v541 = vld [vmem:[#allocation2 + $0x68] sm:$0xff]
  %v542 = vld [vmem:[#allocation2 + $0x70] sm:$0xff]
  %555 = vrot.lane.b32.xlu0 %v531, 127
  %v556 = vpop.permute.xlu0 %555
  %557 = vrot.lane.b32.xlu0 %v532, 127
  %v558 = vpop.permute.xlu0 %557
  %559 = vrot.lane.b32.xlu0 %v533, 127
  %v560 = vpop.permute.xlu0 %559
  %561 = vrot.lane.b32.xlu0 %v534, 127
  %v562 = vpop.permute.xlu0 %561
  %563 = vrot.lane.b32.xlu0 %v535, 127
  %v564 = vpop.permute.xlu0 %563
  %565 = vrot.lane.b32.xlu0 %v536, 127
  %v566 = vpop.permute.xlu0 %565
  %567 = vrot.lane.b32.xlu0 %v537, 127
  %v568 = vpop.permute.xlu0 %567
  %569 = vrot.lane.b32.xlu0 %v538, 127
  %v570 = vpop.permute.xlu0 %569
  %571 = vrot.lane.b32.xlu0 %v539, 127
  %v572 = vpop.permute.xlu0 %571
  %573 = vrot.lane.b32.xlu0 %v540, 127
  %v574 = vpop.permute.xlu0 %573
  %575 = vrot.lane.b32.xlu0 %v541, 127
  %v576 = vpop.permute.xlu0 %575
  %577 = vrot.lane.b32.xlu0 %v542, 127
  %v578 = vpop.permute.xlu0 %577
  %v579 = vsel %vm72, %v556, %v558
  %v580 = vsel %vm72, %v558, %v560
  %v581 = vsel %vm72, %v562, %v564
  %v582 = vsel %vm72, %v564, %v566
  %v583 = vsel %vm72, %v568, %v570
  %v584 = vsel %vm72, %v570, %v572
  %v585 = vsel %vm72, %v574, %v576
  %v586 = vsel %vm72, %v576, %v578
  %v599 = vmax.f32 %v531, %v579
  %v600 = vmax.f32 %v532, %v580
  %v601 = vmax.f32 %v533, %v560
  %v602 = vmax.f32 %v534, %v581
  %v603 = vmax.f32 %v535, %v582
  %v604 = vmax.f32 %v536, %v566
  %v605 = vmax.f32 %v537, %v583
  %v606 = vmax.f32 %v538, %v584
  %v607 = vmax.f32 %v539, %v572
  %v608 = vmax.f32 %v540, %v585
  %v609 = vmax.f32 %v541, %v586
  %v610 = vmax.f32 %v542, %v578
  %611 = vrot.lane.b32.xlu0 %v531, 126
  %v612 = vpop.permute.xlu0 %611
  %613 = vrot.lane.b32.xlu0 %v532, 126
  %v614 = vpop.permute.xlu0 %613
  %615 = vrot.lane.b32.xlu0 %v533, 126
  %v616 = vpop.permute.xlu0 %615
  %617 = vrot.lane.b32.xlu0 %v534, 126
  %v618 = vpop.permute.xlu0 %617
  %619 = vrot.lane.b32.xlu0 %v535, 126
  %v620 = vpop.permute.xlu0 %619
  %621 = vrot.lane.b32.xlu0 %v536, 126
  %v622 = vpop.permute.xlu0 %621
  %623 = vrot.lane.b32.xlu0 %v537, 126
  %v624 = vpop.permute.xlu0 %623
  %625 = vrot.lane.b32.xlu0 %v538, 126
  %v626 = vpop.permute.xlu0 %625
  %627 = vrot.lane.b32.xlu0 %v539, 126
  %v628 = vpop.permute.xlu0 %627
  %629 = vrot.lane.b32.xlu0 %v540, 126
  %v630 = vpop.permute.xlu0 %629
  %631 = vrot.lane.b32.xlu0 %v541, 126
  %v632 = vpop.permute.xlu0 %631
  %633 = vrot.lane.b32.xlu0 %v542, 126
  %v634 = vpop.permute.xlu0 %633
  %v635 = vsel %vm95, %v612, %v614
  %v636 = vsel %vm95, %v614, %v616
  %v637 = vsel %vm95, %v618, %v620
  %v638 = vsel %vm95, %v620, %v622
  %v639 = vsel %vm95, %v624, %v626
  %v640 = vsel %vm95, %v626, %v628
  %v641 = vsel %vm95, %v630, %v632
  %v642 = vsel %vm95, %v632, %v634
  %v655 = vmax.f32 %v599, %v635
  %v656 = vmax.f32 %v600, %v636
  %v657 = vmax.f32 %v601, %v616
  %v658 = vmax.f32 %v602, %v637
  %v659 = vmax.f32 %v603, %v638
  %v660 = vmax.f32 %v604, %v622
  %v661 = vmax.f32 %v605, %v639
  %v662 = vmax.f32 %v606, %v640
  %v663 = vmax.f32 %v607, %v628
  %v664 = vmax.f32 %v608, %v641
  %v665 = vmax.f32 %v609, %v642
  %v666 = vmax.f32 %v610, %v634
  %667 = vrot.lane.b32.xlu0 %v531, 118
  %v668 = vpop.permute.xlu0 %667
  %669 = vrot.lane.b32.xlu0 %v532, 118
  %v670 = vpop.permute.xlu0 %669
  %671 = vrot.lane.b32.xlu0 %v533, 118
  %v672 = vpop.permute.xlu0 %671
  %673 = vrot.lane.b32.xlu0 %v534, 118
  %v674 = vpop.permute.xlu0 %673
  %675 = vrot.lane.b32.xlu0 %v535, 118
  %v676 = vpop.permute.xlu0 %675
  %677 = vrot.lane.b32.xlu0 %v536, 118
  %v678 = vpop.permute.xlu0 %677
  %679 = vrot.lane.b32.xlu0 %v537, 118
  %v680 = vpop.permute.xlu0 %679
  %681 = vrot.lane.b32.xlu0 %v538, 118
  %v682 = vpop.permute.xlu0 %681
  %683 = vrot.lane.b32.xlu0 %v539, 118
  %v684 = vpop.permute.xlu0 %683
  %685 = vrot.lane.b32.xlu0 %v540, 118
  %v686 = vpop.permute.xlu0 %685
  %687 = vrot.lane.b32.xlu0 %v541, 118
  %v688 = vpop.permute.xlu0 %687
  %689 = vrot.lane.b32.xlu0 %v542, 118
  %v690 = vpop.permute.xlu0 %689
  %v691 = vsel %vm118, %v668, %v670
  %v692 = vsel %vm118, %v670, %v672
  %v693 = vsel %vm118, %v674, %v676
  %v694 = vsel %vm118, %v676, %v678
  %v695 = vsel %vm118, %v680, %v682
  %v696 = vsel %vm118, %v682, %v684
  %v697 = vsel %vm118, %v686, %v688
  %v698 = vsel %vm118, %v688, %v690
  %v711 = vmax.f32 %v655, %v691
  %v712 = vmax.f32 %v656, %v692
  %v713 = vmax.f32 %v657, %v672
  %v714 = vmax.f32 %v658, %v693
  %v715 = vmax.f32 %v659, %v694
  %v716 = vmax.f32 %v660, %v678
  %v717 = vmax.f32 %v661, %v695
  %v718 = vmax.f32 %v662, %v696
  %v719 = vmax.f32 %v663, %v684
  %v720 = vmax.f32 %v664, %v697
  %v721 = vmax.f32 %v665, %v698
  %v722 = vmax.f32 %v666, %v690
  %723 = vrot.lane.b32.xlu0 %v532, 117
  %v724 = vpop.permute.xlu0 %723
  %725 = vrot.lane.b32.xlu0 %v533, 117
  %v726 = vpop.permute.xlu0 %725
  %727 = vrot.lane.b32.xlu0 %v535, 117
  %v728 = vpop.permute.xlu0 %727
  %729 = vrot.lane.b32.xlu0 %v536, 117
  %v730 = vpop.permute.xlu0 %729
  %731 = vrot.lane.b32.xlu0 %v538, 117
  %v732 = vpop.permute.xlu0 %731
  %733 = vrot.lane.b32.xlu0 %v539, 117
  %v734 = vpop.permute.xlu0 %733
  %735 = vrot.lane.b32.xlu0 %v541, 117
  %v736 = vpop.permute.xlu0 %735
  %737 = vrot.lane.b32.xlu0 %v542, 117
  %v738 = vpop.permute.xlu0 %737
  %v739 = vsel %vm137, %v724, %v726
  %v740 = vsel %vm137, %v728, %v730
  %v741 = vsel %vm137, %v732, %v734
  %v742 = vsel %vm137, %v736, %v738
  %v755 = vmax.f32 %v711, %v724
  %v756 = vmax.f32 %v712, %v739
  %v757 = vmax.f32 %v713, %v726
  %v758 = vmax.f32 %v714, %v728
  %v759 = vmax.f32 %v715, %v740
  %v760 = vmax.f32 %v716, %v730
  %v761 = vmax.f32 %v717, %v732
  %v762 = vmax.f32 %v718, %v741
  %v763 = vmax.f32 %v719, %v734
  %v764 = vmax.f32 %v720, %v736
  %v765 = vmax.f32 %v721, %v742
  %v766 = vmax.f32 %v722, %v738
  %767 = vrot.lane.b32.xlu0 %v532, 116
  %v768 = vpop.permute.xlu0 %767
  %769 = vrot.lane.b32.xlu0 %v533, 116
  %v770 = vpop.permute.xlu0 %769
  %771 = vrot.lane.b32.xlu0 %v535, 116
  %v772 = vpop.permute.xlu0 %771
  %773 = vrot.lane.b32.xlu0 %v536, 116
  %v774 = vpop.permute.xlu0 %773
  %775 = vrot.lane.b32.xlu0 %v538, 116
  %v776 = vpop.permute.xlu0 %775
  %777 = vrot.lane.b32.xlu0 %v539, 116
  %v778 = vpop.permute.xlu0 %777
  %779 = vrot.lane.b32.xlu0 %v541, 116
  %v780 = vpop.permute.xlu0 %779
  %781 = vrot.lane.b32.xlu0 %v542, 116
  %v782 = vpop.permute.xlu0 %781
  %v783 = vsel %vm154, %v768, %v770
  %v784 = vsel %vm154, %v772, %v774
  %v785 = vsel %vm154, %v776, %v778
  %v786 = vsel %vm154, %v780, %v782
  %v799 = vmax.f32 %v755, %v768
  %v800 = vmax.f32 %v756, %v783
  %v801 = vmax.f32 %v757, %v770
  %v802 = vmax.f32 %v758, %v772
  %v803 = vmax.f32 %v759, %v784
  %v804 = vmax.f32 %v760, %v774
  %v805 = vmax.f32 %v761, %v776
  %v806 = vmax.f32 %v762, %v785
  %v807 = vmax.f32 %v763, %v778
  %v808 = vmax.f32 %v764, %v780
  %v809 = vmax.f32 %v765, %v786
  %v810 = vmax.f32 %v766, %v782
  %811 = vrot.lane.b32.xlu0 %v532, 108
  %v812 = vpop.permute.xlu0 %811
  %813 = vrot.lane.b32.xlu0 %v533, 108
  %v814 = vpop.permute.xlu0 %813
  %815 = vrot.lane.b32.xlu0 %v535, 108
  %v816 = vpop.permute.xlu0 %815
  %817 = vrot.lane.b32.xlu0 %v536, 108
  %v818 = vpop.permute.xlu0 %817
  %819 = vrot.lane.b32.xlu0 %v538, 108
  %v820 = vpop.permute.xlu0 %819
  %821 = vrot.lane.b32.xlu0 %v539, 108
  %v822 = vpop.permute.xlu0 %821
  %823 = vrot.lane.b32.xlu0 %v541, 108
  %v824 = vpop.permute.xlu0 %823
  %825 = vrot.lane.b32.xlu0 %v542, 108
  %v826 = vpop.permute.xlu0 %825
  %v827 = vsel %vm171, %v812, %v814
  %v828 = vsel %vm171, %v816, %v818
  %v829 = vsel %vm171, %v820, %v822
  %v830 = vsel %vm171, %v824, %v826
  %v843 = vmax.f32 %v799, %v812
  %v844 = vmax.f32 %v800, %v827
  %v845 = vmax.f32 %v801, %v814
  %v846 = vmax.f32 %v802, %v816
  %v847 = vmax.f32 %v803, %v828
  %v848 = vmax.f32 %v804, %v818
  %v849 = vmax.f32 %v805, %v820
  %v850 = vmax.f32 %v806, %v829
  %v851 = vmax.f32 %v807, %v822
  %v852 = vmax.f32 %v808, %v824
  %v853 = vmax.f32 %v809, %v830
  %v854 = vmax.f32 %v810, %v826
  %855 = vrot.lane.b32.xlu0 %v532, 107
  %v856 = vpop.permute.xlu0 %855
  %857 = vrot.lane.b32.xlu0 %v533, 107
  %v858 = vpop.permute.xlu0 %857
  %859 = vrot.lane.b32.xlu0 %v535, 107
  %v860 = vpop.permute.xlu0 %859
  %861 = vrot.lane.b32.xlu0 %v536, 107
  %v862 = vpop.permute.xlu0 %861
  %863 = vrot.lane.b32.xlu0 %v538, 107
  %v864 = vpop.permute.xlu0 %863
  %865 = vrot.lane.b32.xlu0 %v539, 107
  %v866 = vpop.permute.xlu0 %865
  %867 = vrot.lane.b32.xlu0 %v541, 107
  %v868 = vpop.permute.xlu0 %867
  %869 = vrot.lane.b32.xlu0 %v542, 107
  %v870 = vpop.permute.xlu0 %869
  %v871 = vsel %vm188, %v856, %v858
  %v872 = vsel %vm188, %v860, %v862
  %v873 = vsel %vm188, %v864, %v866
  %v874 = vsel %vm188, %v868, %v870
  %v887 = vmax.f32 %v843, %v856
  %v888 = vmax.f32 %v844, %v871
  %v889 = vmax.f32 %v845, %v858
  %v890 = vmax.f32 %v846, %v860
  %v891 = vmax.f32 %v847, %v872
  %v892 = vmax.f32 %v848, %v862
  %v893 = vmax.f32 %v849, %v864
  %v894 = vmax.f32 %v850, %v873
  %v895 = vmax.f32 %v851, %v866
  %v896 = vmax.f32 %v852, %v868
  %v897 = vmax.f32 %v853, %v874
  %v898 = vmax.f32 %v854, %v870
  %899 = vrot.lane.b32.xlu0 %v532, 106
  %v900 = vpop.permute.xlu0 %899
  %901 = vrot.lane.b32.xlu0 %v533, 106
  %v902 = vpop.permute.xlu0 %901
  %903 = vrot.lane.b32.xlu0 %v535, 106
  %v904 = vpop.permute.xlu0 %903
  %905 = vrot.lane.b32.xlu0 %v536, 106
  %v906 = vpop.permute.xlu0 %905
  %907 = vrot.lane.b32.xlu0 %v538, 106
  %v908 = vpop.permute.xlu0 %907
  %909 = vrot.lane.b32.xlu0 %v539, 106
  %v910 = vpop.permute.xlu0 %909
  %911 = vrot.lane.b32.xlu0 %v541, 106
  %v912 = vpop.permute.xlu0 %911
  %913 = vrot.lane.b32.xlu0 %v542, 106
  %v914 = vpop.permute.xlu0 %913
  %v915 = vsel %vm205, %v900, %v902
  %v916 = vsel %vm205, %v904, %v906
  %v917 = vsel %vm205, %v908, %v910
  %v918 = vsel %vm205, %v912, %v914
  %v931 = vmax.f32 %v887, %v900
  %v932 = vmax.f32 %v888, %v915
  %v933 = vmax.f32 %v889, %v902
  %v934 = vmax.f32 %v890, %v904
  %v935 = vmax.f32 %v891, %v916
  %v936 = vmax.f32 %v892, %v906
  %v937 = vmax.f32 %v893, %v908
  %v938 = vmax.f32 %v894, %v917
  %v939 = vmax.f32 %v895, %v910
  %v940 = vmax.f32 %v896, %v912
  %v941 = vmax.f32 %v897, %v918
  %v942 = vmax.f32 %v898, %v914
  %v943 = vpack.c.bf16 %v934, %v931
  %v944 = vpack.c.bf16 %v935, %v932
  %v945 = vpack.c.bf16 %v936, %v933
  %v946 = vpack.c.bf16 %v940, %v937
  %v947 = vpack.c.bf16 %v941, %v938
  %v948 = vpack.c.bf16 %v942, %v939
  %v949 = vld [vmem:[%s4] sm:$0xf]
  %v950 = vld [vmem:[%s4 + $0x4] sm:$0xf]
  %v951 = vld [vmem:[%s4 + $0x8] sm:$0xf]
  %v952 = vld [vmem:[%s4 + $0xc] sm:$0xf]
  %v953 = vld [vmem:[%s4 + $0x10] sm:$0xf]
  %v954 = vld [vmem:[%s4 + $0x14] sm:$0xf]
  %v955 = vld [vmem:[%s4 + $0x18] sm:$0xf]
  %v956 = vld [vmem:[%s4 + $0x1c] sm:$0xf]
  %v957 = vld [vmem:[%s4 + $0x20] sm:$0xf]
  %v958 = vld [vmem:[%s4 + $0x24] sm:$0xf]
  %v959 = vld [vmem:[%s4 + $0x28] sm:$0xf]
  %v960 = vld [vmem:[%s4 + $0x2c] sm:$0xf]
  %v961 = vld [vmem:[%s4 + $0x30] sm:$0xf]
  %v962 = vld [vmem:[%s4 + $0x34] sm:$0xf]
  %v963 = vld [vmem:[%s4 + $0x38] sm:$0xf]
  %v964 = vld [vmem:[%s4 + $0x3c] sm:$0xf]
  %v965 = vld [vmem:[%s4 + $0x40] sm:$0xf]
  %v966 = vld [vmem:[%s4 + $0x44] sm:$0xf]
  %v967 = vld [vmem:[%s4 + $0x48] sm:$0xf]
  %v968 = vld [vmem:[%s4 + $0x4c] sm:$0xf]
  %v969 = vld [vmem:[%s4 + $0x50] sm:$0xf]
  %v970 = vld [vmem:[%s4 + $0x54] sm:$0xf]
  %v971 = vld [vmem:[%s4 + $0x58] sm:$0xf]
  %v972 = vld [vmem:[%s4 + $0x5c] sm:$0xf]
  %v973 = vld [vmem:[%s4 + $0x60] sm:$0xf]
  %980 = vrot.lane.b32.xlu0 %v943, 11
  %v981 = vpop.permute.xlu0 %980
  %982 = vrot.lane.b32.xlu0 %v944, 11
  %v983 = vpop.permute.xlu0 %982
  %984 = vrot.lane.b32.xlu0 %v945, 11
  %v985 = vpop.permute.xlu0 %984
  %986 = vrot.lane.b32.xlu0 %v946, 11
  %v987 = vpop.permute.xlu0 %986
  %988 = vrot.lane.b32.xlu0 %v947, 11
  %v989 = vpop.permute.xlu0 %988
  %990 = vrot.lane.b32.xlu0 %v948, 11
  %v991 = vpop.permute.xlu0 %990
  %v992 = vsel %vm368, %v981, %v983
  %v993 = vsel %vm368, %v983, %v985
  %v994 = vsel %vm368, %v987, %v989
  %v995 = vsel %vm368, %v989, %v991
  %v1023 = vunpack.c.l.b16 %v949
  %v1024 = vunpack.c.l.b16 %v950
  %v1025 = vunpack.c.l.b16 %v951
  %v1026 = vunpack.c.l.b16 %v952
  %v1027 = vunpack.c.l.b16 %v953
  %v1028 = vunpack.c.l.b16 %v954
  %v1029 = vunpack.c.l.b16 %v955
  %v1030 = vunpack.c.l.b16 %v956
  %v1031 = vunpack.c.l.b16 %v957
  %v1032 = vunpack.c.l.b16 %v958
  %v1033 = vunpack.c.l.b16 %v959
  %v1034 = vunpack.c.l.b16 %v960
  %v1035 = vunpack.c.l.b16 %v961
  %v1036 = vunpack.c.l.b16 %v962
  %v1037 = vunpack.c.l.b16 %v963
  %v1038 = vunpack.c.l.b16 %v964
  %v1039 = vunpack.c.l.b16 %v965
  %v1040 = vunpack.c.l.b16 %v966
  %v1041 = vunpack.c.l.b16 %v967
  %v1042 = vunpack.c.l.b16 %v968
  %v1043 = vunpack.c.l.b16 %v969
  %v1044 = vunpack.c.l.b16 %v970
  %v1045 = vunpack.c.l.b16 %v971
  %v1046 = vunpack.c.l.b16 %v972
  %v1047 = vunpack.c.l.b16 %v973
  %v1048 = vpack.c.b16 %v1024, %v1023
  %v1049 = vpack.c.b16 %v1026, %v1025
  %v1050 = vpack.c.b16 %v1028, %v1027
  %v1051 = vpack.c.b16 %v1030, %v1029
  %v1052 = vpack.c.b16 %v1032, %v1031
  %v1053 = vpack.c.b16 %v1034, %v1033
  %v1054 = vpack.c.b16 %v1036, %v1035
  %v1055 = vpack.c.b16 %v1038, %v1037
  %v1056 = vpack.c.b16 %v1040, %v1039
  %v1057 = vpack.c.b16 %v1042, %v1041
  %v1058 = vpack.c.b16 %v1044, %v1043
  %v1059 = vpack.c.b16 %v1046, %v1045
  %v1060 = vpack.c.b16 %v1047, %v1047
  %v1074 = vsel %vm469, %v993, 0
  %v1077 = vsel %vm469, %v995, 0
  %vm1079 = vcmask 1043456
  %v1081 = vsel %vm1079, %v1060, 0
  %1083 = vmatprep.subr.bf16.mxu0 0
  %1084 = vmatpush1.bf16.msra.mxu0 %v1048
  %1085 = vmatprep.subr.bf16.mxu0 0
  %1086 = vmatpush1.bf16.msra.mxu0 %v1049
  %1087 = vmatprep.subr.bf16.mxu0 0
  %1088 = vmatpush1.bf16.msra.mxu0 %v1050
  %1089 = vmatprep.subr.bf16.mxu0 0
  %1090 = vmatpush1.bf16.msra.mxu0 %v1051
  %1091 = vmatprep.subr.bf16.mxu0 0
  %1092 = vmatpush1.bf16.msra.mxu0 %v1052
  %1093 = vmatprep.subr.bf16.mxu0 0
  %1094 = vmatpush1.bf16.msra.mxu0 %v1053
  %1095 = vmatprep.subr.bf16.mxu0 0
  %1096 = vmatpush1.bf16.msra.mxu0 %v1054
  %1097 = vmatprep.subr.bf16.mxu0 0
  %1098 = vmatpush1.bf16.msra.mxu0 %v1055
  %1099 = vmatprep.subr.bf16.mxu0 0
  %1100 = vmatpush1.bf16.msra.mxu0 %v1056
  %1101 = vmatprep.subr.bf16.mxu0 0
  %1102 = vmatpush1.bf16.msra.mxu0 %v1057
  %1103 = vmatprep.subr.bf16.mxu0 0
  %1104 = vmatpush1.bf16.msra.mxu0 %v1058
  %1105 = vmatprep.subr.bf16.mxu0 0
  %1106 = vmatpush1.bf16.msra.mxu0 %v1059
  %1107 = vmatprep.subr.bf16.mxu0 0
  %1108 = vmatpush1.bf16.msra.mxu0 %v1081
  %1109 = vmatprep.subr.bf16.mxu0 0
  %1110 = vmatpush1.bf16.msra.mxu0 0
  %1111 = vmatprep.subr.bf16.mxu0 0
  %1112 = vmatpush1.bf16.msra.mxu0 0
  %1113 = vmatprep.subr.bf16.mxu0 0
  %1114 = vmatpush1.bf16.msra.mxu0 0
  %1115 = vmatprep.mubr.bf16.mxu0 %v1074
  %1116 = vmatmul.mubr.bf16.gmra.mrb[0].mxu0 %v992
  %v1117 = vpop.f32.mrb[0].mxu0
  %v1118 = vadd.f32 0.0, %v1117
  %v1119 = vpop.f32.mrb[0].mxu0
  %v1120 = vpop.f32.mrb[0].mxu0
  %v1121 = vadd.f32 0.0, %v1120
  %v1122 = vpop.f32.mrb[0].mxu0
  %1123 = vmatprep.mubr.bf16.mxu0 %v1077
  %1124 = vmatmul.mubr.bf16.gmra.mrb[0].mxu0 %v994
  %v1125 = vpop.f32.mrb[0].mxu0
  %v1126 = vadd.f32 0.0, %v1125
  %v1127 = vpop.f32.mrb[0].mxu0
  %v1128 = vpop.f32.mrb[0].mxu0
  %v1129 = vadd.f32 0.0, %v1128
  %v1130 = vpop.f32.mrb[0].mxu0
  %1131 = vdwg.mxu0
  %v1132 = vld [vmem:[%s13] sm:$0x1]
  %1133 = vst [vmem:[%s14] sm:$0xff] 0.0
  %1134 = vst [vmem:[%s14 + $0x8] sm:$0xff] 0.0
  %1135 = vst.msk [vmem:[%s14 + $0x10] sm:$0xff] %vm469, 0.0
  %1136 = vst [vmem:[%s14 + $0x18] sm:$0xff] 0.0
  %1137 = vst [vmem:[%s14 + $0x20] sm:$0xff] 0.0
  %1138 = vst.msk [vmem:[%s14 + $0x28] sm:$0xff] %vm469, 0.0
  %1139 = vst [vmem:[%s14 + $0x30] sm:$0xff] 0.0
  %1140 = vst [vmem:[%s14 + $0x38] sm:$0xff] 0.0
  %1141 = vst.msk [vmem:[%s14 + $0x40] sm:$0xff] %vm469, 0.0
  %1142 = vst [vmem:[%s14 + $0x48] sm:$0xff] 0.0
  %1143 = vst [vmem:[%s14 + $0x50] sm:$0xff] 0.0
  %1144 = vst.msk [vmem:[%s14 + $0x58] sm:$0xff] %vm469, 0.0
  %v1145 = vmax.f32 %v1118, 0.0
  %v1146 = vmax.f32 %v1121, 0.0
  %v1147 = vmax.f32 %v1126, 0.0
  %v1148 = vmax.f32 %v1129, 0.0
  %v1150 = vlaneseq
  %v1151 = vshrl.u32 %v1150, 7
  %v1152 = vsub.s32 0, %v1151
  %v1153 = vrot.slane %v1132, %v1152
  %v1155 = vmul.f32 %v1153, %v1145
  %v1156 = vmul.f32 %v1153, %v1146
  %v1157 = vmul.f32 %v1153, %v1147
  %v1158 = vmul.f32 %v1153, %v1148
  %1159 = vst.msk [vmem:[%s14 + $0x8] sm:$0xff] %vm469, %v1155
  %1160 = vst.msk [vmem:[%s14 + $0x20] sm:$0xff] %vm469, %v1156
  %1161 = vst.msk [vmem:[%s14 + $0x38] sm:$0xff] %vm469, %v1157
  %1162 = vst.msk [vmem:[%s14 + $0x50] sm:$0xff] %vm469, %v1158
  %v1163 = vld [vmem:[%s14] sm:$0xff]
  %v1164 = vld [vmem:[%s14 + $0x8] sm:$0xff]
  %v1165 = vld [vmem:[%s14 + $0x18] sm:$0xff]
  %v1166 = vld [vmem:[%s14 + $0x20] sm:$0xff]
  %v1167 = vld [vmem:[%s14 + $0x30] sm:$0xff]
  %v1168 = vld [vmem:[%s14 + $0x38] sm:$0xff]
  %v1169 = vld [vmem:[%s14 + $0x48] sm:$0xff]
  %v1170 = vld [vmem:[%s14 + $0x50] sm:$0xff]
  %1179 = vrot.lane.b32.xlu0 %v1163, 127
  %v1180 = vpop.permute.xlu0 %1179
  %1181 = vrot.lane.b32.xlu0 %v1164, 127
  %v1182 = vpop.permute.xlu0 %1181
  %1183 = vrot.lane.b32.xlu0 %v1165, 127
  %v1184 = vpop.permute.xlu0 %1183
  %1185 = vrot.lane.b32.xlu0 %v1166, 127
  %v1186 = vpop.permute.xlu0 %1185
  %1187 = vrot.lane.b32.xlu0 %v1167, 127
  %v1188 = vpop.permute.xlu0 %1187
  %1189 = vrot.lane.b32.xlu0 %v1168, 127
  %v1190 = vpop.permute.xlu0 %1189
  %1191 = vrot.lane.b32.xlu0 %v1169, 127
  %v1192 = vpop.permute.xlu0 %1191
  %1193 = vrot.lane.b32.xlu0 %v1170, 127
  %v1194 = vpop.permute.xlu0 %1193
  %v1195 = vsel %vm72, %v1180, %v1182
  %v1196 = vsel %vm72, %v1184, %v1186
  %v1197 = vsel %vm72, %v1188, %v1190
  %v1198 = vsel %vm72, %v1192, %v1194
  %1207 = vrot.lane.b32.xlu0 %v1163, 126
  %v1208 = vpop.permute.xlu0 %1207
  %1209 = vrot.lane.b32.xlu0 %v1164, 126
  %v1210 = vpop.permute.xlu0 %1209
  %1211 = vrot.lane.b32.xlu0 %v1165, 126
  %v1212 = vpop.permute.xlu0 %1211
  %1213 = vrot.lane.b32.xlu0 %v1166, 126
  %v1214 = vpop.permute.xlu0 %1213
  %1215 = vrot.lane.b32.xlu0 %v1167, 126
  %v1216 = vpop.permute.xlu0 %1215
  %1217 = vrot.lane.b32.xlu0 %v1168, 126
  %v1218 = vpop.permute.xlu0 %1217
  %1219 = vrot.lane.b32.xlu0 %v1169, 126
  %v1220 = vpop.permute.xlu0 %1219
  %1221 = vrot.lane.b32.xlu0 %v1170, 126
  %v1222 = vpop.permute.xlu0 %1221
  %v1223 = vsel %vm95, %v1208, %v1210
  %v1224 = vsel %vm95, %v1212, %v1214
  %v1225 = vsel %vm95, %v1216, %v1218
  %v1226 = vsel %vm95, %v1220, %v1222
  %1235 = vrot.lane.b32.xlu0 %v1163, 122
  %v1236 = vpop.permute.xlu0 %1235
  %1237 = vrot.lane.b32.xlu0 %v1164, 122
  %v1238 = vpop.permute.xlu0 %1237
  %1239 = vrot.lane.b32.xlu0 %v1165, 122
  %v1240 = vpop.permute.xlu0 %1239
  %1241 = vrot.lane.b32.xlu0 %v1166, 122
  %v1242 = vpop.permute.xlu0 %1241
  %1243 = vrot.lane.b32.xlu0 %v1167, 122
  %v1244 = vpop.permute.xlu0 %1243
  %1245 = vrot.lane.b32.xlu0 %v1168, 122
  %v1246 = vpop.permute.xlu0 %1245
  %1247 = vrot.lane.b32.xlu0 %v1169, 122
  %v1248 = vpop.permute.xlu0 %1247
  %1249 = vrot.lane.b32.xlu0 %v1170, 122
  %v1250 = vpop.permute.xlu0 %1249
  %vm1251 = vcmask 998400
  %v1252 = vsel %vm1251, %v1236, %v1238
  %v1253 = vsel %vm1251, %v1240, %v1242
  %v1254 = vsel %vm1251, %v1244, %v1246
  %v1255 = vsel %vm1251, %v1248, %v1250
  %1264 = vrot.lane.b32.xlu0 %v1164, 121
  %v1265 = vpop.permute.xlu0 %1264
  %1266 = vrot.lane.b32.xlu0 %v1166, 121
  %v1267 = vpop.permute.xlu0 %1266
  %1268 = vrot.lane.b32.xlu0 %v1168, 121
  %v1269 = vpop.permute.xlu0 %1268
  %1270 = vrot.lane.b32.xlu0 %v1170, 121
  %v1271 = vpop.permute.xlu0 %1270
  %1276 = vrot.lane.b32.xlu0 %v1164, 120
  %v1277 = vpop.permute.xlu0 %1276
  %1278 = vrot.lane.b32.xlu0 %v1166, 120
  %v1279 = vpop.permute.xlu0 %1278
  %1280 = vrot.lane.b32.xlu0 %v1168, 120
  %v1281 = vpop.permute.xlu0 %1280
  %1282 = vrot.lane.b32.xlu0 %v1170, 120
  %v1283 = vpop.permute.xlu0 %1282
  %1288 = vrot.lane.b32.xlu0 %v1164, 116
  %v1289 = vpop.permute.xlu0 %1288
  %1290 = vrot.lane.b32.xlu0 %v1166, 116
  %v1291 = vpop.permute.xlu0 %1290
  %1292 = vrot.lane.b32.xlu0 %v1168, 116
  %v1293 = vpop.permute.xlu0 %1292
  %1294 = vrot.lane.b32.xlu0 %v1170, 116
  %v1295 = vpop.permute.xlu0 %1294
  %1300 = vrot.lane.b32.xlu0 %v1164, 115
  %v1301 = vpop.permute.xlu0 %1300
  %1302 = vrot.lane.b32.xlu0 %v1166, 115
  %v1303 = vpop.permute.xlu0 %1302
  %1304 = vrot.lane.b32.xlu0 %v1168, 115
  %v1305 = vpop.permute.xlu0 %1304
  %1306 = vrot.lane.b32.xlu0 %v1170, 115
  %v1307 = vpop.permute.xlu0 %1306
  %1312 = vrot.lane.b32.xlu0 %v1164, 114
  %v1313 = vpop.permute.xlu0 %1312
  %1314 = vrot.lane.b32.xlu0 %v1166, 114
  %v1315 = vpop.permute.xlu0 %1314
  %1316 = vrot.lane.b32.xlu0 %v1168, 114
  %v1317 = vpop.permute.xlu0 %1316
  %1318 = vrot.lane.b32.xlu0 %v1170, 114
  %v1319 = vpop.permute.xlu0 %1318
  %v1324 = vpack.c.bf16 %v1165, %v1163
  %v1325 = vpack.c.bf16 %v1166, %v1164
  %v1326 = vpack.c.bf16 %v1169, %v1167
  %v1327 = vpack.c.bf16 %v1170, %v1168
  %v1328 = vpack.c.bf16 %v1196, %v1195
  %v1329 = vpack.c.bf16 %v1186, %v1182
  %v1330 = vpack.c.bf16 %v1198, %v1197
  %v1331 = vpack.c.bf16 %v1194, %v1190
  %v1332 = vpack.c.bf16 %v1224, %v1223
  %v1333 = vpack.c.bf16 %v1214, %v1210
  %v1334 = vpack.c.bf16 %v1226, %v1225
  %v1335 = vpack.c.bf16 %v1222, %v1218
  %v1336 = vpack.c.bf16 %v1253, %v1252
  %v1337 = vpack.c.bf16 %v1242, %v1238
  %v1338 = vpack.c.bf16 %v1255, %v1254
  %v1339 = vpack.c.bf16 %v1250, %v1246
  %v1340 = vpack.c.bf16 %v1267, %v1265
  %v1341 = vpack.c.bf16 %v1271, %v1269
  %v1342 = vpack.c.bf16 %v1279, %v1277
  %v1343 = vpack.c.bf16 %v1283, %v1281
  %v1344 = vpack.c.bf16 %v1291, %v1289
  %v1345 = vpack.c.bf16 %v1295, %v1293
  %v1346 = vpack.c.bf16 %v1303, %v1301
  %v1347 = vpack.c.bf16 %v1307, %v1305
  %v1348 = vpack.c.bf16 %v1315, %v1313
  %v1349 = vpack.c.bf16 %v1319, %v1317
  %v1350 = vld [vmem:[%s5] sm:$0xff]
  %v1351 = vld [vmem:[%s5 + $0x8] sm:$0xf]
  %v1352 = vld [vmem:[%s5 + $0xc] sm:$0xff]
  %v1353 = vld [vmem:[%s5 + $0x14] sm:$0xf]
  %v1354 = vld [vmem:[%s5 + $0x18] sm:$0xff]
  %v1355 = vld [vmem:[%s5 + $0x20] sm:$0xf]
  %v1356 = vld [vmem:[%s5 + $0x24] sm:$0xff]
  %v1357 = vld [vmem:[%s5 + $0x2c] sm:$0xf]
  %v1358 = vld [vmem:[%s6] sm:$0xff]
  %v1359 = vld [vmem:[%s6 + $0x8] sm:$0xff]
  %v1360 = vld [vmem:[%s6 + $0x10] sm:$0xff]
  %v1361 = vld [vmem:[%s6 + $0x18] sm:$0xff]
  %1363 = vset.pattern.permute.xlu0 0
  %1364 = vperm.xlu0 %1363, %v1358
  %v1365 = vpop.permute.xlu0 %1364
  %1368 = vset.pattern.permute.xlu0 0
  %1369 = vperm.xlu0 %1368, %v1359
  %v1370 = vpop.permute.xlu0 %1369
  %1373 = vset.pattern.permute.xlu0 0
  %1374 = vperm.xlu0 %1373, %v1360
  %v1375 = vpop.permute.xlu0 %1374
  %1378 = vset.pattern.permute.xlu0 0
  %1379 = vperm.xlu0 %1378, %v1361
  %v1380 = vpop.permute.xlu0 %1379
  %v1390 = vunpack.c.l.b16 %v1350
  %v1391 = vunpack.c.h.b16 %v1350
  %v1392 = vunpack.c.l.b16 %v1351
  %v1393 = vunpack.c.l.b16 %v1352
  %v1394 = vunpack.c.h.b16 %v1352
  %v1395 = vunpack.c.l.b16 %v1353
  %v1396 = vunpack.c.l.b16 %v1354
  %v1397 = vunpack.c.h.b16 %v1354
  %v1398 = vunpack.c.l.b16 %v1355
  %v1399 = vunpack.c.l.b16 %v1356
  %v1400 = vunpack.c.h.b16 %v1356
  %v1401 = vunpack.c.l.b16 %v1357
  %v1402 = vpack.c.b16 %v1393, %v1390
  %v1403 = vpack.c.b16 %v1394, %v1391
  %v1404 = vpack.c.b16 %v1395, %v1392
  %v1405 = vpack.c.b16 %v1399, %v1396
  %v1406 = vpack.c.b16 %v1400, %v1397
  %v1407 = vpack.c.b16 %v1401, %v1398
  %1438 = vrot.lane.b32.xlu0 %v1324, 7
  %v1439 = vpop.permute.xlu0 %1438
  %1440 = vrot.lane.b32.xlu0 %v1325, 7
  %v1441 = vpop.permute.xlu0 %1440
  %1442 = vrot.lane.b32.xlu0 %v1326, 7
  %v1443 = vpop.permute.xlu0 %1442
  %1444 = vrot.lane.b32.xlu0 %v1327, 7
  %v1445 = vpop.permute.xlu0 %1444
  %1446 = vrot.lane.b32.xlu0 %v1328, 7
  %v1447 = vpop.permute.xlu0 %1446
  %1448 = vrot.lane.b32.xlu0 %v1329, 7
  %v1449 = vpop.permute.xlu0 %1448
  %1450 = vrot.lane.b32.xlu0 %v1330, 7
  %v1451 = vpop.permute.xlu0 %1450
  %1452 = vrot.lane.b32.xlu0 %v1331, 7
  %v1453 = vpop.permute.xlu0 %1452
  %1454 = vrot.lane.b32.xlu0 %v1332, 7
  %v1455 = vpop.permute.xlu0 %1454
  %1456 = vrot.lane.b32.xlu0 %v1333, 7
  %v1457 = vpop.permute.xlu0 %1456
  %1458 = vrot.lane.b32.xlu0 %v1334, 7
  %v1459 = vpop.permute.xlu0 %1458
  %1460 = vrot.lane.b32.xlu0 %v1335, 7
  %v1461 = vpop.permute.xlu0 %1460
  %1462 = vrot.lane.b32.xlu0 %v1336, 7
  %v1463 = vpop.permute.xlu0 %1462
  %1464 = vrot.lane.b32.xlu0 %v1337, 7
  %v1465 = vpop.permute.xlu0 %1464
  %1466 = vrot.lane.b32.xlu0 %v1338, 7
  %v1467 = vpop.permute.xlu0 %1466
  %1468 = vrot.lane.b32.xlu0 %v1339, 7
  %v1469 = vpop.permute.xlu0 %1468
  %1470 = vrot.lane.b32.xlu0 %v1340, 7
  %v1471 = vpop.permute.xlu0 %1470
  %1472 = vrot.lane.b32.xlu0 %v1341, 7
  %v1473 = vpop.permute.xlu0 %1472
  %1474 = vrot.lane.b32.xlu0 %v1342, 7
  %v1475 = vpop.permute.xlu0 %1474
  %1476 = vrot.lane.b32.xlu0 %v1343, 7
  %v1477 = vpop.permute.xlu0 %1476
  %1478 = vrot.lane.b32.xlu0 %v1344, 7
  %v1479 = vpop.permute.xlu0 %1478
  %1480 = vrot.lane.b32.xlu0 %v1345, 7
  %v1481 = vpop.permute.xlu0 %1480
  %1482 = vrot.lane.b32.xlu0 %v1346, 7
  %v1483 = vpop.permute.xlu0 %1482
  %1484 = vrot.lane.b32.xlu0 %v1347, 7
  %v1485 = vpop.permute.xlu0 %1484
  %1486 = vrot.lane.b32.xlu0 %v1348, 7
  %v1487 = vpop.permute.xlu0 %1486
  %1488 = vrot.lane.b32.xlu0 %v1349, 7
  %v1489 = vpop.permute.xlu0 %1488
  %vm1490 = vcmask 56320
  %v1491 = vsel %vm1490, %v1439, %v1441
  %v1492 = vsel %vm1490, %v1443, %v1445
  %v1493 = vsel %vm1490, %v1447, %v1449
  %v1494 = vsel %vm1490, %v1451, %v1453
  %v1495 = vsel %vm1490, %v1455, %v1457
  %v1496 = vsel %vm1490, %v1459, %v1461
  %v1497 = vsel %vm1490, %v1463, %v1465
  %v1498 = vsel %vm1490, %v1467, %v1469
  %vm1517 = vcmask 261120
  %v1519 = vsel %vm1517, %v1404, 0
  %v1522 = vsel %vm1517, %v1407, 0
  %1524 = vmatprep.subr.bf16.mxu0 0
  %1525 = vmatpush1.bf16.msra.mxu0 %v1491
  %1526 = vmatprep.subr.bf16.mxu0 0
  %1527 = vmatpush1.bf16.msra.mxu0 %v1492
  %1528 = vmatprep.subr.bf16.mxu0 0
  %1529 = vmatpush1.bf16.msra.mxu0 %v1493
  %1530 = vmatprep.subr.bf16.mxu0 0
  %1531 = vmatpush1.bf16.msra.mxu0 %v1494
  %1532 = vmatprep.subr.bf16.mxu0 0
  %1533 = vmatpush1.bf16.msra.mxu0 %v1495
  %1534 = vmatprep.subr.bf16.mxu0 0
  %1535 = vmatpush1.bf16.msra.mxu0 %v1496
  %1536 = vmatprep.subr.bf16.mxu0 0
  %1537 = vmatpush1.bf16.msra.mxu0 %v1497
  %1538 = vmatprep.subr.bf16.mxu0 0
  %1539 = vmatpush1.bf16.msra.mxu0 %v1498
  %1540 = vmatprep.subr.bf16.mxu0 0
  %1541 = vmatpush1.bf16.msra.mxu0 %v1471
  %1542 = vmatprep.subr.bf16.mxu0 0
  %1543 = vmatpush1.bf16.msra.mxu0 %v1473
  %1544 = vmatprep.subr.bf16.mxu0 0
  %1545 = vmatpush1.bf16.msra.mxu0 %v1475
  %1546 = vmatprep.subr.bf16.mxu0 0
  %1547 = vmatpush1.bf16.msra.mxu0 %v1477
  %1548 = vmatprep.subr.bf16.mxu0 0
  %1549 = vmatpush1.bf16.msra.mxu0 %v1479
  %1550 = vmatprep.subr.bf16.mxu0 0
  %1551 = vmatpush1.bf16.msra.mxu0 %v1481
  %1552 = vmatprep.subr.bf16.mxu0 0
  %1553 = vmatpush1.bf16.msra.mxu0 %v1483
  %1554 = vmatprep.subr.bf16.mxu0 0
  %1555 = vmatpush1.bf16.msra.mxu0 %v1485
  %1556 = vmatprep.mubr.bf16.mxu0 %v1403
  %1557 = vmatmul.mubr.bf16.gmra.mrb[0].mxu0 %v1402
  %v1558 = vpop.f32.mrb[0].mxu0
  %v1559 = vadd.f32 %v1365, %v1558
  %v1560 = vpop.f32.mrb[0].mxu0
  %v1561 = vpop.f32.mrb[0].mxu0
  %v1562 = vadd.f32 %v1370, %v1561
  %v1563 = vpop.f32.mrb[0].mxu0
  %1564 = vmatprep.mubr.bf16.mxu0 %v1406
  %1565 = vmatmul.mubr.bf16.gmra.mrb[0].mxu0 %v1405
  %v1566 = vpop.f32.mrb[0].mxu0
  %v1567 = vadd.f32 %v1375, %v1566
  %v1568 = vpop.f32.mrb[0].mxu0
  %v1569 = vpop.f32.mrb[0].mxu0
  %v1570 = vadd.f32 %v1380, %v1569
  %v1571 = vpop.f32.mrb[0].mxu0
  %1572 = vdwg.mxu0
  %1573 = vmatprep.subr.bf16.mxu0 0
  %1574 = vmatpush1.bf16.msra.mxu0 %v1487
  %1575 = vmatprep.subr.bf16.mxu0 0
  %1576 = vmatpush1.bf16.msra.mxu0 %v1489
  %1577 = vmatprep.subr.bf16.mxu0 0
  %1578 = vmatpush1.bf16.msra.mxu0 0
  %1579 = vmatprep.subr.bf16.mxu0 0
  %1580 = vmatpush1.bf16.msra.mxu0 0
  %1581 = vmatprep.subr.bf16.mxu0 0
  %1582 = vmatpush1.bf16.msra.mxu0 0
  %1583 = vmatprep.subr.bf16.mxu0 0
  %1584 = vmatpush1.bf16.msra.mxu0 0
  %1585 = vmatprep.subr.bf16.mxu0 0
  %1586 = vmatpush1.bf16.msra.mxu0 0
  %1587 = vmatprep.subr.bf16.mxu0 0
  %1588 = vmatpush1.bf16.msra.mxu0 0
  %1589 = vmatprep.subr.bf16.mxu0 0
  %1590 = vmatpush1.bf16.msra.mxu0 0
  %1591 = vmatprep.subr.bf16.mxu0 0
  %1592 = vmatpush1.bf16.msra.mxu0 0
  %1593 = vmatprep.subr.bf16.mxu0 0
  %1594 = vmatpush1.bf16.msra.mxu0 0
  %1595 = vmatprep.subr.bf16.mxu0 0
  %1596 = vmatpush1.bf16.msra.mxu0 0
  %1597 = vmatprep.subr.bf16.mxu0 0
  %1598 = vmatpush1.bf16.msra.mxu0 0
  %1599 = vmatprep.subr.bf16.mxu0 0
  %1600 = vmatpush1.bf16.msra.mxu0 0
  %1601 = vmatprep.subr.bf16.mxu0 0
  %1602 = vmatpush1.bf16.msra.mxu0 0
  %1603 = vmatprep.subr.bf16.mxu0 0
  %1604 = vmatpush1.bf16.msra.mxu0 0
  %1605 = vmatprep.mubr.bf16.mxu0 0
  %1606 = vmatmul.mubr.bf16.gmra.mrb[0].mxu0 %v1519
  %v1607 = vpop.f32.mrb[0].mxu0
  %v1608 = vadd.f32 %v1559, %v1607
  %v1609 = vpop.f32.mrb[0].mxu0
  %v1610 = vpop.f32.mrb[0].mxu0
  %v1611 = vadd.f32 %v1562, %v1610
  %v1612 = vpop.f32.mrb[0].mxu0
  %1613 = vmatprep.mubr.bf16.mxu0 0
  %1614 = vmatmul.mubr.bf16.gmra.mrb[0].mxu0 %v1522
  %v1615 = vpop.f32.mrb[0].mxu0
  %v1616 = vadd.f32 %v1567, %v1615
  %v1617 = vpop.f32.mrb[0].mxu0
  %v1618 = vpop.f32.mrb[0].mxu0
  %v1619 = vadd.f32 %v1570, %v1618
  %v1620 = vpop.f32.mrb[0].mxu0
  %1621 = vdwg.mxu0
  %v1622 = vmax.f32 %v1608, 0.0
  %v1623 = vmax.f32 %v1611, 0.0
  %v1624 = vmax.f32 %v1616, 0.0
  %v1625 = vmax.f32 %v1619, 0.0
  %v1626 = vmul.f32 %v1153, %v1622
  %v1627 = vmul.f32 %v1153, %v1623
  %v1628 = vmul.f32 %v1153, %v1624
  %v1629 = vmul.f32 %v1153, %v1625
  %1630 = vst.msk [vmem:[%s14 + $0x8] sm:$0xff] %vm469, %v1626
  %1631 = vst.msk [vmem:[%s14 + $0x20] sm:$0xff] %vm469, %v1627
  %1632 = vst.msk [vmem:[%s14 + $0x38] sm:$0xff] %vm469, %v1628
  %1633 = vst.msk [vmem:[%s14 + $0x50] sm:$0xff] %vm469, %v1629
  %v1634 = vld [vmem:[%s14] sm:$0xff]
  %v1635 = vld [vmem:[%s14 + $0x8] sm:$0xff]
  %v1636 = vld [vmem:[%s14 + $0x18] sm:$0xff]
  %v1637 = vld [vmem:[%s14 + $0x20] sm:$0xff]
  %v1638 = vld [vmem:[%s14 + $0x30] sm:$0xff]
  %v1639 = vld [vmem:[%s14 + $0x38] sm:$0xff]
  %v1640 = vld [vmem:[%s14 + $0x48] sm:$0xff]
  %v1641 = vld [vmem:[%s14 + $0x50] sm:$0xff]
  %1650 = vrot.lane.b32.xlu0 %v1634, 127
  %v1651 = vpop.permute.xlu0 %1650
  %1652 = vrot.lane.b32.xlu0 %v1635, 127
  %v1653 = vpop.permute.xlu0 %1652
  %1654 = vrot.lane.b32.xlu0 %v1636, 127
  %v1655 = vpop.permute.xlu0 %1654
  %1656 = vrot.lane.b32.xlu0 %v1637, 127
  %v1657 = vpop.permute.xlu0 %1656
  %1658 = vrot.lane.b32.xlu0 %v1638, 127
  %v1659 = vpop.permute.xlu0 %1658
  %1660 = vrot.lane.b32.xlu0 %v1639, 127
  %v1661 = vpop.permute.xlu0 %1660
  %1662 = vrot.lane.b32.xlu0 %v1640, 127
  %v1663 = vpop.permute.xlu0 %1662
  %1664 = vrot.lane.b32.xlu0 %v1641, 127
  %v1665 = vpop.permute.xlu0 %1664
  %v1666 = vsel %vm72, %v1651, %v1653
  %v1667 = vsel %vm72, %v1655, %v1657
  %v1668 = vsel %vm72, %v1659, %v1661
  %v1669 = vsel %vm72, %v1663, %v1665
  %1678 = vrot.lane.b32.xlu0 %v1634, 126
  %v1679 = vpop.permute.xlu0 %1678
  %1680 = vrot.lane.b32.xlu0 %v1635, 126
  %v1681 = vpop.permute.xlu0 %1680
  %1682 = vrot.lane.b32.xlu0 %v1636, 126
  %v1683 = vpop.permute.xlu0 %1682
  %1684 = vrot.lane.b32.xlu0 %v1637, 126
  %v1685 = vpop.permute.xlu0 %1684
  %1686 = vrot.lane.b32.xlu0 %v1638, 126
  %v1687 = vpop.permute.xlu0 %1686
  %1688 = vrot.lane.b32.xlu0 %v1639, 126
  %v1689 = vpop.permute.xlu0 %1688
  %1690 = vrot.lane.b32.xlu0 %v1640, 126
  %v1691 = vpop.permute.xlu0 %1690
  %1692 = vrot.lane.b32.xlu0 %v1641, 126
  %v1693 = vpop.permute.xlu0 %1692
  %v1694 = vsel %vm95, %v1679, %v1681
  %v1695 = vsel %vm95, %v1683, %v1685
  %v1696 = vsel %vm95, %v1687, %v1689
  %v1697 = vsel %vm95, %v1691, %v1693
  %1706 = vrot.lane.b32.xlu0 %v1634, 122
  %v1707 = vpop.permute.xlu0 %1706
  %1708 = vrot.lane.b32.xlu0 %v1635, 122
  %v1709 = vpop.permute.xlu0 %1708
  %1710 = vrot.lane.b32.xlu0 %v1636, 122
  %v1711 = vpop.permute.xlu0 %1710
  %1712 = vrot.lane.b32.xlu0 %v1637, 122
  %v1713 = vpop.permute.xlu0 %1712
  %1714 = vrot.lane.b32.xlu0 %v1638, 122
  %v1715 = vpop.permute.xlu0 %1714
  %1716 = vrot.lane.b32.xlu0 %v1639, 122
  %v1717 = vpop.permute.xlu0 %1716
  %1718 = vrot.lane.b32.xlu0 %v1640, 122
  %v1719 = vpop.permute.xlu0 %1718
  %1720 = vrot.lane.b32.xlu0 %v1641, 122
  %v1721 = vpop.permute.xlu0 %1720
  %v1722 = vsel %vm1251, %v1707, %v1709
  %v1723 = vsel %vm1251, %v1711, %v1713
  %v1724 = vsel %vm1251, %v1715, %v1717
  %v1725 = vsel %vm1251, %v1719, %v1721
  %1734 = vrot.lane.b32.xlu0 %v1635, 121
  %v1735 = vpop.permute.xlu0 %1734
  %1736 = vrot.lane.b32.xlu0 %v1637, 121
  %v1737 = vpop.permute.xlu0 %1736
  %1738 = vrot.lane.b32.xlu0 %v1639, 121
  %v1739 = vpop.permute.xlu0 %1738
  %1740 = vrot.lane.b32.xlu0 %v1641, 121
  %v1741 = vpop.permute.xlu0 %1740
  %1746 = vrot.lane.b32.xlu0 %v1635, 120
  %v1747 = vpop.permute.xlu0 %1746
  %1748 = vrot.lane.b32.xlu0 %v1637, 120
  %v1749 = vpop.permute.xlu0 %1748
  %1750 = vrot.lane.b32.xlu0 %v1639, 120
  %v1751 = vpop.permute.xlu0 %1750
  %1752 = vrot.lane.b32.xlu0 %v1641, 120
  %v1753 = vpop.permute.xlu0 %1752
  %1758 = vrot.lane.b32.xlu0 %v1635, 116
  %v1759 = vpop.permute.xlu0 %1758
  %1760 = vrot.lane.b32.xlu0 %v1637, 116
  %v1761 = vpop.permute.xlu0 %1760
  %1762 = vrot.lane.b32.xlu0 %v1639, 116
  %v1763 = vpop.permute.xlu0 %1762
  %1764 = vrot.lane.b32.xlu0 %v1641, 116
  %v1765 = vpop.permute.xlu0 %1764
  %1770 = vrot.lane.b32.xlu0 %v1635, 115
  %v1771 = vpop.permute.xlu0 %1770
  %1772 = vrot.lane.b32.xlu0 %v1637, 115
  %v1773 = vpop.permute.xlu0 %1772
  %1774 = vrot.lane.b32.xlu0 %v1639, 115
  %v1775 = vpop.permute.xlu0 %1774
  %1776 = vrot.lane.b32.xlu0 %v1641, 115
  %v1777 = vpop.permute.xlu0 %1776
  %1782 = vrot.lane.b32.xlu0 %v1635, 114
  %v1783 = vpop.permute.xlu0 %1782
  %1784 = vrot.lane.b32.xlu0 %v1637, 114
  %v1785 = vpop.permute.xlu0 %1784
  %1786 = vrot.lane.b32.xlu0 %v1639, 114
  %v1787 = vpop.permute.xlu0 %1786
  %1788 = vrot.lane.b32.xlu0 %v1641, 114
  %v1789 = vpop.permute.xlu0 %1788
  %v1794 = vpack.c.bf16 %v1636, %v1634
  %v1795 = vpack.c.bf16 %v1637, %v1635
  %v1796 = vpack.c.bf16 %v1640, %v1638
  %v1797 = vpack.c.bf16 %v1641, %v1639
  %v1798 = vpack.c.bf16 %v1667, %v1666
  %v1799 = vpack.c.bf16 %v1657, %v1653
  %v1800 = vpack.c.bf16 %v1669, %v1668
  %v1801 = vpack.c.bf16 %v1665, %v1661
  %v1802 = vpack.c.bf16 %v1695, %v1694
  %v1803 = vpack.c.bf16 %v1685, %v1681
  %v1804 = vpack.c.bf16 %v1697, %v1696
  %v1805 = vpack.c.bf16 %v1693, %v1689
  %v1806 = vpack.c.bf16 %v1723, %v1722
  %v1807 = vpack.c.bf16 %v1713, %v1709
  %v1808 = vpack.c.bf16 %v1725, %v1724
  %v1809 = vpack.c.bf16 %v1721, %v1717
  %v1810 = vpack.c.bf16 %v1737, %v1735
  %v1811 = vpack.c.bf16 %v1741, %v1739
  %v1812 = vpack.c.bf16 %v1749, %v1747
  %v1813 = vpack.c.bf16 %v1753, %v1751
  %v1814 = vpack.c.bf16 %v1761, %v1759
  %v1815 = vpack.c.bf16 %v1765, %v1763
  %v1816 = vpack.c.bf16 %v1773, %v1771
  %v1817 = vpack.c.bf16 %v1777, %v1775
  %v1818 = vpack.c.bf16 %v1785, %v1783
  %v1819 = vpack.c.bf16 %v1789, %v1787
  %v1820 = vld [vmem:[%s7] sm:$0xff]
  %v1821 = vld [vmem:[%s7 + $0x8] sm:$0xf]
  %v1822 = vld [vmem:[%s7 + $0xc] sm:$0xff]
  %v1823 = vld [vmem:[%s7 + $0x14] sm:$0xf]
  %v1824 = vld [vmem:[%s7 + $0x18] sm:$0xff]
  %v1825 = vld [vmem:[%s7 + $0x20] sm:$0xf]
  %v1826 = vld [vmem:[%s7 + $0x24] sm:$0xff]
  %v1827 = vld [vmem:[%s7 + $0x2c] sm:$0xf]
  %v1828 = vld [vmem:[%s8] sm:$0xff]
  %v1829 = vld [vmem:[%s8 + $0x8] sm:$0xff]
  %v1830 = vld [vmem:[%s8 + $0x10] sm:$0xff]
  %v1831 = vld [vmem:[%s8 + $0x18] sm:$0xff]
  %1833 = vset.pattern.permute.xlu0 0
  %1834 = vperm.xlu0 %1833, %v1828
  %v1835 = vpop.permute.xlu0 %1834
  %1838 = vset.pattern.permute.xlu0 0
  %1839 = vperm.xlu0 %1838, %v1829
  %v1840 = vpop.permute.xlu0 %1839
  %1843 = vset.pattern.permute.xlu0 0
  %1844 = vperm.xlu0 %1843, %v1830
  %v1845 = vpop.permute.xlu0 %1844
  %1848 = vset.pattern.permute.xlu0 0
  %1849 = vperm.xlu0 %1848, %v1831
  %v1850 = vpop.permute.xlu0 %1849
  %v1860 = vunpack.c.l.b16 %v1820
  %v1861 = vunpack.c.h.b16 %v1820
  %v1862 = vunpack.c.l.b16 %v1821
  %v1863 = vunpack.c.l.b16 %v1822
  %v1864 = vunpack.c.h.b16 %v1822
  %v1865 = vunpack.c.l.b16 %v1823
  %v1866 = vunpack.c.l.b16 %v1824
  %v1867 = vunpack.c.h.b16 %v1824
  %v1868 = vunpack.c.l.b16 %v1825
  %v1869 = vunpack.c.l.b16 %v1826
  %v1870 = vunpack.c.h.b16 %v1826
  %v1871 = vunpack.c.l.b16 %v1827
  %v1872 = vpack.c.b16 %v1863, %v1860
  %v1873 = vpack.c.b16 %v1864, %v1861
  %v1874 = vpack.c.b16 %v1865, %v1862
  %v1875 = vpack.c.b16 %v1869, %v1866
  %v1876 = vpack.c.b16 %v1870, %v1867
  %v1877 = vpack.c.b16 %v1871, %v1868
  %1908 = vrot.lane.b32.xlu0 %v1794, 7
  %v1909 = vpop.permute.xlu0 %1908
  %1910 = vrot.lane.b32.xlu0 %v1795, 7
  %v1911 = vpop.permute.xlu0 %1910
  %1912 = vrot.lane.b32.xlu0 %v1796, 7
  %v1913 = vpop.permute.xlu0 %1912
  %1914 = vrot.lane.b32.xlu0 %v1797, 7
  %v1915 = vpop.permute.xlu0 %1914
  %1916 = vrot.lane.b32.xlu0 %v1798, 7
  %v1917 = vpop.permute.xlu0 %1916
  %1918 = vrot.lane.b32.xlu0 %v1799, 7
  %v1919 = vpop.permute.xlu0 %1918
  %1920 = vrot.lane.b32.xlu0 %v1800, 7
  %v1921 = vpop.permute.xlu0 %1920
  %1922 = vrot.lane.b32.xlu0 %v1801, 7
  %v1923 = vpop.permute.xlu0 %1922
  %1924 = vrot.lane.b32.xlu0 %v1802, 7
  %v1925 = vpop.permute.xlu0 %1924
  %1926 = vrot.lane.b32.xlu0 %v1803, 7
  %v1927 = vpop.permute.xlu0 %1926
  %1928 = vrot.lane.b32.xlu0 %v1804, 7
  %v1929 = vpop.permute.xlu0 %1928
  %1930 = vrot.lane.b32.xlu0 %v1805, 7
  %v1931 = vpop.permute.xlu0 %1930
  %1932 = vrot.lane.b32.xlu0 %v1806, 7
  %v1933 = vpop.permute.xlu0 %1932
  %1934 = vrot.lane.b32.xlu0 %v1807, 7
  %v1935 = vpop.permute.xlu0 %1934
  %1936 = vrot.lane.b32.xlu0 %v1808, 7
  %v1937 = vpop.permute.xlu0 %1936
  %1938 = vrot.lane.b32.xlu0 %v1809, 7
  %v1939 = vpop.permute.xlu0 %1938
  %1940 = vrot.lane.b32.xlu0 %v1810, 7
  %v1941 = vpop.permute.xlu0 %1940
  %1942 = vrot.lane.b32.xlu0 %v1811, 7
  %v1943 = vpop.permute.xlu0 %1942
  %1944 = vrot.lane.b32.xlu0 %v1812, 7
  %v1945 = vpop.permute.xlu0 %1944
  %1946 = vrot.lane.b32.xlu0 %v1813, 7
  %v1947 = vpop.permute.xlu0 %1946
  %1948 = vrot.lane.b32.xlu0 %v1814, 7
  %v1949 = vpop.permute.xlu0 %1948
  %1950 = vrot.lane.b32.xlu0 %v1815, 7
  %v1951 = vpop.permute.xlu0 %1950
  %1952 = vrot.lane.b32.xlu0 %v1816, 7
  %v1953 = vpop.permute.xlu0 %1952
  %1954 = vrot.lane.b32.xlu0 %v1817, 7
  %v1955 = vpop.permute.xlu0 %1954
  %1956 = vrot.lane.b32.xlu0 %v1818, 7
  %v1957 = vpop.permute.xlu0 %1956
  %1958 = vrot.lane.b32.xlu0 %v1819, 7
  %v1959 = vpop.permute.xlu0 %1958
  %v1960 = vsel %vm1490, %v1909, %v1911
  %v1961 = vsel %vm1490, %v1913, %v1915
  %v1962 = vsel %vm1490, %v1917, %v1919
  %v1963 = vsel %vm1490, %v1921, %v1923
  %v1964 = vsel %vm1490, %v1925, %v1927
  %v1965 = vsel %vm1490, %v1929, %v1931
  %v1966 = vsel %vm1490, %v1933, %v1935
  %v1967 = vsel %vm1490, %v1937, %v1939
  %v1987 = vsel %vm1517, %v1874, 0
  %v1990 = vsel %vm1517, %v1877, 0
  %1992 = vmatprep.subr.bf16.mxu0 0
  %1993 = vmatpush1.bf16.msra.mxu0 %v1960
  %1994 = vmatprep.subr.bf16.mxu0 0
  %1995 = vmatpush1.bf16.msra.mxu0 %v1961
  %1996 = vmatprep.subr.bf16.mxu0 0
  %1997 = vmatpush1.bf16.msra.mxu0 %v1962
  %1998 = vmatprep.subr.bf16.mxu0 0
  %1999 = vmatpush1.bf16.msra.mxu0 %v1963
  %2000 = vmatprep.subr.bf16.mxu0 0
  %2001 = vmatpush1.bf16.msra.mxu0 %v1964
  %2002 = vmatprep.subr.bf16.mxu0 0
  %2003 = vmatpush1.bf16.msra.mxu0 %v1965
  %2004 = vmatprep.subr.bf16.mxu0 0
  %2005 = vmatpush1.bf16.msra.mxu0 %v1966
  %2006 = vmatprep.subr.bf16.mxu0 0
  %2007 = vmatpush1.bf16.msra.mxu0 %v1967
  %2008 = vmatprep.subr.bf16.mxu0 0
  %2009 = vmatpush1.bf16.msra.mxu0 %v1941
  %2010 = vmatprep.subr.bf16.mxu0 0
  %2011 = vmatpush1.bf16.msra.mxu0 %v1943
  %2012 = vmatprep.subr.bf16.mxu0 0
  %2013 = vmatpush1.bf16.msra.mxu0 %v1945
  %2014 = vmatprep.subr.bf16.mxu0 0
  %2015 = vmatpush1.bf16.msra.mxu0 %v1947
  %2016 = vmatprep.subr.bf16.mxu0 0
  %2017 = vmatpush1.bf16.msra.mxu0 %v1949
  %2018 = vmatprep.subr.bf16.mxu0 0
  %2019 = vmatpush1.bf16.msra.mxu0 %v1951
  %2020 = vmatprep.subr.bf16.mxu0 0
  %2021 = vmatpush1.bf16.msra.mxu0 %v1953
  %2022 = vmatprep.subr.bf16.mxu0 0
  %2023 = vmatpush1.bf16.msra.mxu0 %v1955
  %2024 = vmatprep.mubr.bf16.mxu0 %v1873
  %2025 = vmatmul.mubr.bf16.gmra.mrb[0].mxu0 %v1872
  %v2026 = vpop.f32.mrb[0].mxu0
  %v2027 = vadd.f32 %v1835, %v2026
  %v2028 = vpop.f32.mrb[0].mxu0
  %v2029 = vpop.f32.mrb[0].mxu0
  %v2030 = vadd.f32 %v1840, %v2029
  %v2031 = vpop.f32.mrb[0].mxu0
  %2032 = vmatprep.mubr.bf16.mxu0 %v1876
  %2033 = vmatmul.mubr.bf16.gmra.mrb[0].mxu0 %v1875
  %v2034 = vpop.f32.mrb[0].mxu0
  %v2035 = vadd.f32 %v1845, %v2034
  %v2036 = vpop.f32.mrb[0].mxu0
  %v2037 = vpop.f32.mrb[0].mxu0
  %v2038 = vadd.f32 %v1850, %v2037
  %v2039 = vpop.f32.mrb[0].mxu0
  %2040 = vdwg.mxu0
  %2041 = vmatprep.subr.bf16.mxu0 0
  %2042 = vmatpush1.bf16.msra.mxu0 %v1957
  %2043 = vmatprep.subr.bf16.mxu0 0
  %2044 = vmatpush1.bf16.msra.mxu0 %v1959
  %2045 = vmatprep.subr.bf16.mxu0 0
  %2046 = vmatpush1.bf16.msra.mxu0 0
  %2047 = vmatprep.subr.bf16.mxu0 0
  %2048 = vmatpush1.bf16.msra.mxu0 0
  %2049 = vmatprep.subr.bf16.mxu0 0
  %2050 = vmatpush1.bf16.msra.mxu0 0
  %2051 = vmatprep.subr.bf16.mxu0 0
  %2052 = vmatpush1.bf16.msra.mxu0 0
  %2053 = vmatprep.subr.bf16.mxu0 0
  %2054 = vmatpush1.bf16.msra.mxu0 0
  %2055 = vmatprep.subr.bf16.mxu0 0
  %2056 = vmatpush1.bf16.msra.mxu0 0
  %2057 = vmatprep.subr.bf16.mxu0 0
  %2058 = vmatpush1.bf16.msra.mxu0 0
  %2059 = vmatprep.subr.bf16.mxu0 0
  %2060 = vmatpush1.bf16.msra.mxu0 0
  %2061 = vmatprep.subr.bf16.mxu0 0
  %2062 = vmatpush1.bf16.msra.mxu0 0
  %2063 = vmatprep.subr.bf16.mxu0 0
  %2064 = vmatpush1.bf16.msra.mxu0 0
  %2065 = vmatprep.subr.bf16.mxu0 0
  %2066 = vmatpush1.bf16.msra.mxu0 0
  %2067 = vmatprep.subr.bf16.mxu0 0
  %2068 = vmatpush1.bf16.msra.mxu0 0
  %2069 = vmatprep.subr.bf16.mxu0 0
  %2070 = vmatpush1.bf16.msra.mxu0 0
  %2071 = vmatprep.subr.bf16.mxu0 0
  %2072 = vmatpush1.bf16.msra.mxu0 0
  %2073 = vmatprep.mubr.bf16.mxu0 0
  %2074 = vmatmul.mubr.bf16.gmra.mrb[0].mxu0 %v1987
  %v2075 = vpop.f32.mrb[0].mxu0
  %v2076 = vadd.f32 %v2027, %v2075
  %v2077 = vpop.f32.mrb[0].mxu0
  %v2078 = vpop.f32.mrb[0].mxu0
  %v2079 = vadd.f32 %v2030, %v2078
  %v2080 = vpop.f32.mrb[0].mxu0
  %2081 = vmatprep.mubr.bf16.mxu0 0
  %2082 = vmatmul.mubr.bf16.gmra.mrb[0].mxu0 %v1990
  %v2083 = vpop.f32.mrb[0].mxu0
  %v2084 = vadd.f32 %v2035, %v2083
  %v2085 = vpop.f32.mrb[0].mxu0
  %v2086 = vpop.f32.mrb[0].mxu0
  %v2087 = vadd.f32 %v2038, %v2086
  %v2088 = vpop.f32.mrb[0].mxu0
  %2089 = vdwg.mxu0
  %v2090 = vadd.f32 %v2076, %v1118
  %v2091 = vadd.f32 %v2079, %v1121
  %v2092 = vadd.f32 %v2084, %v1126
  %v2093 = vadd.f32 %v2087, %v1129
  %v2094 = vmax.f32 %v2090, 0.0
  %v2095 = vmax.f32 %v2091, 0.0
  %v2096 = vmax.f32 %v2092, 0.0
  %v2097 = vmax.f32 %v2093, 0.0
  %v2098 = vmul.f32 %v1153, %v2094
  %v2099 = vmul.f32 %v1153, %v2095
  %v2100 = vmul.f32 %v1153, %v2096
  %v2101 = vmul.f32 %v1153, %v2097
  %2102 = vst.msk [vmem:[%s14 + $0x8] sm:$0xff] %vm469, %v2098
  %2103 = vst.msk [vmem:[%s14 + $0x20] sm:$0xff] %vm469, %v2099
  %2104 = vst.msk [vmem:[%s14 + $0x38] sm:$0xff] %vm469, %v2100
  %2105 = vst.msk [vmem:[%s14 + $0x50] sm:$0xff] %vm469, %v2101
  %v2106 = vld [vmem:[%s14] sm:$0xff]
  %v2107 = vld [vmem:[%s14 + $0x8] sm:$0xff]
  %v2108 = vld [vmem:[%s14 + $0x18] sm:$0xff]
  %v2109 = vld [vmem:[%s14 + $0x20] sm:$0xff]
  %v2110 = vld [vmem:[%s14 + $0x30] sm:$0xff]
  %v2111 = vld [vmem:[%s14 + $0x38] sm:$0xff]
  %v2112 = vld [vmem:[%s14 + $0x48] sm:$0xff]
  %v2113 = vld [vmem:[%s14 + $0x50] sm:$0xff]
  %2122 = vrot.lane.b32.xlu0 %v2106, 127
  %v2123 = vpop.permute.xlu0 %2122
  %2124 = vrot.lane.b32.xlu0 %v2107, 127
  %v2125 = vpop.permute.xlu0 %2124
  %2126 = vrot.lane.b32.xlu0 %v2108, 127
  %v2127 = vpop.permute.xlu0 %2126
  %2128 = vrot.lane.b32.xlu0 %v2109, 127
  %v2129 = vpop.permute.xlu0 %2128
  %2130 = vrot.lane.b32.xlu0 %v2110, 127
  %v2131 = vpop.permute.xlu0 %2130
  %2132 = vrot.lane.b32.xlu0 %v2111, 127
  %v2133 = vpop.permute.xlu0 %2132
  %2134 = vrot.lane.b32.xlu0 %v2112, 127
  %v2135 = vpop.permute.xlu0 %2134
  %2136 = vrot.lane.b32.xlu0 %v2113, 127
  %v2137 = vpop.permute.xlu0 %2136
  %v2138 = vsel %vm72, %v2123, %v2125
  %v2139 = vsel %vm72, %v2127, %v2129
  %v2140 = vsel %vm72, %v2131, %v2133
  %v2141 = vsel %vm72, %v2135, %v2137
  %2150 = vrot.lane.b32.xlu0 %v2106, 126
  %v2151 = vpop.permute.xlu0 %2150
  %2152 = vrot.lane.b32.xlu0 %v2107, 126
  %v2153 = vpop.permute.xlu0 %2152
  %2154 = vrot.lane.b32.xlu0 %v2108, 126
  %v2155 = vpop.permute.xlu0 %2154
  %2156 = vrot.lane.b32.xlu0 %v2109, 126
  %v2157 = vpop.permute.xlu0 %2156
  %2158 = vrot.lane.b32.xlu0 %v2110, 126
  %v2159 = vpop.permute.xlu0 %2158
  %2160 = vrot.lane.b32.xlu0 %v2111, 126
  %v2161 = vpop.permute.xlu0 %2160
  %2162 = vrot.lane.b32.xlu0 %v2112, 126
  %v2163 = vpop.permute.xlu0 %2162
  %2164 = vrot.lane.b32.xlu0 %v2113, 126
  %v2165 = vpop.permute.xlu0 %2164
  %v2166 = vsel %vm95, %v2151, %v2153
  %v2167 = vsel %vm95, %v2155, %v2157
  %v2168 = vsel %vm95, %v2159, %v2161
  %v2169 = vsel %vm95, %v2163, %v2165
  %2178 = vrot.lane.b32.xlu0 %v2106, 122
  %v2179 = vpop.permute.xlu0 %2178
  %2180 = vrot.lane.b32.xlu0 %v2107, 122
  %v2181 = vpop.permute.xlu0 %2180
  %2182 = vrot.lane.b32.xlu0 %v2108, 122
  %v2183 = vpop.permute.xlu0 %2182
  %2184 = vrot.lane.b32.xlu0 %v2109, 122
  %v2185 = vpop.permute.xlu0 %2184
  %2186 = vrot.lane.b32.xlu0 %v2110, 122
  %v2187 = vpop.permute.xlu0 %2186
  %2188 = vrot.lane.b32.xlu0 %v2111, 122
  %v2189 = vpop.permute.xlu0 %2188
  %2190 = vrot.lane.b32.xlu0 %v2112, 122
  %v2191 = vpop.permute.xlu0 %2190
  %2192 = vrot.lane.b32.xlu0 %v2113, 122
  %v2193 = vpop.permute.xlu0 %2192
  %v2194 = vsel %vm1251, %v2179, %v2181
  %v2195 = vsel %vm1251, %v2183, %v2185
  %v2196 = vsel %vm1251, %v2187, %v2189
  %v2197 = vsel %vm1251, %v2191, %v2193
  %2206 = vrot.lane.b32.xlu0 %v2107, 121
  %v2207 = vpop.permute.xlu0 %2206
  %2208 = vrot.lane.b32.xlu0 %v2109, 121
  %v2209 = vpop.permute.xlu0 %2208
  %2210 = vrot.lane.b32.xlu0 %v2111, 121
  %v2211 = vpop.permute.xlu0 %2210
  %2212 = vrot.lane.b32.xlu0 %v2113, 121
  %v2213 = vpop.permute.xlu0 %2212
  %2218 = vrot.lane.b32.xlu0 %v2107, 120
  %v2219 = vpop.permute.xlu0 %2218
  %2220 = vrot.lane.b32.xlu0 %v2109, 120
  %v2221 = vpop.permute.xlu0 %2220
  %2222 = vrot.lane.b32.xlu0 %v2111, 120
  %v2223 = vpop.permute.xlu0 %2222
  %2224 = vrot.lane.b32.xlu0 %v2113, 120
  %v2225 = vpop.permute.xlu0 %2224
  %2230 = vrot.lane.b32.xlu0 %v2107, 116
  %v2231 = vpop.permute.xlu0 %2230
  %2232 = vrot.lane.b32.xlu0 %v2109, 116
  %v2233 = vpop.permute.xlu0 %2232
  %2234 = vrot.lane.b32.xlu0 %v2111, 116
  %v2235 = vpop.permute.xlu0 %2234
  %2236 = vrot.lane.b32.xlu0 %v2113, 116
  %v2237 = vpop.permute.xlu0 %2236
  %2242 = vrot.lane.b32.xlu0 %v2107, 115
  %v2243 = vpop.permute.xlu0 %2242
  %2244 = vrot.lane.b32.xlu0 %v2109, 115
  %v2245 = vpop.permute.xlu0 %2244
  %2246 = vrot.lane.b32.xlu0 %v2111, 115
  %v2247 = vpop.permute.xlu0 %2246
  %2248 = vrot.lane.b32.xlu0 %v2113, 115
  %v2249 = vpop.permute.xlu0 %2248
  %2254 = vrot.lane.b32.xlu0 %v2107, 114
  %v2255 = vpop.permute.xlu0 %2254
  %2256 = vrot.lane.b32.xlu0 %v2109, 114
  %v2257 = vpop.permute.xlu0 %2256
  %2258 = vrot.lane.b32.xlu0 %v2111, 114
  %v2259 = vpop.permute.xlu0 %2258
  %2260 = vrot.lane.b32.xlu0 %v2113, 114
  %v2261 = vpop.permute.xlu0 %2260
  %v2266 = vpack.c.bf16 %v2108, %v2106
  %v2267 = vpack.c.bf16 %v2109, %v2107
  %v2268 = vpack.c.bf16 %v2112, %v2110
  %v2269 = vpack.c.bf16 %v2113, %v2111
  %v2270 = vpack.c.bf16 %v2139, %v2138
  %v2271 = vpack.c.bf16 %v2129, %v2125
  %v2272 = vpack.c.bf16 %v2141, %v2140
  %v2273 = vpack.c.bf16 %v2137, %v2133
  %v2274 = vpack.c.bf16 %v2167, %v2166
  %v2275 = vpack.c.bf16 %v2157, %v2153
  %v2276 = vpack.c.bf16 %v2169, %v2168
  %v2277 = vpack.c.bf16 %v2165, %v2161
  %v2278 = vpack.c.bf16 %v2195, %v2194
  %v2279 = vpack.c.bf16 %v2185, %v2181
  %v2280 = vpack.c.bf16 %v2197, %v2196
  %v2281 = vpack.c.bf16 %v2193, %v2189
  %v2282 = vpack.c.bf16 %v2209, %v2207
  %v2283 = vpack.c.bf16 %v2213, %v2211
  %v2284 = vpack.c.bf16 %v2221, %v2219
  %v2285 = vpack.c.bf16 %v2225, %v2223
  %v2286 = vpack.c.bf16 %v2233, %v2231
  %v2287 = vpack.c.bf16 %v2237, %v2235
  %v2288 = vpack.c.bf16 %v2245, %v2243
  %v2289 = vpack.c.bf16 %v2249, %v2247
  %v2290 = vpack.c.bf16 %v2257, %v2255
  %v2291 = vpack.c.bf16 %v2261, %v2259
  %v2292 = vld [vmem:[%s9] sm:$0xff]
  %v2293 = vld [vmem:[%s9 + $0x8] sm:$0xf]
  %v2294 = vld [vmem:[%s9 + $0xc] sm:$0xff]
  %v2295 = vld [vmem:[%s9 + $0x14] sm:$0xf]
  %v2296 = vld [vmem:[%s9 + $0x18] sm:$0xff]
  %v2297 = vld [vmem:[%s9 + $0x20] sm:$0xf]
  %v2298 = vld [vmem:[%s9 + $0x24] sm:$0xff]
  %v2299 = vld [vmem:[%s9 + $0x2c] sm:$0xf]
  %v2300 = vld [vmem:[%s10] sm:$0xff]
  %v2301 = vld [vmem:[%s10 + $0x8] sm:$0xff]
  %v2302 = vld [vmem:[%s10 + $0x10] sm:$0xff]
  %v2303 = vld [vmem:[%s10 + $0x18] sm:$0xff]
  %2305 = vset.pattern.permute.xlu0 0
  %2306 = vperm.xlu0 %2305, %v2300
  %v2307 = vpop.permute.xlu0 %2306
  %2310 = vset.pattern.permute.xlu0 0
  %2311 = vperm.xlu0 %2310, %v2301
  %v2312 = vpop.permute.xlu0 %2311
  %2315 = vset.pattern.permute.xlu0 0
  %2316 = vperm.xlu0 %2315, %v2302
  %v2317 = vpop.permute.xlu0 %2316
  %2320 = vset.pattern.permute.xlu0 0
  %2321 = vperm.xlu0 %2320, %v2303
  %v2322 = vpop.permute.xlu0 %2321
  %v2332 = vunpack.c.l.b16 %v2292
  %v2333 = vunpack.c.h.b16 %v2292
  %v2334 = vunpack.c.l.b16 %v2293
  %v2335 = vunpack.c.l.b16 %v2294
  %v2336 = vunpack.c.h.b16 %v2294
  %v2337 = vunpack.c.l.b16 %v2295
  %v2338 = vunpack.c.l.b16 %v2296
  %v2339 = vunpack.c.h.b16 %v2296
  %v2340 = vunpack.c.l.b16 %v2297
  %v2341 = vunpack.c.l.b16 %v2298
  %v2342 = vunpack.c.h.b16 %v2298
  %v2343 = vunpack.c.l.b16 %v2299
  %v2344 = vpack.c.b16 %v2335, %v2332
  %v2345 = vpack.c.b16 %v2336, %v2333
  %v2346 = vpack.c.b16 %v2337, %v2334
  %v2347 = vpack.c.b16 %v2341, %v2338
  %v2348 = vpack.c.b16 %v2342, %v2339
  %v2349 = vpack.c.b16 %v2343, %v2340
  %2380 = vrot.lane.b32.xlu0 %v2266, 7
  %v2381 = vpop.permute.xlu0 %2380
  %2382 = vrot.lane.b32.xlu0 %v2267, 7
  %v2383 = vpop.permute.xlu0 %2382
  %2384 = vrot.lane.b32.xlu0 %v2268, 7
  %v2385 = vpop.permute.xlu0 %2384
  %2386 = vrot.lane.b32.xlu0 %v2269, 7
  %v2387 = vpop.permute.xlu0 %2386
  %2388 = vrot.lane.b32.xlu0 %v2270, 7
  %v2389 = vpop.permute.xlu0 %2388
  %2390 = vrot.lane.b32.xlu0 %v2271, 7
  %v2391 = vpop.permute.xlu0 %2390
  %2392 = vrot.lane.b32.xlu0 %v2272, 7
  %v2393 = vpop.permute.xlu0 %2392
  %2394 = vrot.lane.b32.xlu0 %v2273, 7
  %v2395 = vpop.permute.xlu0 %2394
  %2396 = vrot.lane.b32.xlu0 %v2274, 7
  %v2397 = vpop.permute.xlu0 %2396
  %2398 = vrot.lane.b32.xlu0 %v2275, 7
  %v2399 = vpop.permute.xlu0 %2398
  %2400 = vrot.lane.b32.xlu0 %v2276, 7
  %v2401 = vpop.permute.xlu0 %2400
  %2402 = vrot.lane.b32.xlu0 %v2277, 7
  %v2403 = vpop.permute.xlu0 %2402
  %2404 = vrot.lane.b32.xlu0 %v2278, 7
  %v2405 = vpop.permute.xlu0 %2404
  %2406 = vrot.lane.b32.xlu0 %v2279, 7
  %v2407 = vpop.permute.xlu0 %2406
  %2408 = vrot.lane.b32.xlu0 %v2280, 7
  %v2409 = vpop.permute.xlu0 %2408
  %2410 = vrot.lane.b32.xlu0 %v2281, 7
  %v2411 = vpop.permute.xlu0 %2410
  %2412 = vrot.lane.b32.xlu0 %v2282, 7
  %v2413 = vpop.permute.xlu0 %2412
  %2414 = vrot.lane.b32.xlu0 %v2283, 7
  %v2415 = vpop.permute.xlu0 %2414
  %2416 = vrot.lane.b32.xlu0 %v2284, 7
  %v2417 = vpop.permute.xlu0 %2416
  %2418 = vrot.lane.b32.xlu0 %v2285, 7
  %v2419 = vpop.permute.xlu0 %2418
  %2420 = vrot.lane.b32.xlu0 %v2286, 7
  %v2421 = vpop.permute.xlu0 %2420
  %2422 = vrot.lane.b32.xlu0 %v2287, 7
  %v2423 = vpop.permute.xlu0 %2422
  %2424 = vrot.lane.b32.xlu0 %v2288, 7
  %v2425 = vpop.permute.xlu0 %2424
  %2426 = vrot.lane.b32.xlu0 %v2289, 7
  %v2427 = vpop.permute.xlu0 %2426
  %2428 = vrot.lane.b32.xlu0 %v2290, 7
  %v2429 = vpop.permute.xlu0 %2428
  %2430 = vrot.lane.b32.xlu0 %v2291, 7
  %v2431 = vpop.permute.xlu0 %2430
  %v2432 = vsel %vm1490, %v2381, %v2383
  %v2433 = vsel %vm1490, %v2385, %v2387
  %v2434 = vsel %vm1490, %v2389, %v2391
  %v2435 = vsel %vm1490, %v2393, %v2395
  %v2436 = vsel %vm1490, %v2397, %v2399
  %v2437 = vsel %vm1490, %v2401, %v2403
  %v2438 = vsel %vm1490, %v2405, %v2407
  %v2439 = vsel %vm1490, %v2409, %v2411
  %v2459 = vsel %vm1517, %v2346, 0
  %v2462 = vsel %vm1517, %v2349, 0
  %2464 = vmatprep.subr.bf16.mxu0 0
  %2465 = vmatpush1.bf16.msra.mxu0 %v2432
  %2466 = vmatprep.subr.bf16.mxu0 0
  %2467 = vmatpush1.bf16.msra.mxu0 %v2433
  %2468 = vmatprep.subr.bf16.mxu0 0
  %2469 = vmatpush1.bf16.msra.mxu0 %v2434
  %2470 = vmatprep.subr.bf16.mxu0 0
  %2471 = vmatpush1.bf16.msra.mxu0 %v2435
  %2472 = vmatprep.subr.bf16.mxu0 0
  %2473 = vmatpush1.bf16.msra.mxu0 %v2436
  %2474 = vmatprep.subr.bf16.mxu0 0
  %2475 = vmatpush1.bf16.msra.mxu0 %v2437
  %2476 = vmatprep.subr.bf16.mxu0 0
  %2477 = vmatpush1.bf16.msra.mxu0 %v2438
  %2478 = vmatprep.subr.bf16.mxu0 0
  %2479 = vmatpush1.bf16.msra.mxu0 %v2439
  %2480 = vmatprep.subr.bf16.mxu0 0
  %2481 = vmatpush1.bf16.msra.mxu0 %v2413
  %2482 = vmatprep.subr.bf16.mxu0 0
  %2483 = vmatpush1.bf16.msra.mxu0 %v2415
  %2484 = vmatprep.subr.bf16.mxu0 0
  %2485 = vmatpush1.bf16.msra.mxu0 %v2417
  %2486 = vmatprep.subr.bf16.mxu0 0
  %2487 = vmatpush1.bf16.msra.mxu0 %v2419
  %2488 = vmatprep.subr.bf16.mxu0 0
  %2489 = vmatpush1.bf16.msra.mxu0 %v2421
  %2490 = vmatprep.subr.bf16.mxu0 0
  %2491 = vmatpush1.bf16.msra.mxu0 %v2423
  %2492 = vmatprep.subr.bf16.mxu0 0
  %2493 = vmatpush1.bf16.msra.mxu0 %v2425
  %2494 = vmatprep.subr.bf16.mxu0 0
  %2495 = vmatpush1.bf16.msra.mxu0 %v2427
  %2496 = vmatprep.mubr.bf16.mxu0 %v2345
  %2497 = vmatmul.mubr.bf16.gmra.mrb[0].mxu0 %v2344
  %v2498 = vpop.f32.mrb[0].mxu0
  %v2499 = vadd.f32 %v2307, %v2498
  %v2500 = vpop.f32.mrb[0].mxu0
  %v2501 = vpop.f32.mrb[0].mxu0
  %v2502 = vadd.f32 %v2312, %v2501
  %v2503 = vpop.f32.mrb[0].mxu0
  %2504 = vmatprep.mubr.bf16.mxu0 %v2348
  %2505 = vmatmul.mubr.bf16.gmra.mrb[0].mxu0 %v2347
  %v2506 = vpop.f32.mrb[0].mxu0
  %v2507 = vadd.f32 %v2317, %v2506
  %v2508 = vpop.f32.mrb[0].mxu0
  %v2509 = vpop.f32.mrb[0].mxu0
  %v2510 = vadd.f32 %v2322, %v2509
  %v2511 = vpop.f32.mrb[0].mxu0
  %2512 = vdwg.mxu0
  %2513 = vmatprep.subr.bf16.mxu0 0
  %2514 = vmatpush1.bf16.msra.mxu0 %v2429
  %2515 = vmatprep.subr.bf16.mxu0 0
  %2516 = vmatpush1.bf16.msra.mxu0 %v2431
  %2517 = vmatprep.subr.bf16.mxu0 0
  %2518 = vmatpush1.bf16.msra.mxu0 0
  %2519 = vmatprep.subr.bf16.mxu0 0
  %2520 = vmatpush1.bf16.msra.mxu0 0
  %2521 = vmatprep.subr.bf16.mxu0 0
  %2522 = vmatpush1.bf16.msra.mxu0 0
  %2523 = vmatprep.subr.bf16.mxu0 0
  %2524 = vmatpush1.bf16.msra.mxu0 0
  %2525 = vmatprep.subr.bf16.mxu0 0
  %2526 = vmatpush1.bf16.msra.mxu0 0
  %2527 = vmatprep.subr.bf16.mxu0 0
  %2528 = vmatpush1.bf16.msra.mxu0 0
  %2529 = vmatprep.subr.bf16.mxu0 0
  %2530 = vmatpush1.bf16.msra.mxu0 0
  %2531 = vmatprep.subr.bf16.mxu0 0
  %2532 = vmatpush1.bf16.msra.mxu0 0
  %2533 = vmatprep.subr.bf16.mxu0 0
  %2534 = vmatpush1.bf16.msra.mxu0 0
  %2535 = vmatprep.subr.bf16.mxu0 0
  %2536 = vmatpush1.bf16.msra.mxu0 0
  %2537 = vmatprep.subr.bf16.mxu0 0
  %2538 = vmatpush1.bf16.msra.mxu0 0
  %2539 = vmatprep.subr.bf16.mxu0 0
  %2540 = vmatpush1.bf16.msra.mxu0 0
  %2541 = vmatprep.subr.bf16.mxu0 0
  %2542 = vmatpush1.bf16.msra.mxu0 0
  %2543 = vmatprep.subr.bf16.mxu0 0
  %2544 = vmatpush1.bf16.msra.mxu0 0
  %2545 = vmatprep.mubr.bf16.mxu0 0
  %2546 = vmatmul.mubr.bf16.gmra.mrb[0].mxu0 %v2459
  %v2547 = vpop.f32.mrb[0].mxu0
  %v2548 = vadd.f32 %v2499, %v2547
  %v2549 = vpop.f32.mrb[0].mxu0
  %v2550 = vpop.f32.mrb[0].mxu0
  %v2551 = vadd.f32 %v2502, %v2550
  %v2552 = vpop.f32.mrb[0].mxu0
  %2553 = vmatprep.mubr.bf16.mxu0 0
  %2554 = vmatmul.mubr.bf16.gmra.mrb[0].mxu0 %v2462
  %v2555 = vpop.f32.mrb[0].mxu0
  %v2556 = vadd.f32 %v2507, %v2555
  %v2557 = vpop.f32.mrb[0].mxu0
  %v2558 = vpop.f32.mrb[0].mxu0
  %v2559 = vadd.f32 %v2510, %v2558
  %v2560 = vpop.f32.mrb[0].mxu0
  %2561 = vdwg.mxu0
  %v2562 = vmax.f32 %v2548, 0.0
  %v2563 = vmax.f32 %v2551, 0.0
  %v2564 = vmax.f32 %v2556, 0.0
  %v2565 = vmax.f32 %v2559, 0.0
  %v2566 = vmul.f32 %v1153, %v2562
  %v2567 = vmul.f32 %v1153, %v2563
  %v2568 = vmul.f32 %v1153, %v2564
  %v2569 = vmul.f32 %v1153, %v2565
  %2570 = vst.msk [vmem:[%s14 + $0x8] sm:$0xff] %vm469, %v2566
  %2571 = vst.msk [vmem:[%s14 + $0x20] sm:$0xff] %vm469, %v2567
  %2572 = vst.msk [vmem:[%s14 + $0x38] sm:$0xff] %vm469, %v2568
  %2573 = vst.msk [vmem:[%s14 + $0x50] sm:$0xff] %vm469, %v2569
  %v2574 = vld [vmem:[%s14] sm:$0xff]
  %v2575 = vld [vmem:[%s14 + $0x8] sm:$0xff]
  %v2576 = vld [vmem:[%s14 + $0x18] sm:$0xff]
  %v2577 = vld [vmem:[%s14 + $0x20] sm:$0xff]
  %v2578 = vld [vmem:[%s14 + $0x30] sm:$0xff]
  %v2579 = vld [vmem:[%s14 + $0x38] sm:$0xff]
  %v2580 = vld [vmem:[%s14 + $0x48] sm:$0xff]
  %v2581 = vld [vmem:[%s14 + $0x50] sm:$0xff]
  %2590 = vrot.lane.b32.xlu0 %v2574, 127
  %v2591 = vpop.permute.xlu0 %2590
  %2592 = vrot.lane.b32.xlu0 %v2575, 127
  %v2593 = vpop.permute.xlu0 %2592
  %2594 = vrot.lane.b32.xlu0 %v2576, 127
  %v2595 = vpop.permute.xlu0 %2594
  %2596 = vrot.lane.b32.xlu0 %v2577, 127
  %v2597 = vpop.permute.xlu0 %2596
  %2598 = vrot.lane.b32.xlu0 %v2578, 127
  %v2599 = vpop.permute.xlu0 %2598
  %2600 = vrot.lane.b32.xlu0 %v2579, 127
  %v2601 = vpop.permute.xlu0 %2600
  %2602 = vrot.lane.b32.xlu0 %v2580, 127
  %v2603 = vpop.permute.xlu0 %2602
  %2604 = vrot.lane.b32.xlu0 %v2581, 127
  %v2605 = vpop.permute.xlu0 %2604
  %v2606 = vsel %vm72, %v2591, %v2593
  %v2607 = vsel %vm72, %v2595, %v2597
  %v2608 = vsel %vm72, %v2599, %v2601
  %v2609 = vsel %vm72, %v2603, %v2605
  %2618 = vrot.lane.b32.xlu0 %v2574, 126
  %v2619 = vpop.permute.xlu0 %2618
  %2620 = vrot.lane.b32.xlu0 %v2575, 126
  %v2621 = vpop.permute.xlu0 %2620
  %2622 = vrot.lane.b32.xlu0 %v2576, 126
  %v2623 = vpop.permute.xlu0 %2622
  %2624 = vrot.lane.b32.xlu0 %v2577, 126
  %v2625 = vpop.permute.xlu0 %2624
  %2626 = vrot.lane.b32.xlu0 %v2578, 126
  %v2627 = vpop.permute.xlu0 %2626
  %2628 = vrot.lane.b32.xlu0 %v2579, 126
  %v2629 = vpop.permute.xlu0 %2628
  %2630 = vrot.lane.b32.xlu0 %v2580, 126
  %v2631 = vpop.permute.xlu0 %2630
  %2632 = vrot.lane.b32.xlu0 %v2581, 126
  %v2633 = vpop.permute.xlu0 %2632
  %v2634 = vsel %vm95, %v2619, %v2621
  %v2635 = vsel %vm95, %v2623, %v2625
  %v2636 = vsel %vm95, %v2627, %v2629
  %v2637 = vsel %vm95, %v2631, %v2633
  %2646 = vrot.lane.b32.xlu0 %v2574, 122
  %v2647 = vpop.permute.xlu0 %2646
  %2648 = vrot.lane.b32.xlu0 %v2575, 122
  %v2649 = vpop.permute.xlu0 %2648
  %2650 = vrot.lane.b32.xlu0 %v2576, 122
  %v2651 = vpop.permute.xlu0 %2650
  %2652 = vrot.lane.b32.xlu0 %v2577, 122
  %v2653 = vpop.permute.xlu0 %2652
  %2654 = vrot.lane.b32.xlu0 %v2578, 122
  %v2655 = vpop.permute.xlu0 %2654
  %2656 = vrot.lane.b32.xlu0 %v2579, 122
  %v2657 = vpop.permute.xlu0 %2656
  %2658 = vrot.lane.b32.xlu0 %v2580, 122
  %v2659 = vpop.permute.xlu0 %2658
  %2660 = vrot.lane.b32.xlu0 %v2581, 122
  %v2661 = vpop.permute.xlu0 %2660
  %v2662 = vsel %vm1251, %v2647, %v2649
  %v2663 = vsel %vm1251, %v2651, %v2653
  %v2664 = vsel %vm1251, %v2655, %v2657
  %v2665 = vsel %vm1251, %v2659, %v2661
  %2674 = vrot.lane.b32.xlu0 %v2575, 121
  %v2675 = vpop.permute.xlu0 %2674
  %2676 = vrot.lane.b32.xlu0 %v2577, 121
  %v2677 = vpop.permute.xlu0 %2676
  %2678 = vrot.lane.b32.xlu0 %v2579, 121
  %v2679 = vpop.permute.xlu0 %2678
  %2680 = vrot.lane.b32.xlu0 %v2581, 121
  %v2681 = vpop.permute.xlu0 %2680
  %2686 = vrot.lane.b32.xlu0 %v2575, 120
  %v2687 = vpop.permute.xlu0 %2686
  %2688 = vrot.lane.b32.xlu0 %v2577, 120
  %v2689 = vpop.permute.xlu0 %2688
  %2690 = vrot.lane.b32.xlu0 %v2579, 120
  %v2691 = vpop.permute.xlu0 %2690
  %2692 = vrot.lane.b32.xlu0 %v2581, 120
  %v2693 = vpop.permute.xlu0 %2692
  %2698 = vrot.lane.b32.xlu0 %v2575, 116
  %v2699 = vpop.permute.xlu0 %2698
  %2700 = vrot.lane.b32.xlu0 %v2577, 116
  %v2701 = vpop.permute.xlu0 %2700
  %2702 = vrot.lane.b32.xlu0 %v2579, 116
  %v2703 = vpop.permute.xlu0 %2702
  %2704 = vrot.lane.b32.xlu0 %v2581, 116
  %v2705 = vpop.permute.xlu0 %2704
  %2710 = vrot.lane.b32.xlu0 %v2575, 115
  %v2711 = vpop.permute.xlu0 %2710
  %2712 = vrot.lane.b32.xlu0 %v2577, 115
  %v2713 = vpop.permute.xlu0 %2712
  %2714 = vrot.lane.b32.xlu0 %v2579, 115
  %v2715 = vpop.permute.xlu0 %2714
  %2716 = vrot.lane.b32.xlu0 %v2581, 115
  %v2717 = vpop.permute.xlu0 %2716
  %2722 = vrot.lane.b32.xlu0 %v2575, 114
  %v2723 = vpop.permute.xlu0 %2722
  %2724 = vrot.lane.b32.xlu0 %v2577, 114
  %v2725 = vpop.permute.xlu0 %2724
  %2726 = vrot.lane.b32.xlu0 %v2579, 114
  %v2727 = vpop.permute.xlu0 %2726
  %2728 = vrot.lane.b32.xlu0 %v2581, 114
  %v2729 = vpop.permute.xlu0 %2728
  %v2734 = vpack.c.bf16 %v2576, %v2574
  %v2735 = vpack.c.bf16 %v2577, %v2575
  %v2736 = vpack.c.bf16 %v2580, %v2578
  %v2737 = vpack.c.bf16 %v2581, %v2579
  %v2738 = vpack.c.bf16 %v2607, %v2606
  %v2739 = vpack.c.bf16 %v2597, %v2593
  %v2740 = vpack.c.bf16 %v2609, %v2608
  %v2741 = vpack.c.bf16 %v2605, %v2601
  %v2742 = vpack.c.bf16 %v2635, %v2634
  %v2743 = vpack.c.bf16 %v2625, %v2621
  %v2744 = vpack.c.bf16 %v2637, %v2636
  %v2745 = vpack.c.bf16 %v2633, %v2629
  %v2746 = vpack.c.bf16 %v2663, %v2662
  %v2747 = vpack.c.bf16 %v2653, %v2649
  %v2748 = vpack.c.bf16 %v2665, %v2664
  %v2749 = vpack.c.bf16 %v2661, %v2657
  %v2750 = vpack.c.bf16 %v2677, %v2675
  %v2751 = vpack.c.bf16 %v2681, %v2679
  %v2752 = vpack.c.bf16 %v2689, %v2687
  %v2753 = vpack.c.bf16 %v2693, %v2691
  %v2754 = vpack.c.bf16 %v2701, %v2699
  %v2755 = vpack.c.bf16 %v2705, %v2703
  %v2756 = vpack.c.bf16 %v2713, %v2711
  %v2757 = vpack.c.bf16 %v2717, %v2715
  %v2758 = vpack.c.bf16 %v2725, %v2723
  %v2759 = vpack.c.bf16 %v2729, %v2727
  %v2760 = vld [vmem:[%s11] sm:$0xff]
  %v2761 = vld [vmem:[%s11 + $0x8] sm:$0xf]
  %v2762 = vld [vmem:[%s11 + $0xc] sm:$0xff]
  %v2763 = vld [vmem:[%s11 + $0x14] sm:$0xf]
  %v2764 = vld [vmem:[%s11 + $0x18] sm:$0xff]
  %v2765 = vld [vmem:[%s11 + $0x20] sm:$0xf]
  %v2766 = vld [vmem:[%s11 + $0x24] sm:$0xff]
  %v2767 = vld [vmem:[%s11 + $0x2c] sm:$0xf]
  %v2768 = vld [vmem:[%s12] sm:$0xff]
  %v2769 = vld [vmem:[%s12 + $0x8] sm:$0xff]
  %v2770 = vld [vmem:[%s12 + $0x10] sm:$0xff]
  %v2771 = vld [vmem:[%s12 + $0x18] sm:$0xff]
  %2773 = vset.pattern.permute.xlu0 0
  %2774 = vperm.xlu0 %2773, %v2768
  %v2775 = vpop.permute.xlu0 %2774
  %2778 = vset.pattern.permute.xlu0 0
  %2779 = vperm.xlu0 %2778, %v2769
  %v2780 = vpop.permute.xlu0 %2779
  %2783 = vset.pattern.permute.xlu0 0
  %2784 = vperm.xlu0 %2783, %v2770
  %v2785 = vpop.permute.xlu0 %2784
  %2788 = vset.pattern.permute.xlu0 0
  %2789 = vperm.xlu0 %2788, %v2771
  %v2790 = vpop.permute.xlu0 %2789
  %v2800 = vunpack.c.l.b16 %v2760
  %v2801 = vunpack.c.h.b16 %v2760
  %v2802 = vunpack.c.l.b16 %v2761
  %v2803 = vunpack.c.l.b16 %v2762
  %v2804 = vunpack.c.h.b16 %v2762
  %v2805 = vunpack.c.l.b16 %v2763
  %v2806 = vunpack.c.l.b16 %v2764
  %v2807 = vunpack.c.h.b16 %v2764
  %v2808 = vunpack.c.l.b16 %v2765
  %v2809 = vunpack.c.l.b16 %v2766
  %v2810 = vunpack.c.h.b16 %v2766
  %v2811 = vunpack.c.l.b16 %v2767
  %v2812 = vpack.c.b16 %v2803, %v2800
  %v2813 = vpack.c.b16 %v2804, %v2801
  %v2814 = vpack.c.b16 %v2805, %v2802
  %v2815 = vpack.c.b16 %v2809, %v2806
  %v2816 = vpack.c.b16 %v2810, %v2807
  %v2817 = vpack.c.b16 %v2811, %v2808
  %2848 = vrot.lane.b32.xlu0 %v2734, 7
  %v2849 = vpop.permute.xlu0 %2848
  %2850 = vrot.lane.b32.xlu0 %v2735, 7
  %v2851 = vpop.permute.xlu0 %2850
  %2852 = vrot.lane.b32.xlu0 %v2736, 7
  %v2853 = vpop.permute.xlu0 %2852
  %2854 = vrot.lane.b32.xlu0 %v2737, 7
  %v2855 = vpop.permute.xlu0 %2854
  %2856 = vrot.lane.b32.xlu0 %v2738, 7
  %v2857 = vpop.permute.xlu0 %2856
  %2858 = vrot.lane.b32.xlu0 %v2739, 7
  %v2859 = vpop.permute.xlu0 %2858
  %2860 = vrot.lane.b32.xlu0 %v2740, 7
  %v2861 = vpop.permute.xlu0 %2860
  %2862 = vrot.lane.b32.xlu0 %v2741, 7
  %v2863 = vpop.permute.xlu0 %2862
  %2864 = vrot.lane.b32.xlu0 %v2742, 7
  %v2865 = vpop.permute.xlu0 %2864
  %2866 = vrot.lane.b32.xlu0 %v2743, 7
  %v2867 = vpop.permute.xlu0 %2866
  %2868 = vrot.lane.b32.xlu0 %v2744, 7
  %v2869 = vpop.permute.xlu0 %2868
  %2870 = vrot.lane.b32.xlu0 %v2745, 7
  %v2871 = vpop.permute.xlu0 %2870
  %2872 = vrot.lane.b32.xlu0 %v2746, 7
  %v2873 = vpop.permute.xlu0 %2872
  %2874 = vrot.lane.b32.xlu0 %v2747, 7
  %v2875 = vpop.permute.xlu0 %2874
  %2876 = vrot.lane.b32.xlu0 %v2748, 7
  %v2877 = vpop.permute.xlu0 %2876
  %2878 = vrot.lane.b32.xlu0 %v2749, 7
  %v2879 = vpop.permute.xlu0 %2878
  %2880 = vrot.lane.b32.xlu0 %v2750, 7
  %v2881 = vpop.permute.xlu0 %2880
  %2882 = vrot.lane.b32.xlu0 %v2751, 7
  %v2883 = vpop.permute.xlu0 %2882
  %2884 = vrot.lane.b32.xlu0 %v2752, 7
  %v2885 = vpop.permute.xlu0 %2884
  %2886 = vrot.lane.b32.xlu0 %v2753, 7
  %v2887 = vpop.permute.xlu0 %2886
  %2888 = vrot.lane.b32.xlu0 %v2754, 7
  %v2889 = vpop.permute.xlu0 %2888
  %2890 = vrot.lane.b32.xlu0 %v2755, 7
  %v2891 = vpop.permute.xlu0 %2890
  %2892 = vrot.lane.b32.xlu0 %v2756, 7
  %v2893 = vpop.permute.xlu0 %2892
  %2894 = vrot.lane.b32.xlu0 %v2757, 7
  %v2895 = vpop.permute.xlu0 %2894
  %2896 = vrot.lane.b32.xlu0 %v2758, 7
  %v2897 = vpop.permute.xlu0 %2896
  %2898 = vrot.lane.b32.xlu0 %v2759, 7
  %v2899 = vpop.permute.xlu0 %2898
  %v2900 = vsel %vm1490, %v2849, %v2851
  %v2901 = vsel %vm1490, %v2853, %v2855
  %v2902 = vsel %vm1490, %v2857, %v2859
  %v2903 = vsel %vm1490, %v2861, %v2863
  %v2904 = vsel %vm1490, %v2865, %v2867
  %v2905 = vsel %vm1490, %v2869, %v2871
  %v2906 = vsel %vm1490, %v2873, %v2875
  %v2907 = vsel %vm1490, %v2877, %v2879
  %v2927 = vsel %vm1517, %v2814, 0
  %v2930 = vsel %vm1517, %v2817, 0
  %2932 = vmatprep.subr.bf16.mxu0 0
  %2933 = vmatpush1.bf16.msra.mxu0 %v2900
  %2934 = vmatprep.subr.bf16.mxu0 0
  %2935 = vmatpush1.bf16.msra.mxu0 %v2901
  %2936 = vmatprep.subr.bf16.mxu0 0
  %2937 = vmatpush1.bf16.msra.mxu0 %v2902
  %2938 = vmatprep.subr.bf16.mxu0 0
  %2939 = vmatpush1.bf16.msra.mxu0 %v2903
  %2940 = vmatprep.subr.bf16.mxu0 0
  %2941 = vmatpush1.bf16.msra.mxu0 %v2904
  %2942 = vmatprep.subr.bf16.mxu0 0
  %2943 = vmatpush1.bf16.msra.mxu0 %v2905
  %2944 = vmatprep.subr.bf16.mxu0 0
  %2945 = vmatpush1.bf16.msra.mxu0 %v2906
  %2946 = vmatprep.subr.bf16.mxu0 0
  %2947 = vmatpush1.bf16.msra.mxu0 %v2907
  %2948 = vmatprep.subr.bf16.mxu0 0
  %2949 = vmatpush1.bf16.msra.mxu0 %v2881
  %2950 = vmatprep.subr.bf16.mxu0 0
  %2951 = vmatpush1.bf16.msra.mxu0 %v2883
  %2952 = vmatprep.subr.bf16.mxu0 0
  %2953 = vmatpush1.bf16.msra.mxu0 %v2885
  %2954 = vmatprep.subr.bf16.mxu0 0
  %2955 = vmatpush1.bf16.msra.mxu0 %v2887
  %2956 = vmatprep.subr.bf16.mxu0 0
  %2957 = vmatpush1.bf16.msra.mxu0 %v2889
  %2958 = vmatprep.subr.bf16.mxu0 0
  %2959 = vmatpush1.bf16.msra.mxu0 %v2891
  %2960 = vmatprep.subr.bf16.mxu0 0
  %2961 = vmatpush1.bf16.msra.mxu0 %v2893
  %2962 = vmatprep.subr.bf16.mxu0 0
  %2963 = vmatpush1.bf16.msra.mxu0 %v2895
  %2964 = vmatprep.mubr.bf16.mxu0 %v2813
  %2965 = vmatmul.mubr.bf16.gmra.mrb[0].mxu0 %v2812
  %v2966 = vpop.f32.mrb[0].mxu0
  %v2967 = vadd.f32 %v2775, %v2966
  %v2968 = vpop.f32.mrb[0].mxu0
  %v2969 = vpop.f32.mrb[0].mxu0
  %v2970 = vadd.f32 %v2780, %v2969
  %v2971 = vpop.f32.mrb[0].mxu0
  %2972 = vmatprep.mubr.bf16.mxu0 %v2816
  %2973 = vmatmul.mubr.bf16.gmra.mrb[0].mxu0 %v2815
  %v2974 = vpop.f32.mrb[0].mxu0
  %v2975 = vadd.f32 %v2785, %v2974
  %v2976 = vpop.f32.mrb[0].mxu0
  %v2977 = vpop.f32.mrb[0].mxu0
  %v2978 = vadd.f32 %v2790, %v2977
  %v2979 = vpop.f32.mrb[0].mxu0
  %2980 = vdwg.mxu0
  %2981 = vmatprep.subr.bf16.mxu0 0
  %2982 = vmatpush1.bf16.msra.mxu0 %v2897
  %2983 = vmatprep.subr.bf16.mxu0 0
  %2984 = vmatpush1.bf16.msra.mxu0 %v2899
  %2985 = vmatprep.subr.bf16.mxu0 0
  %2986 = vmatpush1.bf16.msra.mxu0 0
  %2987 = vmatprep.subr.bf16.mxu0 0
  %2988 = vmatpush1.bf16.msra.mxu0 0
  %2989 = vmatprep.subr.bf16.mxu0 0
  %2990 = vmatpush1.bf16.msra.mxu0 0
  %2991 = vmatprep.subr.bf16.mxu0 0
  %2992 = vmatpush1.bf16.msra.mxu0 0
  %2993 = vmatprep.subr.bf16.mxu0 0
  %2994 = vmatpush1.bf16.msra.mxu0 0
  %2995 = vmatprep.subr.bf16.mxu0 0
  %2996 = vmatpush1.bf16.msra.mxu0 0
  %2997 = vmatprep.subr.bf16.mxu0 0
  %2998 = vmatpush1.bf16.msra.mxu0 0
  %2999 = vmatprep.subr.bf16.mxu0 0
  %3000 = vmatpush1.bf16.msra.mxu0 0
  %3001 = vmatprep.subr.bf16.mxu0 0
  %3002 = vmatpush1.bf16.msra.mxu0 0
  %3003 = vmatprep.subr.bf16.mxu0 0
  %3004 = vmatpush1.bf16.msra.mxu0 0
  %3005 = vmatprep.subr.bf16.mxu0 0
  %3006 = vmatpush1.bf16.msra.mxu0 0
  %3007 = vmatprep.subr.bf16.mxu0 0
  %3008 = vmatpush1.bf16.msra.mxu0 0
  %3009 = vmatprep.subr.bf16.mxu0 0
  %3010 = vmatpush1.bf16.msra.mxu0 0
  %3011 = vmatprep.subr.bf16.mxu0 0
  %3012 = vmatpush1.bf16.msra.mxu0 0
  %3013 = vmatprep.mubr.bf16.mxu0 0
  %3014 = vmatmul.mubr.bf16.gmra.mrb[0].mxu0 %v2927
  %v3015 = vpop.f32.mrb[0].mxu0
  %v3016 = vadd.f32 %v2967, %v3015
  %v3017 = vpop.f32.mrb[0].mxu0
  %v3018 = vpop.f32.mrb[0].mxu0
  %v3019 = vadd.f32 %v2970, %v3018
  %v3020 = vpop.f32.mrb[0].mxu0
  %3021 = vmatprep.mubr.bf16.mxu0 0
  %3022 = vmatmul.mubr.bf16.gmra.mrb[0].mxu0 %v2930
  %v3023 = vpop.f32.mrb[0].mxu0
  %v3024 = vadd.f32 %v2975, %v3023
  %v3025 = vpop.f32.mrb[0].mxu0
  %v3026 = vpop.f32.mrb[0].mxu0
  %v3027 = vadd.f32 %v2978, %v3026
  %v3028 = vpop.f32.mrb[0].mxu0
  %3029 = vdwg.mxu0
  %v3030 = vadd.f32 %v3016, %v2090
  %v3031 = vadd.f32 %v3019, %v2091
  %v3032 = vadd.f32 %v3024, %v2092
  %v3033 = vadd.f32 %v3027, %v2093
  %v3034 = vmul.f32 %v1153, %v3030
  %v3035 = vmul.f32 %v1153, %v3031
  %v3036 = vmul.f32 %v1153, %v3032
  %v3037 = vmul.f32 %v1153, %v3033
  %3038 = vst.msk [vmem:[%s14 + $0x8] sm:$0xff] %vm469, %v3034
  %3039 = vst.msk [vmem:[%s14 + $0x20] sm:$0xff] %vm469, %v3035
  %3040 = vst.msk [vmem:[%s14 + $0x38] sm:$0xff] %vm469, %v3036
  %3041 = vst.msk [vmem:[%s14 + $0x50] sm:$0xff] %vm469, %v3037
  // Predicated region
  $region58: #{impala_policy_forward.5} parent=0 // pred_check
    _
  $region59: #{impala_policy_forward.5} parent=0 // pred_check_branch
    %3043 = sbr.rel (0) target = $region61
  $region60: #{impala_policy_forward.5} parent=0 // pred_region
    _
  $region61: #{impala_policy_forward.5} parent=0 // pred_fallthru
    _
  // Predicated region
  $region62: #{impala_policy_forward.5} parent=0 // pred_check
    _
  $region63: #{impala_policy_forward.5} parent=0 // pred_check_branch
    %3045 = sbr.rel (0) target = $region65
  $region64: #{impala_policy_forward.5} parent=0 // pred_region
    _
  $region65: #{impala_policy_forward.5} parent=0 // pred_fallthru
    _

// kernel: impala_policy_forward.4
$region0: #{impala_policy_forward.4}
  #allocation0 [shape = 'u32[]', space=smem, size = 0x4, offset = 0x4, fixed_abs, tag = 'smem constant byte address 0x4 - core index']
  #allocation1 [shape = 'u32[144,128]{1,0:T(1,128)}', space=vmem, size = 0x12000, scoped, tag = 'internal scratch']
  #allocation2 [shape = 'f32[16,904]{1,0:T(8,128)}', space=vmem, size = 0x10000, scoped, tag = 'scratch operand']
  %s0 = inlined_call_operand.vmem [shape: f32[8,904], index: 0, kind: input, shape index: {}]
  %s1 = inlined_call_operand.vmem [shape: bf16[16,72], index: 1, kind: input, shape index: {}]
  %s2 = inlined_call_operand.vmem [shape: f32[16,1], index: 2, kind: input, shape index: {}]
  %s3 = inlined_call_operand.vmem [shape: f32[1,648], index: 3, kind: input, shape index: {}]
  %s4 = inlined_call_operand.vmem [shape: bf16[648,200], index: 4, kind: input, shape index: {}]
  %s5 = inlined_call_operand.vmem [shape: bf16[16,144], index: 5, kind: input, shape index: {}]
  %s6 = inlined_call_operand.vmem [shape: f32[16,1], index: 6, kind: input, shape index: {}]
  %s7 = inlined_call_operand.vmem [shape: bf16[16,144], index: 7, kind: input, shape index: {}]
  %s8 = inlined_call_operand.vmem [shape: f32[16,1], index: 8, kind: input, shape index: {}]
  %s9 = inlined_call_operand.vmem [shape: bf16[16,144], index: 9, kind: input, shape index: {}]
  %s10 = inlined_call_operand.vmem [shape: f32[16,1], index: 10, kind: input, shape index: {}]
  %s11 = inlined_call_operand.vmem [shape: bf16[16,144], index: 11, kind: input, shape index: {}]
  %s12 = inlined_call_operand.vmem [shape: f32[16,1], index: 12, kind: input, shape index: {}]
  %s13 = inlined_call_operand.vmem [shape: f32[1,200], index: 13, kind: input, shape index: {}]
  %s14 = inlined_call_operand.vmem [shape: f32[16,456], index: 14, kind: output, shape index: {}]
  %s15 = sld [smem:[#allocation0]]
  $region66: #{impala_policy_forward.4} parent=0
    _
  %s17 = ssub.s32 1, %s15
  %s18 = scalar_select 0, %s17, %s15
  // Predicated region
  $region2: #{impala_policy_forward.4} parent=0 // pred_check
    _
  $region3: #{impala_policy_forward.4} parent=0 // pred_check_branch
    %20 = sbr.rel (0) target = $region5
  $region4: #{impala_policy_forward.4} parent=0 // pred_region
    _
  $region5: #{impala_policy_forward.4} parent=0 // pred_fallthru
    _
  // Predicated region
  $region6: #{impala_policy_forward.4} parent=0 // pred_check
    _
  $region7: #{impala_policy_forward.4} parent=0 // pred_check_branch
    %22 = sbr.rel (0) target = $region9
  $region8: #{impala_policy_forward.4} parent=0 // pred_region
    _
  $region9: #{impala_policy_forward.4} parent=0 // pred_fallthru
    _
  // Predicated region
  $region10: #{impala_policy_forward.4} parent=0 // pred_check
    _
  $region11: #{impala_policy_forward.4} parent=0 // pred_check_branch
    %24 = sbr.rel (0) target = $region13
  $region12: #{impala_policy_forward.4} parent=0 // pred_region
    _
  $region13: #{impala_policy_forward.4} parent=0 // pred_fallthru
    _
  // Predicated region
  $region14: #{impala_policy_forward.4} parent=0 // pred_check
    _
  $region15: #{impala_policy_forward.4} parent=0 // pred_check_branch
    %26 = sbr.rel (0) target = $region17
  $region16: #{impala_policy_forward.4} parent=0 // pred_region
    _
  $region17: #{impala_policy_forward.4} parent=0 // pred_fallthru
    _
  // Predicated region
  $region18: #{impala_policy_forward.4} parent=0 // pred_check
    _
  $region19: #{impala_policy_forward.4} parent=0 // pred_check_branch
    %28 = sbr.rel (0) target = $region21
  $region20: #{impala_policy_forward.4} parent=0 // pred_region
    _
  $region21: #{impala_policy_forward.4} parent=0 // pred_fallthru
    _
  // Predicated region
  $region22: #{impala_policy_forward.4} parent=0 // pred_check
    _
  $region23: #{impala_policy_forward.4} parent=0 // pred_check_branch
    %30 = sbr.rel (0) target = $region25
  $region24: #{impala_policy_forward.4} parent=0 // pred_region
    _
  $region25: #{impala_policy_forward.4} parent=0 // pred_fallthru
    _
  // Predicated region
  $region26: #{impala_policy_forward.4} parent=0 // pred_check
    _
  $region27: #{impala_policy_forward.4} parent=0 // pred_check_branch
    %32 = sbr.rel (0) target = $region29
  $region28: #{impala_policy_forward.4} parent=0 // pred_region
    _
  $region29: #{impala_policy_forward.4} parent=0 // pred_fallthru
    _
  // Predicated region
  $region30: #{impala_policy_forward.4} parent=0 // pred_check
    _
  $region31: #{impala_policy_forward.4} parent=0 // pred_check_branch
    %34 = sbr.rel (0) target = $region33
  $region32: #{impala_policy_forward.4} parent=0 // pred_region
    _
  $region33: #{impala_policy_forward.4} parent=0 // pred_fallthru
    _
  // Predicated region
  $region34: #{impala_policy_forward.4} parent=0 // pred_check
    _
  $region35: #{impala_policy_forward.4} parent=0 // pred_check_branch
    %36 = sbr.rel (0) target = $region37
  $region36: #{impala_policy_forward.4} parent=0 // pred_region
    _
  $region37: #{impala_policy_forward.4} parent=0 // pred_fallthru
    _
  // Predicated region
  $region38: #{impala_policy_forward.4} parent=0 // pred_check
    _
  $region39: #{impala_policy_forward.4} parent=0 // pred_check_branch
    %38 = sbr.rel (0) target = $region41
  $region40: #{impala_policy_forward.4} parent=0 // pred_region
    _
  $region41: #{impala_policy_forward.4} parent=0 // pred_fallthru
    _
  // Predicated region
  $region42: #{impala_policy_forward.4} parent=0 // pred_check
    _
  $region43: #{impala_policy_forward.4} parent=0 // pred_check_branch
    %40 = sbr.rel (0) target = $region45
  $region44: #{impala_policy_forward.4} parent=0 // pred_region
    _
  $region45: #{impala_policy_forward.4} parent=0 // pred_fallthru
    _
  // Predicated region
  $region46: #{impala_policy_forward.4} parent=0 // pred_check
    _
  $region47: #{impala_policy_forward.4} parent=0 // pred_check_branch
    %42 = sbr.rel (0) target = $region49
  $region48: #{impala_policy_forward.4} parent=0 // pred_region
    _
  $region49: #{impala_policy_forward.4} parent=0 // pred_fallthru
    _
  // Predicated region
  $region50: #{impala_policy_forward.4} parent=0 // pred_check
    _
  $region51: #{impala_policy_forward.4} parent=0 // pred_check_branch
    %44 = sbr.rel (0) target = $region53
  $region52: #{impala_policy_forward.4} parent=0 // pred_region
    _
  $region53: #{impala_policy_forward.4} parent=0 // pred_fallthru
    _
  // Predicated region
  $region54: #{impala_policy_forward.4} parent=0 // pred_check
    _
  $region55: #{impala_policy_forward.4} parent=0 // pred_check_branch
    %46 = sbr.rel (0) target = $region57
  $region56: #{impala_policy_forward.4} parent=0 // pred_region
    _
  $region57: #{impala_policy_forward.4} parent=0 // pred_fallthru
    _
  %v48 = vld [vmem:[%s0] sm:$0xff]
  %v49 = vld [vmem:[%s0 + $0x8] sm:$0xff]
  %v50 = vld [vmem:[%s0 + $0x10] sm:$0xff]
  %v51 = vld [vmem:[%s0 + $0x18] sm:$0xff]
  %v52 = vld [vmem:[%s0 + $0x20] sm:$0xff]
  %v53 = vld [vmem:[%s0 + $0x28] sm:$0xff]
  %v54 = vld [vmem:[%s0 + $0x30] sm:$0xff]
  %61 = vrot.lane.b32.xlu0 %v48, 127
  %v62 = vpop.permute.xlu0 %61
  %63 = vrot.lane.b32.xlu0 %v49, 127
  %v64 = vpop.permute.xlu0 %63
  %65 = vrot.lane.b32.xlu0 %v50, 127
  %v66 = vpop.permute.xlu0 %65
  %67 = vrot.lane.b32.xlu0 %v51, 127
  %v68 = vpop.permute.xlu0 %67
  %69 = vrot.lane.b32.xlu0 %v52, 127
  %v70 = vpop.permute.xlu0 %69
  %71 = vrot.lane.b32.xlu0 %v53, 127
  %v72 = vpop.permute.xlu0 %71
  %vm73 = vcmask 1039360
  %v74 = vsel %vm73, %v62, %v64
  %v75 = vsel %vm73, %v64, %v66
  %v76 = vsel %vm73, %v66, %v68
  %v77 = vsel %vm73, %v68, %v70
  %v78 = vsel %vm73, %v70, %v72
  %85 = vrot.lane.b32.xlu0 %v48, 126
  %v86 = vpop.permute.xlu0 %85
  %87 = vrot.lane.b32.xlu0 %v49, 126
  %v88 = vpop.permute.xlu0 %87
  %89 = vrot.lane.b32.xlu0 %v50, 126
  %v90 = vpop.permute.xlu0 %89
  %91 = vrot.lane.b32.xlu0 %v51, 126
  %v92 = vpop.permute.xlu0 %91
  %93 = vrot.lane.b32.xlu0 %v52, 126
  %v94 = vpop.permute.xlu0 %93
  %95 = vrot.lane.b32.xlu0 %v53, 126
  %v96 = vpop.permute.xlu0 %95
  %vm97 = vcmask 1031168
  %v98 = vsel %vm97, %v86, %v88
  %v99 = vsel %vm97, %v88, %v90
  %v100 = vsel %vm97, %v90, %v92
  %v101 = vsel %vm97, %v92, %v94
  %v102 = vsel %vm97, %v94, %v96
  %110 = vrot.lane.b32.xlu0 %v48, 110
  %v111 = vpop.permute.xlu0 %110
  %112 = vrot.lane.b32.xlu0 %v49, 110
  %v113 = vpop.permute.xlu0 %112
  %114 = vrot.lane.b32.xlu0 %v50, 110
  %v115 = vpop.permute.xlu0 %114
  %116 = vrot.lane.b32.xlu0 %v51, 110
  %v117 = vpop.permute.xlu0 %116
  %118 = vrot.lane.b32.xlu0 %v52, 110
  %v119 = vpop.permute.xlu0 %118
  %120 = vrot.lane.b32.xlu0 %v53, 110
  %v121 = vpop.permute.xlu0 %120
  %122 = vrot.lane.b32.xlu0 %v54, 110
  %v123 = vpop.permute.xlu0 %122
  %vm124 = vcmask 900096
  %v125 = vsel %vm124, %v111, %v113
  %v126 = vsel %vm124, %v113, %v115
  %v127 = vsel %vm124, %v115, %v117
  %v128 = vsel %vm124, %v117, %v119
  %v129 = vsel %vm124, %v119, %v121
  %v130 = vsel %vm124, %v121, %v123
  %137 = vrot.lane.b32.xlu0 %v49, 109
  %v138 = vpop.permute.xlu0 %137
  %139 = vrot.lane.b32.xlu0 %v50, 109
  %v140 = vpop.permute.xlu0 %139
  %141 = vrot.lane.b32.xlu0 %v51, 109
  %v142 = vpop.permute.xlu0 %141
  %143 = vrot.lane.b32.xlu0 %v52, 109
  %v144 = vpop.permute.xlu0 %143
  %145 = vrot.lane.b32.xlu0 %v53, 109
  %v146 = vpop.permute.xlu0 %145
  %147 = vrot.lane.b32.xlu0 %v54, 109
  %v148 = vpop.permute.xlu0 %147
  %vm149 = vcmask 891904
  %v150 = vsel %vm149, %v138, %v140
  %v151 = vsel %vm149, %v140, %v142
  %v152 = vsel %vm149, %v142, %v144
  %v153 = vsel %vm149, %v144, %v146
  %v154 = vsel %vm149, %v146, %v148
  %161 = vrot.lane.b32.xlu0 %v49, 108
  %v162 = vpop.permute.xlu0 %161
  %163 = vrot.lane.b32.xlu0 %v50, 108
  %v164 = vpop.permute.xlu0 %163
  %165 = vrot.lane.b32.xlu0 %v51, 108
  %v166 = vpop.permute.xlu0 %165
  %167 = vrot.lane.b32.xlu0 %v52, 108
  %v168 = vpop.permute.xlu0 %167
  %169 = vrot.lane.b32.xlu0 %v53, 108
  %v170 = vpop.permute.xlu0 %169
  %171 = vrot.lane.b32.xlu0 %v54, 108
  %v172 = vpop.permute.xlu0 %171
  %vm173 = vcmask 883712
  %v174 = vsel %vm173, %v162, %v164
  %v175 = vsel %vm173, %v164, %v166
  %v176 = vsel %vm173, %v166, %v168
  %v177 = vsel %vm173, %v168, %v170
  %v178 = vsel %vm173, %v170, %v172
  %185 = vrot.lane.b32.xlu0 %v49, 92
  %v186 = vpop.permute.xlu0 %185
  %187 = vrot.lane.b32.xlu0 %v50, 92
  %v188 = vpop.permute.xlu0 %187
  %189 = vrot.lane.b32.xlu0 %v51, 92
  %v190 = vpop.permute.xlu0 %189
  %191 = vrot.lane.b32.xlu0 %v52, 92
  %v192 = vpop.permute.xlu0 %191
  %193 = vrot.lane.b32.xlu0 %v53, 92
  %v194 = vpop.permute.xlu0 %193
  %195 = vrot.lane.b32.xlu0 %v54, 92
  %v196 = vpop.permute.xlu0 %195
  %vm197 = vcmask 752640
  %v198 = vsel %vm197, %v186, %v188
  %v199 = vsel %vm197, %v188, %v190
  %v200 = vsel %vm197, %v190, %v192
  %v201 = vsel %vm197, %v192, %v194
  %v202 = vsel %vm197, %v194, %v196
  %209 = vrot.lane.b32.xlu0 %v49, 91
  %v210 = vpop.permute.xlu0 %209
  %211 = vrot.lane.b32.xlu0 %v50, 91
  %v212 = vpop.permute.xlu0 %211
  %213 = vrot.lane.b32.xlu0 %v51, 91
  %v214 = vpop.permute.xlu0 %213
  %215 = vrot.lane.b32.xlu0 %v52, 91
  %v216 = vpop.permute.xlu0 %215
  %217 = vrot.lane.b32.xlu0 %v53, 91
  %v218 = vpop.permute.xlu0 %217
  %219 = vrot.lane.b32.xlu0 %v54, 91
  %v220 = vpop.permute.xlu0 %219
  %vm221 = vcmask 744448
  %v222 = vsel %vm221, %v210, %v212
  %v223 = vsel %vm221, %v212, %v214
  %v224 = vsel %vm221, %v214, %v216
  %v225 = vsel %vm221, %v216, %v218
  %v226 = vsel %vm221, %v218, %v220
  %233 = vrot.lane.b32.xlu0 %v49, 90
  %v234 = vpop.permute.xlu0 %233
  %235 = vrot.lane.b32.xlu0 %v50, 90
  %v236 = vpop.permute.xlu0 %235
  %237 = vrot.lane.b32.xlu0 %v51, 90
  %v238 = vpop.permute.xlu0 %237
  %239 = vrot.lane.b32.xlu0 %v52, 90
  %v240 = vpop.permute.xlu0 %239
  %241 = vrot.lane.b32.xlu0 %v53, 90
  %v242 = vpop.permute.xlu0 %241
  %243 = vrot.lane.b32.xlu0 %v54, 90
  %v244 = vpop.permute.xlu0 %243
  %vm245 = vcmask 736256
  %v246 = vsel %vm245, %v234, %v236
  %v247 = vsel %vm245, %v236, %v238
  %v248 = vsel %vm245, %v238, %v240
  %v249 = vsel %vm245, %v240, %v242
  %v250 = vsel %vm245, %v242, %v244
  %v257 = vpack.c.bf16 %v74, %v48
  %v258 = vpack.c.bf16 %v75, %v49
  %v259 = vpack.c.bf16 %v76, %v50
  %v260 = vpack.c.bf16 %v77, %v51
  %v261 = vpack.c.bf16 %v78, %v52
  %v262 = vpack.c.bf16 %v72, %v53
  %v263 = vpack.c.bf16 %v125, %v98
  %v264 = vpack.c.bf16 %v126, %v99
  %v265 = vpack.c.bf16 %v127, %v100
  %v266 = vpack.c.bf16 %v128, %v101
  %v267 = vpack.c.bf16 %v129, %v102
  %v268 = vpack.c.bf16 %v130, %v96
  %v269 = vpack.c.bf16 %v162, %v138
  %v270 = vpack.c.bf16 %v174, %v150
  %v271 = vpack.c.bf16 %v175, %v151
  %v272 = vpack.c.bf16 %v176, %v152
  %v273 = vpack.c.bf16 %v177, %v153
  %v274 = vpack.c.bf16 %v178, %v154
  %v275 = vpack.c.bf16 %v210, %v186
  %v276 = vpack.c.bf16 %v222, %v198
  %v277 = vpack.c.bf16 %v223, %v199
  %v278 = vpack.c.bf16 %v224, %v200
  %v279 = vpack.c.bf16 %v225, %v201
  %v280 = vpack.c.bf16 %v226, %v202
  %v281 = vpack.c.bf16 %v234, %v234
  %v282 = vpack.c.bf16 %v246, %v246
  %v283 = vpack.c.bf16 %v247, %v247
  %v284 = vpack.c.bf16 %v248, %v248
  %v285 = vpack.c.bf16 %v249, %v249
  %v286 = vpack.c.bf16 %v250, %v250
  %v287 = vld [vmem:[%s1] sm:$0xf]
  %v288 = vld [vmem:[%s1 + $0x4] sm:$0xf]
  %v289 = vld [vmem:[%s2] sm:$0xff]
  %v290 = vld [vmem:[%s2 + $0x8] sm:$0xff]
  %292 = vset.pattern.permute.xlu0 0
  %293 = vperm.xlu0 %292, %v289
  %v294 = vpop.permute.xlu0 %293
  %297 = vset.pattern.permute.xlu0 0
  %298 = vperm.xlu0 %297, %v290
  %v299 = vpop.permute.xlu0 %298
  %v303 = vunpack.c.l.b16 %v287
  %v304 = vunpack.c.l.b16 %v288
  %v305 = vpack.c.b16 %v304, %v303
  %336 = vrot.lane.b32.xlu0 %v257, 19
  %v337 = vpop.permute.xlu0 %336
  %338 = vrot.lane.b32.xlu0 %v258, 19
  %v339 = vpop.permute.xlu0 %338
  %340 = vrot.lane.b32.xlu0 %v259, 19
  %v341 = vpop.permute.xlu0 %340
  %342 = vrot.lane.b32.xlu0 %v260, 19
  %v343 = vpop.permute.xlu0 %342
  %344 = vrot.lane.b32.xlu0 %v261, 19
  %v345 = vpop.permute.xlu0 %344
  %346 = vrot.lane.b32.xlu0 %v262, 19
  %v347 = vpop.permute.xlu0 %346
  %348 = vrot.lane.b32.xlu0 %v263, 19
  %v349 = vpop.permute.xlu0 %348
  %350 = vrot.lane.b32.xlu0 %v264, 19
  %v351 = vpop.permute.xlu0 %350
  %352 = vrot.lane.b32.xlu0 %v265, 19
  %v353 = vpop.permute.xlu0 %352
  %354 = vrot.lane.b32.xlu0 %v266, 19
  %v355 = vpop.permute.xlu0 %354
  %356 = vrot.lane.b32.xlu0 %v267, 19
  %v357 = vpop.permute.xlu0 %356
  %358 = vrot.lane.b32.xlu0 %v268, 19
  %v359 = vpop.permute.xlu0 %358
  %360 = vrot.lane.b32.xlu0 %v269, 19
  %v361 = vpop.permute.xlu0 %360
  %362 = vrot.lane.b32.xlu0 %v270, 19
  %v363 = vpop.permute.xlu0 %362
  %364 = vrot.lane.b32.xlu0 %v271, 19
  %v365 = vpop.permute.xlu0 %364
  %366 = vrot.lane.b32.xlu0 %v272, 19
  %v367 = vpop.permute.xlu0 %366
  %368 = vrot.lane.b32.xlu0 %v273, 19
  %v369 = vpop.permute.xlu0 %368
  %370 = vrot.lane.b32.xlu0 %v274, 19
  %v371 = vpop.permute.xlu0 %370
  %372 = vrot.lane.b32.xlu0 %v275, 19
  %v373 = vpop.permute.xlu0 %372
  %374 = vrot.lane.b32.xlu0 %v276, 19
  %v375 = vpop.permute.xlu0 %374
  %376 = vrot.lane.b32.xlu0 %v277, 19
  %v377 = vpop.permute.xlu0 %376
  %378 = vrot.lane.b32.xlu0 %v278, 19
  %v379 = vpop.permute.xlu0 %378
  %380 = vrot.lane.b32.xlu0 %v279, 19
  %v381 = vpop.permute.xlu0 %380
  %382 = vrot.lane.b32.xlu0 %v280, 19
  %v383 = vpop.permute.xlu0 %382
  %384 = vrot.lane.b32.xlu0 %v281, 19
  %v385 = vpop.permute.xlu0 %384
  %386 = vrot.lane.b32.xlu0 %v282, 19
  %v387 = vpop.permute.xlu0 %386
  %388 = vrot.lane.b32.xlu0 %v283, 19
  %v389 = vpop.permute.xlu0 %388
  %390 = vrot.lane.b32.xlu0 %v284, 19
  %v391 = vpop.permute.xlu0 %390
  %392 = vrot.lane.b32.xlu0 %v285, 19
  %v393 = vpop.permute.xlu0 %392
  %394 = vrot.lane.b32.xlu0 %v286, 19
  %v395 = vpop.permute.xlu0 %394
  %vm396 = vcmask 154624
  %v397 = vsel %vm396, %v337, %v339
  %v398 = vsel %vm396, %v339, %v341
  %v399 = vsel %vm396, %v341, %v343
  %v400 = vsel %vm396, %v343, %v345
  %v401 = vsel %vm396, %v345, %v347
  %v402 = vsel %vm396, %v349, %v351
  %v403 = vsel %vm396, %v351, %v353
  %v404 = vsel %vm396, %v353, %v355
  %v405 = vsel %vm396, %v355, %v357
  %v406 = vsel %vm396, %v357, %v359
  %v407 = vsel %vm396, %v361, %v363
  %v408 = vsel %vm396, %v363, %v365
  %v409 = vsel %vm396, %v365, %v367
  %v410 = vsel %vm396, %v367, %v369
  %v411 = vsel %vm396, %v369, %v371
  %v412 = vsel %vm396, %v373, %v375
  %v413 = vsel %vm396, %v375, %v377
  %v414 = vsel %vm396, %v377, %v379
  %v415 = vsel %vm396, %v379, %v381
  %v416 = vsel %vm396, %v381, %v383
  %v417 = vsel %vm396, %v385, %v387
  %v418 = vsel %vm396, %v387, %v389
  %v419 = vsel %vm396, %v389, %v391
  %v420 = vsel %vm396, %v391, %v393
  %v421 = vsel %vm396, %v393, %v395
  %vm446 = vcmask 588800
  %v448 = vsel %vm446, %v305, 0
  %vm450 = vcmask 1043456
  %v452 = vsel %vm450, %v417, 0
  %v455 = vsel %vm450, %v418, 0
  %v458 = vsel %vm450, %v419, 0
  %v461 = vsel %vm450, %v420, 0
  %v464 = vsel %vm450, %v421, 0
  %v467 = vsel %vm450, %v395, 0
  %469 = vmatprep.subr.bf16.mxu0 %v398
  %470 = vmatpush1.bf16.msra.mxu0 %v397
  %471 = vmatprep.subr.bf16.mxu0 %v403
  %472 = vmatpush1.bf16.msra.mxu0 %v402
  %473 = vmatprep.subr.bf16.mxu0 %v408
  %474 = vmatpush1.bf16.msra.mxu0 %v407
  %475 = vmatprep.subr.bf16.mxu0 %v413
  %476 = vmatpush1.bf16.msra.mxu0 %v412
  %477 = vmatprep.subr.bf16.mxu0 %v455
  %478 = vmatpush1.bf16.msra.mxu0 %v452
  %479 = vmatprep.subr.bf16.mxu0 0
  %480 = vmatpush1.bf16.msra.mxu0 0
  %481 = vmatprep.subr.bf16.mxu0 0
  %482 = vmatpush1.bf16.msra.mxu0 0
  %483 = vmatprep.subr.bf16.mxu0 0
  %484 = vmatpush1.bf16.msra.mxu0 0
  %485 = vmatprep.subr.bf16.mxu0 0
  %486 = vmatpush1.bf16.msra.mxu0 0
  %487 = vmatprep.subr.bf16.mxu0 0
  %488 = vmatpush1.bf16.msra.mxu0 0
  %489 = vmatprep.subr.bf16.mxu0 0
  %490 = vmatpush1.bf16.msra.mxu0 0
  %491 = vmatprep.subr.bf16.mxu0 0
  %492 = vmatpush1.bf16.msra.mxu0 0
  %493 = vmatprep.subr.bf16.mxu0 0
  %494 = vmatpush1.bf16.msra.mxu0 0
  %495 = vmatprep.subr.bf16.mxu0 0
  %496 = vmatpush1.bf16.msra.mxu0 0
  %497 = vmatprep.subr.bf16.mxu0 0
  %498 = vmatpush1.bf16.msra.mxu0 0
  %499 = vmatprep.subr.bf16.mxu0 0
  %500 = vmatpush1.bf16.msra.mxu0 0
  %501 = vmatprep.mubr.bf16.mxu0 0
  %502 = vmatmul.mubr.bf16.gmra.mrb[0].mxu0 %v448
  %v503 = vpop.f32.mrb[0].mxu0
  %v504 = vadd.f32 %v294, %v503
  %v505 = vpop.f32.mrb[0].mxu0
  %v506 = vadd.f32 %v294, %v505
  %v507 = vpop.f32.mrb[0].mxu0
  %v508 = vadd.f32 %v299, %v507
  %v509 = vpop.f32.mrb[0].mxu0
  %v510 = vadd.f32 %v299, %v509
  %511 = vdwg.mxu0
  %512 = vmatprep.subr.bf16.mxu0 %v400
  %513 = vmatpush1.bf16.msra.mxu0 %v399
  %514 = vmatprep.subr.bf16.mxu0 %v405
  %515 = vmatpush1.bf16.msra.mxu0 %v404
  %516 = vmatprep.subr.bf16.mxu0 %v410
  %517 = vmatpush1.bf16.msra.mxu0 %v409
  %518 = vmatprep.subr.bf16.mxu0 %v415
  %519 = vmatpush1.bf16.msra.mxu0 %v414
  %520 = vmatprep.subr.bf16.mxu0 %v461
  %521 = vmatpush1.bf16.msra.mxu0 %v458
  %522 = vmatprep.subr.bf16.mxu0 0
  %523 = vmatpush1.bf16.msra.mxu0 0
  %524 = vmatprep.subr.bf16.mxu0 0
  %525 = vmatpush1.bf16.msra.mxu0 0
  %526 = vmatprep.subr.bf16.mxu0 0
  %527 = vmatpush1.bf16.msra.mxu0 0
  %528 = vmatprep.subr.bf16.mxu0 0
  %529 = vmatpush1.bf16.msra.mxu0 0
  %530 = vmatprep.subr.bf16.mxu0 0
  %531 = vmatpush1.bf16.msra.mxu0 0
  %532 = vmatprep.subr.bf16.mxu0 0
  %533 = vmatpush1.bf16.msra.mxu0 0
  %534 = vmatprep.subr.bf16.mxu0 0
  %535 = vmatpush1.bf16.msra.mxu0 0
  %536 = vmatprep.subr.bf16.mxu0 0
  %537 = vmatpush1.bf16.msra.mxu0 0
  %538 = vmatprep.subr.bf16.mxu0 0
  %539 = vmatpush1.bf16.msra.mxu0 0
  %540 = vmatprep.subr.bf16.mxu0 0
  %541 = vmatpush1.bf16.msra.mxu0 0
  %542 = vmatprep.subr.bf16.mxu0 0
  %543 = vmatpush1.bf16.msra.mxu0 0
  %544 = vmatprep.mubr.bf16.mxu0 0
  %545 = vmatmul.mubr.bf16.gmra.mrb[0].mxu0 %v448
  %v546 = vpop.f32.mrb[0].mxu0
  %v547 = vadd.f32 %v294, %v546
  %v548 = vpop.f32.mrb[0].mxu0
  %v549 = vadd.f32 %v294, %v548
  %v550 = vpop.f32.mrb[0].mxu0
  %v551 = vadd.f32 %v299, %v550
  %v552 = vpop.f32.mrb[0].mxu0
  %v553 = vadd.f32 %v299, %v552
  %554 = vdwg.mxu0
  %555 = vmatprep.subr.bf16.mxu0 %v347
  %556 = vmatpush1.bf16.msra.mxu0 %v401
  %557 = vmatprep.subr.bf16.mxu0 %v359
  %558 = vmatpush1.bf16.msra.mxu0 %v406
  %559 = vmatprep.subr.bf16.mxu0 %v371
  %560 = vmatpush1.bf16.msra.mxu0 %v411
  %561 = vmatprep.subr.bf16.mxu0 %v383
  %562 = vmatpush1.bf16.msra.mxu0 %v416
  %563 = vmatprep.subr.bf16.mxu0 %v467
  %564 = vmatpush1.bf16.msra.mxu0 %v464
  %565 = vmatprep.subr.bf16.mxu0 0
  %566 = vmatpush1.bf16.msra.mxu0 0
  %567 = vmatprep.subr.bf16.mxu0 0
  %568 = vmatpush1.bf16.msra.mxu0 0
  %569 = vmatprep.subr.bf16.mxu0 0
  %570 = vmatpush1.bf16.msra.mxu0 0
  %571 = vmatprep.subr.bf16.mxu0 0
  %572 = vmatpush1.bf16.msra.mxu0 0
  %573 = vmatprep.subr.bf16.mxu0 0
  %574 = vmatpush1.bf16.msra.mxu0 0
  %575 = vmatprep.subr.bf16.mxu0 0
  %576 = vmatpush1.bf16.msra.mxu0 0
  %577 = vmatprep.subr.bf16.mxu0 0
  %578 = vmatpush1.bf16.msra.mxu0 0
  %579 = vmatprep.subr.bf16.mxu0 0
  %580 = vmatpush1.bf16.msra.mxu0 0
  %581 = vmatprep.subr.bf16.mxu0 0
  %582 = vmatpush1.bf16.msra.mxu0 0
  %583 = vmatprep.subr.bf16.mxu0 0
  %584 = vmatpush1.bf16.msra.mxu0 0
  %585 = vmatprep.subr.bf16.mxu0 0
  %586 = vmatpush1.bf16.msra.mxu0 0
  %587 = vmatprep.mubr.bf16.mxu0 0
  %588 = vmatmul.mubr.bf16.gmra.mrb[0].mxu0 %v448
  %v589 = vpop.f32.mrb[0].mxu0
  %v590 = vadd.f32 %v294, %v589
  %v591 = vpop.f32.mrb[0].mxu0
  %v592 = vadd.f32 %v294, %v591
  %v593 = vpop.f32.mrb[0].mxu0
  %v594 = vadd.f32 %v299, %v593
  %v595 = vpop.f32.mrb[0].mxu0
  %v596 = vadd.f32 %v299, %v595
  %597 = vdwg.mxu0
  %v598 = vld [vmem:[%s3] sm:$0x3f]
  %599 = vst [vmem:[#allocation2] sm:$0xff] 0.0
  %600 = vst [vmem:[#allocation2 + $0x8] sm:$0xff] 0.0
  %601 = vst [vmem:[#allocation2 + $0x10] sm:$0xff] 0.0
  %602 = vst [vmem:[#allocation2 + $0x18] sm:$0xff] 0.0
  %603 = vst [vmem:[#allocation2 + $0x20] sm:$0xff] 0.0
  %604 = vst [vmem:[#allocation2 + $0x28] sm:$0xff] 0.0
  %605 = vst [vmem:[#allocation2 + $0x30] sm:$0xff] 0.0
  %vm606 = vcmask 64512
  %607 = vst.msk [vmem:[#allocation2 + $0x38] sm:$0xff] %vm606, 0.0
  %608 = vst [vmem:[#allocation2 + $0x40] sm:$0xff] 0.0
  %609 = vst [vmem:[#allocation2 + $0x48] sm:$0xff] 0.0
  %610 = vst [vmem:[#allocation2 + $0x50] sm:$0xff] 0.0
  %611 = vst [vmem:[#allocation2 + $0x58] sm:$0xff] 0.0
  %612 = vst [vmem:[#allocation2 + $0x60] sm:$0xff] 0.0
  %613 = vst [vmem:[#allocation2 + $0x68] sm:$0xff] 0.0
  %614 = vst [vmem:[#allocation2 + $0x70] sm:$0xff] 0.0
  %615 = vst.msk [vmem:[#allocation2 + $0x78] sm:$0xff] %vm606, 0.0
  %v617 = vlaneseq
  %v618 = vshrl.u32 %v617, 7
  %v619 = vsub.s32 0, %v618
  %v620 = vrot.slane %v598, %v619
  %v621 = vlaneseq
  %v622 = vshrl.u32 %v621, 7
  %v623 = vsub.s32 1, %v622
  %v624 = vrot.slane %v598, %v623
  %v625 = vlaneseq
  %v626 = vshrl.u32 %v625, 7
  %v627 = vsub.s32 2, %v626
  %v628 = vrot.slane %v598, %v627
  %v629 = vlaneseq
  %v630 = vshrl.u32 %v629, 7
  %v631 = vsub.s32 3, %v630
  %v632 = vrot.slane %v598, %v631
  %v633 = vlaneseq
  %v634 = vshrl.u32 %v633, 7
  %v635 = vsub.s32 4, %v634
  %v636 = vrot.slane %v598, %v635
  %v637 = vlaneseq
  %v638 = vshrl.u32 %v637, 7
  %v639 = vsub.s32 5, %v638
  %v640 = vrot.slane %v598, %v639
  %v647 = vmul.f32 %v620, %v504
  %v648 = vmul.f32 %v624, %v506
  %v649 = vmul.f32 %v628, %v547
  %v650 = vmul.f32 %v632, %v549
  %v651 = vmul.f32 %v636, %v590
  %v652 = vmul.f32 %v640, %v592
  %v653 = vmul.f32 %v620, %v508
  %v654 = vmul.f32 %v624, %v510
  %v655 = vmul.f32 %v628, %v551
  %v656 = vmul.f32 %v632, %v553
  %v657 = vmul.f32 %v636, %v594
  %v658 = vmul.f32 %v640, %v596
  %v659 = vsub.f32 1.0, %v598
  %v660 = vmul.f32 %v659, -1e+30
  %v662 = vlaneseq
  %v663 = vshrl.u32 %v662, 7
  %v664 = vsub.s32 0, %v663
  %v665 = vrot.slane %v660, %v664
  %v666 = vlaneseq
  %v667 = vshrl.u32 %v666, 7
  %v668 = vsub.s32 1, %v667
  %v669 = vrot.slane %v660, %v668
  %v670 = vlaneseq
  %v671 = vshrl.u32 %v670, 7
  %v672 = vsub.s32 2, %v671
  %v673 = vrot.slane %v660, %v672
  %v674 = vlaneseq
  %v675 = vshrl.u32 %v674, 7
  %v676 = vsub.s32 3, %v675
  %v677 = vrot.slane %v660, %v676
  %v678 = vlaneseq
  %v679 = vshrl.u32 %v678, 7
  %v680 = vsub.s32 4, %v679
  %v681 = vrot.slane %v660, %v680
  %v682 = vlaneseq
  %v683 = vshrl.u32 %v682, 7
  %v684 = vsub.s32 5, %v683
  %v685 = vrot.slane %v660, %v684
  %v692 = vadd.f32 %v647, %v665
  %v693 = vadd.f32 %v648, %v669
  %v694 = vadd.f32 %v649, %v673
  %v695 = vadd.f32 %v650, %v677
  %v696 = vadd.f32 %v651, %v681
  %v697 = vadd.f32 %v652, %v685
  %v698 = vadd.f32 %v653, %v665
  %v699 = vadd.f32 %v654, %v669
  %v700 = vadd.f32 %v655, %v673
  %v701 = vadd.f32 %v656, %v677
  %v702 = vadd.f32 %v657, %v681
  %v703 = vadd.f32 %v658, %v685
  %704 = vst [vmem:[#allocation2 + $0x8] sm:$0xff] %v692
  %705 = vst [vmem:[#allocation2 + $0x10] sm:$0xff] %v693
  %706 = vst [vmem:[#allocation2 + $0x18] sm:$0xff] %v694
  %707 = vst [vmem:[#allocation2 + $0x20] sm:$0xff] %v695
  %708 = vst [vmem:[#allocation2 + $0x28] sm:$0xff] %v696
  %709 = vst.msk [vmem:[#allocation2 + $0x30] sm:$0xff] %vm606, %v697
  %710 = vst [vmem:[#allocation2 + $0x48] sm:$0xff] %v698
  %711 = vst [vmem:[#allocation2 + $0x50] sm:$0xff] %v699
  %712 = vst [vmem:[#allocation2 + $0x58] sm:$0xff] %v700
  %713 = vst [vmem:[#allocation2 + $0x60] sm:$0xff] %v701
  %714 = vst [vmem:[#allocation2 + $0x68] sm:$0xff] %v702
  %715 = vst.msk [vmem:[#allocation2 + $0x70] sm:$0xff] %vm606, %v703
  %v716 = vld [vmem:[#allocation2] sm:$0xff]
  %v717 = vld [vmem:[#allocation2 + $0x8] sm:$0xff]
  %v718 = vld [vmem:[#allocation2 + $0x10] sm:$0xff]
  %v719 = vld [vmem:[#allocation2 + $0x18] sm:$0xff]
  %v720 = vld [vmem:[#allocation2 + $0x20] sm:$0xff]
  %v721 = vld [vmem:[#allocation2 + $0x28] sm:$0xff]
  %v722 = vld [vmem:[#allocation2 + $0x40] sm:$0xff]
  %v723 = vld [vmem:[#allocation2 + $0x48] sm:$0xff]
  %v724 = vld [vmem:[#allocation2 + $0x50] sm:$0xff]
  %v725 = vld [vmem:[#allocation2 + $0x58] sm:$0xff]
  %v726 = vld [vmem:[#allocation2 + $0x60] sm:$0xff]
  %v727 = vld [vmem:[#allocation2 + $0x68] sm:$0xff]
  %740 = vrot.lane.b32.xlu0 %v716, 127
  %v741 = vpop.permute.xlu0 %740
  %742 = vrot.lane.b32.xlu0 %v717, 127
  %v743 = vpop.permute.xlu0 %742
  %744 = vrot.lane.b32.xlu0 %v718, 127
  %v745 = vpop.permute.xlu0 %744
  %746 = vrot.lane.b32.xlu0 %v719, 127
  %v747 = vpop.permute.xlu0 %746
  %748 = vrot.lane.b32.xlu0 %v720, 127
  %v749 = vpop.permute.xlu0 %748
  %750 = vrot.lane.b32.xlu0 %v721, 127
  %v751 = vpop.permute.xlu0 %750
  %752 = vrot.lane.b32.xlu0 %v722, 127
  %v753 = vpop.permute.xlu0 %752
  %754 = vrot.lane.b32.xlu0 %v723, 127
  %v755 = vpop.permute.xlu0 %754
  %756 = vrot.lane.b32.xlu0 %v724, 127
  %v757 = vpop.permute.xlu0 %756
  %758 = vrot.lane.b32.xlu0 %v725, 127
  %v759 = vpop.permute.xlu0 %758
  %760 = vrot.lane.b32.xlu0 %v726, 127
  %v761 = vpop.permute.xlu0 %760
  %762 = vrot.lane.b32.xlu0 %v727, 127
  %v763 = vpop.permute.xlu0 %762
  %v764 = vsel %vm73, %v741, %v743
  %v765 = vsel %vm73, %v743, %v745
  %v766 = vsel %vm73, %v745, %v747
  %v767 = vsel %vm73, %v747, %v749
  %v768 = vsel %vm73, %v749, %v751
  %v769 = vsel %vm73, %v753, %v755
  %v770 = vsel %vm73, %v755, %v757
  %v771 = vsel %vm73, %v757, %v759
  %v772 = vsel %vm73, %v759, %v761
  %v773 = vsel %vm73, %v761, %v763
  %v786 = vmax.f32 %v716, %v764
  %v787 = vmax.f32 %v717, %v765
  %v788 = vmax.f32 %v718, %v766
  %v789 = vmax.f32 %v719, %v767
  %v790 = vmax.f32 %v720, %v768
  %v791 = vmax.f32 %v721, %v751
  %v792 = vmax.f32 %v722, %v769
  %v793 = vmax.f32 %v723, %v770
  %v794 = vmax.f32 %v724, %v771
  %v795 = vmax.f32 %v725, %v772
  %v796 = vmax.f32 %v726, %v773
  %v797 = vmax.f32 %v727, %v763
  %798 = vrot.lane.b32.xlu0 %v716, 126
  %v799 = vpop.permute.xlu0 %798
  %800 = vrot.lane.b32.xlu0 %v717, 126
  %v801 = vpop.permute.xlu0 %800
  %802 = vrot.lane.b32.xlu0 %v718, 126
  %v803 = vpop.permute.xlu0 %802
  %804 = vrot.lane.b32.xlu0 %v719, 126
  %v805 = vpop.permute.xlu0 %804
  %806 = vrot.lane.b32.xlu0 %v720, 126
  %v807 = vpop.permute.xlu0 %806
  %808 = vrot.lane.b32.xlu0 %v721, 126
  %v809 = vpop.permute.xlu0 %808
  %810 = vrot.lane.b32.xlu0 %v722, 126
  %v811 = vpop.permute.xlu0 %810
  %812 = vrot.lane.b32.xlu0 %v723, 126
  %v813 = vpop.permute.xlu0 %812
  %814 = vrot.lane.b32.xlu0 %v724, 126
  %v815 = vpop.permute.xlu0 %814
  %816 = vrot.lane.b32.xlu0 %v725, 126
  %v817 = vpop.permute.xlu0 %816
  %818 = vrot.lane.b32.xlu0 %v726, 126
  %v819 = vpop.permute.xlu0 %818
  %820 = vrot.lane.b32.xlu0 %v727, 126
  %v821 = vpop.permute.xlu0 %820
  %v822 = vsel %vm97, %v799, %v801
  %v823 = vsel %vm97, %v801, %v803
  %v824 = vsel %vm97, %v803, %v805
  %v825 = vsel %vm97, %v805, %v807
  %v826 = vsel %vm97, %v807, %v809
  %v827 = vsel %vm97, %v811, %v813
  %v828 = vsel %vm97, %v813, %v815
  %v829 = vsel %vm97, %v815, %v817
  %v830 = vsel %vm97, %v817, %v819
  %v831 = vsel %vm97, %v819, %v821
  %v844 = vmax.f32 %v786, %v822
  %v845 = vmax.f32 %v787, %v823
  %v846 = vmax.f32 %v788, %v824
  %v847 = vmax.f32 %v789, %v825
  %v848 = vmax.f32 %v790, %v826
  %v849 = vmax.f32 %v791, %v809
  %v850 = vmax.f32 %v792, %v827
  %v851 = vmax.f32 %v793, %v828
  %v852 = vmax.f32 %v794, %v829
  %v853 = vmax.f32 %v795, %v830
  %v854 = vmax.f32 %v796, %v831
  %v855 = vmax.f32 %v797, %v821
  %v856 = vld [vmem:[#allocation2 + $0x30] sm:$0xff]
  %v857 = vld [vmem:[#allocation2 + $0x70] sm:$0xff]
  %860 = vrot.lane.b32.xlu0 %v716, 110
  %v861 = vpop.permute.xlu0 %860
  %862 = vrot.lane.b32.xlu0 %v717, 110
  %v863 = vpop.permute.xlu0 %862
  %864 = vrot.lane.b32.xlu0 %v718, 110
  %v865 = vpop.permute.xlu0 %864
  %866 = vrot.lane.b32.xlu0 %v719, 110
  %v867 = vpop.permute.xlu0 %866
  %868 = vrot.lane.b32.xlu0 %v720, 110
  %v869 = vpop.permute.xlu0 %868
  %870 = vrot.lane.b32.xlu0 %v721, 110
  %v871 = vpop.permute.xlu0 %870
  %872 = vrot.lane.b32.xlu0 %v856, 110
  %v873 = vpop.permute.xlu0 %872
  %874 = vrot.lane.b32.xlu0 %v722, 110
  %v875 = vpop.permute.xlu0 %874
  %876 = vrot.lane.b32.xlu0 %v723, 110
  %v877 = vpop.permute.xlu0 %876
  %878 = vrot.lane.b32.xlu0 %v724, 110
  %v879 = vpop.permute.xlu0 %878
  %880 = vrot.lane.b32.xlu0 %v725, 110
  %v881 = vpop.permute.xlu0 %880
  %882 = vrot.lane.b32.xlu0 %v726, 110
  %v883 = vpop.permute.xlu0 %882
  %884 = vrot.lane.b32.xlu0 %v727, 110
  %v885 = vpop.permute.xlu0 %884
  %886 = vrot.lane.b32.xlu0 %v857, 110
  %v887 = vpop.permute.xlu0 %886
  %v888 = vsel %vm124, %v861, %v863
  %v889 = vsel %vm124, %v863, %v865
  %v890 = vsel %vm124, %v865, %v867
  %v891 = vsel %vm124, %v867, %v869
  %v892 = vsel %vm124, %v869, %v871
  %v893 = vsel %vm124, %v871, %v873
  %v894 = vsel %vm124, %v875, %v877
  %v895 = vsel %vm124, %v877, %v879
  %v896 = vsel %vm124, %v879, %v881
  %v897 = vsel %vm124, %v881, %v883
  %v898 = vsel %vm124, %v883, %v885
  %v899 = vsel %vm124, %v885, %v887
  %v912 = vmax.f32 %v844, %v888
  %v913 = vmax.f32 %v845, %v889
  %v914 = vmax.f32 %v846, %v890
  %v915 = vmax.f32 %v847, %v891
  %v916 = vmax.f32 %v848, %v892
  %v917 = vmax.f32 %v849, %v893
  %v918 = vmax.f32 %v850, %v894
  %v919 = vmax.f32 %v851, %v895
  %v920 = vmax.f32 %v852, %v896
  %v921 = vmax.f32 %v853, %v897
  %v922 = vmax.f32 %v854, %v898
  %v923 = vmax.f32 %v855, %v899
  %924 = vrot.lane.b32.xlu0 %v717, 109
  %v925 = vpop.permute.xlu0 %924
  %926 = vrot.lane.b32.xlu0 %v718, 109
  %v927 = vpop.permute.xlu0 %926
  %928 = vrot.lane.b32.xlu0 %v719, 109
  %v929 = vpop.permute.xlu0 %928
  %930 = vrot.lane.b32.xlu0 %v720, 109
  %v931 = vpop.permute.xlu0 %930
  %932 = vrot.lane.b32.xlu0 %v721, 109
  %v933 = vpop.permute.xlu0 %932
  %934 = vrot.lane.b32.xlu0 %v856, 109
  %v935 = vpop.permute.xlu0 %934
  %936 = vrot.lane.b32.xlu0 %v723, 109
  %v937 = vpop.permute.xlu0 %936
  %938 = vrot.lane.b32.xlu0 %v724, 109
  %v939 = vpop.permute.xlu0 %938
  %940 = vrot.lane.b32.xlu0 %v725, 109
  %v941 = vpop.permute.xlu0 %940
  %942 = vrot.lane.b32.xlu0 %v726, 109
  %v943 = vpop.permute.xlu0 %942
  %944 = vrot.lane.b32.xlu0 %v727, 109
  %v945 = vpop.permute.xlu0 %944
  %946 = vrot.lane.b32.xlu0 %v857, 109
  %v947 = vpop.permute.xlu0 %946
  %v948 = vsel %vm149, %v925, %v927
  %v949 = vsel %vm149, %v927, %v929
  %v950 = vsel %vm149, %v929, %v931
  %v951 = vsel %vm149, %v931, %v933
  %v952 = vsel %vm149, %v933, %v935
  %v953 = vsel %vm149, %v937, %v939
  %v954 = vsel %vm149, %v939, %v941
  %v955 = vsel %vm149, %v941, %v943
  %v956 = vsel %vm149, %v943, %v945
  %v957 = vsel %vm149, %v945, %v947
  %v970 = vmax.f32 %v912, %v925
  %v971 = vmax.f32 %v913, %v948
  %v972 = vmax.f32 %v914, %v949
  %v973 = vmax.f32 %v915, %v950
  %v974 = vmax.f32 %v916, %v951
  %v975 = vmax.f32 %v917, %v952
  %v976 = vmax.f32 %v918, %v937
  %v977 = vmax.f32 %v919, %v953
  %v978 = vmax.f32 %v920, %v954
  %v979 = vmax.f32 %v921, %v955
  %v980 = vmax.f32 %v922, %v956
  %v981 = vmax.f32 %v923, %v957
  %982 = vrot.lane.b32.xlu0 %v717, 108
  %v983 = vpop.permute.xlu0 %982
  %984 = vrot.lane.b32.xlu0 %v718, 108
  %v985 = vpop.permute.xlu0 %984
  %986 = vrot.lane.b32.xlu0 %v719, 108
  %v987 = vpop.permute.xlu0 %986
  %988 = vrot.lane.b32.xlu0 %v720, 108
  %v989 = vpop.permute.xlu0 %988
  %990 = vrot.lane.b32.xlu0 %v721, 108
  %v991 = vpop.permute.xlu0 %990
  %992 = vrot.lane.b32.xlu0 %v856, 108
  %v993 = vpop.permute.xlu0 %992
  %994 = vrot.lane.b32.xlu0 %v723, 108
  %v995 = vpop.permute.xlu0 %994
  %996 = vrot.lane.b32.xlu0 %v724, 108
  %v997 = vpop.permute.xlu0 %996
  %998 = vrot.lane.b32.xlu0 %v725, 108
  %v999 = vpop.permute.xlu0 %998
  %1000 = vrot.lane.b32.xlu0 %v726, 108
  %v1001 = vpop.permute.xlu0 %1000
  %1002 = vrot.lane.b32.xlu0 %v727, 108
  %v1003 = vpop.permute.xlu0 %1002
  %1004 = vrot.lane.b32.xlu0 %v857, 108
  %v1005 = vpop.permute.xlu0 %1004
  %v1006 = vsel %vm173, %v983, %v985
  %v1007 = vsel %vm173, %v985, %v987
  %v1008 = vsel %vm173, %v987, %v989
  %v1009 = vsel %vm173, %v989, %v991
  %v1010 = vsel %vm173, %v991, %v993
  %v1011 = vsel %vm173, %v995, %v997
  %v1012 = vsel %vm173, %v997, %v999
  %v1013 = vsel %vm173, %v999, %v1001
  %v1014 = vsel %vm173, %v1001, %v1003
  %v1015 = vsel %vm173, %v1003, %v1005
  %v1028 = vmax.f32 %v970, %v983
  %v1029 = vmax.f32 %v971, %v1006
  %v1030 = vmax.f32 %v972, %v1007
  %v1031 = vmax.f32 %v973, %v1008
  %v1032 = vmax.f32 %v974, %v1009
  %v1033 = vmax.f32 %v975, %v1010
  %v1034 = vmax.f32 %v976, %v995
  %v1035 = vmax.f32 %v977, %v1011
  %v1036 = vmax.f32 %v978, %v1012
  %v1037 = vmax.f32 %v979, %v1013
  %v1038 = vmax.f32 %v980, %v1014
  %v1039 = vmax.f32 %v981, %v1015
  %1040 = vrot.lane.b32.xlu0 %v717, 92
  %v1041 = vpop.permute.xlu0 %1040
  %1042 = vrot.lane.b32.xlu0 %v718, 92
  %v1043 = vpop.permute.xlu0 %1042
  %1044 = vrot.lane.b32.xlu0 %v719, 92
  %v1045 = vpop.permute.xlu0 %1044
  %1046 = vrot.lane.b32.xlu0 %v720, 92
  %v1047 = vpop.permute.xlu0 %1046
  %1048 = vrot.lane.b32.xlu0 %v721, 92
  %v1049 = vpop.permute.xlu0 %1048
  %1050 = vrot.lane.b32.xlu0 %v856, 92
  %v1051 = vpop.permute.xlu0 %1050
  %1052 = vrot.lane.b32.xlu0 %v723, 92
  %v1053 = vpop.permute.xlu0 %1052
  %1054 = vrot.lane.b32.xlu0 %v724, 92
  %v1055 = vpop.permute.xlu0 %1054
  %1056 = vrot.lane.b32.xlu0 %v725, 92
  %v1057 = vpop.permute.xlu0 %1056
  %1058 = vrot.lane.b32.xlu0 %v726, 92
  %v1059 = vpop.permute.xlu0 %1058
  %1060 = vrot.lane.b32.xlu0 %v727, 92
  %v1061 = vpop.permute.xlu0 %1060
  %1062 = vrot.lane.b32.xlu0 %v857, 92
  %v1063 = vpop.permute.xlu0 %1062
  %v1064 = vsel %vm197, %v1041, %v1043
  %v1065 = vsel %vm197, %v1043, %v1045
  %v1066 = vsel %vm197, %v1045, %v1047
  %v1067 = vsel %vm197, %v1047, %v1049
  %v1068 = vsel %vm197, %v1049, %v1051
  %v1069 = vsel %vm197, %v1053, %v1055
  %v1070 = vsel %vm197, %v1055, %v1057
  %v1071 = vsel %vm197, %v1057, %v1059
  %v1072 = vsel %vm197, %v1059, %v1061
  %v1073 = vsel %vm197, %v1061, %v1063
  %v1086 = vmax.f32 %v1028, %v1041
  %v1087 = vmax.f32 %v1029, %v1064
  %v1088 = vmax.f32 %v1030, %v1065
  %v1089 = vmax.f32 %v1031, %v1066
  %v1090 = vmax.f32 %v1032, %v1067
  %v1091 = vmax.f32 %v1033, %v1068
  %v1092 = vmax.f32 %v1034, %v1053
  %v1093 = vmax.f32 %v1035, %v1069
  %v1094 = vmax.f32 %v1036, %v1070
  %v1095 = vmax.f32 %v1037, %v1071
  %v1096 = vmax.f32 %v1038, %v1072
  %v1097 = vmax.f32 %v1039, %v1073
  %1098 = vrot.lane.b32.xlu0 %v717, 91
  %v1099 = vpop.permute.xlu0 %1098
  %1100 = vrot.lane.b32.xlu0 %v718, 91
  %v1101 = vpop.permute.xlu0 %1100
  %1102 = vrot.lane.b32.xlu0 %v719, 91
  %v1103 = vpop.permute.xlu0 %1102
  %1104 = vrot.lane.b32.xlu0 %v720, 91
  %v1105 = vpop.permute.xlu0 %1104
  %1106 = vrot.lane.b32.xlu0 %v721, 91
  %v1107 = vpop.permute.xlu0 %1106
  %1108 = vrot.lane.b32.xlu0 %v856, 91
  %v1109 = vpop.permute.xlu0 %1108
  %1110 = vrot.lane.b32.xlu0 %v723, 91
  %v1111 = vpop.permute.xlu0 %1110
  %1112 = vrot.lane.b32.xlu0 %v724, 91
  %v1113 = vpop.permute.xlu0 %1112
  %1114 = vrot.lane.b32.xlu0 %v725, 91
  %v1115 = vpop.permute.xlu0 %1114
  %1116 = vrot.lane.b32.xlu0 %v726, 91
  %v1117 = vpop.permute.xlu0 %1116
  %1118 = vrot.lane.b32.xlu0 %v727, 91
  %v1119 = vpop.permute.xlu0 %1118
  %1120 = vrot.lane.b32.xlu0 %v857, 91
  %v1121 = vpop.permute.xlu0 %1120
  %v1122 = vsel %vm221, %v1099, %v1101
  %v1123 = vsel %vm221, %v1101, %v1103
  %v1124 = vsel %vm221, %v1103, %v1105
  %v1125 = vsel %vm221, %v1105, %v1107
  %v1126 = vsel %vm221, %v1107, %v1109
  %v1127 = vsel %vm221, %v1111, %v1113
  %v1128 = vsel %vm221, %v1113, %v1115
  %v1129 = vsel %vm221, %v1115, %v1117
  %v1130 = vsel %vm221, %v1117, %v1119
  %v1131 = vsel %vm221, %v1119, %v1121
  %v1144 = vmax.f32 %v1086, %v1099
  %v1145 = vmax.f32 %v1087, %v1122
  %v1146 = vmax.f32 %v1088, %v1123
  %v1147 = vmax.f32 %v1089, %v1124
  %v1148 = vmax.f32 %v1090, %v1125
  %v1149 = vmax.f32 %v1091, %v1126
  %v1150 = vmax.f32 %v1092, %v1111
  %v1151 = vmax.f32 %v1093, %v1127
  %v1152 = vmax.f32 %v1094, %v1128
  %v1153 = vmax.f32 %v1095, %v1129
  %v1154 = vmax.f32 %v1096, %v1130
  %v1155 = vmax.f32 %v1097, %v1131
  %1156 = vrot.lane.b32.xlu0 %v717, 90
  %v1157 = vpop.permute.xlu0 %1156
  %1158 = vrot.lane.b32.xlu0 %v718, 90
  %v1159 = vpop.permute.xlu0 %1158
  %1160 = vrot.lane.b32.xlu0 %v719, 90
  %v1161 = vpop.permute.xlu0 %1160
  %1162 = vrot.lane.b32.xlu0 %v720, 90
  %v1163 = vpop.permute.xlu0 %1162
  %1164 = vrot.lane.b32.xlu0 %v721, 90
  %v1165 = vpop.permute.xlu0 %1164
  %1166 = vrot.lane.b32.xlu0 %v856, 90
  %v1167 = vpop.permute.xlu0 %1166
  %1168 = vrot.lane.b32.xlu0 %v723, 90
  %v1169 = vpop.permute.xlu0 %1168
  %1170 = vrot.lane.b32.xlu0 %v724, 90
  %v1171 = vpop.permute.xlu0 %1170
  %1172 = vrot.lane.b32.xlu0 %v725, 90
  %v1173 = vpop.permute.xlu0 %1172
  %1174 = vrot.lane.b32.xlu0 %v726, 90
  %v1175 = vpop.permute.xlu0 %1174
  %1176 = vrot.lane.b32.xlu0 %v727, 90
  %v1177 = vpop.permute.xlu0 %1176
  %1178 = vrot.lane.b32.xlu0 %v857, 90
  %v1179 = vpop.permute.xlu0 %1178
  %v1180 = vsel %vm245, %v1157, %v1159
  %v1181 = vsel %vm245, %v1159, %v1161
  %v1182 = vsel %vm245, %v1161, %v1163
  %v1183 = vsel %vm245, %v1163, %v1165
  %v1184 = vsel %vm245, %v1165, %v1167
  %v1185 = vsel %vm245, %v1169, %v1171
  %v1186 = vsel %vm245, %v1171, %v1173
  %v1187 = vsel %vm245, %v1173, %v1175
  %v1188 = vsel %vm245, %v1175, %v1177
  %v1189 = vsel %vm245, %v1177, %v1179
  %v1202 = vmax.f32 %v1144, %v1157
  %v1203 = vmax.f32 %v1145, %v1180
  %v1204 = vmax.f32 %v1146, %v1181
  %v1205 = vmax.f32 %v1147, %v1182
  %v1206 = vmax.f32 %v1148, %v1183
  %v1207 = vmax.f32 %v1149, %v1184
  %v1208 = vmax.f32 %v1150, %v1169
  %v1209 = vmax.f32 %v1151, %v1185
  %v1210 = vmax.f32 %v1152, %v1186
  %v1211 = vmax.f32 %v1153, %v1187
  %v1212 = vmax.f32 %v1154, %v1188
  %v1213 = vmax.f32 %v1155, %v1189
  %v1214 = vpack.c.bf16 %v1208, %v1202
  %v1215 = vpack.c.bf16 %v1209, %v1203
  %v1216 = vpack.c.bf16 %v1210, %v1204
  %v1217 = vpack.c.bf16 %v1211, %v1205
  %v1218 = vpack.c.bf16 %v1212, %v1206
  %v1219 = vpack.c.bf16 %v1213, %v1207
  %v1220 = vld [vmem:[%s4] sm:$0xff]
  %v1221 = vld [vmem:[%s4 + $0x8] sm:$0xff]
  %v1222 = vld [vmem:[%s4 + $0x10] sm:$0xff]
  %v1223 = vld [vmem:[%s4 + $0x18] sm:$0xff]
  %v1224 = vld [vmem:[%s4 + $0x20] sm:$0xff]
  %v1225 = vld [vmem:[%s4 + $0x28] sm:$0xff]
  %v1226 = vld [vmem:[%s4 + $0x30] sm:$0xff]
  %v1227 = vld [vmem:[%s4 + $0x38] sm:$0xff]
  %v1228 = vld [vmem:[%s4 + $0x40] sm:$0xff]
  %v1229 = vld [vmem:[%s4 + $0x48] sm:$0xff]
  %v1230 = vld [vmem:[%s4 + $0x50] sm:$0xff]
  %v1231 = vld [vmem:[%s4 + $0x58] sm:$0xff]
  %v1232 = vld [vmem:[%s4 + $0x60] sm:$0xff]
  %v1233 = vld [vmem:[%s4 + $0x68] sm:$0xff]
  %v1234 = vld [vmem:[%s4 + $0x70] sm:$0xff]
  %v1235 = vld [vmem:[%s4 + $0x78] sm:$0xff]
  %v1236 = vld [vmem:[%s4 + $0x80] sm:$0xff]
  %v1237 = vld [vmem:[%s4 + $0x88] sm:$0xff]
  %v1238 = vld [vmem:[%s4 + $0x90] sm:$0xff]
  %v1239 = vld [vmem:[%s4 + $0x98] sm:$0xff]
  %v1240 = vld [vmem:[%s4 + $0xa0] sm:$0xff]
  %v1241 = vld [vmem:[%s4 + $0xa8] sm:$0xff]
  %v1242 = vld [vmem:[%s4 + $0xb0] sm:$0xff]
  %v1243 = vld [vmem:[%s4 + $0xb8] sm:$0xff]
  %v1244 = vld [vmem:[%s4 + $0xc0] sm:$0xff]
  %v1245 = vld [vmem:[%s4 + $0xc8] sm:$0xff]
  %v1246 = vld [vmem:[%s4 + $0xd0] sm:$0xff]
  %v1247 = vld [vmem:[%s4 + $0xd8] sm:$0xff]
  %v1248 = vld [vmem:[%s4 + $0xe0] sm:$0xff]
  %v1249 = vld [vmem:[%s4 + $0xe8] sm:$0xff]
  %v1250 = vld [vmem:[%s4 + $0xf0] sm:$0xff]
  %v1251 = vld [vmem:[%s4 + $0xf8] sm:$0xff]
  %v1252 = vld [vmem:[%s4 + $0x100] sm:$0xff]
  %v1253 = vld [vmem:[%s4 + $0x108] sm:$0xff]
  %v1254 = vld [vmem:[%s4 + $0x110] sm:$0xff]
  %v1255 = vld [vmem:[%s4 + $0x118] sm:$0xff]
  %v1256 = vld [vmem:[%s4 + $0x120] sm:$0xff]
  %v1257 = vld [vmem:[%s4 + $0x128] sm:$0xff]
  %v1258 = vld [vmem:[%s4 + $0x130] sm:$0xff]
  %v1259 = vld [vmem:[%s4 + $0x138] sm:$0xff]
  %v1260 = vld [vmem:[%s4 + $0x140] sm:$0xff]
  %v1261 = vld [vmem:[%s4 + $0x148] sm:$0xff]
  %v1262 = vld [vmem:[%s4 + $0x150] sm:$0xff]
  %v1263 = vld [vmem:[%s4 + $0x158] sm:$0xff]
  %v1264 = vld [vmem:[%s4 + $0x160] sm:$0xff]
  %v1265 = vld [vmem:[%s4 + $0x168] sm:$0xff]
  %v1266 = vld [vmem:[%s4 + $0x170] sm:$0xff]
  %v1267 = vld [vmem:[%s4 + $0x178] sm:$0xff]
  %v1268 = vld [vmem:[%s4 + $0x180] sm:$0xff]
  %v1269 = vld [vmem:[%s4 + $0x188] sm:$0xff]
  %v1270 = vld [vmem:[%s4 + $0x190] sm:$0xff]
  %v1271 = vld [vmem:[%s4 + $0x198] sm:$0xff]
  %v1272 = vld [vmem:[%s4 + $0x1a0] sm:$0xff]
  %v1273 = vld [vmem:[%s4 + $0x1a8] sm:$0xff]
  %v1274 = vld [vmem:[%s4 + $0x1b0] sm:$0xff]
  %v1275 = vld [vmem:[%s4 + $0x1b8] sm:$0xff]
  %v1276 = vld [vmem:[%s4 + $0x1c0] sm:$0xff]
  %v1277 = vld [vmem:[%s4 + $0x1c8] sm:$0xff]
  %v1278 = vld [vmem:[%s4 + $0x1d0] sm:$0xff]
  %v1279 = vld [vmem:[%s4 + $0x1d8] sm:$0xff]
  %v1280 = vld [vmem:[%s4 + $0x1e0] sm:$0xff]
  %v1281 = vld [vmem:[%s4 + $0x1e8] sm:$0xff]
  %v1282 = vld [vmem:[%s4 + $0x1f0] sm:$0xff]
  %v1283 = vld [vmem:[%s4 + $0x1f8] sm:$0xff]
  %v1284 = vld [vmem:[%s4 + $0x200] sm:$0xff]
  %v1285 = vld [vmem:[%s4 + $0x208] sm:$0xff]
  %v1286 = vld [vmem:[%s4 + $0x210] sm:$0xff]
  %v1287 = vld [vmem:[%s4 + $0x218] sm:$0xff]
  %v1288 = vld [vmem:[%s4 + $0x220] sm:$0xff]
  %v1289 = vld [vmem:[%s4 + $0x228] sm:$0xff]
  %v1290 = vld [vmem:[%s4 + $0x230] sm:$0xff]
  %v1291 = vld [vmem:[%s4 + $0x238] sm:$0xff]
  %v1292 = vld [vmem:[%s4 + $0x240] sm:$0xff]
  %v1293 = vld [vmem:[%s4 + $0x248] sm:$0xff]
  %v1294 = vld [vmem:[%s4 + $0x250] sm:$0xff]
  %v1295 = vld [vmem:[%s4 + $0x258] sm:$0xff]
  %v1296 = vld [vmem:[%s4 + $0x260] sm:$0xff]
  %v1297 = vld [vmem:[%s4 + $0x268] sm:$0xff]
  %v1298 = vld [vmem:[%s4 + $0x270] sm:$0xff]
  %v1299 = vld [vmem:[%s4 + $0x278] sm:$0xff]
  %v1300 = vld [vmem:[%s4 + $0x280] sm:$0xff]
  %1307 = vrot.lane.b32.xlu0 %v1214, 19
  %v1308 = vpop.permute.xlu0 %1307
  %1309 = vrot.lane.b32.xlu0 %v1215, 19
  %v1310 = vpop.permute.xlu0 %1309
  %1311 = vrot.lane.b32.xlu0 %v1216, 19
  %v1312 = vpop.permute.xlu0 %1311
  %1313 = vrot.lane.b32.xlu0 %v1217, 19
  %v1314 = vpop.permute.xlu0 %1313
  %1315 = vrot.lane.b32.xlu0 %v1218, 19
  %v1316 = vpop.permute.xlu0 %1315
  %1317 = vrot.lane.b32.xlu0 %v1219, 19
  %v1318 = vpop.permute.xlu0 %1317
  %v1319 = vsel %vm396, %v1308, %v1310
  %v1320 = vsel %vm396, %v1310, %v1312
  %v1321 = vsel %vm396, %v1312, %v1314
  %v1322 = vsel %vm396, %v1314, %v1316
  %v1323 = vsel %vm396, %v1316, %v1318
  %v1410 = vunpack.c.l.b16 %v1220
  %v1411 = vunpack.c.h.b16 %v1220
  %v1412 = vunpack.c.l.b16 %v1221
  %v1413 = vunpack.c.h.b16 %v1221
  %v1414 = vunpack.c.l.b16 %v1222
  %v1415 = vunpack.c.h.b16 %v1222
  %v1416 = vunpack.c.l.b16 %v1223
  %v1417 = vunpack.c.h.b16 %v1223
  %v1418 = vunpack.c.l.b16 %v1224
  %v1419 = vunpack.c.h.b16 %v1224
  %v1420 = vunpack.c.l.b16 %v1225
  %v1421 = vunpack.c.h.b16 %v1225
  %v1422 = vunpack.c.l.b16 %v1226
  %v1423 = vunpack.c.h.b16 %v1226
  %v1424 = vunpack.c.l.b16 %v1227
  %v1425 = vunpack.c.h.b16 %v1227
  %v1426 = vunpack.c.l.b16 %v1228
  %v1427 = vunpack.c.h.b16 %v1228
  %v1428 = vunpack.c.l.b16 %v1229
  %v1429 = vunpack.c.h.b16 %v1229
  %v1430 = vunpack.c.l.b16 %v1230
  %v1431 = vunpack.c.h.b16 %v1230
  %v1432 = vunpack.c.l.b16 %v1231
  %v1433 = vunpack.c.h.b16 %v1231
  %v1434 = vunpack.c.l.b16 %v1232
  %v1435 = vunpack.c.h.b16 %v1232
  %v1436 = vunpack.c.l.b16 %v1233
  %v1437 = vunpack.c.h.b16 %v1233
  %v1438 = vunpack.c.l.b16 %v1234
  %v1439 = vunpack.c.h.b16 %v1234
  %v1440 = vunpack.c.l.b16 %v1235
  %v1441 = vunpack.c.h.b16 %v1235
  %v1442 = vunpack.c.l.b16 %v1236
  %v1443 = vunpack.c.h.b16 %v1236
  %v1444 = vunpack.c.l.b16 %v1237
  %v1445 = vunpack.c.h.b16 %v1237
  %v1446 = vunpack.c.l.b16 %v1238
  %v1447 = vunpack.c.h.b16 %v1238
  %v1448 = vunpack.c.l.b16 %v1239
  %v1449 = vunpack.c.h.b16 %v1239
  %v1450 = vunpack.c.l.b16 %v1240
  %v1451 = vunpack.c.h.b16 %v1240
  %v1452 = vunpack.c.l.b16 %v1241
  %v1453 = vunpack.c.h.b16 %v1241
  %v1454 = vunpack.c.l.b16 %v1242
  %v1455 = vunpack.c.h.b16 %v1242
  %v1456 = vunpack.c.l.b16 %v1243
  %v1457 = vunpack.c.h.b16 %v1243
  %v1458 = vunpack.c.l.b16 %v1244
  %v1459 = vunpack.c.h.b16 %v1244
  %v1460 = vunpack.c.l.b16 %v1245
  %v1461 = vunpack.c.h.b16 %v1245
  %v1462 = vunpack.c.l.b16 %v1246
  %v1463 = vunpack.c.h.b16 %v1246
  %v1464 = vunpack.c.l.b16 %v1247
  %v1465 = vunpack.c.h.b16 %v1247
  %v1466 = vunpack.c.l.b16 %v1248
  %v1467 = vunpack.c.h.b16 %v1248
  %v1468 = vunpack.c.l.b16 %v1249
  %v1469 = vunpack.c.h.b16 %v1249
  %v1470 = vunpack.c.l.b16 %v1250
  %v1471 = vunpack.c.h.b16 %v1250
  %v1472 = vunpack.c.l.b16 %v1251
  %v1473 = vunpack.c.h.b16 %v1251
  %v1474 = vunpack.c.l.b16 %v1252
  %v1475 = vunpack.c.h.b16 %v1252
  %v1476 = vunpack.c.l.b16 %v1253
  %v1477 = vunpack.c.h.b16 %v1253
  %v1478 = vunpack.c.l.b16 %v1254
  %v1479 = vunpack.c.h.b16 %v1254
  %v1480 = vunpack.c.l.b16 %v1255
  %v1481 = vunpack.c.h.b16 %v1255
  %v1482 = vunpack.c.l.b16 %v1256
  %v1483 = vunpack.c.h.b16 %v1256
  %v1484 = vunpack.c.l.b16 %v1257
  %v1485 = vunpack.c.h.b16 %v1257
  %v1486 = vunpack.c.l.b16 %v1258
  %v1487 = vunpack.c.h.b16 %v1258
  %v1488 = vunpack.c.l.b16 %v1259
  %v1489 = vunpack.c.h.b16 %v1259
  %v1490 = vunpack.c.l.b16 %v1260
  %v1491 = vunpack.c.h.b16 %v1260
  %v1492 = vunpack.c.l.b16 %v1261
  %v1493 = vunpack.c.h.b16 %v1261
  %v1494 = vunpack.c.l.b16 %v1262
  %v1495 = vunpack.c.h.b16 %v1262
  %v1496 = vunpack.c.l.b16 %v1263
  %v1497 = vunpack.c.h.b16 %v1263
  %v1498 = vunpack.c.l.b16 %v1264
  %v1499 = vunpack.c.h.b16 %v1264
  %v1500 = vunpack.c.l.b16 %v1265
  %v1501 = vunpack.c.h.b16 %v1265
  %v1502 = vunpack.c.l.b16 %v1266
  %v1503 = vunpack.c.h.b16 %v1266
  %v1504 = vunpack.c.l.b16 %v1267
  %v1505 = vunpack.c.h.b16 %v1267
  %v1506 = vunpack.c.l.b16 %v1268
  %v1507 = vunpack.c.h.b16 %v1268
  %v1508 = vunpack.c.l.b16 %v1269
  %v1509 = vunpack.c.h.b16 %v1269
  %v1510 = vunpack.c.l.b16 %v1270
  %v1511 = vunpack.c.h.b16 %v1270
  %v1512 = vunpack.c.l.b16 %v1271
  %v1513 = vunpack.c.h.b16 %v1271
  %v1514 = vunpack.c.l.b16 %v1272
  %v1515 = vunpack.c.h.b16 %v1272
  %v1516 = vunpack.c.l.b16 %v1273
  %v1517 = vunpack.c.h.b16 %v1273
  %v1518 = vunpack.c.l.b16 %v1274
  %v1519 = vunpack.c.h.b16 %v1274
  %v1520 = vunpack.c.l.b16 %v1275
  %v1521 = vunpack.c.h.b16 %v1275
  %v1522 = vunpack.c.l.b16 %v1276
  %v1523 = vunpack.c.h.b16 %v1276
  %v1524 = vunpack.c.l.b16 %v1277
  %v1525 = vunpack.c.h.b16 %v1277
  %v1526 = vunpack.c.l.b16 %v1278
  %v1527 = vunpack.c.h.b16 %v1278
  %v1528 = vunpack.c.l.b16 %v1279
  %v1529 = vunpack.c.h.b16 %v1279
  %v1530 = vunpack.c.l.b16 %v1280
  %v1531 = vunpack.c.h.b16 %v1280
  %v1532 = vunpack.c.l.b16 %v1281
  %v1533 = vunpack.c.h.b16 %v1281
  %v1534 = vunpack.c.l.b16 %v1282
  %v1535 = vunpack.c.h.b16 %v1282
  %v1536 = vunpack.c.l.b16 %v1283
  %v1537 = vunpack.c.h.b16 %v1283
  %v1538 = vunpack.c.l.b16 %v1284
  %v1539 = vunpack.c.h.b16 %v1284
  %v1540 = vunpack.c.l.b16 %v1285
  %v1541 = vunpack.c.h.b16 %v1285
  %v1542 = vunpack.c.l.b16 %v1286
  %v1543 = vunpack.c.h.b16 %v1286
  %v1544 = vunpack.c.l.b16 %v1287
  %v1545 = vunpack.c.h.b16 %v1287
  %v1546 = vunpack.c.l.b16 %v1288
  %v1547 = vunpack.c.h.b16 %v1288
  %v1548 = vunpack.c.l.b16 %v1289
  %v1549 = vunpack.c.h.b16 %v1289
  %v1550 = vunpack.c.l.b16 %v1290
  %v1551 = vunpack.c.h.b16 %v1290
  %v1552 = vunpack.c.l.b16 %v1291
  %v1553 = vunpack.c.h.b16 %v1291
  %v1554 = vunpack.c.l.b16 %v1292
  %v1555 = vunpack.c.h.b16 %v1292
  %v1556 = vunpack.c.l.b16 %v1293
  %v1557 = vunpack.c.h.b16 %v1293
  %v1558 = vunpack.c.l.b16 %v1294
  %v1559 = vunpack.c.h.b16 %v1294
  %v1560 = vunpack.c.l.b16 %v1295
  %v1561 = vunpack.c.h.b16 %v1295
  %v1562 = vunpack.c.l.b16 %v1296
  %v1563 = vunpack.c.h.b16 %v1296
  %v1564 = vunpack.c.l.b16 %v1297
  %v1565 = vunpack.c.h.b16 %v1297
  %v1566 = vunpack.c.l.b16 %v1298
  %v1567 = vunpack.c.h.b16 %v1298
  %v1568 = vunpack.c.l.b16 %v1299
  %v1569 = vunpack.c.h.b16 %v1299
  %v1570 = vunpack.c.l.b16 %v1300
  %v1571 = vunpack.c.h.b16 %v1300
  %v1572 = vpack.c.b16 %v1412, %v1410
  %v1573 = vpack.c.b16 %v1413, %v1411
  %v1574 = vpack.c.b16 %v1416, %v1414
  %v1575 = vpack.c.b16 %v1417, %v1415
  %v1576 = vpack.c.b16 %v1420, %v1418
  %v1577 = vpack.c.b16 %v1421, %v1419
  %v1578 = vpack.c.b16 %v1424, %v1422
  %v1579 = vpack.c.b16 %v1425, %v1423
  %v1580 = vpack.c.b16 %v1428, %v1426
  %v1581 = vpack.c.b16 %v1429, %v1427
  %v1582 = vpack.c.b16 %v1432, %v1430
  %v1583 = vpack.c.b16 %v1433, %v1431
  %v1584 = vpack.c.b16 %v1436, %v1434
  %v1585 = vpack.c.b16 %v1437, %v1435
  %v1586 = vpack.c.b16 %v1440, %v1438
  %v1587 = vpack.c.b16 %v1441, %v1439
  %v1588 = vpack.c.b16 %v1444, %v1442
  %v1589 = vpack.c.b16 %v1445, %v1443
  %v1590 = vpack.c.b16 %v1448, %v1446
  %v1591 = vpack.c.b16 %v1449, %v1447
  %v1592 = vpack.c.b16 %v1452, %v1450
  %v1593 = vpack.c.b16 %v1453, %v1451
  %v1594 = vpack.c.b16 %v1456, %v1454
  %v1595 = vpack.c.b16 %v1457, %v1455
  %v1596 = vpack.c.b16 %v1460, %v1458
  %v1597 = vpack.c.b16 %v1461, %v1459
  %v1598 = vpack.c.b16 %v1464, %v1462
  %v1599 = vpack.c.b16 %v1465, %v1463
  %v1600 = vpack.c.b16 %v1468, %v1466
  %v1601 = vpack.c.b16 %v1469, %v1467
  %v1602 = vpack.c.b16 %v1472, %v1470
  %v1603 = vpack.c.b16 %v1473, %v1471
  %v1604 = vpack.c.b16 %v1476, %v1474
  %v1605 = vpack.c.b16 %v1477, %v1475
  %v1606 = vpack.c.b16 %v1480, %v1478
  %v1607 = vpack.c.b16 %v1481, %v1479
  %v1608 = vpack.c.b16 %v1484, %v1482
  %v1609 = vpack.c.b16 %v1485, %v1483
  %v1610 = vpack.c.b16 %v1488, %v1486
  %v1611 = vpack.c.b16 %v1489, %v1487
  %v1612 = vpack.c.b16 %v1492, %v1490
  %v1613 = vpack.c.b16 %v1493, %v1491
  %v1614 = vpack.c.b16 %v1496, %v1494
  %v1615 = vpack.c.b16 %v1497, %v1495
  %v1616 = vpack.c.b16 %v1500, %v1498
  %v1617 = vpack.c.b16 %v1501, %v1499
  %v1618 = vpack.c.b16 %v1504, %v1502
  %v1619 = vpack.c.b16 %v1505, %v1503
  %v1620 = vpack.c.b16 %v1508, %v1506
  %v1621 = vpack.c.b16 %v1509, %v1507
  %v1622 = vpack.c.b16 %v1512, %v1510
  %v1623 = vpack.c.b16 %v1513, %v1511
  %v1624 = vpack.c.b16 %v1516, %v1514
  %v1625 = vpack.c.b16 %v1517, %v1515
  %v1626 = vpack.c.b16 %v1520, %v1518
  %v1627 = vpack.c.b16 %v1521, %v1519
  %v1628 = vpack.c.b16 %v1524, %v1522
  %v1629 = vpack.c.b16 %v1525, %v1523
  %v1630 = vpack.c.b16 %v1528, %v1526
  %v1631 = vpack.c.b16 %v1529, %v1527
  %v1632 = vpack.c.b16 %v1532, %v1530
  %v1633 = vpack.c.b16 %v1533, %v1531
  %v1634 = vpack.c.b16 %v1536, %v1534
  %v1635 = vpack.c.b16 %v1537, %v1535
  %v1636 = vpack.c.b16 %v1540, %v1538
  %v1637 = vpack.c.b16 %v1541, %v1539
  %v1638 = vpack.c.b16 %v1544, %v1542
  %v1639 = vpack.c.b16 %v1545, %v1543
  %v1640 = vpack.c.b16 %v1548, %v1546
  %v1641 = vpack.c.b16 %v1549, %v1547
  %v1642 = vpack.c.b16 %v1552, %v1550
  %v1643 = vpack.c.b16 %v1553, %v1551
  %v1644 = vpack.c.b16 %v1556, %v1554
  %v1645 = vpack.c.b16 %v1557, %v1555
  %v1646 = vpack.c.b16 %v1560, %v1558
  %v1647 = vpack.c.b16 %v1561, %v1559
  %v1648 = vpack.c.b16 %v1564, %v1562
  %v1649 = vpack.c.b16 %v1565, %v1563
  %v1650 = vpack.c.b16 %v1568, %v1566
  %v1651 = vpack.c.b16 %v1569, %v1567
  %v1652 = vpack.c.b16 %v1570, %v1570
  %v1653 = vpack.c.b16 %v1571, %v1571
  %v1735 = vsel %vm606, %v1318, 0
  %v1738 = vsel %vm450, %v1652, 0
  %v1741 = vsel %vm450, %v1653, 0
  %1743 = vmatprep.subr.bf16.mxu0 %v1573
  %1744 = vmatpush1.bf16.msra.mxu0 %v1572
  %1745 = vmatprep.subr.bf16.mxu0 %v1575
  %1746 = vmatpush1.bf16.msra.mxu0 %v1574
  %1747 = vmatprep.subr.bf16.mxu0 %v1577
  %1748 = vmatpush1.bf16.msra.mxu0 %v1576
  %1749 = vmatprep.subr.bf16.mxu0 %v1579
  %1750 = vmatpush1.bf16.msra.mxu0 %v1578
  %1751 = vmatprep.subr.bf16.mxu0 %v1581
  %1752 = vmatpush1.bf16.msra.mxu0 %v1580
  %1753 = vmatprep.subr.bf16.mxu0 %v1583
  %1754 = vmatpush1.bf16.msra.mxu0 %v1582
  %1755 = vmatprep.subr.bf16.mxu0 %v1585
  %1756 = vmatpush1.bf16.msra.mxu0 %v1584
  %1757 = vmatprep.subr.bf16.mxu0 %v1587
  %1758 = vmatpush1.bf16.msra.mxu0 %v1586
  %1759 = vmatprep.subr.bf16.mxu0 %v1589
  %1760 = vmatpush1.bf16.msra.mxu0 %v1588
  %1761 = vmatprep.subr.bf16.mxu0 %v1591
  %1762 = vmatpush1.bf16.msra.mxu0 %v1590
  %1763 = vmatprep.subr.bf16.mxu0 %v1593
  %1764 = vmatpush1.bf16.msra.mxu0 %v1592
  %1765 = vmatprep.subr.bf16.mxu0 %v1595
  %1766 = vmatpush1.bf16.msra.mxu0 %v1594
  %1767 = vmatprep.subr.bf16.mxu0 %v1597
  %1768 = vmatpush1.bf16.msra.mxu0 %v1596
  %1769 = vmatprep.subr.bf16.mxu0 %v1599
  %1770 = vmatpush1.bf16.msra.mxu0 %v1598
  %1771 = vmatprep.subr.bf16.mxu0 %v1601
  %1772 = vmatpush1.bf16.msra.mxu0 %v1600
  %1773 = vmatprep.subr.bf16.mxu0 %v1603
  %1774 = vmatpush1.bf16.msra.mxu0 %v1602
  %1775 = vmatprep.mubr.bf16.mxu0 %v1320
  %1776 = vmatmul.mubr.bf16.gmra.mrb[0].mxu0 %v1319
  %v1777 = vpop.f32.mrb[0].mxu0
  %v1778 = vadd.f32 0.0, %v1777
  %v1779 = vpop.f32.mrb[0].mxu0
  %v1780 = vadd.f32 0.0, %v1779
  %v1781 = vpop.f32.mrb[0].mxu0
  %v1782 = vadd.f32 0.0, %v1781
  %v1783 = vpop.f32.mrb[0].mxu0
  %v1784 = vadd.f32 0.0, %v1783
  %1785 = vdwg.mxu0
  %1786 = vmatprep.subr.bf16.mxu0 %v1605
  %1787 = vmatpush1.bf16.msra.mxu0 %v1604
  %1788 = vmatprep.subr.bf16.mxu0 %v1607
  %1789 = vmatpush1.bf16.msra.mxu0 %v1606
  %1790 = vmatprep.subr.bf16.mxu0 %v1609
  %1791 = vmatpush1.bf16.msra.mxu0 %v1608
  %1792 = vmatprep.subr.bf16.mxu0 %v1611
  %1793 = vmatpush1.bf16.msra.mxu0 %v1610
  %1794 = vmatprep.subr.bf16.mxu0 %v1613
  %1795 = vmatpush1.bf16.msra.mxu0 %v1612
  %1796 = vmatprep.subr.bf16.mxu0 %v1615
  %1797 = vmatpush1.bf16.msra.mxu0 %v1614
  %1798 = vmatprep.subr.bf16.mxu0 %v1617
  %1799 = vmatpush1.bf16.msra.mxu0 %v1616
  %1800 = vmatprep.subr.bf16.mxu0 %v1619
  %1801 = vmatpush1.bf16.msra.mxu0 %v1618
  %1802 = vmatprep.subr.bf16.mxu0 %v1621
  %1803 = vmatpush1.bf16.msra.mxu0 %v1620
  %1804 = vmatprep.subr.bf16.mxu0 %v1623
  %1805 = vmatpush1.bf16.msra.mxu0 %v1622
  %1806 = vmatprep.subr.bf16.mxu0 %v1625
  %1807 = vmatpush1.bf16.msra.mxu0 %v1624
  %1808 = vmatprep.subr.bf16.mxu0 %v1627
  %1809 = vmatpush1.bf16.msra.mxu0 %v1626
  %1810 = vmatprep.subr.bf16.mxu0 %v1629
  %1811 = vmatpush1.bf16.msra.mxu0 %v1628
  %1812 = vmatprep.subr.bf16.mxu0 %v1631
  %1813 = vmatpush1.bf16.msra.mxu0 %v1630
  %1814 = vmatprep.subr.bf16.mxu0 %v1633
  %1815 = vmatpush1.bf16.msra.mxu0 %v1632
  %1816 = vmatprep.subr.bf16.mxu0 %v1635
  %1817 = vmatpush1.bf16.msra.mxu0 %v1634
  %1818 = vmatprep.mubr.bf16.mxu0 %v1322
  %1819 = vmatmul.mubr.bf16.gmra.mrb[0].mxu0 %v1321
  %v1820 = vpop.f32.mrb[0].mxu0
  %v1821 = vadd.f32 %v1778, %v1820
  %v1822 = vpop.f32.mrb[0].mxu0
  %v1823 = vadd.f32 %v1780, %v1822
  %v1824 = vpop.f32.mrb[0].mxu0
  %v1825 = vadd.f32 %v1782, %v1824
  %v1826 = vpop.f32.mrb[0].mxu0
  %v1827 = vadd.f32 %v1784, %v1826
  %1828 = vdwg.mxu0
  %1829 = vmatprep.subr.bf16.mxu0 %v1637
  %1830 = vmatpush1.bf16.msra.mxu0 %v1636
  %1831 = vmatprep.subr.bf16.mxu0 %v1639
  %1832 = vmatpush1.bf16.msra.mxu0 %v1638
  %1833 = vmatprep.subr.bf16.mxu0 %v1641
  %1834 = vmatpush1.bf16.msra.mxu0 %v1640
  %1835 = vmatprep.subr.bf16.mxu0 %v1643
  %1836 = vmatpush1.bf16.msra.mxu0 %v1642
  %1837 = vmatprep.subr.bf16.mxu0 %v1645
  %1838 = vmatpush1.bf16.msra.mxu0 %v1644
  %1839 = vmatprep.subr.bf16.mxu0 %v1647
  %1840 = vmatpush1.bf16.msra.mxu0 %v1646
  %1841 = vmatprep.subr.bf16.mxu0 %v1649
  %1842 = vmatpush1.bf16.msra.mxu0 %v1648
  %1843 = vmatprep.subr.bf16.mxu0 %v1651
  %1844 = vmatpush1.bf16.msra.mxu0 %v1650
  %1845 = vmatprep.subr.bf16.mxu0 %v1741
  %1846 = vmatpush1.bf16.msra.mxu0 %v1738
  %1847 = vmatprep.subr.bf16.mxu0 0
  %1848 = vmatpush1.bf16.msra.mxu0 0
  %1849 = vmatprep.subr.bf16.mxu0 0
  %1850 = vmatpush1.bf16.msra.mxu0 0
  %1851 = vmatprep.subr.bf16.mxu0 0
  %1852 = vmatpush1.bf16.msra.mxu0 0
  %1853 = vmatprep.subr.bf16.mxu0 0
  %1854 = vmatpush1.bf16.msra.mxu0 0
  %1855 = vmatprep.subr.bf16.mxu0 0
  %1856 = vmatpush1.bf16.msra.mxu0 0
  %1857 = vmatprep.subr.bf16.mxu0 0
  %1858 = vmatpush1.bf16.msra.mxu0 0
  %1859 = vmatprep.subr.bf16.mxu0 0
  %1860 = vmatpush1.bf16.msra.mxu0 0
  %1861 = vmatprep.mubr.bf16.mxu0 %v1735
  %1862 = vmatmul.mubr.bf16.gmra.mrb[0].mxu0 %v1323
  %v1863 = vpop.f32.mrb[0].mxu0
  %v1864 = vadd.f32 %v1821, %v1863
  %v1865 = vpop.f32.mrb[0].mxu0
  %v1866 = vadd.f32 %v1823, %v1865
  %v1867 = vpop.f32.mrb[0].mxu0
  %v1868 = vadd.f32 %v1825, %v1867
  %v1869 = vpop.f32.mrb[0].mxu0
  %v1870 = vadd.f32 %v1827, %v1869
  %1871 = vdwg.mxu0
  %v1872 = vld [vmem:[%s13] sm:$0x3]
  %1873 = vst [vmem:[%s14] sm:$0xff] 0.0
  %1874 = vst [vmem:[%s14 + $0x8] sm:$0xff] 0.0
  %1875 = vst [vmem:[%s14 + $0x10] sm:$0xff] 0.0
  %1876 = vst.msk [vmem:[%s14 + $0x18] sm:$0xff] %vm446, 0.0
  %1877 = vst [vmem:[%s14 + $0x20] sm:$0xff] 0.0
  %1878 = vst [vmem:[%s14 + $0x28] sm:$0xff] 0.0
  %1879 = vst [vmem:[%s14 + $0x30] sm:$0xff] 0.0
  %1880 = vst.msk [vmem:[%s14 + $0x38] sm:$0xff] %vm446, 0.0
  %v1881 = vmax.f32 %v1864, 0.0
  %v1882 = vmax.f32 %v1866, 0.0
  %v1883 = vmax.f32 %v1868, 0.0
  %v1884 = vmax.f32 %v1870, 0.0
  %v1886 = vlaneseq
  %v1887 = vshrl.u32 %v1886, 7
  %v1888 = vsub.s32 0, %v1887
  %v1889 = vrot.slane %v1872, %v1888
  %v1890 = vlaneseq
  %v1891 = vshrl.u32 %v1890, 7
  %v1892 = vsub.s32 1, %v1891
  %v1893 = vrot.slane %v1872, %v1892
  %v1896 = vmul.f32 %v1889, %v1881
  %v1897 = vmul.f32 %v1893, %v1882
  %v1898 = vmul.f32 %v1889, %v1883
  %v1899 = vmul.f32 %v1893, %v1884
  %1900 = vst [vmem:[%s14 + $0x8] sm:$0xff] %v1896
  %1901 = vst.msk [vmem:[%s14 + $0x10] sm:$0xff] %vm446, %v1897
  %1902 = vst [vmem:[%s14 + $0x28] sm:$0xff] %v1898
  %1903 = vst.msk [vmem:[%s14 + $0x30] sm:$0xff] %vm446, %v1899
  %v1904 = vld [vmem:[%s14] sm:$0xff]
  %v1905 = vld [vmem:[%s14 + $0x8] sm:$0xff]
  %v1906 = vld [vmem:[%s14 + $0x10] sm:$0xff]
  %v1907 = vld [vmem:[%s14 + $0x20] sm:$0xff]
  %v1908 = vld [vmem:[%s14 + $0x28] sm:$0xff]
  %v1909 = vld [vmem:[%s14 + $0x30] sm:$0xff]
  %1916 = vrot.lane.b32.xlu0 %v1904, 127
  %v1917 = vpop.permute.xlu0 %1916
  %1918 = vrot.lane.b32.xlu0 %v1905, 127
  %v1919 = vpop.permute.xlu0 %1918
  %1920 = vrot.lane.b32.xlu0 %v1906, 127
  %v1921 = vpop.permute.xlu0 %1920
  %1922 = vrot.lane.b32.xlu0 %v1907, 127
  %v1923 = vpop.permute.xlu0 %1922
  %1924 = vrot.lane.b32.xlu0 %v1908, 127
  %v1925 = vpop.permute.xlu0 %1924
  %1926 = vrot.lane.b32.xlu0 %v1909, 127
  %v1927 = vpop.permute.xlu0 %1926
  %v1928 = vsel %vm73, %v1917, %v1919
  %v1929 = vsel %vm73, %v1919, %v1921
  %v1930 = vsel %vm73, %v1923, %v1925
  %v1931 = vsel %vm73, %v1925, %v1927
  %1938 = vrot.lane.b32.xlu0 %v1904, 126
  %v1939 = vpop.permute.xlu0 %1938
  %1940 = vrot.lane.b32.xlu0 %v1905, 126
  %v1941 = vpop.permute.xlu0 %1940
  %1942 = vrot.lane.b32.xlu0 %v1906, 126
  %v1943 = vpop.permute.xlu0 %1942
  %1944 = vrot.lane.b32.xlu0 %v1907, 126
  %v1945 = vpop.permute.xlu0 %1944
  %1946 = vrot.lane.b32.xlu0 %v1908, 126
  %v1947 = vpop.permute.xlu0 %1946
  %1948 = vrot.lane.b32.xlu0 %v1909, 126
  %v1949 = vpop.permute.xlu0 %1948
  %v1950 = vsel %vm97, %v1939, %v1941
  %v1951 = vsel %vm97, %v1941, %v1943
  %v1952 = vsel %vm97, %v1945, %v1947
  %v1953 = vsel %vm97, %v1947, %v1949
  %1960 = vrot.lane.b32.xlu0 %v1904, 118
  %v1961 = vpop.permute.xlu0 %1960
  %1962 = vrot.lane.b32.xlu0 %v1905, 118
  %v1963 = vpop.permute.xlu0 %1962
  %1964 = vrot.lane.b32.xlu0 %v1906, 118
  %v1965 = vpop.permute.xlu0 %1964
  %1966 = vrot.lane.b32.xlu0 %v1907, 118
  %v1967 = vpop.permute.xlu0 %1966
  %1968 = vrot.lane.b32.xlu0 %v1908, 118
  %v1969 = vpop.permute.xlu0 %1968
  %1970 = vrot.lane.b32.xlu0 %v1909, 118
  %v1971 = vpop.permute.xlu0 %1970
  %vm1972 = vcmask 965632
  %v1973 = vsel %vm1972, %v1961, %v1963
  %v1974 = vsel %vm1972, %v1963, %v1965
  %v1975 = vsel %vm1972, %v1967, %v1969
  %v1976 = vsel %vm1972, %v1969, %v1971
  %1983 = vrot.lane.b32.xlu0 %v1905, 117
  %v1984 = vpop.permute.xlu0 %1983
  %1985 = vrot.lane.b32.xlu0 %v1906, 117
  %v1986 = vpop.permute.xlu0 %1985
  %1987 = vrot.lane.b32.xlu0 %v1908, 117
  %v1988 = vpop.permute.xlu0 %1987
  %1989 = vrot.lane.b32.xlu0 %v1909, 117
  %v1990 = vpop.permute.xlu0 %1989
  %vm1991 = vcmask 957440
  %v1992 = vsel %vm1991, %v1984, %v1986
  %v1993 = vsel %vm1991, %v1988, %v1990
  %2000 = vrot.lane.b32.xlu0 %v1905, 116
  %v2001 = vpop.permute.xlu0 %2000
  %2002 = vrot.lane.b32.xlu0 %v1906, 116
  %v2003 = vpop.permute.xlu0 %2002
  %2004 = vrot.lane.b32.xlu0 %v1908, 116
  %v2005 = vpop.permute.xlu0 %2004
  %2006 = vrot.lane.b32.xlu0 %v1909, 116
  %v2007 = vpop.permute.xlu0 %2006
  %vm2008 = vcmask 949248
  %v2009 = vsel %vm2008, %v2001, %v2003
  %v2010 = vsel %vm2008, %v2005, %v2007
  %2017 = vrot.lane.b32.xlu0 %v1905, 108
  %v2018 = vpop.permute.xlu0 %2017
  %2019 = vrot.lane.b32.xlu0 %v1906, 108
  %v2020 = vpop.permute.xlu0 %2019
  %2021 = vrot.lane.b32.xlu0 %v1908, 108
  %v2022 = vpop.permute.xlu0 %2021
  %2023 = vrot.lane.b32.xlu0 %v1909, 108
  %v2024 = vpop.permute.xlu0 %2023
  %v2025 = vsel %vm173, %v2018, %v2020
  %v2026 = vsel %vm173, %v2022, %v2024
  %2033 = vrot.lane.b32.xlu0 %v1905, 107
  %v2034 = vpop.permute.xlu0 %2033
  %2035 = vrot.lane.b32.xlu0 %v1906, 107
  %v2036 = vpop.permute.xlu0 %2035
  %2037 = vrot.lane.b32.xlu0 %v1908, 107
  %v2038 = vpop.permute.xlu0 %2037
  %2039 = vrot.lane.b32.xlu0 %v1909, 107
  %v2040 = vpop.permute.xlu0 %2039
  %vm2041 = vcmask 875520
  %v2042 = vsel %vm2041, %v2034, %v2036
  %v2043 = vsel %vm2041, %v2038, %v2040
  %2050 = vrot.lane.b32.xlu0 %v1905, 106
  %v2051 = vpop.permute.xlu0 %2050
  %2052 = vrot.lane.b32.xlu0 %v1906, 106
  %v2053 = vpop.permute.xlu0 %2052
  %2054 = vrot.lane.b32.xlu0 %v1908, 106
  %v2055 = vpop.permute.xlu0 %2054
  %2056 = vrot.lane.b32.xlu0 %v1909, 106
  %v2057 = vpop.permute.xlu0 %2056
  %vm2058 = vcmask 867328
  %v2059 = vsel %vm2058, %v2051, %v2053
  %v2060 = vsel %vm2058, %v2055, %v2057
  %v2067 = vpack.c.bf16 %v1907, %v1904
  %v2068 = vpack.c.bf16 %v1908, %v1905
  %v2069 = vpack.c.bf16 %v1909, %v1906
  %v2070 = vpack.c.bf16 %v1930, %v1928
  %v2071 = vpack.c.bf16 %v1931, %v1929
  %v2072 = vpack.c.bf16 %v1927, %v1921
  %v2073 = vpack.c.bf16 %v1952, %v1950
  %v2074 = vpack.c.bf16 %v1953, %v1951
  %v2075 = vpack.c.bf16 %v1949, %v1943
  %v2076 = vpack.c.bf16 %v1975, %v1973
  %v2077 = vpack.c.bf16 %v1976, %v1974
  %v2078 = vpack.c.bf16 %v1971, %v1965
  %v2079 = vpack.c.bf16 %v1988, %v1984
  %v2080 = vpack.c.bf16 %v1993, %v1992
  %v2081 = vpack.c.bf16 %v1990, %v1986
  %v2082 = vpack.c.bf16 %v2005, %v2001
  %v2083 = vpack.c.bf16 %v2010, %v2009
  %v2084 = vpack.c.bf16 %v2007, %v2003
  %v2085 = vpack.c.bf16 %v2022, %v2018
  %v2086 = vpack.c.bf16 %v2026, %v2025
  %v2087 = vpack.c.bf16 %v2024, %v2020
  %v2088 = vpack.c.bf16 %v2038, %v2034
  %v2089 = vpack.c.bf16 %v2043, %v2042
  %v2090 = vpack.c.bf16 %v2040, %v2036
  %v2091 = vpack.c.bf16 %v2055, %v2051
  %v2092 = vpack.c.bf16 %v2060, %v2059
  %v2093 = vpack.c.bf16 %v2057, %v2053
  %v2094 = vld [vmem:[%s5] sm:$0xff]
  %v2095 = vld [vmem:[%s5 + $0x8] sm:$0xff]
  %v2096 = vld [vmem:[%s6] sm:$0xff]
  %v2097 = vld [vmem:[%s6 + $0x8] sm:$0xff]
  %2099 = vset.pattern.permute.xlu0 0
  %2100 = vperm.xlu0 %2099, %v2096
  %v2101 = vpop.permute.xlu0 %2100
  %2104 = vset.pattern.permute.xlu0 0
  %2105 = vperm.xlu0 %2104, %v2097
  %v2106 = vpop.permute.xlu0 %2105
  %v2110 = vunpack.c.l.b16 %v2094
  %v2111 = vunpack.c.h.b16 %v2094
  %v2112 = vunpack.c.l.b16 %v2095
  %v2113 = vunpack.c.h.b16 %v2095
  %v2114 = vpack.c.b16 %v2112, %v2110
  %v2115 = vpack.c.b16 %v2113, %v2111
  %2144 = vrot.lane.b32.xlu0 %v2067, 11
  %v2145 = vpop.permute.xlu0 %2144
  %2146 = vrot.lane.b32.xlu0 %v2068, 11
  %v2147 = vpop.permute.xlu0 %2146
  %2148 = vrot.lane.b32.xlu0 %v2069, 11
  %v2149 = vpop.permute.xlu0 %2148
  %2150 = vrot.lane.b32.xlu0 %v2070, 11
  %v2151 = vpop.permute.xlu0 %2150
  %2152 = vrot.lane.b32.xlu0 %v2071, 11
  %v2153 = vpop.permute.xlu0 %2152
  %2154 = vrot.lane.b32.xlu0 %v2072, 11
  %v2155 = vpop.permute.xlu0 %2154
  %2156 = vrot.lane.b32.xlu0 %v2073, 11
  %v2157 = vpop.permute.xlu0 %2156
  %2158 = vrot.lane.b32.xlu0 %v2074, 11
  %v2159 = vpop.permute.xlu0 %2158
  %2160 = vrot.lane.b32.xlu0 %v2075, 11
  %v2161 = vpop.permute.xlu0 %2160
  %2162 = vrot.lane.b32.xlu0 %v2076, 11
  %v2163 = vpop.permute.xlu0 %2162
  %2164 = vrot.lane.b32.xlu0 %v2077, 11
  %v2165 = vpop.permute.xlu0 %2164
  %2166 = vrot.lane.b32.xlu0 %v2078, 11
  %v2167 = vpop.permute.xlu0 %2166
  %2168 = vrot.lane.b32.xlu0 %v2079, 11
  %v2169 = vpop.permute.xlu0 %2168
  %2170 = vrot.lane.b32.xlu0 %v2080, 11
  %v2171 = vpop.permute.xlu0 %2170
  %2172 = vrot.lane.b32.xlu0 %v2081, 11
  %v2173 = vpop.permute.xlu0 %2172
  %2174 = vrot.lane.b32.xlu0 %v2082, 11
  %v2175 = vpop.permute.xlu0 %2174
  %2176 = vrot.lane.b32.xlu0 %v2083, 11
  %v2177 = vpop.permute.xlu0 %2176
  %2178 = vrot.lane.b32.xlu0 %v2084, 11
  %v2179 = vpop.permute.xlu0 %2178
  %2180 = vrot.lane.b32.xlu0 %v2085, 11
  %v2181 = vpop.permute.xlu0 %2180
  %2182 = vrot.lane.b32.xlu0 %v2086, 11
  %v2183 = vpop.permute.xlu0 %2182
  %2184 = vrot.lane.b32.xlu0 %v2087, 11
  %v2185 = vpop.permute.xlu0 %2184
  %2186 = vrot.lane.b32.xlu0 %v2088, 11
  %v2187 = vpop.permute.xlu0 %2186
  %2188 = vrot.lane.b32.xlu0 %v2089, 11
  %v2189 = vpop.permute.xlu0 %2188
  %2190 = vrot.lane.b32.xlu0 %v2090, 11
  %v2191 = vpop.permute.xlu0 %2190
  %2192 = vrot.lane.b32.xlu0 %v2091, 11
  %v2193 = vpop.permute.xlu0 %2192
  %2194 = vrot.lane.b32.xlu0 %v2092, 11
  %v2195 = vpop.permute.xlu0 %2194
  %2196 = vrot.lane.b32.xlu0 %v2093, 11
  %v2197 = vpop.permute.xlu0 %2196
  %vm2198 = vcmask 89088
  %v2199 = vsel %vm2198, %v2145, %v2147
  %v2200 = vsel %vm2198, %v2147, %v2149
  %v2201 = vsel %vm2198, %v2151, %v2153
  %v2202 = vsel %vm2198, %v2153, %v2155
  %v2203 = vsel %vm2198, %v2157, %v2159
  %v2204 = vsel %vm2198, %v2159, %v2161
  %v2205 = vsel %vm2198, %v2163, %v2165
  %v2206 = vsel %vm2198, %v2165, %v2167
  %v2207 = vsel %vm2198, %v2169, %v2171
  %v2208 = vsel %vm2198, %v2171, %v2173
  %v2209 = vsel %vm2198, %v2175, %v2177
  %v2210 = vsel %vm2198, %v2177, %v2179
  %v2211 = vsel %vm2198, %v2181, %v2183
  %v2212 = vsel %vm2198, %v2183, %v2185
  %v2213 = vsel %vm2198, %v2187, %v2189
  %v2214 = vsel %vm2198, %v2189, %v2191
  %v2215 = vsel %vm2198, %v2193, %v2195
  %v2216 = vsel %vm2198, %v2195, %v2197
  %vm2235 = vcmask 130048
  %v2237 = vsel %vm2235, %v2115, 0
  %2239 = vmatprep.subr.bf16.mxu0 %v2200
  %2240 = vmatpush1.bf16.msra.mxu0 %v2199
  %2241 = vmatprep.subr.bf16.mxu0 %v2202
  %2242 = vmatpush1.bf16.msra.mxu0 %v2201
  %2243 = vmatprep.subr.bf16.mxu0 %v2204
  %2244 = vmatpush1.bf16.msra.mxu0 %v2203
  %2245 = vmatprep.subr.bf16.mxu0 %v2206
  %2246 = vmatpush1.bf16.msra.mxu0 %v2205
  %2247 = vmatprep.subr.bf16.mxu0 %v2208
  %2248 = vmatpush1.bf16.msra.mxu0 %v2207
  %2249 = vmatprep.subr.bf16.mxu0 %v2210
  %2250 = vmatpush1.bf16.msra.mxu0 %v2209
  %2251 = vmatprep.subr.bf16.mxu0 %v2212
  %2252 = vmatpush1.bf16.msra.mxu0 %v2211
  %2253 = vmatprep.subr.bf16.mxu0 %v2214
  %2254 = vmatpush1.bf16.msra.mxu0 %v2213
  %2255 = vmatprep.subr.bf16.mxu0 %v2216
  %2256 = vmatpush1.bf16.msra.mxu0 %v2215
  %2257 = vmatprep.subr.bf16.mxu0 0
  %2258 = vmatpush1.bf16.msra.mxu0 0
  %2259 = vmatprep.subr.bf16.mxu0 0
  %2260 = vmatpush1.bf16.msra.mxu0 0
  %2261 = vmatprep.subr.bf16.mxu0 0
  %2262 = vmatpush1.bf16.msra.mxu0 0
  %2263 = vmatprep.subr.bf16.mxu0 0
  %2264 = vmatpush1.bf16.msra.mxu0 0
  %2265 = vmatprep.subr.bf16.mxu0 0
  %2266 = vmatpush1.bf16.msra.mxu0 0
  %2267 = vmatprep.subr.bf16.mxu0 0
  %2268 = vmatpush1.bf16.msra.mxu0 0
  %2269 = vmatprep.subr.bf16.mxu0 0
  %2270 = vmatpush1.bf16.msra.mxu0 0
  %2271 = vmatprep.mubr.bf16.mxu0 %v2237
  %2272 = vmatmul.mubr.bf16.gmra.mrb[0].mxu0 %v2114
  %v2273 = vpop.f32.mrb[0].mxu0
  %v2274 = vadd.f32 %v2101, %v2273
  %v2275 = vpop.f32.mrb[0].mxu0
  %v2276 = vadd.f32 %v2101, %v2275
  %v2277 = vpop.f32.mrb[0].mxu0
  %v2278 = vadd.f32 %v2106, %v2277
  %v2279 = vpop.f32.mrb[0].mxu0
  %v2280 = vadd.f32 %v2106, %v2279
  %2281 = vdwg.mxu0
  %v2282 = vmax.f32 %v2274, 0.0
  %v2283 = vmax.f32 %v2276, 0.0
  %v2284 = vmax.f32 %v2278, 0.0
  %v2285 = vmax.f32 %v2280, 0.0
  %v2286 = vmul.f32 %v1889, %v2282
  %v2287 = vmul.f32 %v1893, %v2283
  %v2288 = vmul.f32 %v1889, %v2284
  %v2289 = vmul.f32 %v1893, %v2285
  %2290 = vst [vmem:[%s14 + $0x8] sm:$0xff] %v2286
  %2291 = vst.msk [vmem:[%s14 + $0x10] sm:$0xff] %vm446, %v2287
  %2292 = vst [vmem:[%s14 + $0x28] sm:$0xff] %v2288
  %2293 = vst.msk [vmem:[%s14 + $0x30] sm:$0xff] %vm446, %v2289
  %v2294 = vld [vmem:[%s14] sm:$0xff]
  %v2295 = vld [vmem:[%s14 + $0x8] sm:$0xff]
  %v2296 = vld [vmem:[%s14 + $0x10] sm:$0xff]
  %v2297 = vld [vmem:[%s14 + $0x20] sm:$0xff]
  %v2298 = vld [vmem:[%s14 + $0x28] sm:$0xff]
  %v2299 = vld [vmem:[%s14 + $0x30] sm:$0xff]
  %2306 = vrot.lane.b32.xlu0 %v2294, 127
  %v2307 = vpop.permute.xlu0 %2306
  %2308 = vrot.lane.b32.xlu0 %v2295, 127
  %v2309 = vpop.permute.xlu0 %2308
  %2310 = vrot.lane.b32.xlu0 %v2296, 127
  %v2311 = vpop.permute.xlu0 %2310
  %2312 = vrot.lane.b32.xlu0 %v2297, 127
  %v2313 = vpop.permute.xlu0 %2312
  %2314 = vrot.lane.b32.xlu0 %v2298, 127
  %v2315 = vpop.permute.xlu0 %2314
  %2316 = vrot.lane.b32.xlu0 %v2299, 127
  %v2317 = vpop.permute.xlu0 %2316
  %v2318 = vsel %vm73, %v2307, %v2309
  %v2319 = vsel %vm73, %v2309, %v2311
  %v2320 = vsel %vm73, %v2313, %v2315
  %v2321 = vsel %vm73, %v2315, %v2317
  %2328 = vrot.lane.b32.xlu0 %v2294, 126
  %v2329 = vpop.permute.xlu0 %2328
  %2330 = vrot.lane.b32.xlu0 %v2295, 126
  %v2331 = vpop.permute.xlu0 %2330
  %2332 = vrot.lane.b32.xlu0 %v2296, 126
  %v2333 = vpop.permute.xlu0 %2332
  %2334 = vrot.lane.b32.xlu0 %v2297, 126
  %v2335 = vpop.permute.xlu0 %2334
  %2336 = vrot.lane.b32.xlu0 %v2298, 126
  %v2337 = vpop.permute.xlu0 %2336
  %2338 = vrot.lane.b32.xlu0 %v2299, 126
  %v2339 = vpop.permute.xlu0 %2338
  %v2340 = vsel %vm97, %v2329, %v2331
  %v2341 = vsel %vm97, %v2331, %v2333
  %v2342 = vsel %vm97, %v2335, %v2337
  %v2343 = vsel %vm97, %v2337, %v2339
  %2350 = vrot.lane.b32.xlu0 %v2294, 118
  %v2351 = vpop.permute.xlu0 %2350
  %2352 = vrot.lane.b32.xlu0 %v2295, 118
  %v2353 = vpop.permute.xlu0 %2352
  %2354 = vrot.lane.b32.xlu0 %v2296, 118
  %v2355 = vpop.permute.xlu0 %2354
  %2356 = vrot.lane.b32.xlu0 %v2297, 118
  %v2357 = vpop.permute.xlu0 %2356
  %2358 = vrot.lane.b32.xlu0 %v2298, 118
  %v2359 = vpop.permute.xlu0 %2358
  %2360 = vrot.lane.b32.xlu0 %v2299, 118
  %v2361 = vpop.permute.xlu0 %2360
  %v2362 = vsel %vm1972, %v2351, %v2353
  %v2363 = vsel %vm1972, %v2353, %v2355
  %v2364 = vsel %vm1972, %v2357, %v2359
  %v2365 = vsel %vm1972, %v2359, %v2361
  %2372 = vrot.lane.b32.xlu0 %v2295, 117
  %v2373 = vpop.permute.xlu0 %2372
  %2374 = vrot.lane.b32.xlu0 %v2296, 117
  %v2375 = vpop.permute.xlu0 %2374
  %2376 = vrot.lane.b32.xlu0 %v2298, 117
  %v2377 = vpop.permute.xlu0 %2376
  %2378 = vrot.lane.b32.xlu0 %v2299, 117
  %v2379 = vpop.permute.xlu0 %2378
  %v2380 = vsel %vm1991, %v2373, %v2375
  %v2381 = vsel %vm1991, %v2377, %v2379
  %2388 = vrot.lane.b32.xlu0 %v2295, 116
  %v2389 = vpop.permute.xlu0 %2388
  %2390 = vrot.lane.b32.xlu0 %v2296, 116
  %v2391 = vpop.permute.xlu0 %2390
  %2392 = vrot.lane.b32.xlu0 %v2298, 116
  %v2393 = vpop.permute.xlu0 %2392
  %2394 = vrot.lane.b32.xlu0 %v2299, 116
  %v2395 = vpop.permute.xlu0 %2394
  %v2396 = vsel %vm2008, %v2389, %v2391
  %v2397 = vsel %vm2008, %v2393, %v2395
  %2404 = vrot.lane.b32.xlu0 %v2295, 108
  %v2405 = vpop.permute.xlu0 %2404
  %2406 = vrot.lane.b32.xlu0 %v2296, 108
  %v2407 = vpop.permute.xlu0 %2406
  %2408 = vrot.lane.b32.xlu0 %v2298, 108
  %v2409 = vpop.permute.xlu0 %2408
  %2410 = vrot.lane.b32.xlu0 %v2299, 108
  %v2411 = vpop.permute.xlu0 %2410
  %v2412 = vsel %vm173, %v2405, %v2407
  %v2413 = vsel %vm173, %v2409, %v2411
  %2420 = vrot.lane.b32.xlu0 %v2295, 107
  %v2421 = vpop.permute.xlu0 %2420
  %2422 = vrot.lane.b32.xlu0 %v2296, 107
  %v2423 = vpop.permute.xlu0 %2422
  %2424 = vrot.lane.b32.xlu0 %v2298, 107
  %v2425 = vpop.permute.xlu0 %2424
  %2426 = vrot.lane.b32.xlu0 %v2299, 107
  %v2427 = vpop.permute.xlu0 %2426
  %v2428 = vsel %vm2041, %v2421, %v2423
  %v2429 = vsel %vm2041, %v2425, %v2427
  %2436 = vrot.lane.b32.xlu0 %v2295, 106
  %v2437 = vpop.permute.xlu0 %2436
  %2438 = vrot.lane.b32.xlu0 %v2296, 106
  %v2439 = vpop.permute.xlu0 %2438
  %2440 = vrot.lane.b32.xlu0 %v2298, 106
  %v2441 = vpop.permute.xlu0 %2440
  %2442 = vrot.lane.b32.xlu0 %v2299, 106
  %v2443 = vpop.permute.xlu0 %2442
  %v2444 = vsel %vm2058, %v2437, %v2439
  %v2445 = vsel %vm2058, %v2441, %v2443
  %v2452 = vpack.c.bf16 %v2297, %v2294
  %v2453 = vpack.c.bf16 %v2298, %v2295
  %v2454 = vpack.c.bf16 %v2299, %v2296
  %v2455 = vpack.c.bf16 %v2320, %v2318
  %v2456 = vpack.c.bf16 %v2321, %v2319
  %v2457 = vpack.c.bf16 %v2317, %v2311
  %v2458 = vpack.c.bf16 %v2342, %v2340
  %v2459 = vpack.c.bf16 %v2343, %v2341
  %v2460 = vpack.c.bf16 %v2339, %v2333
  %v2461 = vpack.c.bf16 %v2364, %v2362
  %v2462 = vpack.c.bf16 %v2365, %v2363
  %v2463 = vpack.c.bf16 %v2361, %v2355
  %v2464 = vpack.c.bf16 %v2377, %v2373
  %v2465 = vpack.c.bf16 %v2381, %v2380
  %v2466 = vpack.c.bf16 %v2379, %v2375
  %v2467 = vpack.c.bf16 %v2393, %v2389
  %v2468 = vpack.c.bf16 %v2397, %v2396
  %v2469 = vpack.c.bf16 %v2395, %v2391
  %v2470 = vpack.c.bf16 %v2409, %v2405
  %v2471 = vpack.c.bf16 %v2413, %v2412
  %v2472 = vpack.c.bf16 %v2411, %v2407
  %v2473 = vpack.c.bf16 %v2425, %v2421
  %v2474 = vpack.c.bf16 %v2429, %v2428
  %v2475 = vpack.c.bf16 %v2427, %v2423
  %v2476 = vpack.c.bf16 %v2441, %v2437
  %v2477 = vpack.c.bf16 %v2445, %v2444
  %v2478 = vpack.c.bf16 %v2443, %v2439
  %v2479 = vld [vmem:[%s7] sm:$0xff]
  %v2480 = vld [vmem:[%s7 + $0x8] sm:$0xff]
  %v2481 = vld [vmem:[%s8] sm:$0xff]
  %v2482 = vld [vmem:[%s8 + $0x8] sm:$0xff]
  %2484 = vset.pattern.permute.xlu0 0
  %2485 = vperm.xlu0 %2484, %v2481
  %v2486 = vpop.permute.xlu0 %2485
  %2489 = vset.pattern.permute.xlu0 0
  %2490 = vperm.xlu0 %2489, %v2482
  %v2491 = vpop.permute.xlu0 %2490
  %v2495 = vunpack.c.l.b16 %v2479
  %v2496 = vunpack.c.h.b16 %v2479
  %v2497 = vunpack.c.l.b16 %v2480
  %v2498 = vunpack.c.h.b16 %v2480
  %v2499 = vpack.c.b16 %v2497, %v2495
  %v2500 = vpack.c.b16 %v2498, %v2496
  %2529 = vrot.lane.b32.xlu0 %v2452, 11
  %v2530 = vpop.permute.xlu0 %2529
  %2531 = vrot.lane.b32.xlu0 %v2453, 11
  %v2532 = vpop.permute.xlu0 %2531
  %2533 = vrot.lane.b32.xlu0 %v2454, 11
  %v2534 = vpop.permute.xlu0 %2533
  %2535 = vrot.lane.b32.xlu0 %v2455, 11
  %v2536 = vpop.permute.xlu0 %2535
  %2537 = vrot.lane.b32.xlu0 %v2456, 11
  %v2538 = vpop.permute.xlu0 %2537
  %2539 = vrot.lane.b32.xlu0 %v2457, 11
  %v2540 = vpop.permute.xlu0 %2539
  %2541 = vrot.lane.b32.xlu0 %v2458, 11
  %v2542 = vpop.permute.xlu0 %2541
  %2543 = vrot.lane.b32.xlu0 %v2459, 11
  %v2544 = vpop.permute.xlu0 %2543
  %2545 = vrot.lane.b32.xlu0 %v2460, 11
  %v2546 = vpop.permute.xlu0 %2545
  %2547 = vrot.lane.b32.xlu0 %v2461, 11
  %v2548 = vpop.permute.xlu0 %2547
  %2549 = vrot.lane.b32.xlu0 %v2462, 11
  %v2550 = vpop.permute.xlu0 %2549
  %2551 = vrot.lane.b32.xlu0 %v2463, 11
  %v2552 = vpop.permute.xlu0 %2551
  %2553 = vrot.lane.b32.xlu0 %v2464, 11
  %v2554 = vpop.permute.xlu0 %2553
  %2555 = vrot.lane.b32.xlu0 %v2465, 11
  %v2556 = vpop.permute.xlu0 %2555
  %2557 = vrot.lane.b32.xlu0 %v2466, 11
  %v2558 = vpop.permute.xlu0 %2557
  %2559 = vrot.lane.b32.xlu0 %v2467, 11
  %v2560 = vpop.permute.xlu0 %2559
  %2561 = vrot.lane.b32.xlu0 %v2468, 11
  %v2562 = vpop.permute.xlu0 %2561
  %2563 = vrot.lane.b32.xlu0 %v2469, 11
  %v2564 = vpop.permute.xlu0 %2563
  %2565 = vrot.lane.b32.xlu0 %v2470, 11
  %v2566 = vpop.permute.xlu0 %2565
  %2567 = vrot.lane.b32.xlu0 %v2471, 11
  %v2568 = vpop.permute.xlu0 %2567
  %2569 = vrot.lane.b32.xlu0 %v2472, 11
  %v2570 = vpop.permute.xlu0 %2569
  %2571 = vrot.lane.b32.xlu0 %v2473, 11
  %v2572 = vpop.permute.xlu0 %2571
  %2573 = vrot.lane.b32.xlu0 %v2474, 11
  %v2574 = vpop.permute.xlu0 %2573
  %2575 = vrot.lane.b32.xlu0 %v2475, 11
  %v2576 = vpop.permute.xlu0 %2575
  %2577 = vrot.lane.b32.xlu0 %v2476, 11
  %v2578 = vpop.permute.xlu0 %2577
  %2579 = vrot.lane.b32.xlu0 %v2477, 11
  %v2580 = vpop.permute.xlu0 %2579
  %2581 = vrot.lane.b32.xlu0 %v2478, 11
  %v2582 = vpop.permute.xlu0 %2581
  %v2583 = vsel %vm2198, %v2530, %v2532
  %v2584 = vsel %vm2198, %v2532, %v2534
  %v2585 = vsel %vm2198, %v2536, %v2538
  %v2586 = vsel %vm2198, %v2538, %v2540
  %v2587 = vsel %vm2198, %v2542, %v2544
  %v2588 = vsel %vm2198, %v2544, %v2546
  %v2589 = vsel %vm2198, %v2548, %v2550
  %v2590 = vsel %vm2198, %v2550, %v2552
  %v2591 = vsel %vm2198, %v2554, %v2556
  %v2592 = vsel %vm2198, %v2556, %v2558
  %v2593 = vsel %vm2198, %v2560, %v2562
  %v2594 = vsel %vm2198, %v2562, %v2564
  %v2595 = vsel %vm2198, %v2566, %v2568
  %v2596 = vsel %vm2198, %v2568, %v2570
  %v2597 = vsel %vm2198, %v2572, %v2574
  %v2598 = vsel %vm2198, %v2574, %v2576
  %v2599 = vsel %vm2198, %v2578, %v2580
  %v2600 = vsel %vm2198, %v2580, %v2582
  %v2620 = vsel %vm2235, %v2500, 0
  %2622 = vmatprep.subr.bf16.mxu0 %v2584
  %2623 = vmatpush1.bf16.msra.mxu0 %v2583
  %2624 = vmatprep.subr.bf16.mxu0 %v2586
  %2625 = vmatpush1.bf16.msra.mxu0 %v2585
  %2626 = vmatprep.subr.bf16.mxu0 %v2588
  %2627 = vmatpush1.bf16.msra.mxu0 %v2587
  %2628 = vmatprep.subr.bf16.mxu0 %v2590
  %2629 = vmatpush1.bf16.msra.mxu0 %v2589
  %2630 = vmatprep.subr.bf16.mxu0 %v2592
  %2631 = vmatpush1.bf16.msra.mxu0 %v2591
  %2632 = vmatprep.subr.bf16.mxu0 %v2594
  %2633 = vmatpush1.bf16.msra.mxu0 %v2593
  %2634 = vmatprep.subr.bf16.mxu0 %v2596
  %2635 = vmatpush1.bf16.msra.mxu0 %v2595
  %2636 = vmatprep.subr.bf16.mxu0 %v2598
  %2637 = vmatpush1.bf16.msra.mxu0 %v2597
  %2638 = vmatprep.subr.bf16.mxu0 %v2600
  %2639 = vmatpush1.bf16.msra.mxu0 %v2599
  %2640 = vmatprep.subr.bf16.mxu0 0
  %2641 = vmatpush1.bf16.msra.mxu0 0
  %2642 = vmatprep.subr.bf16.mxu0 0
  %2643 = vmatpush1.bf16.msra.mxu0 0
  %2644 = vmatprep.subr.bf16.mxu0 0
  %2645 = vmatpush1.bf16.msra.mxu0 0
  %2646 = vmatprep.subr.bf16.mxu0 0
  %2647 = vmatpush1.bf16.msra.mxu0 0
  %2648 = vmatprep.subr.bf16.mxu0 0
  %2649 = vmatpush1.bf16.msra.mxu0 0
  %2650 = vmatprep.subr.bf16.mxu0 0
  %2651 = vmatpush1.bf16.msra.mxu0 0
  %2652 = vmatprep.subr.bf16.mxu0 0
  %2653 = vmatpush1.bf16.msra.mxu0 0
  %2654 = vmatprep.mubr.bf16.mxu0 %v2620
  %2655 = vmatmul.mubr.bf16.gmra.mrb[0].mxu0 %v2499
  %v2656 = vpop.f32.mrb[0].mxu0
  %v2657 = vadd.f32 %v2486, %v2656
  %v2658 = vpop.f32.mrb[0].mxu0
  %v2659 = vadd.f32 %v2486, %v2658
  %v2660 = vpop.f32.mrb[0].mxu0
  %v2661 = vadd.f32 %v2491, %v2660
  %v2662 = vpop.f32.mrb[0].mxu0
  %v2663 = vadd.f32 %v2491, %v2662
  %2664 = vdwg.mxu0
  %v2665 = vadd.f32 %v2657, %v1864
  %v2666 = vadd.f32 %v2659, %v1866
  %v2667 = vadd.f32 %v2661, %v1868
  %v2668 = vadd.f32 %v2663, %v1870
  %v2669 = vmax.f32 %v2665, 0.0
  %v2670 = vmax.f32 %v2666, 0.0
  %v2671 = vmax.f32 %v2667, 0.0
  %v2672 = vmax.f32 %v2668, 0.0
  %v2673 = vmul.f32 %v1889, %v2669
  %v2674 = vmul.f32 %v1893, %v2670
  %v2675 = vmul.f32 %v1889, %v2671
  %v2676 = vmul.f32 %v1893, %v2672
  %2677 = vst [vmem:[%s14 + $0x8] sm:$0xff] %v2673
  %2678 = vst.msk [vmem:[%s14 + $0x10] sm:$0xff] %vm446, %v2674
  %2679 = vst [vmem:[%s14 + $0x28] sm:$0xff] %v2675
  %2680 = vst.msk [vmem:[%s14 + $0x30] sm:$0xff] %vm446, %v2676
  %v2681 = vld [vmem:[%s14] sm:$0xff]
  %v2682 = vld [vmem:[%s14 + $0x8] sm:$0xff]
  %v2683 = vld [vmem:[%s14 + $0x10] sm:$0xff]
  %v2684 = vld [vmem:[%s14 + $0x20] sm:$0xff]
  %v2685 = vld [vmem:[%s14 + $0x28] sm:$0xff]
  %v2686 = vld [vmem:[%s14 + $0x30] sm:$0xff]
  %2693 = vrot.lane.b32.xlu0 %v2681, 127
  %v2694 = vpop.permute.xlu0 %2693
  %2695 = vrot.lane.b32.xlu0 %v2682, 127
  %v2696 = vpop.permute.xlu0 %2695
  %2697 = vrot.lane.b32.xlu0 %v2683, 127
  %v2698 = vpop.permute.xlu0 %2697
  %2699 = vrot.lane.b32.xlu0 %v2684, 127
  %v2700 = vpop.permute.xlu0 %2699
  %2701 = vrot.lane.b32.xlu0 %v2685, 127
  %v2702 = vpop.permute.xlu0 %2701
  %2703 = vrot.lane.b32.xlu0 %v2686, 127
  %v2704 = vpop.permute.xlu0 %2703
  %v2705 = vsel %vm73, %v2694, %v2696
  %v2706 = vsel %vm73, %v2696, %v2698
  %v2707 = vsel %vm73, %v2700, %v2702
  %v2708 = vsel %vm73, %v2702, %v2704
  %2715 = vrot.lane.b32.xlu0 %v2681, 126
  %v2716 = vpop.permute.xlu0 %2715
  %2717 = vrot.lane.b32.xlu0 %v2682, 126
  %v2718 = vpop.permute.xlu0 %2717
  %2719 = vrot.lane.b32.xlu0 %v2683, 126
  %v2720 = vpop.permute.xlu0 %2719
  %2721 = vrot.lane.b32.xlu0 %v2684, 126
  %v2722 = vpop.permute.xlu0 %2721
  %2723 = vrot.lane.b32.xlu0 %v2685, 126
  %v2724 = vpop.permute.xlu0 %2723
  %2725 = vrot.lane.b32.xlu0 %v2686, 126
  %v2726 = vpop.permute.xlu0 %2725
  %v2727 = vsel %vm97, %v2716, %v2718
  %v2728 = vsel %vm97, %v2718, %v2720
  %v2729 = vsel %vm97, %v2722, %v2724
  %v2730 = vsel %vm97, %v2724, %v2726
  %2737 = vrot.lane.b32.xlu0 %v2681, 118
  %v2738 = vpop.permute.xlu0 %2737
  %2739 = vrot.lane.b32.xlu0 %v2682, 118
  %v2740 = vpop.permute.xlu0 %2739
  %2741 = vrot.lane.b32.xlu0 %v2683, 118
  %v2742 = vpop.permute.xlu0 %2741
  %2743 = vrot.lane.b32.xlu0 %v2684, 118
  %v2744 = vpop.permute.xlu0 %2743
  %2745 = vrot.lane.b32.xlu0 %v2685, 118
  %v2746 = vpop.permute.xlu0 %2745
  %2747 = vrot.lane.b32.xlu0 %v2686, 118
  %v2748 = vpop.permute.xlu0 %2747
  %v2749 = vsel %vm1972, %v2738, %v2740
  %v2750 = vsel %vm1972, %v2740, %v2742
  %v2751 = vsel %vm1972, %v2744, %v2746
  %v2752 = vsel %vm1972, %v2746, %v2748
  %2759 = vrot.lane.b32.xlu0 %v2682, 117
  %v2760 = vpop.permute.xlu0 %2759
  %2761 = vrot.lane.b32.xlu0 %v2683, 117
  %v2762 = vpop.permute.xlu0 %2761
  %2763 = vrot.lane.b32.xlu0 %v2685, 117
  %v2764 = vpop.permute.xlu0 %2763
  %2765 = vrot.lane.b32.xlu0 %v2686, 117
  %v2766 = vpop.permute.xlu0 %2765
  %v2767 = vsel %vm1991, %v2760, %v2762
  %v2768 = vsel %vm1991, %v2764, %v2766
  %2775 = vrot.lane.b32.xlu0 %v2682, 116
  %v2776 = vpop.permute.xlu0 %2775
  %2777 = vrot.lane.b32.xlu0 %v2683, 116
  %v2778 = vpop.permute.xlu0 %2777
  %2779 = vrot.lane.b32.xlu0 %v2685, 116
  %v2780 = vpop.permute.xlu0 %2779
  %2781 = vrot.lane.b32.xlu0 %v2686, 116
  %v2782 = vpop.permute.xlu0 %2781
  %v2783 = vsel %vm2008, %v2776, %v2778
  %v2784 = vsel %vm2008, %v2780, %v2782
  %2791 = vrot.lane.b32.xlu0 %v2682, 108
  %v2792 = vpop.permute.xlu0 %2791
  %2793 = vrot.lane.b32.xlu0 %v2683, 108
  %v2794 = vpop.permute.xlu0 %2793
  %2795 = vrot.lane.b32.xlu0 %v2685, 108
  %v2796 = vpop.permute.xlu0 %2795
  %2797 = vrot.lane.b32.xlu0 %v2686, 108
  %v2798 = vpop.permute.xlu0 %2797
  %v2799 = vsel %vm173, %v2792, %v2794
  %v2800 = vsel %vm173, %v2796, %v2798
  %2807 = vrot.lane.b32.xlu0 %v2682, 107
  %v2808 = vpop.permute.xlu0 %2807
  %2809 = vrot.lane.b32.xlu0 %v2683, 107
  %v2810 = vpop.permute.xlu0 %2809
  %2811 = vrot.lane.b32.xlu0 %v2685, 107
  %v2812 = vpop.permute.xlu0 %2811
  %2813 = vrot.lane.b32.xlu0 %v2686, 107
  %v2814 = vpop.permute.xlu0 %2813
  %v2815 = vsel %vm2041, %v2808, %v2810
  %v2816 = vsel %vm2041, %v2812, %v2814
  %2823 = vrot.lane.b32.xlu0 %v2682, 106
  %v2824 = vpop.permute.xlu0 %2823
  %2825 = vrot.lane.b32.xlu0 %v2683, 106
  %v2826 = vpop.permute.xlu0 %2825
  %2827 = vrot.lane.b32.xlu0 %v2685, 106
  %v2828 = vpop.permute.xlu0 %2827
  %2829 = vrot.lane.b32.xlu0 %v2686, 106
  %v2830 = vpop.permute.xlu0 %2829
  %v2831 = vsel %vm2058, %v2824, %v2826
  %v2832 = vsel %vm2058, %v2828, %v2830
  %v2839 = vpack.c.bf16 %v2684, %v2681
  %v2840 = vpack.c.bf16 %v2685, %v2682
  %v2841 = vpack.c.bf16 %v2686, %v2683
  %v2842 = vpack.c.bf16 %v2707, %v2705
  %v2843 = vpack.c.bf16 %v2708, %v2706
  %v2844 = vpack.c.bf16 %v2704, %v2698
  %v2845 = vpack.c.bf16 %v2729, %v2727
  %v2846 = vpack.c.bf16 %v2730, %v2728
  %v2847 = vpack.c.bf16 %v2726, %v2720
  %v2848 = vpack.c.bf16 %v2751, %v2749
  %v2849 = vpack.c.bf16 %v2752, %v2750
  %v2850 = vpack.c.bf16 %v2748, %v2742
  %v2851 = vpack.c.bf16 %v2764, %v2760
  %v2852 = vpack.c.bf16 %v2768, %v2767
  %v2853 = vpack.c.bf16 %v2766, %v2762
  %v2854 = vpack.c.bf16 %v2780, %v2776
  %v2855 = vpack.c.bf16 %v2784, %v2783
  %v2856 = vpack.c.bf16 %v2782, %v2778
  %v2857 = vpack.c.bf16 %v2796, %v2792
  %v2858 = vpack.c.bf16 %v2800, %v2799
  %v2859 = vpack.c.bf16 %v2798, %v2794
  %v2860 = vpack.c.bf16 %v2812, %v2808
  %v2861 = vpack.c.bf16 %v2816, %v2815
  %v2862 = vpack.c.bf16 %v2814, %v2810
  %v2863 = vpack.c.bf16 %v2828, %v2824
  %v2864 = vpack.c.bf16 %v2832, %v2831
  %v2865 = vpack.c.bf16 %v2830, %v2826
  %v2866 = vld [vmem:[%s9] sm:$0xff]
  %v2867 = vld [vmem:[%s9 + $0x8] sm:$0xff]
  %v2868 = vld [vmem:[%s10] sm:$0xff]
  %v2869 = vld [vmem:[%s10 + $0x8] sm:$0xff]
  %2871 = vset.pattern.permute.xlu0 0
  %2872 = vperm.xlu0 %2871, %v2868
  %v2873 = vpop.permute.xlu0 %2872
  %2876 = vset.pattern.permute.xlu0 0
  %2877 = vperm.xlu0 %2876, %v2869
  %v2878 = vpop.permute.xlu0 %2877
  %v2882 = vunpack.c.l.b16 %v2866
  %v2883 = vunpack.c.h.b16 %v2866
  %v2884 = vunpack.c.l.b16 %v2867
  %v2885 = vunpack.c.h.b16 %v2867
  %v2886 = vpack.c.b16 %v2884, %v2882
  %v2887 = vpack.c.b16 %v2885, %v2883
  %2916 = vrot.lane.b32.xlu0 %v2839, 11
  %v2917 = vpop.permute.xlu0 %2916
  %2918 = vrot.lane.b32.xlu0 %v2840, 11
  %v2919 = vpop.permute.xlu0 %2918
  %2920 = vrot.lane.b32.xlu0 %v2841, 11
  %v2921 = vpop.permute.xlu0 %2920
  %2922 = vrot.lane.b32.xlu0 %v2842, 11
  %v2923 = vpop.permute.xlu0 %2922
  %2924 = vrot.lane.b32.xlu0 %v2843, 11
  %v2925 = vpop.permute.xlu0 %2924
  %2926 = vrot.lane.b32.xlu0 %v2844, 11
  %v2927 = vpop.permute.xlu0 %2926
  %2928 = vrot.lane.b32.xlu0 %v2845, 11
  %v2929 = vpop.permute.xlu0 %2928
  %2930 = vrot.lane.b32.xlu0 %v2846, 11
  %v2931 = vpop.permute.xlu0 %2930
  %2932 = vrot.lane.b32.xlu0 %v2847, 11
  %v2933 = vpop.permute.xlu0 %2932
  %2934 = vrot.lane.b32.xlu0 %v2848, 11
  %v2935 = vpop.permute.xlu0 %2934
  %2936 = vrot.lane.b32.xlu0 %v2849, 11
  %v2937 = vpop.permute.xlu0 %2936
  %2938 = vrot.lane.b32.xlu0 %v2850, 11
  %v2939 = vpop.permute.xlu0 %2938
  %2940 = vrot.lane.b32.xlu0 %v2851, 11
  %v2941 = vpop.permute.xlu0 %2940
  %2942 = vrot.lane.b32.xlu0 %v2852, 11
  %v2943 = vpop.permute.xlu0 %2942
  %2944 = vrot.lane.b32.xlu0 %v2853, 11
  %v2945 = vpop.permute.xlu0 %2944
  %2946 = vrot.lane.b32.xlu0 %v2854, 11
  %v2947 = vpop.permute.xlu0 %2946
  %2948 = vrot.lane.b32.xlu0 %v2855, 11
  %v2949 = vpop.permute.xlu0 %2948
  %2950 = vrot.lane.b32.xlu0 %v2856, 11
  %v2951 = vpop.permute.xlu0 %2950
  %2952 = vrot.lane.b32.xlu0 %v2857, 11
  %v2953 = vpop.permute.xlu0 %2952
  %2954 = vrot.lane.b32.xlu0 %v2858, 11
  %v2955 = vpop.permute.xlu0 %2954
  %2956 = vrot.lane.b32.xlu0 %v2859, 11
  %v2957 = vpop.permute.xlu0 %2956
  %2958 = vrot.lane.b32.xlu0 %v2860, 11
  %v2959 = vpop.permute.xlu0 %2958
  %2960 = vrot.lane.b32.xlu0 %v2861, 11
  %v2961 = vpop.permute.xlu0 %2960
  %2962 = vrot.lane.b32.xlu0 %v2862, 11
  %v2963 = vpop.permute.xlu0 %2962
  %2964 = vrot.lane.b32.xlu0 %v2863, 11
  %v2965 = vpop.permute.xlu0 %2964
  %2966 = vrot.lane.b32.xlu0 %v2864, 11
  %v2967 = vpop.permute.xlu0 %2966
  %2968 = vrot.lane.b32.xlu0 %v2865, 11
  %v2969 = vpop.permute.xlu0 %2968
  %v2970 = vsel %vm2198, %v2917, %v2919
  %v2971 = vsel %vm2198, %v2919, %v2921
  %v2972 = vsel %vm2198, %v2923, %v2925
  %v2973 = vsel %vm2198, %v2925, %v2927
  %v2974 = vsel %vm2198, %v2929, %v2931
  %v2975 = vsel %vm2198, %v2931, %v2933
  %v2976 = vsel %vm2198, %v2935, %v2937
  %v2977 = vsel %vm2198, %v2937, %v2939
  %v2978 = vsel %vm2198, %v2941, %v2943
  %v2979 = vsel %vm2198, %v2943, %v2945
  %v2980 = vsel %vm2198, %v2947, %v2949
  %v2981 = vsel %vm2198, %v2949, %v2951
  %v2982 = vsel %vm2198, %v2953, %v2955
  %v2983 = vsel %vm2198, %v2955, %v2957
  %v2984 = vsel %vm2198, %v2959, %v2961
  %v2985 = vsel %vm2198, %v2961, %v2963
  %v2986 = vsel %vm2198, %v2965, %v2967
  %v2987 = vsel %vm2198, %v2967, %v2969
  %v3007 = vsel %vm2235, %v2887, 0
  %3009 = vmatprep.subr.bf16.mxu0 %v2971
  %3010 = vmatpush1.bf16.msra.mxu0 %v2970
  %3011 = vmatprep.subr.bf16.mxu0 %v2973
  %3012 = vmatpush1.bf16.msra.mxu0 %v2972
  %3013 = vmatprep.subr.bf16.mxu0 %v2975
  %3014 = vmatpush1.bf16.msra.mxu0 %v2974
  %3015 = vmatprep.subr.bf16.mxu0 %v2977
  %3016 = vmatpush1.bf16.msra.mxu0 %v2976
  %3017 = vmatprep.subr.bf16.mxu0 %v2979
  %3018 = vmatpush1.bf16.msra.mxu0 %v2978
  %3019 = vmatprep.subr.bf16.mxu0 %v2981
  %3020 = vmatpush1.bf16.msra.mxu0 %v2980
  %3021 = vmatprep.subr.bf16.mxu0 %v2983
  %3022 = vmatpush1.bf16.msra.mxu0 %v2982
  %3023 = vmatprep.subr.bf16.mxu0 %v2985
  %3024 = vmatpush1.bf16.msra.mxu0 %v2984
  %3025 = vmatprep.subr.bf16.mxu0 %v2987
  %3026 = vmatpush1.bf16.msra.mxu0 %v2986
  %3027 = vmatprep.subr.bf16.mxu0 0
  %3028 = vmatpush1.bf16.msra.mxu0 0
  %3029 = vmatprep.subr.bf16.mxu0 0
  %3030 = vmatpush1.bf16.msra.mxu0 0
  %3031 = vmatprep.subr.bf16.mxu0 0
  %3032 = vmatpush1.bf16.msra.mxu0 0
  %3033 = vmatprep.subr.bf16.mxu0 0
  %3034 = vmatpush1.bf16.msra.mxu0 0
  %3035 = vmatprep.subr.bf16.mxu0 0
  %3036 = vmatpush1.bf16.msra.mxu0 0
  %3037 = vmatprep.subr.bf16.mxu0 0
  %3038 = vmatpush1.bf16.msra.mxu0 0
  %3039 = vmatprep.subr.bf16.mxu0 0
  %3040 = vmatpush1.bf16.msra.mxu0 0
  %3041 = vmatprep.mubr.bf16.mxu0 %v3007
  %3042 = vmatmul.mubr.bf16.gmra.mrb[0].mxu0 %v2886
  %v3043 = vpop.f32.mrb[0].mxu0
  %v3044 = vadd.f32 %v2873, %v3043
  %v3045 = vpop.f32.mrb[0].mxu0
  %v3046 = vadd.f32 %v2873, %v3045
  %v3047 = vpop.f32.mrb[0].mxu0
  %v3048 = vadd.f32 %v2878, %v3047
  %v3049 = vpop.f32.mrb[0].mxu0
  %v3050 = vadd.f32 %v2878, %v3049
  %3051 = vdwg.mxu0
  %v3052 = vmax.f32 %v3044, 0.0
  %v3053 = vmax.f32 %v3046, 0.0
  %v3054 = vmax.f32 %v3048, 0.0
  %v3055 = vmax.f32 %v3050, 0.0
  %v3056 = vmul.f32 %v1889, %v3052
  %v3057 = vmul.f32 %v1893, %v3053
  %v3058 = vmul.f32 %v1889, %v3054
  %v3059 = vmul.f32 %v1893, %v3055
  %3060 = vst [vmem:[%s14 + $0x8] sm:$0xff] %v3056
  %3061 = vst.msk [vmem:[%s14 + $0x10] sm:$0xff] %vm446, %v3057
  %3062 = vst [vmem:[%s14 + $0x28] sm:$0xff] %v3058
  %3063 = vst.msk [vmem:[%s14 + $0x30] sm:$0xff] %vm446, %v3059
  %v3064 = vld [vmem:[%s14] sm:$0xff]
  %v3065 = vld [vmem:[%s14 + $0x8] sm:$0xff]
  %v3066 = vld [vmem:[%s14 + $0x10] sm:$0xff]
  %v3067 = vld [vmem:[%s14 + $0x20] sm:$0xff]
  %v3068 = vld [vmem:[%s14 + $0x28] sm:$0xff]
  %v3069 = vld [vmem:[%s14 + $0x30] sm:$0xff]
  %3076 = vrot.lane.b32.xlu0 %v3064, 127
  %v3077 = vpop.permute.xlu0 %3076
  %3078 = vrot.lane.b32.xlu0 %v3065, 127
  %v3079 = vpop.permute.xlu0 %3078
  %3080 = vrot.lane.b32.xlu0 %v3066, 127
  %v3081 = vpop.permute.xlu0 %3080
  %3082 = vrot.lane.b32.xlu0 %v3067, 127
  %v3083 = vpop.permute.xlu0 %3082
  %3084 = vrot.lane.b32.xlu0 %v3068, 127
  %v3085 = vpop.permute.xlu0 %3084
  %3086 = vrot.lane.b32.xlu0 %v3069, 127
  %v3087 = vpop.permute.xlu0 %3086
  %v3088 = vsel %vm73, %v3077, %v3079
  %v3089 = vsel %vm73, %v3079, %v3081
  %v3090 = vsel %vm73, %v3083, %v3085
  %v3091 = vsel %vm73, %v3085, %v3087
  %3098 = vrot.lane.b32.xlu0 %v3064, 126
  %v3099 = vpop.permute.xlu0 %3098
  %3100 = vrot.lane.b32.xlu0 %v3065, 126
  %v3101 = vpop.permute.xlu0 %3100
  %3102 = vrot.lane.b32.xlu0 %v3066, 126
  %v3103 = vpop.permute.xlu0 %3102
  %3104 = vrot.lane.b32.xlu0 %v3067, 126
  %v3105 = vpop.permute.xlu0 %3104
  %3106 = vrot.lane.b32.xlu0 %v3068, 126
  %v3107 = vpop.permute.xlu0 %3106
  %3108 = vrot.lane.b32.xlu0 %v3069, 126
  %v3109 = vpop.permute.xlu0 %3108
  %v3110 = vsel %vm97, %v3099, %v3101
  %v3111 = vsel %vm97, %v3101, %v3103
  %v3112 = vsel %vm97, %v3105, %v3107
  %v3113 = vsel %vm97, %v3107, %v3109
  %3120 = vrot.lane.b32.xlu0 %v3064, 118
  %v3121 = vpop.permute.xlu0 %3120
  %3122 = vrot.lane.b32.xlu0 %v3065, 118
  %v3123 = vpop.permute.xlu0 %3122
  %3124 = vrot.lane.b32.xlu0 %v3066, 118
  %v3125 = vpop.permute.xlu0 %3124
  %3126 = vrot.lane.b32.xlu0 %v3067, 118
  %v3127 = vpop.permute.xlu0 %3126
  %3128 = vrot.lane.b32.xlu0 %v3068, 118
  %v3129 = vpop.permute.xlu0 %3128
  %3130 = vrot.lane.b32.xlu0 %v3069, 118
  %v3131 = vpop.permute.xlu0 %3130
  %v3132 = vsel %vm1972, %v3121, %v3123
  %v3133 = vsel %vm1972, %v3123, %v3125
  %v3134 = vsel %vm1972, %v3127, %v3129
  %v3135 = vsel %vm1972, %v3129, %v3131
  %3142 = vrot.lane.b32.xlu0 %v3065, 117
  %v3143 = vpop.permute.xlu0 %3142
  %3144 = vrot.lane.b32.xlu0 %v3066, 117
  %v3145 = vpop.permute.xlu0 %3144
  %3146 = vrot.lane.b32.xlu0 %v3068, 117
  %v3147 = vpop.permute.xlu0 %3146
  %3148 = vrot.lane.b32.xlu0 %v3069, 117
  %v3149 = vpop.permute.xlu0 %3148
  %v3150 = vsel %vm1991, %v3143, %v3145
  %v3151 = vsel %vm1991, %v3147, %v3149
  %3158 = vrot.lane.b32.xlu0 %v3065, 116
  %v3159 = vpop.permute.xlu0 %3158
  %3160 = vrot.lane.b32.xlu0 %v3066, 116
  %v3161 = vpop.permute.xlu0 %3160
  %3162 = vrot.lane.b32.xlu0 %v3068, 116
  %v3163 = vpop.permute.xlu0 %3162
  %3164 = vrot.lane.b32.xlu0 %v3069, 116
  %v3165 = vpop.permute.xlu0 %3164
  %v3166 = vsel %vm2008, %v3159, %v3161
  %v3167 = vsel %vm2008, %v3163, %v3165
  %3174 = vrot.lane.b32.xlu0 %v3065, 108
  %v3175 = vpop.permute.xlu0 %3174
  %3176 = vrot.lane.b32.xlu0 %v3066, 108
  %v3177 = vpop.permute.xlu0 %3176
  %3178 = vrot.lane.b32.xlu0 %v3068, 108
  %v3179 = vpop.permute.xlu0 %3178
  %3180 = vrot.lane.b32.xlu0 %v3069, 108
  %v3181 = vpop.permute.xlu0 %3180
  %v3182 = vsel %vm173, %v3175, %v3177
  %v3183 = vsel %vm173, %v3179, %v3181
  %3190 = vrot.lane.b32.xlu0 %v3065, 107
  %v3191 = vpop.permute.xlu0 %3190
  %3192 = vrot.lane.b32.xlu0 %v3066, 107
  %v3193 = vpop.permute.xlu0 %3192
  %3194 = vrot.lane.b32.xlu0 %v3068, 107
  %v3195 = vpop.permute.xlu0 %3194
  %3196 = vrot.lane.b32.xlu0 %v3069, 107
  %v3197 = vpop.permute.xlu0 %3196
  %v3198 = vsel %vm2041, %v3191, %v3193
  %v3199 = vsel %vm2041, %v3195, %v3197
  %3206 = vrot.lane.b32.xlu0 %v3065, 106
  %v3207 = vpop.permute.xlu0 %3206
  %3208 = vrot.lane.b32.xlu0 %v3066, 106
  %v3209 = vpop.permute.xlu0 %3208
  %3210 = vrot.lane.b32.xlu0 %v3068, 106
  %v3211 = vpop.permute.xlu0 %3210
  %3212 = vrot.lane.b32.xlu0 %v3069, 106
  %v3213 = vpop.permute.xlu0 %3212
  %v3214 = vsel %vm2058, %v3207, %v3209
  %v3215 = vsel %vm2058, %v3211, %v3213
  %v3222 = vpack.c.bf16 %v3067, %v3064
  %v3223 = vpack.c.bf16 %v3068, %v3065
  %v3224 = vpack.c.bf16 %v3069, %v3066
  %v3225 = vpack.c.bf16 %v3090, %v3088
  %v3226 = vpack.c.bf16 %v3091, %v3089
  %v3227 = vpack.c.bf16 %v3087, %v3081
  %v3228 = vpack.c.bf16 %v3112, %v3110
  %v3229 = vpack.c.bf16 %v3113, %v3111
  %v3230 = vpack.c.bf16 %v3109, %v3103
  %v3231 = vpack.c.bf16 %v3134, %v3132
  %v3232 = vpack.c.bf16 %v3135, %v3133
  %v3233 = vpack.c.bf16 %v3131, %v3125
  %v3234 = vpack.c.bf16 %v3147, %v3143
  %v3235 = vpack.c.bf16 %v3151, %v3150
  %v3236 = vpack.c.bf16 %v3149, %v3145
  %v3237 = vpack.c.bf16 %v3163, %v3159
  %v3238 = vpack.c.bf16 %v3167, %v3166
  %v3239 = vpack.c.bf16 %v3165, %v3161
  %v3240 = vpack.c.bf16 %v3179, %v3175
  %v3241 = vpack.c.bf16 %v3183, %v3182
  %v3242 = vpack.c.bf16 %v3181, %v3177
  %v3243 = vpack.c.bf16 %v3195, %v3191
  %v3244 = vpack.c.bf16 %v3199, %v3198
  %v3245 = vpack.c.bf16 %v3197, %v3193
  %v3246 = vpack.c.bf16 %v3211, %v3207
  %v3247 = vpack.c.bf16 %v3215, %v3214
  %v3248 = vpack.c.bf16 %v3213, %v3209
  %v3249 = vld [vmem:[%s11] sm:$0xff]
  %v3250 = vld [vmem:[%s11 + $0x8] sm:$0xff]
  %v3251 = vld [vmem:[%s12] sm:$0xff]
  %v3252 = vld [vmem:[%s12 + $0x8] sm:$0xff]
  %3254 = vset.pattern.permute.xlu0 0
  %3255 = vperm.xlu0 %3254, %v3251
  %v3256 = vpop.permute.xlu0 %3255
  %3259 = vset.pattern.permute.xlu0 0
  %3260 = vperm.xlu0 %3259, %v3252
  %v3261 = vpop.permute.xlu0 %3260
  %v3265 = vunpack.c.l.b16 %v3249
  %v3266 = vunpack.c.h.b16 %v3249
  %v3267 = vunpack.c.l.b16 %v3250
  %v3268 = vunpack.c.h.b16 %v3250
  %v3269 = vpack.c.b16 %v3267, %v3265
  %v3270 = vpack.c.b16 %v3268, %v3266
  %3299 = vrot.lane.b32.xlu0 %v3222, 11
  %v3300 = vpop.permute.xlu0 %3299
  %3301 = vrot.lane.b32.xlu0 %v3223, 11
  %v3302 = vpop.permute.xlu0 %3301
  %3303 = vrot.lane.b32.xlu0 %v3224, 11
  %v3304 = vpop.permute.xlu0 %3303
  %3305 = vrot.lane.b32.xlu0 %v3225, 11
  %v3306 = vpop.permute.xlu0 %3305
  %3307 = vrot.lane.b32.xlu0 %v3226, 11
  %v3308 = vpop.permute.xlu0 %3307
  %3309 = vrot.lane.b32.xlu0 %v3227, 11
  %v3310 = vpop.permute.xlu0 %3309
  %3311 = vrot.lane.b32.xlu0 %v3228, 11
  %v3312 = vpop.permute.xlu0 %3311
  %3313 = vrot.lane.b32.xlu0 %v3229, 11
  %v3314 = vpop.permute.xlu0 %3313
  %3315 = vrot.lane.b32.xlu0 %v3230, 11
  %v3316 = vpop.permute.xlu0 %3315
  %3317 = vrot.lane.b32.xlu0 %v3231, 11
  %v3318 = vpop.permute.xlu0 %3317
  %3319 = vrot.lane.b32.xlu0 %v3232, 11
  %v3320 = vpop.permute.xlu0 %3319
  %3321 = vrot.lane.b32.xlu0 %v3233, 11
  %v3322 = vpop.permute.xlu0 %3321
  %3323 = vrot.lane.b32.xlu0 %v3234, 11
  %v3324 = vpop.permute.xlu0 %3323
  %3325 = vrot.lane.b32.xlu0 %v3235, 11
  %v3326 = vpop.permute.xlu0 %3325
  %3327 = vrot.lane.b32.xlu0 %v3236, 11
  %v3328 = vpop.permute.xlu0 %3327
  %3329 = vrot.lane.b32.xlu0 %v3237, 11
  %v3330 = vpop.permute.xlu0 %3329
  %3331 = vrot.lane.b32.xlu0 %v3238, 11
  %v3332 = vpop.permute.xlu0 %3331
  %3333 = vrot.lane.b32.xlu0 %v3239, 11
  %v3334 = vpop.permute.xlu0 %3333
  %3335 = vrot.lane.b32.xlu0 %v3240, 11
  %v3336 = vpop.permute.xlu0 %3335
  %3337 = vrot.lane.b32.xlu0 %v3241, 11
  %v3338 = vpop.permute.xlu0 %3337
  %3339 = vrot.lane.b32.xlu0 %v3242, 11
  %v3340 = vpop.permute.xlu0 %3339
  %3341 = vrot.lane.b32.xlu0 %v3243, 11
  %v3342 = vpop.permute.xlu0 %3341
  %3343 = vrot.lane.b32.xlu0 %v3244, 11
  %v3344 = vpop.permute.xlu0 %3343
  %3345 = vrot.lane.b32.xlu0 %v3245, 11
  %v3346 = vpop.permute.xlu0 %3345
  %3347 = vrot.lane.b32.xlu0 %v3246, 11
  %v3348 = vpop.permute.xlu0 %3347
  %3349 = vrot.lane.b32.xlu0 %v3247, 11
  %v3350 = vpop.permute.xlu0 %3349
  %3351 = vrot.lane.b32.xlu0 %v3248, 11
  %v3352 = vpop.permute.xlu0 %3351
  %v3353 = vsel %vm2198, %v3300, %v3302
  %v3354 = vsel %vm2198, %v3302, %v3304
  %v3355 = vsel %vm2198, %v3306, %v3308
  %v3356 = vsel %vm2198, %v3308, %v3310
  %v3357 = vsel %vm2198, %v3312, %v3314
  %v3358 = vsel %vm2198, %v3314, %v3316
  %v3359 = vsel %vm2198, %v3318, %v3320
  %v3360 = vsel %vm2198, %v3320, %v3322
  %v3361 = vsel %vm2198, %v3324, %v3326
  %v3362 = vsel %vm2198, %v3326, %v3328
  %v3363 = vsel %vm2198, %v3330, %v3332
  %v3364 = vsel %vm2198, %v3332, %v3334
  %v3365 = vsel %vm2198, %v3336, %v3338
  %v3366 = vsel %vm2198, %v3338, %v3340
  %v3367 = vsel %vm2198, %v3342, %v3344
  %v3368 = vsel %vm2198, %v3344, %v3346
  %v3369 = vsel %vm2198, %v3348, %v3350
  %v3370 = vsel %vm2198, %v3350, %v3352
  %v3390 = vsel %vm2235, %v3270, 0
  %3392 = vmatprep.subr.bf16.mxu0 %v3354
  %3393 = vmatpush1.bf16.msra.mxu0 %v3353
  %3394 = vmatprep.subr.bf16.mxu0 %v3356
  %3395 = vmatpush1.bf16.msra.mxu0 %v3355
  %3396 = vmatprep.subr.bf16.mxu0 %v3358
  %3397 = vmatpush1.bf16.msra.mxu0 %v3357
  %3398 = vmatprep.subr.bf16.mxu0 %v3360
  %3399 = vmatpush1.bf16.msra.mxu0 %v3359
  %3400 = vmatprep.subr.bf16.mxu0 %v3362
  %3401 = vmatpush1.bf16.msra.mxu0 %v3361
  %3402 = vmatprep.subr.bf16.mxu0 %v3364
  %3403 = vmatpush1.bf16.msra.mxu0 %v3363
  %3404 = vmatprep.subr.bf16.mxu0 %v3366
  %3405 = vmatpush1.bf16.msra.mxu0 %v3365
  %3406 = vmatprep.subr.bf16.mxu0 %v3368
  %3407 = vmatpush1.bf16.msra.mxu0 %v3367
  %3408 = vmatprep.subr.bf16.mxu0 %v3370
  %3409 = vmatpush1.bf16.msra.mxu0 %v3369
  %3410 = vmatprep.subr.bf16.mxu0 0
  %3411 = vmatpush1.bf16.msra.mxu0 0
  %3412 = vmatprep.subr.bf16.mxu0 0
  %3413 = vmatpush1.bf16.msra.mxu0 0
  %3414 = vmatprep.subr.bf16.mxu0 0
  %3415 = vmatpush1.bf16.msra.mxu0 0
  %3416 = vmatprep.subr.bf16.mxu0 0
  %3417 = vmatpush1.bf16.msra.mxu0 0
  %3418 = vmatprep.subr.bf16.mxu0 0
  %3419 = vmatpush1.bf16.msra.mxu0 0
  %3420 = vmatprep.subr.bf16.mxu0 0
  %3421 = vmatpush1.bf16.msra.mxu0 0
  %3422 = vmatprep.subr.bf16.mxu0 0
  %3423 = vmatpush1.bf16.msra.mxu0 0
  %3424 = vmatprep.mubr.bf16.mxu0 %v3390
  %3425 = vmatmul.mubr.bf16.gmra.mrb[0].mxu0 %v3269
  %v3426 = vpop.f32.mrb[0].mxu0
  %v3427 = vadd.f32 %v3256, %v3426
  %v3428 = vpop.f32.mrb[0].mxu0
  %v3429 = vadd.f32 %v3256, %v3428
  %v3430 = vpop.f32.mrb[0].mxu0
  %v3431 = vadd.f32 %v3261, %v3430
  %v3432 = vpop.f32.mrb[0].mxu0
  %v3433 = vadd.f32 %v3261, %v3432
  %3434 = vdwg.mxu0
  %v3435 = vadd.f32 %v3427, %v2665
  %v3436 = vadd.f32 %v3429, %v2666
  %v3437 = vadd.f32 %v3431, %v2667
  %v3438 = vadd.f32 %v3433, %v2668
  %v3439 = vmul.f32 %v1889, %v3435
  %v3440 = vmul.f32 %v1893, %v3436
  %v3441 = vmul.f32 %v1889, %v3437
  %v3442 = vmul.f32 %v1893, %v3438
  %3443 = vst [vmem:[%s14 + $0x8] sm:$0xff] %v3439
  %3444 = vst.msk [vmem:[%s14 + $0x10] sm:$0xff] %vm446, %v3440
  %3445 = vst [vmem:[%s14 + $0x28] sm:$0xff] %v3441
  %3446 = vst.msk [vmem:[%s14 + $0x30] sm:$0xff] %vm446, %v3442
  // Predicated region
  $region58: #{impala_policy_forward.4} parent=0 // pred_check
    _
  $region59: #{impala_policy_forward.4} parent=0 // pred_check_branch
    %3448 = sbr.rel (0) target = $region61
  $region60: #{impala_policy_forward.4} parent=0 // pred_region
    _
  $region61: #{impala_policy_forward.4} parent=0 // pred_fallthru
    _
  // Predicated region
  $region62: #{impala_policy_forward.4} parent=0 // pred_check
    _
  $region63: #{impala_policy_forward.4} parent=0 // pred_check_branch
    %3450 = sbr.rel (0) target = $region65
  $region64: #{impala_policy_forward.4} parent=0 // pred_region
    _
  $region65: #{impala_policy_forward.4} parent=0 // pred_fallthru
    _

</llo_original>
